<compile_context>
chip_gen: v7x
topology: tpu7x:2x2x1
jax: 0.10.0
libtpu: 0.0.40
codegen_flags: <defaults>
</compile_context>

<pallas_src>
import functools

import jax
import jax.numpy as jnp
from jax import lax
from jax.experimental import pallas as pl
from jax.experimental.pallas import tpu as pltpu


EXPANSION = 4                       # Bottleneck.expansion
_VMEM_LIMIT = 48 * 1024 * 1024      # <= 64 MiB physical VMEM on v7x


def _round_up(x, m):
    return (x + m - 1) // m * m


# ----------------------------- fused kernel -------------------------------- #

def _bottleneck_kernel(*refs, taps, m2, res_off, has_sc):
    """Fused bottleneck for one batch element (one grid step).

    Activations live in a flat (rows, C) layout over a spatially padded grid
    (stride-1) or a 4-phase stacked padded grid (stride-2), with row width a
    multiple of 8.  Every 3x3 tap and the shortcut are then contiguous
    row-offset slices of VMEM buffers (no gather-like relayouts).
    """
    if has_sc:
        (mask_ref, x_ref, w1_ref, b1_ref, w2_ref, b2_ref, w3_ref, b3_ref,
         ws_ref, bs_ref, o_ref, y1_ref, y2_ref, acc_ref) = refs
    else:
        (mask_ref, x_ref, w1_ref, b1_ref, w2_ref, b2_ref, w3_ref, b3_ref,
         o_ref, y1_ref, y2_ref, acc_ref) = refs
        ws_ref = bs_ref = None

    # conv1 (1x1) + BN1 + ReLU over the padded grid.  The mask zeroes the pad
    # positions so conv2 sees the same zero padding PyTorch applies.
    x = x_ref[0]                                                    # (Mx, Cin)
    y1 = jnp.dot(x, w1_ref[...], preferred_element_type=jnp.float32)
    y1 = jnp.maximum(y1 + b1_ref[...], 0.0) * mask_ref[...]
    y1_ref[...] = y1.astype(jnp.bfloat16)

    # conv2 (3x3, stride folded into the layout) + BN2 + ReLU:
    # 9 contiguous-slice matmuls accumulated in f32; tap 0 writes directly.
    for t, off in enumerate(taps):
        part = jnp.dot(y1_ref[off:off + m2, :], w2_ref[t],
                       preferred_element_type=jnp.float32)
        if t == 0:
            acc_ref[...] = part
        else:
            acc_ref[...] += part
    y2_ref[...] = jnp.maximum(acc_ref[...] + b2_ref[...],
                              0.0).astype(jnp.bfloat16)

    # conv3 (1x1) + BN3, shortcut (projection or identity), add, final ReLU.
    out = jnp.dot(y2_ref[...], w3_ref[...], preferred_element_type=jnp.float32)
    out = out + b3_ref[...]
    xs = x_ref[0, res_off:res_off + m2, :]
    if has_sc:
        res = jnp.dot(xs, ws_ref[...], preferred_element_type=jnp.float32)
        res = res + bs_ref[...]
    else:
        res = xs.astype(jnp.float32)
    o_ref[0] = jnp.maximum(out + res, 0.0).astype(o_ref.dtype)


# ------------------------------- wrappers ----------------------------------- #

def _prep_grid(x, stride):
    """Pad + (stride-2) phase-stack an NHWC tensor and flatten the spatial grid
    so every 3x3 tap / the shortcut become contiguous row slices.
    Returns (flat (N, Mx, C), geometry dict)."""
    N, H, W, C = x.shape
    if stride == 1:
        Ho, Wo = H, W
        Wrow = _round_up(W + 2, 8)
        xp = jnp.pad(x, ((0, 0), (1, 1), (1, Wrow - W - 1), (0, 0)))
        flat = xp.reshape(N, (H + 2) * Wrow, C)
        taps = tuple(dh * Wrow + dw for dh in range(3) for dw in range(3))
        res_off = Wrow + 1
    elif stride == 2:
        Ho, Wo = (H - 1) // 2 + 1, (W - 1) // 2 + 1
        Hq, Wq = (H + 3) // 2, (W + 3) // 2
        Wrow = _round_up(Wq, 8)
        xp = jnp.pad(x, ((0, 0), (1, 1), (1, 1), (0, 0)))
        phases = []
        for a in range(2):
            for b in range(2):
                p = xp[:, a::2, b::2, :]
                p = jnp.pad(p, ((0, 0), (0, Hq - p.shape[1]),
                                (0, Wrow - p.shape[2]), (0, 0)))
                phases.append(p)
        flat = jnp.concatenate(phases, axis=1).reshape(N, 4 * Hq * Wrow, C)
        taps = tuple(((2 * (dh % 2) + (dw % 2)) * Hq + dh // 2) * Wrow + dw // 2
                     for dh in range(3) for dw in range(3))
        res_off = 3 * Hq * Wrow
    else:
        raise NotImplementedError("stride must be 1 or 2")
    m2 = Ho * Wrow
    need = max(max(off + m2 for off in taps), res_off + m2, flat.shape[1])
    Mx = _round_up(need, 8)
    if Mx > flat.shape[1]:
        flat = jnp.pad(flat, ((0, 0), (0, Mx - flat.shape[1]), (0, 0)))
    return flat, dict(taps=taps, m2=m2, res_off=res_off,
                      Wrow=Wrow, Ho=Ho, Wo=Wo, Mx=Mx)


def prepare_params(params, in_planes, planes):
    """Fold BN into conv weights, pad channels to multiples of 128, cast to
    bf16 -- done once (inference-mode constants), not on every forward call."""
    cin_p = _round_up(in_planes, 128)
    c1_p = _round_up(planes, 128)
    c3 = EXPANSION * planes
    c3_p = _round_up(c3, 128)

    def pad2(w, r, c):
        return jnp.pad(w, ((0, r - w.shape[0]), (0, c - w.shape[1])))

    def pbias(b, c):
        return jnp.pad(b.astype(jnp.float32), (0, c - b.shape[0]))[None, :]

    p = {}
    p['w1'] = pad2(params['w1'] * params['s1'][None, :],
                   cin_p, c1_p).astype(jnp.bfloat16)
    p['b1'] = pbias(params['b1'], c1_p)
    w2 = (params['w2'] * params['s2'][None, None, None, :]).reshape(
        9, planes, planes)
    p['w2'] = jnp.pad(w2, ((0, 0), (0, c1_p - planes),
                           (0, c1_p - planes))).astype(jnp.bfloat16)
    p['b2'] = pbias(params['b2'], c1_p)
    p['w3'] = pad2(params['w3'] * params['s3'][None, :],
                   c1_p, c3_p).astype(jnp.bfloat16)
    p['b3'] = pbias(params['b3'], c3_p)
    if 'ws' in params:
        p['ws'] = pad2(params['ws'] * params['ss'][None, :],
                       cin_p, c3_p).astype(jnp.bfloat16)
        p['bs'] = pbias(params['bs'], c3_p)
    return p


def bottleneck_forward(prepped, x_nchw, *, stride, in_planes, planes):
    """Matches torch Bottleneck.forward (inference-mode BN), NCHW in/out."""
    cin_p = prepped['w1'].shape[0]
    c1_p = prepped['w1'].shape[1]
    c2_p = prepped['w2'].shape[2]
    c3 = EXPANSION * planes
    c3_p = prepped['w3'].shape[1]
    has_sc = 'ws' in prepped
    if not has_sc:
        assert cin_p == c3_p and stride == 1, "identity shortcut shape mismatch"

    N, C, H, W = x_nchw.shape
    assert C == in_planes, (C, in_planes)
    x = jnp.transpose(x_nchw, (0, 2, 3, 1)).astype(jnp.bfloat16)    # NCHW->NHWC
    x = jnp.pad(x, ((0, 0), (0, 0), (0, 0), (0, cin_p - C)))        # lane-dense

    x_flat, g = _prep_grid(x, stride)
    mask, _ = _prep_grid(jnp.ones((1, H, W, 1), jnp.float32), stride)
    mask = mask[0]                                                  # (Mx, 1)

    taps, m2, res_off, Mx = g['taps'], g['m2'], g['res_off'], g['Mx']

    def fixed(shape):
        return pl.BlockSpec(shape, lambda b, _s=len(shape): (0,) * _s)

    in_specs = [
        fixed((Mx, 1)),                                             # mask
        pl.BlockSpec((1, Mx, cin_p), lambda b: (b, 0, 0)),          # x
        fixed(prepped['w1'].shape), fixed(prepped['b1'].shape),
        fixed(prepped['w2'].shape), fixed(prepped['b2'].shape),
        fixed(prepped['w3'].shape), fixed(prepped['b3'].shape),
    ]
    operands = [mask, x_flat, prepped['w1'], prepped['b1'],
                prepped['w2'], prepped['b2'], prepped['w3'], prepped['b3']]
    if has_sc:
        in_specs += [fixed(prepped['ws'].shape), fixed(prepped['bs'].shape)]
        operands += [prepped['ws'], prepped['bs']]

    kernel = functools.partial(_bottleneck_kernel, taps=taps, m2=m2,
                               res_off=res_off, has_sc=has_sc)
    out = pl.pallas_call(
        kernel,
        out_shape=jax.ShapeDtypeStruct((N, m2, c3_p), jnp.bfloat16),
        grid=(N,),
        in_specs=in_specs,
        out_specs=pl.BlockSpec((1, m2, c3_p), lambda b: (b, 0, 0)),
        scratch_shapes=[pltpu.VMEM((Mx, c1_p), jnp.bfloat16),       # conv1 out
                        pltpu.VMEM((m2, c2_p), jnp.bfloat16),       # conv2 out
                        pltpu.VMEM((m2, c2_p), jnp.float32)],       # conv2 acc
        compiler_params=pltpu.CompilerParams(
            dimension_semantics=("parallel",),
            vmem_limit_bytes=_VMEM_LIMIT),
    )(*operands)

    out = out.reshape(N, g['Ho'], g['Wrow'], c3_p)[:, :, :g['Wo'], :c3]
    out = out.astype(jnp.float32)
    return jnp.transpose(out, (0, 3, 1, 2))                         # NHWC->NCHW


# ------------------------------- reference ---------------------------------- #

def bottleneck_ref(params, x_nchw, *, stride):
    """Pure-JAX f32 reference (same math as the PyTorch module, eval-mode BN)."""
    def bn(y, s, b):
        return y * s + b
    x = jnp.transpose(x_nchw, (0, 2, 3, 1)).astype(jnp.float32)
    out = jax.nn.relu(bn(jnp.matmul(x, params['w1']), params['s1'], params['b1']))
    out = lax.conv_general_dilated(
        out, params['w2'], window_strides=(stride, stride),
        padding=((1, 1), (1, 1)), dimension_numbers=('NHWC', 'HWIO', 'NHWC'))
    out = jax.nn.relu(bn(out, params['s2'], params['b2']))
    out = bn(jnp.matmul(out, params['w3']), params['s3'], params['b3'])
    if 'ws' in params:
        xs = x[:, ::stride, ::stride, :]
        sc = bn(jnp.matmul(xs, params['ws']), params['ss'], params['bs'])
    else:
        sc = x
    out = jax.nn.relu(out + sc)
    return jnp.transpose(out, (0, 3, 1, 2))


# ------------------------------ parameters ---------------------------------- #

def make_bottleneck_params(in_planes, planes, stride, seed=0):
    key = jax.random.PRNGKey(seed)
    keys = jax.random.split(key, 8)

    def conv_w(k, shape, fan_in):
        return jax.random.normal(k, shape, jnp.float32) / jnp.sqrt(float(fan_in))

    def bn(k, c, eps=1e-5):
        k1, k2, k3, k4 = jax.random.split(k, 4)
        gamma = 1.0 + 0.1 * jax.random.normal(k1, (c,), jnp.float32)
        beta = 0.1 * jax.random.normal(k2, (c,), jnp.float32)
        mean = 0.1 * jax.random.normal(k3, (c,), jnp.float32)
        var = jax.random.uniform(k4, (c,), jnp.float32, minval=0.5, maxval=1.5)
        scale = gamma / jnp.sqrt(var + eps)
        bias = beta - mean * scale
        return scale, bias

    p = {
        'w1': conv_w(keys[0], (in_planes, planes), in_planes),          # 1x1
        'w2': conv_w(keys[1], (3, 3, planes, planes), 9 * planes),      # 3x3 HWIO
        'w3': conv_w(keys[2], (planes, EXPANSION * planes), planes),    # 1x1
    }
    p['s1'], p['b1'] = bn(keys[3], planes)
    p['s2'], p['b2'] = bn(keys[4], planes)
    p['s3'], p['b3'] = bn(keys[5], EXPANSION * planes)
    if stride != 1 or in_planes != EXPANSION * planes:
        p['ws'] = conv_w(keys[6], (in_planes, EXPANSION * planes), in_planes)
        p['ss'], p['bs'] = bn(keys[7], EXPANSION * planes)
    return p


# --------------------------------- main -------------------------------------- #

if __name__ == "__main__":
    key = jax.random.PRNGKey(0)
    configs = [
        # (batch, in_planes, planes, hw, stride)
        (2, 64, 64, 16, 1),    # projection shortcut, stride 1
        (2, 64, 64, 16, 2),    # projection shortcut, stride 2
        (2, 256, 64, 8, 1),    # identity shortcut
    ]
    for idx, (batch, in_planes, planes, hw, stride) in enumerate(configs):
        kx, key = jax.random.split(key)
        x = jax.random.normal(kx, (batch, in_planes, hw, hw), jnp.float32)

        params = make_bottleneck_params(in_planes, planes, stride, seed=idx)
        prepped = prepare_params(params, in_planes, planes)   # folded once

        fwd = jax.jit(functools.partial(bottleneck_forward, stride=stride,
                                        in_planes=in_planes, planes=planes))
        out = fwd(prepped, x)
        jax.block_until_ready(out)

        ho = (hw - 1) // stride + 1
        assert out.shape == (batch, EXPANSION * planes, ho, ho), out.shape
        assert out.dtype == jnp.float32

        ref = bottleneck_ref(params, x, stride=stride)
        err = float(jnp.max(jnp.abs(out - ref)))
        assert err < 0.5, f"config {idx}: max abs err {err}"

    print("KERNEL_OK")
</pallas_src>

<mosaic_0001>
module attributes {stable_mosaic.version = 11 : i64} {
  func.func @_bottleneck_kernel(%arg0: i32, %arg1: memref<440x1xf32, #tpu.memory_space<vmem>>, %arg2: memref<1x440x128xbf16, #tpu.memory_space<vmem>>, %arg3: memref<128x128xbf16, #tpu.memory_space<vmem>>, %arg4: memref<1x128xf32, #tpu.memory_space<vmem>>, %arg5: memref<9x128x128xbf16, #tpu.memory_space<vmem>>, %arg6: memref<1x128xf32, #tpu.memory_space<vmem>>, %arg7: memref<128x256xbf16, #tpu.memory_space<vmem>>, %arg8: memref<1x256xf32, #tpu.memory_space<vmem>>, %arg9: memref<128x256xbf16, #tpu.memory_space<vmem>>, %arg10: memref<1x256xf32, #tpu.memory_space<vmem>>, %arg11: memref<1x384x256xbf16, #tpu.memory_space<vmem>>, %arg12: memref<440x128xbf16, #tpu.memory_space<vmem>>, %arg13: memref<384x128xbf16, #tpu.memory_space<vmem>>, %arg14: memref<384x128xf32, #tpu.memory_space<vmem>>) attributes {dimension_semantics = [#tpu.dimension_semantics<parallel>], iteration_bounds = array<i64: 2>, scalar_prefetch = 0 : i64, scratch_operands = 3 : i64, tpu.core_type = #tpu.core_type<tc>, window_params = [{pipeline_mode = #tpu.pipeline_mode<synchronous>, transform_indices = @transform_0, window_bounds = array<i64: 440, 1>}, {transform_indices = @transform_1, window_bounds = array<i64: 1, 440, 128>}, {pipeline_mode = #tpu.pipeline_mode<synchronous>, transform_indices = @transform_2, window_bounds = array<i64: 128, 128>}, {pipeline_mode = #tpu.pipeline_mode<synchronous>, transform_indices = @transform_3, window_bounds = array<i64: 1, 128>}, {pipeline_mode = #tpu.pipeline_mode<synchronous>, transform_indices = @transform_4, window_bounds = array<i64: 9, 128, 128>}, {pipeline_mode = #tpu.pipeline_mode<synchronous>, transform_indices = @transform_5, window_bounds = array<i64: 1, 128>}, {pipeline_mode = #tpu.pipeline_mode<synchronous>, transform_indices = @transform_6, window_bounds = array<i64: 128, 256>}, {pipeline_mode = #tpu.pipeline_mode<synchronous>, transform_indices = @transform_7, window_bounds = array<i64: 1, 256>}, {pipeline_mode = #tpu.pipeline_mode<synchronous>, transform_indices = @transform_8, window_bounds = array<i64: 128, 256>}, {pipeline_mode = #tpu.pipeline_mode<synchronous>, transform_indices = @transform_9, window_bounds = array<i64: 1, 256>}, {transform_indices = @transform_10, window_bounds = array<i64: 1, 384, 256>}]} {
    %c0 = arith.constant 0 : index
    %c0_0 = arith.constant 0 : index
    %c0_1 = arith.constant 0 : index
    %0 = vector.load %arg2[%c0, %c0_0, %c0_1] : memref<1x440x128xbf16, #tpu.memory_space<vmem>>, vector<1x440x128xbf16>
    %1 = vector.shape_cast %0 : vector<1x440x128xbf16> to vector<440x128xbf16>
    %c0_2 = arith.constant 0 : index
    %c0_3 = arith.constant 0 : index
    %2 = vector.load %arg3[%c0_2, %c0_3] : memref<128x128xbf16, #tpu.memory_space<vmem>>, vector<128x128xbf16>
    %cst = arith.constant dense<0.000000e+00> : vector<440x128xf32>
    %3 = tpu.matmul %1, %2, %cst {dimension_numbers = #tpu.dot_dimension_numbers<[1], [0], [0], [1], [0, 0, 1, 1], [], []>} : vector<440x128xbf16>, vector<128x128xbf16>, vector<440x128xf32> -> vector<440x128xf32>
    %c0_4 = arith.constant 0 : index
    %c0_5 = arith.constant 0 : index
    %4 = vector.load %arg4[%c0_4, %c0_5] : memref<1x128xf32, #tpu.memory_space<vmem>>, vector<1x128xf32>
    %5 = vector.broadcast %4 : vector<1x128xf32> to vector<440x128xf32>
    %6 = arith.addf %3, %5 : vector<440x128xf32>
    %cst_6 = arith.constant 0.000000e+00 : f32
    %7 = vector.broadcast %cst_6 : f32 to vector<440x128xf32>
    %8 = arith.maximumf %6, %7 : vector<440x128xf32>
    %c0_7 = arith.constant 0 : index
    %c0_8 = arith.constant 0 : index
    %9 = vector.load %arg1[%c0_7, %c0_8] : memref<440x1xf32, #tpu.memory_space<vmem>>, vector<440x1xf32>
    %10 = vector.broadcast %9 : vector<440x1xf32> to vector<440x128xf32>
    %11 = arith.mulf %8, %10 : vector<440x128xf32>
    %12 = arith.truncf %11 : vector<440x128xf32> to vector<440x128xbf16>
    %c0_9 = arith.constant 0 : index
    %c0_10 = arith.constant 0 : index
    %13 = vector.load %arg12[%c0_9, %c0_10] : memref<440x128xbf16, #tpu.memory_space<vmem>>, vector<440x128xbf16>
    tpu.vector_store %arg12[%c0_9, %c0_10], %12 {strides = array<i32>} : memref<440x128xbf16, #tpu.memory_space<vmem>>, vector<440x128xbf16>,
    %c0_11 = arith.constant 0 : index
    %c0_12 = arith.constant 0 : index
    %14 = vector.load %arg12[%c0_11, %c0_12] : memref<440x128xbf16, #tpu.memory_space<vmem>>, vector<384x128xbf16>
    %c0_13 = arith.constant 0 : index
    %c0_14 = arith.constant 0 : index
    %c0_15 = arith.constant 0 : index
    %15 = vector.load %arg5[%c0_13, %c0_14, %c0_15] : memref<9x128x128xbf16, #tpu.memory_space<vmem>>, vector<1x128x128xbf16>
    %16 = vector.shape_cast %15 : vector<1x128x128xbf16> to vector<128x128xbf16>
    %cst_16 = arith.constant dense<0.000000e+00> : vector<384x128xf32>
    %17 = tpu.matmul %14, %16, %cst_16 {dimension_numbers = #tpu.dot_dimension_numbers<[1], [0], [0], [1], [0, 0, 1, 1], [], []>} : vector<384x128xbf16>, vector<128x128xbf16>, vector<384x128xf32> -> vector<384x128xf32>
    %c0_17 = arith.constant 0 : index
    %c0_18 = arith.constant 0 : index
    %18 = vector.load %arg14[%c0_17, %c0_18] : memref<384x128xf32, #tpu.memory_space<vmem>>, vector<384x128xf32>
    tpu.vector_store %arg14[%c0_17, %c0_18], %17 {strides = array<i32>} : memref<384x128xf32, #tpu.memory_space<vmem>>, vector<384x128xf32>,
    %c1 = arith.constant 1 : index
    %c0_19 = arith.constant 0 : index
    %19 = vector.load %arg12[%c1, %c0_19] : memref<440x128xbf16, #tpu.memory_space<vmem>>, vector<384x128xbf16>
    %c1_20 = arith.constant 1 : index
    %c0_21 = arith.constant 0 : index
    %c0_22 = arith.constant 0 : index
    %20 = vector.load %arg5[%c1_20, %c0_21, %c0_22] : memref<9x128x128xbf16, #tpu.memory_space<vmem>>, vector<1x128x128xbf16>
    %21 = vector.shape_cast %20 : vector<1x128x128xbf16> to vector<128x128xbf16>
    %cst_23 = arith.constant dense<0.000000e+00> : vector<384x128xf32>
    %22 = tpu.matmul %19, %21, %cst_23 {dimension_numbers = #tpu.dot_dimension_numbers<[1], [0], [0], [1], [0, 0, 1, 1], [], []>} : vector<384x128xbf16>, vector<128x128xbf16>, vector<384x128xf32> -> vector<384x128xf32>
    %c0_24 = arith.constant 0 : index
    %c0_25 = arith.constant 0 : index
    %23 = vector.load %arg14[%c0_24, %c0_25] : memref<384x128xf32, #tpu.memory_space<vmem>>, vector<384x128xf32>
    %24 = arith.addf %23, %22 : vector<384x128xf32>
    %c0_26 = arith.constant 0 : index
    %c0_27 = arith.constant 0 : index
    %25 = vector.load %arg14[%c0_26, %c0_27] : memref<384x128xf32, #tpu.memory_space<vmem>>, vector<384x128xf32>
    tpu.vector_store %arg14[%c0_26, %c0_27], %24 {strides = array<i32>} : memref<384x128xf32, #tpu.memory_space<vmem>>, vector<384x128xf32>,
    %c2 = arith.constant 2 : index
    %c0_28 = arith.constant 0 : index
    %26 = vector.load %arg12[%c2, %c0_28] : memref<440x128xbf16, #tpu.memory_space<vmem>>, vector<384x128xbf16>
    %c2_29 = arith.constant 2 : index
    %c0_30 = arith.constant 0 : index
    %c0_31 = arith.constant 0 : index
    %27 = vector.load %arg5[%c2_29, %c0_30, %c0_31] : memref<9x128x128xbf16, #tpu.memory_space<vmem>>, vector<1x128x128xbf16>
    %28 = vector.shape_cast %27 : vector<1x128x128xbf16> to vector<128x128xbf16>
    %cst_32 = arith.constant dense<0.000000e+00> : vector<384x128xf32>
    %29 = tpu.matmul %26, %28, %cst_32 {dimension_numbers = #tpu.dot_dimension_numbers<[1], [0], [0], [1], [0, 0, 1, 1], [], []>} : vector<384x128xbf16>, vector<128x128xbf16>, vector<384x128xf32> -> vector<384x128xf32>
    %c0_33 = arith.constant 0 : index
    %c0_34 = arith.constant 0 : index
    %30 = vector.load %arg14[%c0_33, %c0_34] : memref<384x128xf32, #tpu.memory_space<vmem>>, vector<384x128xf32>
    %31 = arith.addf %30, %29 : vector<384x128xf32>
    %c0_35 = arith.constant 0 : index
    %c0_36 = arith.constant 0 : index
    %32 = vector.load %arg14[%c0_35, %c0_36] : memref<384x128xf32, #tpu.memory_space<vmem>>, vector<384x128xf32>
    tpu.vector_store %arg14[%c0_35, %c0_36], %31 {strides = array<i32>} : memref<384x128xf32, #tpu.memory_space<vmem>>, vector<384x128xf32>,
    %c24 = arith.constant 24 : index
    %c0_37 = arith.constant 0 : index
    %33 = vector.load %arg12[%c24, %c0_37] : memref<440x128xbf16, #tpu.memory_space<vmem>>, vector<384x128xbf16>
    %c3 = arith.constant 3 : index
    %c0_38 = arith.constant 0 : index
    %c0_39 = arith.constant 0 : index
    %34 = vector.load %arg5[%c3, %c0_38, %c0_39] : memref<9x128x128xbf16, #tpu.memory_space<vmem>>, vector<1x128x128xbf16>
    %35 = vector.shape_cast %34 : vector<1x128x128xbf16> to vector<128x128xbf16>
    %cst_40 = arith.constant dense<0.000000e+00> : vector<384x128xf32>
    %36 = tpu.matmul %33, %35, %cst_40 {dimension_numbers = #tpu.dot_dimension_numbers<[1], [0], [0], [1], [0, 0, 1, 1], [], []>} : vector<384x128xbf16>, vector<128x128xbf16>, vector<384x128xf32> -> vector<384x128xf32>
    %c0_41 = arith.constant 0 : index
    %c0_42 = arith.constant 0 : index
    %37 = vector.load %arg14[%c0_41, %c0_42] : memref<384x128xf32, #tpu.memory_space<vmem>>, vector<384x128xf32>
    %38 = arith.addf %37, %36 : vector<384x128xf32>
    %c0_43 = arith.constant 0 : index
    %c0_44 = arith.constant 0 : index
    %39 = vector.load %arg14[%c0_43, %c0_44] : memref<384x128xf32, #tpu.memory_space<vmem>>, vector<384x128xf32>
    tpu.vector_store %arg14[%c0_43, %c0_44], %38 {strides = array<i32>} : memref<384x128xf32, #tpu.memory_space<vmem>>, vector<384x128xf32>,
    %c25 = arith.constant 25 : index
    %c0_45 = arith.constant 0 : index
    %40 = vector.load %arg12[%c25, %c0_45] : memref<440x128xbf16, #tpu.memory_space<vmem>>, vector<384x128xbf16>
    %c4 = arith.constant 4 : index
    %c0_46 = arith.constant 0 : index
    %c0_47 = arith.constant 0 : index
    %41 = vector.load %arg5[%c4, %c0_46, %c0_47] : memref<9x128x128xbf16, #tpu.memory_space<vmem>>, vector<1x128x128xbf16>
    %42 = vector.shape_cast %41 : vector<1x128x128xbf16> to vector<128x128xbf16>
    %cst_48 = arith.constant dense<0.000000e+00> : vector<384x128xf32>
    %43 = tpu.matmul %40, %42, %cst_48 {dimension_numbers = #tpu.dot_dimension_numbers<[1], [0], [0], [1], [0, 0, 1, 1], [], []>} : vector<384x128xbf16>, vector<128x128xbf16>, vector<384x128xf32> -> vector<384x128xf32>
    %c0_49 = arith.constant 0 : index
    %c0_50 = arith.constant 0 : index
    %44 = vector.load %arg14[%c0_49, %c0_50] : memref<384x128xf32, #tpu.memory_space<vmem>>, vector<384x128xf32>
    %45 = arith.addf %44, %43 : vector<384x128xf32>
    %c0_51 = arith.constant 0 : index
    %c0_52 = arith.constant 0 : index
    %46 = vector.load %arg14[%c0_51, %c0_52] : memref<384x128xf32, #tpu.memory_space<vmem>>, vector<384x128xf32>
    tpu.vector_store %arg14[%c0_51, %c0_52], %45 {strides = array<i32>} : memref<384x128xf32, #tpu.memory_space<vmem>>, vector<384x128xf32>,
    %c26 = arith.constant 26 : index
    %c0_53 = arith.constant 0 : index
    %47 = vector.load %arg12[%c26, %c0_53] : memref<440x128xbf16, #tpu.memory_space<vmem>>, vector<384x128xbf16>
    %c5 = arith.constant 5 : index
    %c0_54 = arith.constant 0 : index
    %c0_55 = arith.constant 0 : index
    %48 = vector.load %arg5[%c5, %c0_54, %c0_55] : memref<9x128x128xbf16, #tpu.memory_space<vmem>>, vector<1x128x128xbf16>
    %49 = vector.shape_cast %48 : vector<1x128x128xbf16> to vector<128x128xbf16>
    %cst_56 = arith.constant dense<0.000000e+00> : vector<384x128xf32>
    %50 = tpu.matmul %47, %49, %cst_56 {dimension_numbers = #tpu.dot_dimension_numbers<[1], [0], [0], [1], [0, 0, 1, 1], [], []>} : vector<384x128xbf16>, vector<128x128xbf16>, vector<384x128xf32> -> vector<384x128xf32>
    %c0_57 = arith.constant 0 : index
    %c0_58 = arith.constant 0 : index
    %51 = vector.load %arg14[%c0_57, %c0_58] : memref<384x128xf32, #tpu.memory_space<vmem>>, vector<384x128xf32>
    %52 = arith.addf %51, %50 : vector<384x128xf32>
    %c0_59 = arith.constant 0 : index
    %c0_60 = arith.constant 0 : index
    %53 = vector.load %arg14[%c0_59, %c0_60] : memref<384x128xf32, #tpu.memory_space<vmem>>, vector<384x128xf32>
    tpu.vector_store %arg14[%c0_59, %c0_60], %52 {strides = array<i32>} : memref<384x128xf32, #tpu.memory_space<vmem>>, vector<384x128xf32>,
    %c48 = arith.constant 48 : index
    %c0_61 = arith.constant 0 : index
    %54 = vector.load %arg12[%c48, %c0_61] : memref<440x128xbf16, #tpu.memory_space<vmem>>, vector<384x128xbf16>
    %c6 = arith.constant 6 : index
    %c0_62 = arith.constant 0 : index
    %c0_63 = arith.constant 0 : index
    %55 = vector.load %arg5[%c6, %c0_62, %c0_63] : memref<9x128x128xbf16, #tpu.memory_space<vmem>>, vector<1x128x128xbf16>
    %56 = vector.shape_cast %55 : vector<1x128x128xbf16> to vector<128x128xbf16>
    %cst_64 = arith.constant dense<0.000000e+00> : vector<384x128xf32>
    %57 = tpu.matmul %54, %56, %cst_64 {dimension_numbers = #tpu.dot_dimension_numbers<[1], [0], [0], [1], [0, 0, 1, 1], [], []>} : vector<384x128xbf16>, vector<128x128xbf16>, vector<384x128xf32> -> vector<384x128xf32>
    %c0_65 = arith.constant 0 : index
    %c0_66 = arith.constant 0 : index
    %58 = vector.load %arg14[%c0_65, %c0_66] : memref<384x128xf32, #tpu.memory_space<vmem>>, vector<384x128xf32>
    %59 = arith.addf %58, %57 : vector<384x128xf32>
    %c0_67 = arith.constant 0 : index
    %c0_68 = arith.constant 0 : index
    %60 = vector.load %arg14[%c0_67, %c0_68] : memref<384x128xf32, #tpu.memory_space<vmem>>, vector<384x128xf32>
    tpu.vector_store %arg14[%c0_67, %c0_68], %59 {strides = array<i32>} : memref<384x128xf32, #tpu.memory_space<vmem>>, vector<384x128xf32>,
    %c49 = arith.constant 49 : index
    %c0_69 = arith.constant 0 : index
    %61 = vector.load %arg12[%c49, %c0_69] : memref<440x128xbf16, #tpu.memory_space<vmem>>, vector<384x128xbf16>
    %c7 = arith.constant 7 : index
    %c0_70 = arith.constant 0 : index
    %c0_71 = arith.constant 0 : index
    %62 = vector.load %arg5[%c7, %c0_70, %c0_71] : memref<9x128x128xbf16, #tpu.memory_space<vmem>>, vector<1x128x128xbf16>
    %63 = vector.shape_cast %62 : vector<1x128x128xbf16> to vector<128x128xbf16>
    %cst_72 = arith.constant dense<0.000000e+00> : vector<384x128xf32>
    %64 = tpu.matmul %61, %63, %cst_72 {dimension_numbers = #tpu.dot_dimension_numbers<[1], [0], [0], [1], [0, 0, 1, 1], [], []>} : vector<384x128xbf16>, vector<128x128xbf16>, vector<384x128xf32> -> vector<384x128xf32>
    %c0_73 = arith.constant 0 : index
    %c0_74 = arith.constant 0 : index
    %65 = vector.load %arg14[%c0_73, %c0_74] : memref<384x128xf32, #tpu.memory_space<vmem>>, vector<384x128xf32>
    %66 = arith.addf %65, %64 : vector<384x128xf32>
    %c0_75 = arith.constant 0 : index
    %c0_76 = arith.constant 0 : index
    %67 = vector.load %arg14[%c0_75, %c0_76] : memref<384x128xf32, #tpu.memory_space<vmem>>, vector<384x128xf32>
    tpu.vector_store %arg14[%c0_75, %c0_76], %66 {strides = array<i32>} : memref<384x128xf32, #tpu.memory_space<vmem>>, vector<384x128xf32>,
    %c50 = arith.constant 50 : index
    %c0_77 = arith.constant 0 : index
    %68 = vector.load %arg12[%c50, %c0_77] : memref<440x128xbf16, #tpu.memory_space<vmem>>, vector<384x128xbf16>
    %c8 = arith.constant 8 : index
    %c0_78 = arith.constant 0 : index
    %c0_79 = arith.constant 0 : index
    %69 = vector.load %arg5[%c8, %c0_78, %c0_79] : memref<9x128x128xbf16, #tpu.memory_space<vmem>>, vector<1x128x128xbf16>
    %70 = vector.shape_cast %69 : vector<1x128x128xbf16> to vector<128x128xbf16>
    %cst_80 = arith.constant dense<0.000000e+00> : vector<384x128xf32>
    %71 = tpu.matmul %68, %70, %cst_80 {dimension_numbers = #tpu.dot_dimension_numbers<[1], [0], [0], [1], [0, 0, 1, 1], [], []>} : vector<384x128xbf16>, vector<128x128xbf16>, vector<384x128xf32> -> vector<384x128xf32>
    %c0_81 = arith.constant 0 : index
    %c0_82 = arith.constant 0 : index
    %72 = vector.load %arg14[%c0_81, %c0_82] : memref<384x128xf32, #tpu.memory_space<vmem>>, vector<384x128xf32>
    %73 = arith.addf %72, %71 : vector<384x128xf32>
    %c0_83 = arith.constant 0 : index
    %c0_84 = arith.constant 0 : index
    %74 = vector.load %arg14[%c0_83, %c0_84] : memref<384x128xf32, #tpu.memory_space<vmem>>, vector<384x128xf32>
    tpu.vector_store %arg14[%c0_83, %c0_84], %73 {strides = array<i32>} : memref<384x128xf32, #tpu.memory_space<vmem>>, vector<384x128xf32>,
    %c0_85 = arith.constant 0 : index
    %c0_86 = arith.constant 0 : index
    %75 = vector.load %arg14[%c0_85, %c0_86] : memref<384x128xf32, #tpu.memory_space<vmem>>, vector<384x128xf32>
    %c0_87 = arith.constant 0 : index
    %c0_88 = arith.constant 0 : index
    %76 = vector.load %arg6[%c0_87, %c0_88] : memref<1x128xf32, #tpu.memory_space<vmem>>, vector<1x128xf32>
    %77 = vector.broadcast %76 : vector<1x128xf32> to vector<384x128xf32>
    %78 = arith.addf %75, %77 : vector<384x128xf32>
    %cst_89 = arith.constant 0.000000e+00 : f32
    %79 = vector.broadcast %cst_89 : f32 to vector<384x128xf32>
    %80 = arith.maximumf %78, %79 : vector<384x128xf32>
    %81 = arith.truncf %80 : vector<384x128xf32> to vector<384x128xbf16>
    %c0_90 = arith.constant 0 : index
    %c0_91 = arith.constant 0 : index
    %82 = vector.load %arg13[%c0_90, %c0_91] : memref<384x128xbf16, #tpu.memory_space<vmem>>, vector<384x128xbf16>
    tpu.vector_store %arg13[%c0_90, %c0_91], %81 {strides = array<i32>} : memref<384x128xbf16, #tpu.memory_space<vmem>>, vector<384x128xbf16>,
    %c0_92 = arith.constant 0 : index
    %c0_93 = arith.constant 0 : index
    %83 = vector.load %arg13[%c0_92, %c0_93] : memref<384x128xbf16, #tpu.memory_space<vmem>>, vector<384x128xbf16>
    %c0_94 = arith.constant 0 : index
    %c0_95 = arith.constant 0 : index
    %84 = vector.load %arg7[%c0_94, %c0_95] : memref<128x256xbf16, #tpu.memory_space<vmem>>, vector<128x256xbf16>
    %cst_96 = arith.constant dense<0.000000e+00> : vector<384x256xf32>
    %85 = tpu.matmul %83, %84, %cst_96 {dimension_numbers = #tpu.dot_dimension_numbers<[1], [0], [0], [1], [0, 0, 1, 1], [], []>} : vector<384x128xbf16>, vector<128x256xbf16>, vector<384x256xf32> -> vector<384x256xf32>
    %c0_97 = arith.constant 0 : index
    %c0_98 = arith.constant 0 : index
    %86 = vector.load %arg8[%c0_97, %c0_98] : memref<1x256xf32, #tpu.memory_space<vmem>>, vector<1x256xf32>
    %87 = vector.broadcast %86 : vector<1x256xf32> to vector<384x256xf32>
    %88 = arith.addf %85, %87 : vector<384x256xf32>
    %c0_99 = arith.constant 0 : index
    %c25_100 = arith.constant 25 : index
    %c0_101 = arith.constant 0 : index
    %89 = vector.load %arg2[%c0_99, %c25_100, %c0_101] : memref<1x440x128xbf16, #tpu.memory_space<vmem>>, vector<1x384x128xbf16>
    %90 = vector.shape_cast %89 : vector<1x384x128xbf16> to vector<384x128xbf16>
    %c0_102 = arith.constant 0 : index
    %c0_103 = arith.constant 0 : index
    %91 = vector.load %arg9[%c0_102, %c0_103] : memref<128x256xbf16, #tpu.memory_space<vmem>>, vector<128x256xbf16>
    %cst_104 = arith.constant dense<0.000000e+00> : vector<384x256xf32>
    %92 = tpu.matmul %90, %91, %cst_104 {dimension_numbers = #tpu.dot_dimension_numbers<[1], [0], [0], [1], [0, 0, 1, 1], [], []>} : vector<384x128xbf16>, vector<128x256xbf16>, vector<384x256xf32> -> vector<384x256xf32>
    %c0_105 = arith.constant 0 : index
    %c0_106 = arith.constant 0 : index
    %93 = vector.load %arg10[%c0_105, %c0_106] : memref<1x256xf32, #tpu.memory_space<vmem>>, vector<1x256xf32>
    %94 = vector.broadcast %93 : vector<1x256xf32> to vector<384x256xf32>
    %95 = arith.addf %92, %94 : vector<384x256xf32>
    %96 = arith.addf %88, %95 : vector<384x256xf32>
    %cst_107 = arith.constant 0.000000e+00 : f32
    %97 = vector.broadcast %cst_107 : f32 to vector<384x256xf32>
    %98 = arith.maximumf %96, %97 : vector<384x256xf32>
    %99 = arith.truncf %98 : vector<384x256xf32> to vector<384x256xbf16>
    %c0_108 = arith.constant 0 : index
    %c0_109 = arith.constant 0 : index
    %c0_110 = arith.constant 0 : index
    %100 = vector.load %arg11[%c0_108, %c0_109, %c0_110] : memref<1x384x256xbf16, #tpu.memory_space<vmem>>, vector<1x384x256xbf16>
    %101 = vector.shape_cast %100 : vector<1x384x256xbf16> to vector<384x256xbf16>
    %102 = vector.shape_cast %99 : vector<384x256xbf16> to vector<1x384x256xbf16>
    tpu.vector_store %arg11[%c0_108, %c0_109, %c0_110], %102 {strides = array<i32>} : memref<1x384x256xbf16, #tpu.memory_space<vmem>>, vector<1x384x256xbf16>,
    return
  }
  func.func @transform_0(%arg0: i32) -> (i32, i32) {
    %c0_i32 = arith.constant 0 : i32
    %c0_i32_0 = arith.constant 0 : i32
    %c0_i32_1 = arith.constant 0 : i32
    return %c0_i32, %c0_i32_0 : i32, i32
  }
  func.func @transform_1(%arg0: i32) -> (i32, i32, i32) {
    %c0_i32 = arith.constant 0 : i32
    %c0_i32_0 = arith.constant 0 : i32
    %c0_i32_1 = arith.constant 0 : i32
    return %arg0, %c0_i32, %c0_i32_0 : i32, i32, i32
  }
  func.func @transform_2(%arg0: i32) -> (i32, i32) {
    %c0_i32 = arith.constant 0 : i32
    %c0_i32_0 = arith.constant 0 : i32
    %c0_i32_1 = arith.constant 0 : i32
    return %c0_i32, %c0_i32_0 : i32, i32
  }
  func.func @transform_3(%arg0: i32) -> (i32, i32) {
    %c0_i32 = arith.constant 0 : i32
    %c0_i32_0 = arith.constant 0 : i32
    %c0_i32_1 = arith.constant 0 : i32
    return %c0_i32, %c0_i32_0 : i32, i32
  }
  func.func @transform_4(%arg0: i32) -> (i32, i32, i32) {
    %c0_i32 = arith.constant 0 : i32
    %c0_i32_0 = arith.constant 0 : i32
    %c0_i32_1 = arith.constant 0 : i32
    %c0_i32_2 = arith.constant 0 : i32
    return %c0_i32, %c0_i32_0, %c0_i32_1 : i32, i32, i32
  }
  func.func @transform_5(%arg0: i32) -> (i32, i32) {
    %c0_i32 = arith.constant 0 : i32
    %c0_i32_0 = arith.constant 0 : i32
    %c0_i32_1 = arith.constant 0 : i32
    return %c0_i32, %c0_i32_0 : i32, i32
  }
  func.func @transform_6(%arg0: i32) -> (i32, i32) {
    %c0_i32 = arith.constant 0 : i32
    %c0_i32_0 = arith.constant 0 : i32
    %c0_i32_1 = arith.constant 0 : i32
    return %c0_i32, %c0_i32_0 : i32, i32
  }
  func.func @transform_7(%arg0: i32) -> (i32, i32) {
    %c0_i32 = arith.constant 0 : i32
    %c0_i32_0 = arith.constant 0 : i32
    %c0_i32_1 = arith.constant 0 : i32
    return %c0_i32, %c0_i32_0 : i32, i32
  }
  func.func @transform_8(%arg0: i32) -> (i32, i32) {
    %c0_i32 = arith.constant 0 : i32
    %c0_i32_0 = arith.constant 0 : i32
    %c0_i32_1 = arith.constant 0 : i32
    return %c0_i32, %c0_i32_0 : i32, i32
  }
  func.func @transform_9(%arg0: i32) -> (i32, i32) {
    %c0_i32 = arith.constant 0 : i32
    %c0_i32_0 = arith.constant 0 : i32
    %c0_i32_1 = arith.constant 0 : i32
    return %c0_i32, %c0_i32_0 : i32, i32
  }
  func.func @transform_10(%arg0: i32) -> (i32, i32, i32) {
    %c0_i32 = arith.constant 0 : i32
    %c0_i32_0 = arith.constant 0 : i32
    %c0_i32_1 = arith.constant 0 : i32
    return %arg0, %c0_i32, %c0_i32_0 : i32, i32, i32
  }
}

</mosaic_0001>

<llo_original>
// kernel: bottleneck_forward.1
$region0: #{bottleneck_forward.1}
  #allocation0 [shape = 'u32[]', space=smem, size = 0x4, offset = 0x4, fixed_abs, tag = 'smem constant byte address 0x4 - core index']
  #allocation1 [shape = 'u32[144,128]{1,0:T(1,128)}', space=vmem, size = 0x12000, scoped, tag = 'internal scratch']
  #allocation2 [shape = 'bf16[440,128]{1,0:T(8,128)(2,1)}', space=vmem, size = 0x1b800, scoped, tag = 'scratch operand']
  #allocation3 [shape = 'bf16[384,128]{1,0:T(16,128)(2,1)}', space=vmem, size = 0x18000, scoped, tag = 'scratch operand']
  #allocation4 [shape = 'f32[384,128]{1,0:T(8,128)}', space=vmem, size = 0x30000, scoped, tag = 'scratch operand']
  %s0 = inlined_call_operand.vmem [shape: f32[440,1], index: 0, kind: input, shape index: {}]
  %s1 = inlined_call_operand.vmem [shape: bf16[2,440,128], index: 1, kind: input, shape index: {}]
  %s2 = inlined_call_operand.vmem [shape: bf16[128,128], index: 2, kind: input, shape index: {}]
  %s3 = inlined_call_operand.vmem [shape: f32[1,128], index: 3, kind: input, shape index: {}]
  %s4 = inlined_call_operand.vmem [shape: bf16[9,128,128], index: 4, kind: input, shape index: {}]
  %s5 = inlined_call_operand.vmem [shape: f32[1,128], index: 5, kind: input, shape index: {}]
  %s6 = inlined_call_operand.vmem [shape: bf16[128,256], index: 6, kind: input, shape index: {}]
  %s7 = inlined_call_operand.vmem [shape: f32[1,256], index: 7, kind: input, shape index: {}]
  %s8 = inlined_call_operand.vmem [shape: bf16[128,256], index: 8, kind: input, shape index: {}]
  %s9 = inlined_call_operand.vmem [shape: f32[1,256], index: 9, kind: input, shape index: {}]
  %s10 = inlined_call_operand.vmem [shape: bf16[2,384,256], index: 10, kind: output, shape index: {}]
  %s11 = sld [smem:[#allocation0]]
  $region73: #{bottleneck_forward.1} parent=0
    _
  %s13 = ssub.s32 1, %s11
  %s14 = scalar_select 0, %s13, %s11
  loop: start=0, step=1, limit=4
  $region2: #{bottleneck_forward.1} parent=0 // loop_pre_header
    _
  $region3: #{bottleneck_forward.1} parent=0 // loop_header
    %s16 = sphi 0, %s20
    %p17 = scmp.ge.s32.totalorder %s16, 4
    %s24 = sphi 0, %s24
    %s26 = sphi 0, %s24
    %s27 = sphi 0, %s26
    %s41 = sphi 0, %s27
    %s47 = sphi 0, %s49
    %s50 = sphi 0, %s47
    %s51 = sphi 0, %s50
    %s67 = sphi 0, %s51
    %s71 = sphi 0, %s71
    %s73 = sphi 0, %s71
    %s74 = sphi 0, %s73
    %s88 = sphi 0, %s74
    %s92 = sphi 0, %s92
    %s94 = sphi 0, %s92
    %s95 = sphi 0, %s94
    %s109 = sphi 0, %s95
    %s113 = sphi 0, %s113
    %s115 = sphi 0, %s113
    %s116 = sphi 0, %s115
    %s130 = sphi 0, %s116
    %s134 = sphi 0, %s134
    %s136 = sphi 0, %s134
    %s137 = sphi 0, %s136
    %s151 = sphi 0, %s137
    %s155 = sphi 0, %s155
    %s157 = sphi 0, %s155
    %s158 = sphi 0, %s157
    %s172 = sphi 0, %s158
    %s176 = sphi 0, %s176
    %s178 = sphi 0, %s176
    %s179 = sphi 0, %s178
    %s193 = sphi 0, %s179
    %s197 = sphi 0, %s197
    %s199 = sphi 0, %s197
    %s200 = sphi 0, %s199
    %s214 = sphi 0, %s200
    %s218 = sphi 0, %s218
    %s220 = sphi 0, %s218
    %s221 = sphi 0, %s220
    %s235 = sphi 0, %s221
    %s241 = sphi 0, %s243
    %s244 = sphi 0, %s241
    %s245 = sphi 0, %s244
    %s261 = sphi 0, %s245
  $region4: #{bottleneck_forward.1} parent=0 // loop_header_branch
    %19 = sbr.rel (%p17) target = $region8
  $region5: #{bottleneck_forward.1} parent=0 // loop_body
    %s21 = ssub.s32 %s16, 1
    %s22 = ssub.s32 %s16, 2
    %s23 = sadd.s32 %s16, 1
    %s25 = sadd.s32 %s24, 1
    %p28 = scmp.eq.s32.totalorder %s16, 1
    %p29 = scmp.ne.s32.totalorder %s24, %s26
    %p30 = scmp.eq.s32.totalorder %s16, 0
    %p31 = por %p29, %p30
    %p32 = scmp.ne.s32.totalorder %s24, %s26
    %p33 = scmp.eq.s32.totalorder %s21, 1
    %p34 = por %p32, %p33
    %p35 = scmp.ne.s32.totalorder %s26, %s27
    %p36 = scmp.eq.s32.totalorder %s21, 0
    %p37 = por %p35, %p36
    %p38 = scmp.ne.s32.totalorder %s26, %s27
    %p39 = scmp.eq.s32.totalorder %s22, 1
    %p40 = por %p38, %p39
    %p42 = scmp.ne.s32.totalorder %s27, %s41
    %p43 = scmp.eq.s32.totalorder %s22, 0
    %p44 = por %p42, %p43
    %s45 = ssub.s32 %s16, %s23
    %p46 = scmp.eq.s32.totalorder %s45, 0
    %s48 = sadd.s32 %s47, 1
    %s49 = scalar_select %p46, %s47, %s48
    %p52 = pneg %p46
    %p53 = scmp.eq.s32.totalorder %s16, 1
    %p54 = por %p52, %p53
    %p55 = scmp.ne.s32.totalorder %s47, %s50
    %p56 = scmp.eq.s32.totalorder %s16, 0
    %p57 = por %p55, %p56
    %p58 = scmp.ne.s32.totalorder %s47, %s50
    %p59 = scmp.eq.s32.totalorder %s21, 1
    %p60 = por %p58, %p59
    %p61 = scmp.ne.s32.totalorder %s50, %s51
    %p62 = scmp.eq.s32.totalorder %s21, 0
    %p63 = por %p61, %p62
    %p64 = scmp.ne.s32.totalorder %s50, %s51
    %p65 = scmp.eq.s32.totalorder %s22, 1
    %p66 = por %p64, %p65
    %p68 = scmp.ne.s32.totalorder %s51, %s67
    %p69 = scmp.eq.s32.totalorder %s22, 0
    %p70 = por %p68, %p69
    %s72 = sadd.s32 %s71, 1
    %p75 = scmp.eq.s32.totalorder %s16, 1
    %p76 = scmp.ne.s32.totalorder %s71, %s73
    %p77 = scmp.eq.s32.totalorder %s16, 0
    %p78 = por %p76, %p77
    %p79 = scmp.ne.s32.totalorder %s71, %s73
    %p80 = scmp.eq.s32.totalorder %s21, 1
    %p81 = por %p79, %p80
    %p82 = scmp.ne.s32.totalorder %s73, %s74
    %p83 = scmp.eq.s32.totalorder %s21, 0
    %p84 = por %p82, %p83
    %p85 = scmp.ne.s32.totalorder %s73, %s74
    %p86 = scmp.eq.s32.totalorder %s22, 1
    %p87 = por %p85, %p86
    %p89 = scmp.ne.s32.totalorder %s74, %s88
    %p90 = scmp.eq.s32.totalorder %s22, 0
    %p91 = por %p89, %p90
    %s93 = sadd.s32 %s92, 1
    %p96 = scmp.eq.s32.totalorder %s16, 1
    %p97 = scmp.ne.s32.totalorder %s92, %s94
    %p98 = scmp.eq.s32.totalorder %s16, 0
    %p99 = por %p97, %p98
    %p100 = scmp.ne.s32.totalorder %s92, %s94
    %p101 = scmp.eq.s32.totalorder %s21, 1
    %p102 = por %p100, %p101
    %p103 = scmp.ne.s32.totalorder %s94, %s95
    %p104 = scmp.eq.s32.totalorder %s21, 0
    %p105 = por %p103, %p104
    %p106 = scmp.ne.s32.totalorder %s94, %s95
    %p107 = scmp.eq.s32.totalorder %s22, 1
    %p108 = por %p106, %p107
    %p110 = scmp.ne.s32.totalorder %s95, %s109
    %p111 = scmp.eq.s32.totalorder %s22, 0
    %p112 = por %p110, %p111
    %s114 = sadd.s32 %s113, 1
    %p117 = scmp.eq.s32.totalorder %s16, 1
    %p118 = scmp.ne.s32.totalorder %s113, %s115
    %p119 = scmp.eq.s32.totalorder %s16, 0
    %p120 = por %p118, %p119
    %p121 = scmp.ne.s32.totalorder %s113, %s115
    %p122 = scmp.eq.s32.totalorder %s21, 1
    %p123 = por %p121, %p122
    %p124 = scmp.ne.s32.totalorder %s115, %s116
    %p125 = scmp.eq.s32.totalorder %s21, 0
    %p126 = por %p124, %p125
    %p127 = scmp.ne.s32.totalorder %s115, %s116
    %p128 = scmp.eq.s32.totalorder %s22, 1
    %p129 = por %p127, %p128
    %p131 = scmp.ne.s32.totalorder %s116, %s130
    %p132 = scmp.eq.s32.totalorder %s22, 0
    %p133 = por %p131, %p132
    %s135 = sadd.s32 %s134, 1
    %p138 = scmp.eq.s32.totalorder %s16, 1
    %p139 = scmp.ne.s32.totalorder %s134, %s136
    %p140 = scmp.eq.s32.totalorder %s16, 0
    %p141 = por %p139, %p140
    %p142 = scmp.ne.s32.totalorder %s134, %s136
    %p143 = scmp.eq.s32.totalorder %s21, 1
    %p144 = por %p142, %p143
    %p145 = scmp.ne.s32.totalorder %s136, %s137
    %p146 = scmp.eq.s32.totalorder %s21, 0
    %p147 = por %p145, %p146
    %p148 = scmp.ne.s32.totalorder %s136, %s137
    %p149 = scmp.eq.s32.totalorder %s22, 1
    %p150 = por %p148, %p149
    %p152 = scmp.ne.s32.totalorder %s137, %s151
    %p153 = scmp.eq.s32.totalorder %s22, 0
    %p154 = por %p152, %p153
    %s156 = sadd.s32 %s155, 1
    %p159 = scmp.eq.s32.totalorder %s16, 1
    %p160 = scmp.ne.s32.totalorder %s155, %s157
    %p161 = scmp.eq.s32.totalorder %s16, 0
    %p162 = por %p160, %p161
    %p163 = scmp.ne.s32.totalorder %s155, %s157
    %p164 = scmp.eq.s32.totalorder %s21, 1
    %p165 = por %p163, %p164
    %p166 = scmp.ne.s32.totalorder %s157, %s158
    %p167 = scmp.eq.s32.totalorder %s21, 0
    %p168 = por %p166, %p167
    %p169 = scmp.ne.s32.totalorder %s157, %s158
    %p170 = scmp.eq.s32.totalorder %s22, 1
    %p171 = por %p169, %p170
    %p173 = scmp.ne.s32.totalorder %s158, %s172
    %p174 = scmp.eq.s32.totalorder %s22, 0
    %p175 = por %p173, %p174
    %s177 = sadd.s32 %s176, 1
    %p180 = scmp.eq.s32.totalorder %s16, 1
    %p181 = scmp.ne.s32.totalorder %s176, %s178
    %p182 = scmp.eq.s32.totalorder %s16, 0
    %p183 = por %p181, %p182
    %p184 = scmp.ne.s32.totalorder %s176, %s178
    %p185 = scmp.eq.s32.totalorder %s21, 1
    %p186 = por %p184, %p185
    %p187 = scmp.ne.s32.totalorder %s178, %s179
    %p188 = scmp.eq.s32.totalorder %s21, 0
    %p189 = por %p187, %p188
    %p190 = scmp.ne.s32.totalorder %s178, %s179
    %p191 = scmp.eq.s32.totalorder %s22, 1
    %p192 = por %p190, %p191
    %p194 = scmp.ne.s32.totalorder %s179, %s193
    %p195 = scmp.eq.s32.totalorder %s22, 0
    %p196 = por %p194, %p195
    %s198 = sadd.s32 %s197, 1
    %p201 = scmp.eq.s32.totalorder %s16, 1
    %p202 = scmp.ne.s32.totalorder %s197, %s199
    %p203 = scmp.eq.s32.totalorder %s16, 0
    %p204 = por %p202, %p203
    %p205 = scmp.ne.s32.totalorder %s197, %s199
    %p206 = scmp.eq.s32.totalorder %s21, 1
    %p207 = por %p205, %p206
    %p208 = scmp.ne.s32.totalorder %s199, %s200
    %p209 = scmp.eq.s32.totalorder %s21, 0
    %p210 = por %p208, %p209
    %p211 = scmp.ne.s32.totalorder %s199, %s200
    %p212 = scmp.eq.s32.totalorder %s22, 1
    %p213 = por %p211, %p212
    %p215 = scmp.ne.s32.totalorder %s200, %s214
    %p216 = scmp.eq.s32.totalorder %s22, 0
    %p217 = por %p215, %p216
    %s219 = sadd.s32 %s218, 1
    %p222 = scmp.eq.s32.totalorder %s16, 1
    %p223 = scmp.ne.s32.totalorder %s218, %s220
    %p224 = scmp.eq.s32.totalorder %s16, 0
    %p225 = por %p223, %p224
    %p226 = scmp.ne.s32.totalorder %s218, %s220
    %p227 = scmp.eq.s32.totalorder %s21, 1
    %p228 = por %p226, %p227
    %p229 = scmp.ne.s32.totalorder %s220, %s221
    %p230 = scmp.eq.s32.totalorder %s21, 0
    %p231 = por %p229, %p230
    %p232 = scmp.ne.s32.totalorder %s220, %s221
    %p233 = scmp.eq.s32.totalorder %s22, 1
    %p234 = por %p232, %p233
    %p236 = scmp.ne.s32.totalorder %s221, %s235
    %p237 = scmp.eq.s32.totalorder %s22, 0
    %p238 = por %p236, %p237
    %s239 = ssub.s32 %s16, %s23
    %p240 = scmp.eq.s32.totalorder %s239, 0
    %s242 = sadd.s32 %s241, 1
    %s243 = scalar_select %p240, %s241, %s242
    %p246 = pneg %p240
    %p247 = scmp.eq.s32.totalorder %s16, 1
    %p248 = por %p246, %p247
    %p249 = scmp.ne.s32.totalorder %s241, %s244
    %p250 = scmp.eq.s32.totalorder %s16, 0
    %p251 = por %p249, %p250
    %p252 = scmp.ne.s32.totalorder %s241, %s244
    %p253 = scmp.eq.s32.totalorder %s21, 1
    %p254 = por %p252, %p253
    %p255 = scmp.ne.s32.totalorder %s244, %s245
    %p256 = scmp.eq.s32.totalorder %s21, 0
    %p257 = por %p255, %p256
    %p258 = scmp.ne.s32.totalorder %s244, %s245
    %p259 = scmp.eq.s32.totalorder %s22, 1
    %p260 = por %p258, %p259
    %p262 = scmp.ne.s32.totalorder %s245, %s261
    %p263 = scmp.eq.s32.totalorder %s22, 0
    %p264 = por %p262, %p263
    %p265 = scmp.le.s32.totalorder 1, %s16
    %p266 = scmp.lt.s32.totalorder %s16, 3
    %p267 = pnand %p265, %p266
    %p268 = pneg %p267
    // Predicated region
    $region9: #{bottleneck_forward.1} parent=5 // pred_check
      _
    $region10: #{bottleneck_forward.1} parent=5 // pred_check_branch
      %270 = sbr.rel (%p267) target = $region12
    $region11: #{bottleneck_forward.1} parent=5 // pred_region
      %s271 = ssub.s32 %s16, 1
      // Predicated region
      $region13: #{bottleneck_forward.1} parent=11 // pred_check
        %p272 = pneg %p37
      $region14: #{bottleneck_forward.1} parent=11 // pred_check_branch
        %274 = sbr.rel (%p272) target = $region16
      $region15: #{bottleneck_forward.1} parent=11 // pred_region
        _
      $region16: #{bottleneck_forward.1} parent=11 // pred_fallthru
        _
      // Predicated region
      $region17: #{bottleneck_forward.1} parent=11 // pred_check
        %p275 = pneg %p84
      $region18: #{bottleneck_forward.1} parent=11 // pred_check_branch
        %277 = sbr.rel (%p275) target = $region20
      $region19: #{bottleneck_forward.1} parent=11 // pred_region
        _
      $region20: #{bottleneck_forward.1} parent=11 // pred_fallthru
        _
      // Predicated region
      $region21: #{bottleneck_forward.1} parent=11 // pred_check
        %p278 = pneg %p105
      $region22: #{bottleneck_forward.1} parent=11 // pred_check_branch
        %280 = sbr.rel (%p278) target = $region24
      $region23: #{bottleneck_forward.1} parent=11 // pred_region
        _
      $region24: #{bottleneck_forward.1} parent=11 // pred_fallthru
        _
      // Predicated region
      $region25: #{bottleneck_forward.1} parent=11 // pred_check
        %p281 = pneg %p126
      $region26: #{bottleneck_forward.1} parent=11 // pred_check_branch
        %283 = sbr.rel (%p281) target = $region28
      $region27: #{bottleneck_forward.1} parent=11 // pred_region
        _
      $region28: #{bottleneck_forward.1} parent=11 // pred_fallthru
        _
      // Predicated region
      $region29: #{bottleneck_forward.1} parent=11 // pred_check
        %p284 = pneg %p147
      $region30: #{bottleneck_forward.1} parent=11 // pred_check_branch
        %286 = sbr.rel (%p284) target = $region32
      $region31: #{bottleneck_forward.1} parent=11 // pred_region
        _
      $region32: #{bottleneck_forward.1} parent=11 // pred_fallthru
        _
      // Predicated region
      $region33: #{bottleneck_forward.1} parent=11 // pred_check
        %p287 = pneg %p168
      $region34: #{bottleneck_forward.1} parent=11 // pred_check_branch
        %289 = sbr.rel (%p287) target = $region36
      $region35: #{bottleneck_forward.1} parent=11 // pred_region
        _
      $region36: #{bottleneck_forward.1} parent=11 // pred_fallthru
        _
      // Predicated region
      $region37: #{bottleneck_forward.1} parent=11 // pred_check
        %p290 = pneg %p189
      $region38: #{bottleneck_forward.1} parent=11 // pred_check_branch
        %292 = sbr.rel (%p290) target = $region40
      $region39: #{bottleneck_forward.1} parent=11 // pred_region
        _
      $region40: #{bottleneck_forward.1} parent=11 // pred_fallthru
        _
      // Predicated region
      $region41: #{bottleneck_forward.1} parent=11 // pred_check
        %p293 = pneg %p210
      $region42: #{bottleneck_forward.1} parent=11 // pred_check_branch
        %295 = sbr.rel (%p293) target = $region44
      $region43: #{bottleneck_forward.1} parent=11 // pred_region
        _
      $region44: #{bottleneck_forward.1} parent=11 // pred_fallthru
        _
      // Predicated region
      $region45: #{bottleneck_forward.1} parent=11 // pred_check
        %p296 = pneg %p231
      $region46: #{bottleneck_forward.1} parent=11 // pred_check_branch
        %298 = sbr.rel (%p296) target = $region48
      $region47: #{bottleneck_forward.1} parent=11 // pred_region
        _
      $region48: #{bottleneck_forward.1} parent=11 // pred_fallthru
        _
    $region12: #{bottleneck_forward.1} parent=5 // pred_fallthru
      _
    %p299 = scmp.lt.s32.totalorder %s16, 2
    // Predicated region
    $region49: #{bottleneck_forward.1} parent=5 // pred_check
      %p300 = pneg %p299
    $region50: #{bottleneck_forward.1} parent=5 // pred_check_branch
      %302 = sbr.rel (%p300) target = $region52
    $region51: #{bottleneck_forward.1} parent=5 // pred_region
      // Predicated region
      $region53: #{bottleneck_forward.1} parent=51 // pred_check
        %p303 = pneg %p57
      $region54: #{bottleneck_forward.1} parent=51 // pred_check_branch
        %305 = sbr.rel (%p303) target = $region56
      $region55: #{bottleneck_forward.1} parent=51 // pred_region
        %p306 = scmp.lt.s32.totalorder %s16, 1
        %s307 = scalar_select %p306, %s16, 1
        %s308 = smul.addr %s307, 55
        %s309 = smul.addr %s308, 4
        %s310 = scalar_lea.vmem %s1, %s309
      $region56: #{bottleneck_forward.1} parent=51 // pred_fallthru
        _
    $region52: #{bottleneck_forward.1} parent=5 // pred_fallthru
      _
    %p311 = scmp.le.s32.totalorder 1, %s16
    %p312 = scmp.lt.s32.totalorder %s16, 3
    %p313 = pnand %p311, %p312
    %p314 = pneg %p313
    // Predicated region
    $region57: #{bottleneck_forward.1} parent=5 // pred_check
      _
    $region58: #{bottleneck_forward.1} parent=5 // pred_check_branch
      %316 = sbr.rel (%p313) target = $region60
    $region59: #{bottleneck_forward.1} parent=5 // pred_region
      %s317 = ssub.s32 %s16, 1
      %p318 = pneg %p37
      %p319 = pneg %p34
      %p320 = scmp.lt.s32.totalorder %s21, 1
      %s321 = scalar_select %p320, %s21, 1
      %s322 = smul.addr %s321, 55
      %s323 = smul.addr %s322, 4
      %s324 = scalar_lea.vmem %s1, %s323
      %p325 = pneg %p63
      %p326 = pneg %p60
      %p327 = pneg %p84
      %p328 = pneg %p81
      %p329 = pneg %p105
      %p330 = pneg %p102
      %p331 = pneg %p126
      %p332 = pneg %p123
      %p333 = pneg %p147
      %p334 = pneg %p144
      %p335 = pneg %p168
      %p336 = pneg %p165
      %p337 = pneg %p189
      %p338 = pneg %p186
      %p339 = pneg %p210
      %p340 = pneg %p207
      %p341 = pneg %p231
      %p342 = pneg %p228
      %p343 = pneg %p257
      %p344 = pneg %p254
      %p345 = scmp.lt.s32.totalorder %s21, 1
      %s346 = scalar_select %p345, %s21, 1
      %s347 = smul.addr %s346, 96
      %s348 = smul.addr %s347, 4
      %s349 = scalar_lea.vmem %s10, %s348
      %p350 = scmp.lt.s32.totalorder %s21, 1
      %s351 = scalar_select %p350, %s21, 1
      %s352 = smul.addr %s351, 55
      %s353 = smul.addr %s352, 4
      %s354 = scalar_lea.vmem %s1, %s353
      %p355 = scmp.lt.s32.totalorder %s21, 1
      %s356 = scalar_select %p355, %s21, 1
      %s357 = smul.addr %s356, 96
      %s358 = smul.addr %s357, 4
      %s359 = scalar_lea.vmem %s10, %s358
      %v361 = vld [vmem:[%s354] sm:$0xf]
      %v362 = vld [vmem:[%s354 + $0x4] sm:$0xf]
      %v363 = vld [vmem:[%s354 + $0x8] sm:$0xf]
      %v364 = vld [vmem:[%s354 + $0xc] sm:$0xf]
      %v365 = vld [vmem:[%s354 + $0x10] sm:$0xf]
      %v366 = vld [vmem:[%s354 + $0x14] sm:$0xf]
      %v367 = vld [vmem:[%s354 + $0x18] sm:$0xf]
      %v368 = vld [vmem:[%s354 + $0x1c] sm:$0xf]
      %v369 = vld [vmem:[%s354 + $0x20] sm:$0xf]
      %v370 = vld [vmem:[%s354 + $0x24] sm:$0xf]
      %v371 = vld [vmem:[%s354 + $0x28] sm:$0xf]
      %v372 = vld [vmem:[%s354 + $0x2c] sm:$0xf]
      %v373 = vld [vmem:[%s354 + $0x30] sm:$0xf]
      %v374 = vld [vmem:[%s354 + $0x34] sm:$0xf]
      %v375 = vld [vmem:[%s354 + $0x38] sm:$0xf]
      %v376 = vld [vmem:[%s354 + $0x3c] sm:$0xf]
      %v377 = vld [vmem:[%s354 + $0x40] sm:$0xf]
      %v378 = vld [vmem:[%s354 + $0x44] sm:$0xf]
      %v379 = vld [vmem:[%s354 + $0x48] sm:$0xf]
      %v380 = vld [vmem:[%s354 + $0x4c] sm:$0xf]
      %v381 = vld [vmem:[%s354 + $0x50] sm:$0xf]
      %v382 = vld [vmem:[%s354 + $0x54] sm:$0xf]
      %v383 = vld [vmem:[%s354 + $0x58] sm:$0xf]
      %v384 = vld [vmem:[%s354 + $0x5c] sm:$0xf]
      %v385 = vld [vmem:[%s354 + $0x60] sm:$0xf]
      %v386 = vld [vmem:[%s354 + $0x64] sm:$0xf]
      %v387 = vld [vmem:[%s354 + $0x68] sm:$0xf]
      %v388 = vld [vmem:[%s354 + $0x6c] sm:$0xf]
      %v389 = vld [vmem:[%s354 + $0x70] sm:$0xf]
      %v390 = vld [vmem:[%s354 + $0x74] sm:$0xf]
      %v391 = vld [vmem:[%s354 + $0x78] sm:$0xf]
      %v392 = vld [vmem:[%s354 + $0x7c] sm:$0xf]
      %v393 = vld [vmem:[%s354 + $0x80] sm:$0xf]
      %v394 = vld [vmem:[%s354 + $0x84] sm:$0xf]
      %v395 = vld [vmem:[%s354 + $0x88] sm:$0xf]
      %v396 = vld [vmem:[%s354 + $0x8c] sm:$0xf]
      %v397 = vld [vmem:[%s354 + $0x90] sm:$0xf]
      %v398 = vld [vmem:[%s354 + $0x94] sm:$0xf]
      %v399 = vld [vmem:[%s354 + $0x98] sm:$0xf]
      %v400 = vld [vmem:[%s354 + $0x9c] sm:$0xf]
      %v401 = vld [vmem:[%s354 + $0xa0] sm:$0xf]
      %v402 = vld [vmem:[%s354 + $0xa4] sm:$0xf]
      %v403 = vld [vmem:[%s354 + $0xa8] sm:$0xf]
      %v404 = vld [vmem:[%s354 + $0xac] sm:$0xf]
      %v405 = vld [vmem:[%s354 + $0xb0] sm:$0xf]
      %v406 = vld [vmem:[%s354 + $0xb4] sm:$0xf]
      %v407 = vld [vmem:[%s354 + $0xb8] sm:$0xf]
      %v408 = vld [vmem:[%s354 + $0xbc] sm:$0xf]
      %v409 = vld [vmem:[%s354 + $0xc0] sm:$0xf]
      %v410 = vld [vmem:[%s354 + $0xc4] sm:$0xf]
      %v411 = vld [vmem:[%s354 + $0xc8] sm:$0xf]
      %v412 = vld [vmem:[%s354 + $0xcc] sm:$0xf]
      %v413 = vld [vmem:[%s354 + $0xd0] sm:$0xf]
      %v414 = vld [vmem:[%s354 + $0xd4] sm:$0xf]
      %v415 = vld [vmem:[%s354 + $0xd8] sm:$0xf]
      %v416 = vld [vmem:[%s2] sm:$0xf]
      %v417 = vld [vmem:[%s2 + $0x4] sm:$0xf]
      %v418 = vld [vmem:[%s2 + $0x8] sm:$0xf]
      %v419 = vld [vmem:[%s2 + $0xc] sm:$0xf]
      %v420 = vld [vmem:[%s2 + $0x10] sm:$0xf]
      %v421 = vld [vmem:[%s2 + $0x14] sm:$0xf]
      %v422 = vld [vmem:[%s2 + $0x18] sm:$0xf]
      %v423 = vld [vmem:[%s2 + $0x1c] sm:$0xf]
      %v424 = vld [vmem:[%s2 + $0x20] sm:$0xf]
      %v425 = vld [vmem:[%s2 + $0x24] sm:$0xf]
      %v426 = vld [vmem:[%s2 + $0x28] sm:$0xf]
      %v427 = vld [vmem:[%s2 + $0x2c] sm:$0xf]
      %v428 = vld [vmem:[%s2 + $0x30] sm:$0xf]
      %v429 = vld [vmem:[%s2 + $0x34] sm:$0xf]
      %v430 = vld [vmem:[%s2 + $0x38] sm:$0xf]
      %v431 = vld [vmem:[%s2 + $0x3c] sm:$0xf]
      %v432 = vld [vmem:[%s3] sm:$0x1]
      %v434 = vlaneseq
      %v435 = vshrl.u32 %v434, 7
      %v436 = vsub.s32 0, %v435
      %v437 = vrot.slane %v432, %v436
      %v494 = vunpack.c.l.b16 %v361
      %v495 = vunpack.c.l.b16 %v362
      %v496 = vunpack.c.l.b16 %v363
      %v497 = vunpack.c.l.b16 %v364
      %v498 = vunpack.c.l.b16 %v365
      %v499 = vunpack.c.l.b16 %v366
      %v500 = vunpack.c.l.b16 %v367
      %v501 = vunpack.c.l.b16 %v368
      %v502 = vunpack.c.l.b16 %v369
      %v503 = vunpack.c.l.b16 %v370
      %v504 = vunpack.c.l.b16 %v371
      %v505 = vunpack.c.l.b16 %v372
      %v506 = vunpack.c.l.b16 %v373
      %v507 = vunpack.c.l.b16 %v374
      %v508 = vunpack.c.l.b16 %v375
      %v509 = vunpack.c.l.b16 %v376
      %v510 = vunpack.c.l.b16 %v377
      %v511 = vunpack.c.l.b16 %v378
      %v512 = vunpack.c.l.b16 %v379
      %v513 = vunpack.c.l.b16 %v380
      %v514 = vunpack.c.l.b16 %v381
      %v515 = vunpack.c.l.b16 %v382
      %v516 = vunpack.c.l.b16 %v383
      %v517 = vunpack.c.l.b16 %v384
      %v518 = vunpack.c.l.b16 %v385
      %v519 = vunpack.c.l.b16 %v386
      %v520 = vunpack.c.l.b16 %v387
      %v521 = vunpack.c.l.b16 %v388
      %v522 = vunpack.c.l.b16 %v389
      %v523 = vunpack.c.l.b16 %v390
      %v524 = vunpack.c.l.b16 %v391
      %v525 = vunpack.c.l.b16 %v392
      %v526 = vunpack.c.l.b16 %v393
      %v527 = vunpack.c.l.b16 %v394
      %v528 = vunpack.c.l.b16 %v395
      %v529 = vunpack.c.l.b16 %v396
      %v530 = vunpack.c.l.b16 %v397
      %v531 = vunpack.c.l.b16 %v398
      %v532 = vunpack.c.l.b16 %v399
      %v533 = vunpack.c.l.b16 %v400
      %v534 = vunpack.c.l.b16 %v401
      %v535 = vunpack.c.l.b16 %v402
      %v536 = vunpack.c.l.b16 %v403
      %v537 = vunpack.c.l.b16 %v404
      %v538 = vunpack.c.l.b16 %v405
      %v539 = vunpack.c.l.b16 %v406
      %v540 = vunpack.c.l.b16 %v407
      %v541 = vunpack.c.l.b16 %v408
      %v542 = vunpack.c.l.b16 %v409
      %v543 = vunpack.c.l.b16 %v410
      %v544 = vunpack.c.l.b16 %v411
      %v545 = vunpack.c.l.b16 %v412
      %v546 = vunpack.c.l.b16 %v413
      %v547 = vunpack.c.l.b16 %v414
      %v548 = vunpack.c.l.b16 %v415
      %v549 = vpack.c.b16 %v495, %v494
      %v550 = vpack.c.b16 %v497, %v496
      %v551 = vpack.c.b16 %v499, %v498
      %v552 = vpack.c.b16 %v501, %v500
      %v553 = vpack.c.b16 %v503, %v502
      %v554 = vpack.c.b16 %v505, %v504
      %v555 = vpack.c.b16 %v507, %v506
      %v556 = vpack.c.b16 %v509, %v508
      %v557 = vpack.c.b16 %v511, %v510
      %v558 = vpack.c.b16 %v513, %v512
      %v559 = vpack.c.b16 %v515, %v514
      %v560 = vpack.c.b16 %v517, %v516
      %v561 = vpack.c.b16 %v519, %v518
      %v562 = vpack.c.b16 %v521, %v520
      %v563 = vpack.c.b16 %v523, %v522
      %v564 = vpack.c.b16 %v525, %v524
      %v565 = vpack.c.b16 %v527, %v526
      %v566 = vpack.c.b16 %v529, %v528
      %v567 = vpack.c.b16 %v531, %v530
      %v568 = vpack.c.b16 %v533, %v532
      %v569 = vpack.c.b16 %v535, %v534
      %v570 = vpack.c.b16 %v537, %v536
      %v571 = vpack.c.b16 %v539, %v538
      %v572 = vpack.c.b16 %v541, %v540
      %v573 = vpack.c.b16 %v543, %v542
      %v574 = vpack.c.b16 %v545, %v544
      %v575 = vpack.c.b16 %v547, %v546
      %v576 = vpack.c.b16 %v548, %v548
      %v621 = vunpack.c.l.b16 %v416
      %v622 = vunpack.c.l.b16 %v417
      %v623 = vunpack.c.l.b16 %v418
      %v624 = vunpack.c.l.b16 %v419
      %v625 = vunpack.c.l.b16 %v420
      %v626 = vunpack.c.l.b16 %v421
      %v627 = vunpack.c.l.b16 %v422
      %v628 = vunpack.c.l.b16 %v423
      %v629 = vunpack.c.l.b16 %v424
      %v630 = vunpack.c.l.b16 %v425
      %v631 = vunpack.c.l.b16 %v426
      %v632 = vunpack.c.l.b16 %v427
      %v633 = vunpack.c.l.b16 %v428
      %v634 = vunpack.c.l.b16 %v429
      %v635 = vunpack.c.l.b16 %v430
      %v636 = vunpack.c.l.b16 %v431
      %v637 = vpack.c.b16 %v622, %v621
      %v638 = vpack.c.b16 %v624, %v623
      %v639 = vpack.c.b16 %v626, %v625
      %v640 = vpack.c.b16 %v628, %v627
      %v641 = vpack.c.b16 %v630, %v629
      %v642 = vpack.c.b16 %v632, %v631
      %v643 = vpack.c.b16 %v634, %v633
      %v644 = vpack.c.b16 %v636, %v635
      %653 = vmatprep.subr.bf16.mxu0 0
      %654 = vmatpush1.bf16.msra.mxu0 %v637
      %655 = vmatprep.subr.bf16.mxu0 0
      %656 = vmatpush1.bf16.msra.mxu0 %v638
      %657 = vmatprep.subr.bf16.mxu0 0
      %658 = vmatpush1.bf16.msra.mxu0 %v639
      %659 = vmatprep.subr.bf16.mxu0 0
      %660 = vmatpush1.bf16.msra.mxu0 %v640
      %661 = vmatprep.subr.bf16.mxu0 0
      %662 = vmatpush1.bf16.msra.mxu0 %v641
      %663 = vmatprep.subr.bf16.mxu0 0
      %664 = vmatpush1.bf16.msra.mxu0 %v642
      %665 = vmatprep.subr.bf16.mxu0 0
      %666 = vmatpush1.bf16.msra.mxu0 %v643
      %667 = vmatprep.subr.bf16.mxu0 0
      %668 = vmatpush1.bf16.msra.mxu0 %v644
      %669 = vmatprep.subr.bf16.mxu0 0
      %670 = vmatpush1.bf16.msra.mxu0 0
      %671 = vmatprep.subr.bf16.mxu0 0
      %672 = vmatpush1.bf16.msra.mxu0 0
      %673 = vmatprep.subr.bf16.mxu0 0
      %674 = vmatpush1.bf16.msra.mxu0 0
      %675 = vmatprep.subr.bf16.mxu0 0
      %676 = vmatpush1.bf16.msra.mxu0 0
      %677 = vmatprep.subr.bf16.mxu0 0
      %678 = vmatpush1.bf16.msra.mxu0 0
      %679 = vmatprep.subr.bf16.mxu0 0
      %680 = vmatpush1.bf16.msra.mxu0 0
      %681 = vmatprep.subr.bf16.mxu0 0
      %682 = vmatpush1.bf16.msra.mxu0 0
      %683 = vmatprep.subr.bf16.mxu0 0
      %684 = vmatpush1.bf16.msra.mxu0 0
      %685 = vmatprep.mubr.bf16.mxu0 0
      %686 = vmatmul.mubr.bf16.gmra.mrb[0].mxu0 %v549
      %v687 = vpop.f32.mrb[0].mxu0
      %v688 = vadd.f32 %v437, %v687
      %v689 = vpop.f32.mrb[0].mxu0
      %v690 = vpop.f32.mrb[0].mxu0
      %v691 = vadd.f32 %v437, %v690
      %v692 = vpop.f32.mrb[0].mxu0
      %693 = vmatprep.mubr.bf16.mxu0 0
      %694 = vmatmul.mubr.bf16.gmra.mrb[0].mxu0 %v550
      %v695 = vpop.f32.mrb[0].mxu0
      %v696 = vadd.f32 %v437, %v695
      %v697 = vpop.f32.mrb[0].mxu0
      %v698 = vpop.f32.mrb[0].mxu0
      %v699 = vadd.f32 %v437, %v698
      %v700 = vpop.f32.mrb[0].mxu0
      %701 = vmatprep.mubr.bf16.mxu0 0
      %702 = vmatmul.mubr.bf16.gmra.mrb[0].mxu0 %v551
      %v703 = vpop.f32.mrb[0].mxu0
      %v704 = vadd.f32 %v437, %v703
      %v705 = vpop.f32.mrb[0].mxu0
      %v706 = vpop.f32.mrb[0].mxu0
      %v707 = vadd.f32 %v437, %v706
      %v708 = vpop.f32.mrb[0].mxu0
      %709 = vmatprep.mubr.bf16.mxu0 0
      %710 = vmatmul.mubr.bf16.gmra.mrb[0].mxu0 %v552
      %v711 = vpop.f32.mrb[0].mxu0
      %v712 = vadd.f32 %v437, %v711
      %v713 = vpop.f32.mrb[0].mxu0
      %v714 = vpop.f32.mrb[0].mxu0
      %v715 = vadd.f32 %v437, %v714
      %v716 = vpop.f32.mrb[0].mxu0
      %717 = vmatprep.mubr.bf16.mxu0 0
      %718 = vmatmul.mubr.bf16.gmra.mrb[0].mxu0 %v553
      %v719 = vpop.f32.mrb[0].mxu0
      %v720 = vadd.f32 %v437, %v719
      %v721 = vpop.f32.mrb[0].mxu0
      %v722 = vpop.f32.mrb[0].mxu0
      %v723 = vadd.f32 %v437, %v722
      %v724 = vpop.f32.mrb[0].mxu0
      %725 = vmatprep.mubr.bf16.mxu0 0
      %726 = vmatmul.mubr.bf16.gmra.mrb[0].mxu0 %v554
      %v727 = vpop.f32.mrb[0].mxu0
      %v728 = vadd.f32 %v437, %v727
      %v729 = vpop.f32.mrb[0].mxu0
      %v730 = vpop.f32.mrb[0].mxu0
      %v731 = vadd.f32 %v437, %v730
      %v732 = vpop.f32.mrb[0].mxu0
      %733 = vmatprep.mubr.bf16.mxu0 0
      %734 = vmatmul.mubr.bf16.gmra.mrb[0].mxu0 %v555
      %v735 = vpop.f32.mrb[0].mxu0
      %v736 = vadd.f32 %v437, %v735
      %v737 = vpop.f32.mrb[0].mxu0
      %v738 = vpop.f32.mrb[0].mxu0
      %v739 = vadd.f32 %v437, %v738
      %v740 = vpop.f32.mrb[0].mxu0
      %741 = vmatprep.mubr.bf16.mxu0 0
      %742 = vmatmul.mubr.bf16.gmra.mrb[0].mxu0 %v556
      %v743 = vpop.f32.mrb[0].mxu0
      %v744 = vadd.f32 %v437, %v743
      %v745 = vpop.f32.mrb[0].mxu0
      %v746 = vpop.f32.mrb[0].mxu0
      %v747 = vadd.f32 %v437, %v746
      %v748 = vpop.f32.mrb[0].mxu0
      %749 = vmatprep.mubr.bf16.mxu0 0
      %750 = vmatmul.mubr.bf16.gmra.mrb[0].mxu0 %v557
      %v751 = vpop.f32.mrb[0].mxu0
      %v752 = vadd.f32 %v437, %v751
      %v753 = vpop.f32.mrb[0].mxu0
      %v754 = vpop.f32.mrb[0].mxu0
      %v755 = vadd.f32 %v437, %v754
      %v756 = vpop.f32.mrb[0].mxu0
      %757 = vmatprep.mubr.bf16.mxu0 0
      %758 = vmatmul.mubr.bf16.gmra.mrb[0].mxu0 %v558
      %v759 = vpop.f32.mrb[0].mxu0
      %v760 = vadd.f32 %v437, %v759
      %v761 = vpop.f32.mrb[0].mxu0
      %v762 = vpop.f32.mrb[0].mxu0
      %v763 = vadd.f32 %v437, %v762
      %v764 = vpop.f32.mrb[0].mxu0
      %765 = vmatprep.mubr.bf16.mxu0 0
      %766 = vmatmul.mubr.bf16.gmra.mrb[0].mxu0 %v559
      %v767 = vpop.f32.mrb[0].mxu0
      %v768 = vadd.f32 %v437, %v767
      %v769 = vpop.f32.mrb[0].mxu0
      %v770 = vpop.f32.mrb[0].mxu0
      %v771 = vadd.f32 %v437, %v770
      %v772 = vpop.f32.mrb[0].mxu0
      %773 = vmatprep.mubr.bf16.mxu0 0
      %774 = vmatmul.mubr.bf16.gmra.mrb[0].mxu0 %v560
      %v775 = vpop.f32.mrb[0].mxu0
      %v776 = vadd.f32 %v437, %v775
      %v777 = vpop.f32.mrb[0].mxu0
      %v778 = vpop.f32.mrb[0].mxu0
      %v779 = vadd.f32 %v437, %v778
      %v780 = vpop.f32.mrb[0].mxu0
      %781 = vmatprep.mubr.bf16.mxu0 0
      %782 = vmatmul.mubr.bf16.gmra.mrb[0].mxu0 %v561
      %v783 = vpop.f32.mrb[0].mxu0
      %v784 = vadd.f32 %v437, %v783
      %v785 = vpop.f32.mrb[0].mxu0
      %v786 = vpop.f32.mrb[0].mxu0
      %v787 = vadd.f32 %v437, %v786
      %v788 = vpop.f32.mrb[0].mxu0
      %789 = vmatprep.mubr.bf16.mxu0 0
      %790 = vmatmul.mubr.bf16.gmra.mrb[0].mxu0 %v562
      %v791 = vpop.f32.mrb[0].mxu0
      %v792 = vadd.f32 %v437, %v791
      %v793 = vpop.f32.mrb[0].mxu0
      %v794 = vpop.f32.mrb[0].mxu0
      %v795 = vadd.f32 %v437, %v794
      %v796 = vpop.f32.mrb[0].mxu0
      %797 = vmatprep.mubr.bf16.mxu0 0
      %798 = vmatmul.mubr.bf16.gmra.mrb[0].mxu0 %v563
      %v799 = vpop.f32.mrb[0].mxu0
      %v800 = vadd.f32 %v437, %v799
      %v801 = vpop.f32.mrb[0].mxu0
      %v802 = vpop.f32.mrb[0].mxu0
      %v803 = vadd.f32 %v437, %v802
      %v804 = vpop.f32.mrb[0].mxu0
      %805 = vmatprep.mubr.bf16.mxu0 0
      %806 = vmatmul.mubr.bf16.gmra.mrb[0].mxu0 %v564
      %v807 = vpop.f32.mrb[0].mxu0
      %v808 = vadd.f32 %v437, %v807
      %v809 = vpop.f32.mrb[0].mxu0
      %v810 = vpop.f32.mrb[0].mxu0
      %v811 = vadd.f32 %v437, %v810
      %v812 = vpop.f32.mrb[0].mxu0
      %813 = vmatprep.mubr.bf16.mxu0 0
      %814 = vmatmul.mubr.bf16.gmra.mrb[0].mxu0 %v565
      %v815 = vpop.f32.mrb[0].mxu0
      %v816 = vadd.f32 %v437, %v815
      %v817 = vpop.f32.mrb[0].mxu0
      %v818 = vpop.f32.mrb[0].mxu0
      %v819 = vadd.f32 %v437, %v818
      %v820 = vpop.f32.mrb[0].mxu0
      %821 = vmatprep.mubr.bf16.mxu0 0
      %822 = vmatmul.mubr.bf16.gmra.mrb[0].mxu0 %v566
      %v823 = vpop.f32.mrb[0].mxu0
      %v824 = vadd.f32 %v437, %v823
      %v825 = vpop.f32.mrb[0].mxu0
      %v826 = vpop.f32.mrb[0].mxu0
      %v827 = vadd.f32 %v437, %v826
      %v828 = vpop.f32.mrb[0].mxu0
      %829 = vmatprep.mubr.bf16.mxu0 0
      %830 = vmatmul.mubr.bf16.gmra.mrb[0].mxu0 %v567
      %v831 = vpop.f32.mrb[0].mxu0
      %v832 = vadd.f32 %v437, %v831
      %v833 = vpop.f32.mrb[0].mxu0
      %v834 = vpop.f32.mrb[0].mxu0
      %v835 = vadd.f32 %v437, %v834
      %v836 = vpop.f32.mrb[0].mxu0
      %837 = vmatprep.mubr.bf16.mxu0 0
      %838 = vmatmul.mubr.bf16.gmra.mrb[0].mxu0 %v568
      %v839 = vpop.f32.mrb[0].mxu0
      %v840 = vadd.f32 %v437, %v839
      %v841 = vpop.f32.mrb[0].mxu0
      %v842 = vpop.f32.mrb[0].mxu0
      %v843 = vadd.f32 %v437, %v842
      %v844 = vpop.f32.mrb[0].mxu0
      %845 = vmatprep.mubr.bf16.mxu0 0
      %846 = vmatmul.mubr.bf16.gmra.mrb[0].mxu0 %v569
      %v847 = vpop.f32.mrb[0].mxu0
      %v848 = vadd.f32 %v437, %v847
      %v849 = vpop.f32.mrb[0].mxu0
      %v850 = vpop.f32.mrb[0].mxu0
      %v851 = vadd.f32 %v437, %v850
      %v852 = vpop.f32.mrb[0].mxu0
      %853 = vmatprep.mubr.bf16.mxu0 0
      %854 = vmatmul.mubr.bf16.gmra.mrb[0].mxu0 %v570
      %v855 = vpop.f32.mrb[0].mxu0
      %v856 = vadd.f32 %v437, %v855
      %v857 = vpop.f32.mrb[0].mxu0
      %v858 = vpop.f32.mrb[0].mxu0
      %v859 = vadd.f32 %v437, %v858
      %v860 = vpop.f32.mrb[0].mxu0
      %861 = vmatprep.mubr.bf16.mxu0 0
      %862 = vmatmul.mubr.bf16.gmra.mrb[0].mxu0 %v571
      %v863 = vpop.f32.mrb[0].mxu0
      %v864 = vadd.f32 %v437, %v863
      %v865 = vpop.f32.mrb[0].mxu0
      %v866 = vpop.f32.mrb[0].mxu0
      %v867 = vadd.f32 %v437, %v866
      %v868 = vpop.f32.mrb[0].mxu0
      %869 = vmatprep.mubr.bf16.mxu0 0
      %870 = vmatmul.mubr.bf16.gmra.mrb[0].mxu0 %v572
      %v871 = vpop.f32.mrb[0].mxu0
      %v872 = vadd.f32 %v437, %v871
      %v873 = vpop.f32.mrb[0].mxu0
      %v874 = vpop.f32.mrb[0].mxu0
      %v875 = vadd.f32 %v437, %v874
      %v876 = vpop.f32.mrb[0].mxu0
      %877 = vmatprep.mubr.bf16.mxu0 0
      %878 = vmatmul.mubr.bf16.gmra.mrb[0].mxu0 %v573
      %v879 = vpop.f32.mrb[0].mxu0
      %v880 = vadd.f32 %v437, %v879
      %v881 = vpop.f32.mrb[0].mxu0
      %v882 = vpop.f32.mrb[0].mxu0
      %v883 = vadd.f32 %v437, %v882
      %v884 = vpop.f32.mrb[0].mxu0
      %885 = vmatprep.mubr.bf16.mxu0 0
      %886 = vmatmul.mubr.bf16.gmra.mrb[0].mxu0 %v574
      %v887 = vpop.f32.mrb[0].mxu0
      %v888 = vadd.f32 %v437, %v887
      %v889 = vpop.f32.mrb[0].mxu0
      %v890 = vpop.f32.mrb[0].mxu0
      %v891 = vadd.f32 %v437, %v890
      %v892 = vpop.f32.mrb[0].mxu0
      %893 = vmatprep.mubr.bf16.mxu0 0
      %894 = vmatmul.mubr.bf16.gmra.mrb[0].mxu0 %v575
      %v895 = vpop.f32.mrb[0].mxu0
      %v896 = vadd.f32 %v437, %v895
      %v897 = vpop.f32.mrb[0].mxu0
      %v898 = vpop.f32.mrb[0].mxu0
      %v899 = vadd.f32 %v437, %v898
      %v900 = vpop.f32.mrb[0].mxu0
      %901 = vmatprep.mubr.bf16.mxu0 0
      %902 = vmatmul.mubr.bf16.gmra.mrb[0].mxu0 %v576
      %v903 = vpop.f32.mrb[0].mxu0
      %v904 = vadd.f32 %v437, %v903
      %v905 = vpop.f32.mrb[0].mxu0
      %v906 = vpop.f32.mrb[0].mxu0
      %v907 = vpop.f32.mrb[0].mxu0
      %908 = vdwg.mxu0
      %v909 = vmax.f32 %v688, 0.0
      %v910 = vmax.f32 %v691, 0.0
      %v911 = vmax.f32 %v696, 0.0
      %v912 = vmax.f32 %v699, 0.0
      %v913 = vmax.f32 %v704, 0.0
      %v914 = vmax.f32 %v707, 0.0
      %v915 = vmax.f32 %v712, 0.0
      %v916 = vmax.f32 %v715, 0.0
      %v917 = vmax.f32 %v720, 0.0
      %v918 = vmax.f32 %v723, 0.0
      %v919 = vmax.f32 %v728, 0.0
      %v920 = vmax.f32 %v731, 0.0
      %v921 = vmax.f32 %v736, 0.0
      %v922 = vmax.f32 %v739, 0.0
      %v923 = vmax.f32 %v744, 0.0
      %v924 = vmax.f32 %v747, 0.0
      %v925 = vmax.f32 %v752, 0.0
      %v926 = vmax.f32 %v755, 0.0
      %v927 = vmax.f32 %v760, 0.0
      %v928 = vmax.f32 %v763, 0.0
      %v929 = vmax.f32 %v768, 0.0
      %v930 = vmax.f32 %v771, 0.0
      %v931 = vmax.f32 %v776, 0.0
      %v932 = vmax.f32 %v779, 0.0
      %v933 = vmax.f32 %v784, 0.0
      %v934 = vmax.f32 %v787, 0.0
      %v935 = vmax.f32 %v792, 0.0
      %v936 = vmax.f32 %v795, 0.0
      %v937 = vmax.f32 %v800, 0.0
      %v938 = vmax.f32 %v803, 0.0
      %v939 = vmax.f32 %v808, 0.0
      %v940 = vmax.f32 %v811, 0.0
      %v941 = vmax.f32 %v816, 0.0
      %v942 = vmax.f32 %v819, 0.0
      %v943 = vmax.f32 %v824, 0.0
      %v944 = vmax.f32 %v827, 0.0
      %v945 = vmax.f32 %v832, 0.0
      %v946 = vmax.f32 %v835, 0.0
      %v947 = vmax.f32 %v840, 0.0
      %v948 = vmax.f32 %v843, 0.0
      %v949 = vmax.f32 %v848, 0.0
      %v950 = vmax.f32 %v851, 0.0
      %v951 = vmax.f32 %v856, 0.0
      %v952 = vmax.f32 %v859, 0.0
      %v953 = vmax.f32 %v864, 0.0
      %v954 = vmax.f32 %v867, 0.0
      %v955 = vmax.f32 %v872, 0.0
      %v956 = vmax.f32 %v875, 0.0
      %v957 = vmax.f32 %v880, 0.0
      %v958 = vmax.f32 %v883, 0.0
      %v959 = vmax.f32 %v888, 0.0
      %v960 = vmax.f32 %v891, 0.0
      %v961 = vmax.f32 %v896, 0.0
      %v962 = vmax.f32 %v899, 0.0
      %v963 = vmax.f32 %v904, 0.0
      %v964 = vld [vmem:[%s0] sm:$0xff]
      %v965 = vld [vmem:[%s0 + $0x8] sm:$0xff]
      %v966 = vld [vmem:[%s0 + $0x10] sm:$0xff]
      %v967 = vld [vmem:[%s0 + $0x18] sm:$0xff]
      %v968 = vld [vmem:[%s0 + $0x20] sm:$0xff]
      %v969 = vld [vmem:[%s0 + $0x28] sm:$0xff]
      %v970 = vld [vmem:[%s0 + $0x30] sm:$0xff]
      %v971 = vld [vmem:[%s0 + $0x38] sm:$0xff]
      %v972 = vld [vmem:[%s0 + $0x40] sm:$0xff]
      %v973 = vld [vmem:[%s0 + $0x48] sm:$0xff]
      %v974 = vld [vmem:[%s0 + $0x50] sm:$0xff]
      %v975 = vld [vmem:[%s0 + $0x58] sm:$0xff]
      %v976 = vld [vmem:[%s0 + $0x60] sm:$0xff]
      %v977 = vld [vmem:[%s0 + $0x68] sm:$0xff]
      %v978 = vld [vmem:[%s0 + $0x70] sm:$0xff]
      %v979 = vld [vmem:[%s0 + $0x78] sm:$0xff]
      %v980 = vld [vmem:[%s0 + $0x80] sm:$0xff]
      %v981 = vld [vmem:[%s0 + $0x88] sm:$0xff]
      %v982 = vld [vmem:[%s0 + $0x90] sm:$0xff]
      %v983 = vld [vmem:[%s0 + $0x98] sm:$0xff]
      %v984 = vld [vmem:[%s0 + $0xa0] sm:$0xff]
      %v985 = vld [vmem:[%s0 + $0xa8] sm:$0xff]
      %v986 = vld [vmem:[%s0 + $0xb0] sm:$0xff]
      %v987 = vld [vmem:[%s0 + $0xb8] sm:$0xff]
      %v988 = vld [vmem:[%s0 + $0xc0] sm:$0xff]
      %v989 = vld [vmem:[%s0 + $0xc8] sm:$0xff]
      %v990 = vld [vmem:[%s0 + $0xd0] sm:$0xff]
      %v991 = vld [vmem:[%s0 + $0xd8] sm:$0xff]
      %v992 = vld [vmem:[%s0 + $0xe0] sm:$0xff]
      %v993 = vld [vmem:[%s0 + $0xe8] sm:$0xff]
      %v994 = vld [vmem:[%s0 + $0xf0] sm:$0xff]
      %v995 = vld [vmem:[%s0 + $0xf8] sm:$0xff]
      %v996 = vld [vmem:[%s0 + $0x100] sm:$0xff]
      %v997 = vld [vmem:[%s0 + $0x108] sm:$0xff]
      %v998 = vld [vmem:[%s0 + $0x110] sm:$0xff]
      %v999 = vld [vmem:[%s0 + $0x118] sm:$0xff]
      %v1000 = vld [vmem:[%s0 + $0x120] sm:$0xff]
      %v1001 = vld [vmem:[%s0 + $0x128] sm:$0xff]
      %v1002 = vld [vmem:[%s0 + $0x130] sm:$0xff]
      %v1003 = vld [vmem:[%s0 + $0x138] sm:$0xff]
      %v1004 = vld [vmem:[%s0 + $0x140] sm:$0xff]
      %v1005 = vld [vmem:[%s0 + $0x148] sm:$0xff]
      %v1006 = vld [vmem:[%s0 + $0x150] sm:$0xff]
      %v1007 = vld [vmem:[%s0 + $0x158] sm:$0xff]
      %v1008 = vld [vmem:[%s0 + $0x160] sm:$0xff]
      %v1009 = vld [vmem:[%s0 + $0x168] sm:$0xff]
      %v1010 = vld [vmem:[%s0 + $0x170] sm:$0xff]
      %v1011 = vld [vmem:[%s0 + $0x178] sm:$0xff]
      %v1012 = vld [vmem:[%s0 + $0x180] sm:$0xff]
      %v1013 = vld [vmem:[%s0 + $0x188] sm:$0xff]
      %v1014 = vld [vmem:[%s0 + $0x190] sm:$0xff]
      %v1015 = vld [vmem:[%s0 + $0x198] sm:$0xff]
      %v1016 = vld [vmem:[%s0 + $0x1a0] sm:$0xff]
      %v1017 = vld [vmem:[%s0 + $0x1a8] sm:$0xff]
      %v1018 = vld [vmem:[%s0 + $0x1b0] sm:$0xff]
      %1020 = vset.pattern.permute.xlu0 0
      %1021 = vperm.xlu0 %1020, %v964
      %v1022 = vpop.permute.xlu0 %1021
      %1025 = vset.pattern.permute.xlu0 0
      %1026 = vperm.xlu0 %1025, %v965
      %v1027 = vpop.permute.xlu0 %1026
      %1030 = vset.pattern.permute.xlu0 0
      %1031 = vperm.xlu0 %1030, %v966
      %v1032 = vpop.permute.xlu0 %1031
      %1035 = vset.pattern.permute.xlu0 0
      %1036 = vperm.xlu0 %1035, %v967
      %v1037 = vpop.permute.xlu0 %1036
      %1040 = vset.pattern.permute.xlu0 0
      %1041 = vperm.xlu0 %1040, %v968
      %v1042 = vpop.permute.xlu0 %1041
      %1045 = vset.pattern.permute.xlu0 0
      %1046 = vperm.xlu0 %1045, %v969
      %v1047 = vpop.permute.xlu0 %1046
      %1050 = vset.pattern.permute.xlu0 0
      %1051 = vperm.xlu0 %1050, %v970
      %v1052 = vpop.permute.xlu0 %1051
      %1055 = vset.pattern.permute.xlu0 0
      %1056 = vperm.xlu0 %1055, %v971
      %v1057 = vpop.permute.xlu0 %1056
      %1060 = vset.pattern.permute.xlu0 0
      %1061 = vperm.xlu0 %1060, %v972
      %v1062 = vpop.permute.xlu0 %1061
      %1065 = vset.pattern.permute.xlu0 0
      %1066 = vperm.xlu0 %1065, %v973
      %v1067 = vpop.permute.xlu0 %1066
      %1070 = vset.pattern.permute.xlu0 0
      %1071 = vperm.xlu0 %1070, %v974
      %v1072 = vpop.permute.xlu0 %1071
      %1075 = vset.pattern.permute.xlu0 0
      %1076 = vperm.xlu0 %1075, %v975
      %v1077 = vpop.permute.xlu0 %1076
      %1080 = vset.pattern.permute.xlu0 0
      %1081 = vperm.xlu0 %1080, %v976
      %v1082 = vpop.permute.xlu0 %1081
      %1085 = vset.pattern.permute.xlu0 0
      %1086 = vperm.xlu0 %1085, %v977
      %v1087 = vpop.permute.xlu0 %1086
      %1090 = vset.pattern.permute.xlu0 0
      %1091 = vperm.xlu0 %1090, %v978
      %v1092 = vpop.permute.xlu0 %1091
      %1095 = vset.pattern.permute.xlu0 0
      %1096 = vperm.xlu0 %1095, %v979
      %v1097 = vpop.permute.xlu0 %1096
      %1100 = vset.pattern.permute.xlu0 0
      %1101 = vperm.xlu0 %1100, %v980
      %v1102 = vpop.permute.xlu0 %1101
      %1105 = vset.pattern.permute.xlu0 0
      %1106 = vperm.xlu0 %1105, %v981
      %v1107 = vpop.permute.xlu0 %1106
      %1110 = vset.pattern.permute.xlu0 0
      %1111 = vperm.xlu0 %1110, %v982
      %v1112 = vpop.permute.xlu0 %1111
      %1115 = vset.pattern.permute.xlu0 0
      %1116 = vperm.xlu0 %1115, %v983
      %v1117 = vpop.permute.xlu0 %1116
      %1120 = vset.pattern.permute.xlu0 0
      %1121 = vperm.xlu0 %1120, %v984
      %v1122 = vpop.permute.xlu0 %1121
      %1125 = vset.pattern.permute.xlu0 0
      %1126 = vperm.xlu0 %1125, %v985
      %v1127 = vpop.permute.xlu0 %1126
      %1130 = vset.pattern.permute.xlu0 0
      %1131 = vperm.xlu0 %1130, %v986
      %v1132 = vpop.permute.xlu0 %1131
      %1135 = vset.pattern.permute.xlu0 0
      %1136 = vperm.xlu0 %1135, %v987
      %v1137 = vpop.permute.xlu0 %1136
      %1140 = vset.pattern.permute.xlu0 0
      %1141 = vperm.xlu0 %1140, %v988
      %v1142 = vpop.permute.xlu0 %1141
      %1145 = vset.pattern.permute.xlu0 0
      %1146 = vperm.xlu0 %1145, %v989
      %v1147 = vpop.permute.xlu0 %1146
      %1150 = vset.pattern.permute.xlu0 0
      %1151 = vperm.xlu0 %1150, %v990
      %v1152 = vpop.permute.xlu0 %1151
      %1155 = vset.pattern.permute.xlu0 0
      %1156 = vperm.xlu0 %1155, %v991
      %v1157 = vpop.permute.xlu0 %1156
      %1160 = vset.pattern.permute.xlu0 0
      %1161 = vperm.xlu0 %1160, %v992
      %v1162 = vpop.permute.xlu0 %1161
      %1165 = vset.pattern.permute.xlu0 0
      %1166 = vperm.xlu0 %1165, %v993
      %v1167 = vpop.permute.xlu0 %1166
      %1170 = vset.pattern.permute.xlu0 0
      %1171 = vperm.xlu0 %1170, %v994
      %v1172 = vpop.permute.xlu0 %1171
      %1175 = vset.pattern.permute.xlu0 0
      %1176 = vperm.xlu0 %1175, %v995
      %v1177 = vpop.permute.xlu0 %1176
      %1180 = vset.pattern.permute.xlu0 0
      %1181 = vperm.xlu0 %1180, %v996
      %v1182 = vpop.permute.xlu0 %1181
      %1185 = vset.pattern.permute.xlu0 0
      %1186 = vperm.xlu0 %1185, %v997
      %v1187 = vpop.permute.xlu0 %1186
      %1190 = vset.pattern.permute.xlu0 0
      %1191 = vperm.xlu0 %1190, %v998
      %v1192 = vpop.permute.xlu0 %1191
      %1195 = vset.pattern.permute.xlu0 0
      %1196 = vperm.xlu0 %1195, %v999
      %v1197 = vpop.permute.xlu0 %1196
      %1200 = vset.pattern.permute.xlu0 0
      %1201 = vperm.xlu0 %1200, %v1000
      %v1202 = vpop.permute.xlu0 %1201
      %1205 = vset.pattern.permute.xlu0 0
      %1206 = vperm.xlu0 %1205, %v1001
      %v1207 = vpop.permute.xlu0 %1206
      %1210 = vset.pattern.permute.xlu0 0
      %1211 = vperm.xlu0 %1210, %v1002
      %v1212 = vpop.permute.xlu0 %1211
      %1215 = vset.pattern.permute.xlu0 0
      %1216 = vperm.xlu0 %1215, %v1003
      %v1217 = vpop.permute.xlu0 %1216
      %1220 = vset.pattern.permute.xlu0 0
      %1221 = vperm.xlu0 %1220, %v1004
      %v1222 = vpop.permute.xlu0 %1221
      %1225 = vset.pattern.permute.xlu0 0
      %1226 = vperm.xlu0 %1225, %v1005
      %v1227 = vpop.permute.xlu0 %1226
      %1230 = vset.pattern.permute.xlu0 0
      %1231 = vperm.xlu0 %1230, %v1006
      %v1232 = vpop.permute.xlu0 %1231
      %1235 = vset.pattern.permute.xlu0 0
      %1236 = vperm.xlu0 %1235, %v1007
      %v1237 = vpop.permute.xlu0 %1236
      %1240 = vset.pattern.permute.xlu0 0
      %1241 = vperm.xlu0 %1240, %v1008
      %v1242 = vpop.permute.xlu0 %1241
      %1245 = vset.pattern.permute.xlu0 0
      %1246 = vperm.xlu0 %1245, %v1009
      %v1247 = vpop.permute.xlu0 %1246
      %1250 = vset.pattern.permute.xlu0 0
      %1251 = vperm.xlu0 %1250, %v1010
      %v1252 = vpop.permute.xlu0 %1251
      %1255 = vset.pattern.permute.xlu0 0
      %1256 = vperm.xlu0 %1255, %v1011
      %v1257 = vpop.permute.xlu0 %1256
      %1260 = vset.pattern.permute.xlu0 0
      %1261 = vperm.xlu0 %1260, %v1012
      %v1262 = vpop.permute.xlu0 %1261
      %1265 = vset.pattern.permute.xlu0 0
      %1266 = vperm.xlu0 %1265, %v1013
      %v1267 = vpop.permute.xlu0 %1266
      %1270 = vset.pattern.permute.xlu0 0
      %1271 = vperm.xlu0 %1270, %v1014
      %v1272 = vpop.permute.xlu0 %1271
      %1275 = vset.pattern.permute.xlu0 0
      %1276 = vperm.xlu0 %1275, %v1015
      %v1277 = vpop.permute.xlu0 %1276
      %1280 = vset.pattern.permute.xlu0 0
      %1281 = vperm.xlu0 %1280, %v1016
      %v1282 = vpop.permute.xlu0 %1281
      %1285 = vset.pattern.permute.xlu0 0
      %1286 = vperm.xlu0 %1285, %v1017
      %v1287 = vpop.permute.xlu0 %1286
      %1290 = vset.pattern.permute.xlu0 0
      %1291 = vperm.xlu0 %1290, %v1018
      %v1292 = vpop.permute.xlu0 %1291
      %v1294 = vmul.f32 %v909, %v1022
      %v1295 = vmul.f32 %v910, %v1027
      %v1296 = vmul.f32 %v911, %v1032
      %v1297 = vmul.f32 %v912, %v1037
      %v1298 = vmul.f32 %v913, %v1042
      %v1299 = vmul.f32 %v914, %v1047
      %v1300 = vmul.f32 %v915, %v1052
      %v1301 = vmul.f32 %v916, %v1057
      %v1302 = vmul.f32 %v917, %v1062
      %v1303 = vmul.f32 %v918, %v1067
      %v1304 = vmul.f32 %v919, %v1072
      %v1305 = vmul.f32 %v920, %v1077
      %v1306 = vmul.f32 %v921, %v1082
      %v1307 = vmul.f32 %v922, %v1087
      %v1308 = vmul.f32 %v923, %v1092
      %v1309 = vmul.f32 %v924, %v1097
      %v1310 = vmul.f32 %v925, %v1102
      %v1311 = vmul.f32 %v926, %v1107
      %v1312 = vmul.f32 %v927, %v1112
      %v1313 = vmul.f32 %v928, %v1117
      %v1314 = vmul.f32 %v929, %v1122
      %v1315 = vmul.f32 %v930, %v1127
      %v1316 = vmul.f32 %v931, %v1132
      %v1317 = vmul.f32 %v932, %v1137
      %v1318 = vmul.f32 %v933, %v1142
      %v1319 = vmul.f32 %v934, %v1147
      %v1320 = vmul.f32 %v935, %v1152
      %v1321 = vmul.f32 %v936, %v1157
      %v1322 = vmul.f32 %v937, %v1162
      %v1323 = vmul.f32 %v938, %v1167
      %v1324 = vmul.f32 %v939, %v1172
      %v1325 = vmul.f32 %v940, %v1177
      %v1326 = vmul.f32 %v941, %v1182
      %v1327 = vmul.f32 %v942, %v1187
      %v1328 = vmul.f32 %v943, %v1192
      %v1329 = vmul.f32 %v944, %v1197
      %v1330 = vmul.f32 %v945, %v1202
      %v1331 = vmul.f32 %v946, %v1207
      %v1332 = vmul.f32 %v947, %v1212
      %v1333 = vmul.f32 %v948, %v1217
      %v1334 = vmul.f32 %v949, %v1222
      %v1335 = vmul.f32 %v950, %v1227
      %v1336 = vmul.f32 %v951, %v1232
      %v1337 = vmul.f32 %v952, %v1237
      %v1338 = vmul.f32 %v953, %v1242
      %v1339 = vmul.f32 %v954, %v1247
      %v1340 = vmul.f32 %v955, %v1252
      %v1341 = vmul.f32 %v956, %v1257
      %v1342 = vmul.f32 %v957, %v1262
      %v1343 = vmul.f32 %v958, %v1267
      %v1344 = vmul.f32 %v959, %v1272
      %v1345 = vmul.f32 %v960, %v1277
      %v1346 = vmul.f32 %v961, %v1282
      %v1347 = vmul.f32 %v962, %v1287
      %v1348 = vmul.f32 %v963, %v1292
      %v1349 = vpack.c.bf16 %v1295, %v1294
      %v1350 = vpack.c.bf16 %v1297, %v1296
      %v1351 = vpack.c.bf16 %v1299, %v1298
      %v1352 = vpack.c.bf16 %v1301, %v1300
      %v1353 = vpack.c.bf16 %v1303, %v1302
      %v1354 = vpack.c.bf16 %v1305, %v1304
      %v1355 = vpack.c.bf16 %v1307, %v1306
      %v1356 = vpack.c.bf16 %v1309, %v1308
      %v1357 = vpack.c.bf16 %v1311, %v1310
      %v1358 = vpack.c.bf16 %v1313, %v1312
      %v1359 = vpack.c.bf16 %v1315, %v1314
      %v1360 = vpack.c.bf16 %v1317, %v1316
      %v1361 = vpack.c.bf16 %v1319, %v1318
      %v1362 = vpack.c.bf16 %v1321, %v1320
      %v1363 = vpack.c.bf16 %v1323, %v1322
      %v1364 = vpack.c.bf16 %v1325, %v1324
      %v1365 = vpack.c.bf16 %v1327, %v1326
      %v1366 = vpack.c.bf16 %v1329, %v1328
      %v1367 = vpack.c.bf16 %v1331, %v1330
      %v1368 = vpack.c.bf16 %v1333, %v1332
      %v1369 = vpack.c.bf16 %v1335, %v1334
      %v1370 = vpack.c.bf16 %v1337, %v1336
      %v1371 = vpack.c.bf16 %v1339, %v1338
      %v1372 = vpack.c.bf16 %v1341, %v1340
      %v1373 = vpack.c.bf16 %v1343, %v1342
      %v1374 = vpack.c.bf16 %v1345, %v1344
      %v1375 = vpack.c.bf16 %v1347, %v1346
      %v1376 = vpack.c.bf16 %v1348, %v1348
      %v1405 = vunpack.c.l.b16 %v1349
      %v1406 = vunpack.c.h.b16 %v1349
      %v1407 = vunpack.c.l.b16 %v1350
      %v1408 = vunpack.c.h.b16 %v1350
      %v1409 = vunpack.c.l.b16 %v1351
      %v1410 = vunpack.c.h.b16 %v1351
      %v1411 = vunpack.c.l.b16 %v1352
      %v1412 = vunpack.c.h.b16 %v1352
      %v1413 = vunpack.c.l.b16 %v1353
      %v1414 = vunpack.c.h.b16 %v1353
      %v1415 = vunpack.c.l.b16 %v1354
      %v1416 = vunpack.c.h.b16 %v1354
      %v1417 = vunpack.c.l.b16 %v1355
      %v1418 = vunpack.c.h.b16 %v1355
      %v1419 = vunpack.c.l.b16 %v1356
      %v1420 = vunpack.c.h.b16 %v1356
      %v1421 = vunpack.c.l.b16 %v1357
      %v1422 = vunpack.c.h.b16 %v1357
      %v1423 = vunpack.c.l.b16 %v1358
      %v1424 = vunpack.c.h.b16 %v1358
      %v1425 = vunpack.c.l.b16 %v1359
      %v1426 = vunpack.c.h.b16 %v1359
      %v1427 = vunpack.c.l.b16 %v1360
      %v1428 = vunpack.c.h.b16 %v1360
      %v1429 = vunpack.c.l.b16 %v1361
      %v1430 = vunpack.c.h.b16 %v1361
      %v1431 = vunpack.c.l.b16 %v1362
      %v1432 = vunpack.c.h.b16 %v1362
      %v1433 = vunpack.c.l.b16 %v1363
      %v1434 = vunpack.c.h.b16 %v1363
      %v1435 = vunpack.c.l.b16 %v1364
      %v1436 = vunpack.c.h.b16 %v1364
      %v1437 = vunpack.c.l.b16 %v1365
      %v1438 = vunpack.c.h.b16 %v1365
      %v1439 = vunpack.c.l.b16 %v1366
      %v1440 = vunpack.c.h.b16 %v1366
      %v1441 = vunpack.c.l.b16 %v1367
      %v1442 = vunpack.c.h.b16 %v1367
      %v1443 = vunpack.c.l.b16 %v1368
      %v1444 = vunpack.c.h.b16 %v1368
      %v1445 = vunpack.c.l.b16 %v1369
      %v1446 = vunpack.c.h.b16 %v1369
      %v1447 = vunpack.c.l.b16 %v1370
      %v1448 = vunpack.c.h.b16 %v1370
      %v1449 = vunpack.c.l.b16 %v1371
      %v1450 = vunpack.c.h.b16 %v1371
      %v1451 = vunpack.c.l.b16 %v1372
      %v1452 = vunpack.c.h.b16 %v1372
      %v1453 = vunpack.c.l.b16 %v1373
      %v1454 = vunpack.c.h.b16 %v1373
      %v1455 = vunpack.c.l.b16 %v1374
      %v1456 = vunpack.c.h.b16 %v1374
      %v1457 = vunpack.c.l.b16 %v1375
      %v1458 = vunpack.c.h.b16 %v1375
      %v1459 = vunpack.c.l.b16 %v1376
      %v1460 = vpack.c.b16 %v1405, %v1405
      %v1461 = vpack.c.b16 %v1406, %v1406
      %v1462 = vpack.c.b16 %v1407, %v1407
      %v1463 = vpack.c.b16 %v1408, %v1408
      %v1464 = vpack.c.b16 %v1409, %v1409
      %v1465 = vpack.c.b16 %v1410, %v1410
      %v1466 = vpack.c.b16 %v1411, %v1411
      %v1467 = vpack.c.b16 %v1412, %v1412
      %v1468 = vpack.c.b16 %v1413, %v1413
      %v1469 = vpack.c.b16 %v1414, %v1414
      %v1470 = vpack.c.b16 %v1415, %v1415
      %v1471 = vpack.c.b16 %v1416, %v1416
      %v1472 = vpack.c.b16 %v1417, %v1417
      %v1473 = vpack.c.b16 %v1418, %v1418
      %v1474 = vpack.c.b16 %v1419, %v1419
      %v1475 = vpack.c.b16 %v1420, %v1420
      %v1476 = vpack.c.b16 %v1421, %v1421
      %v1477 = vpack.c.b16 %v1422, %v1422
      %v1478 = vpack.c.b16 %v1423, %v1423
      %v1479 = vpack.c.b16 %v1424, %v1424
      %v1480 = vpack.c.b16 %v1425, %v1425
      %v1481 = vpack.c.b16 %v1426, %v1426
      %v1482 = vpack.c.b16 %v1427, %v1427
      %v1483 = vpack.c.b16 %v1428, %v1428
      %v1484 = vpack.c.b16 %v1429, %v1429
      %v1485 = vpack.c.b16 %v1430, %v1430
      %v1486 = vpack.c.b16 %v1431, %v1431
      %v1487 = vpack.c.b16 %v1432, %v1432
      %v1488 = vpack.c.b16 %v1433, %v1433
      %v1489 = vpack.c.b16 %v1434, %v1434
      %v1490 = vpack.c.b16 %v1435, %v1435
      %v1491 = vpack.c.b16 %v1436, %v1436
      %v1492 = vpack.c.b16 %v1437, %v1437
      %v1493 = vpack.c.b16 %v1438, %v1438
      %v1494 = vpack.c.b16 %v1439, %v1439
      %v1495 = vpack.c.b16 %v1440, %v1440
      %v1496 = vpack.c.b16 %v1441, %v1441
      %v1497 = vpack.c.b16 %v1442, %v1442
      %v1498 = vpack.c.b16 %v1443, %v1443
      %v1499 = vpack.c.b16 %v1444, %v1444
      %v1500 = vpack.c.b16 %v1445, %v1445
      %v1501 = vpack.c.b16 %v1446, %v1446
      %v1502 = vpack.c.b16 %v1447, %v1447
      %v1503 = vpack.c.b16 %v1448, %v1448
      %v1504 = vpack.c.b16 %v1449, %v1449
      %v1505 = vpack.c.b16 %v1450, %v1450
      %v1506 = vpack.c.b16 %v1451, %v1451
      %v1507 = vpack.c.b16 %v1452, %v1452
      %v1508 = vpack.c.b16 %v1453, %v1453
      %v1509 = vpack.c.b16 %v1454, %v1454
      %v1510 = vpack.c.b16 %v1455, %v1455
      %v1511 = vpack.c.b16 %v1456, %v1456
      %v1512 = vpack.c.b16 %v1457, %v1457
      %v1513 = vpack.c.b16 %v1458, %v1458
      %v1514 = vpack.c.b16 %v1459, %v1459
      %1570 = vst [vmem:[#allocation2] sm:$0xf] %v1460
      %1571 = vst [vmem:[#allocation2 + $0x4] sm:$0xf] %v1461
      %1572 = vst [vmem:[#allocation2 + $0x8] sm:$0xf] %v1462
      %1573 = vst [vmem:[#allocation2 + $0xc] sm:$0xf] %v1463
      %1574 = vst [vmem:[#allocation2 + $0x10] sm:$0xf] %v1464
      %1575 = vst [vmem:[#allocation2 + $0x14] sm:$0xf] %v1465
      %1576 = vst [vmem:[#allocation2 + $0x18] sm:$0xf] %v1466
      %1577 = vst [vmem:[#allocation2 + $0x1c] sm:$0xf] %v1467
      %1578 = vst [vmem:[#allocation2 + $0x20] sm:$0xf] %v1468
      %1579 = vst [vmem:[#allocation2 + $0x24] sm:$0xf] %v1469
      %1580 = vst [vmem:[#allocation2 + $0x28] sm:$0xf] %v1470
      %1581 = vst [vmem:[#allocation2 + $0x2c] sm:$0xf] %v1471
      %1582 = vst [vmem:[#allocation2 + $0x30] sm:$0xf] %v1472
      %1583 = vst [vmem:[#allocation2 + $0x34] sm:$0xf] %v1473
      %1584 = vst [vmem:[#allocation2 + $0x38] sm:$0xf] %v1474
      %1585 = vst [vmem:[#allocation2 + $0x3c] sm:$0xf] %v1475
      %1586 = vst [vmem:[#allocation2 + $0x40] sm:$0xf] %v1476
      %1587 = vst [vmem:[#allocation2 + $0x44] sm:$0xf] %v1477
      %1588 = vst [vmem:[#allocation2 + $0x48] sm:$0xf] %v1478
      %1589 = vst [vmem:[#allocation2 + $0x4c] sm:$0xf] %v1479
      %1590 = vst [vmem:[#allocation2 + $0x50] sm:$0xf] %v1480
      %1591 = vst [vmem:[#allocation2 + $0x54] sm:$0xf] %v1481
      %1592 = vst [vmem:[#allocation2 + $0x58] sm:$0xf] %v1482
      %1593 = vst [vmem:[#allocation2 + $0x5c] sm:$0xf] %v1483
      %1594 = vst [vmem:[#allocation2 + $0x60] sm:$0xf] %v1484
      %1595 = vst [vmem:[#allocation2 + $0x64] sm:$0xf] %v1485
      %1596 = vst [vmem:[#allocation2 + $0x68] sm:$0xf] %v1486
      %1597 = vst [vmem:[#allocation2 + $0x6c] sm:$0xf] %v1487
      %1598 = vst [vmem:[#allocation2 + $0x70] sm:$0xf] %v1488
      %1599 = vst [vmem:[#allocation2 + $0x74] sm:$0xf] %v1489
      %1600 = vst [vmem:[#allocation2 + $0x78] sm:$0xf] %v1490
      %1601 = vst [vmem:[#allocation2 + $0x7c] sm:$0xf] %v1491
      %1602 = vst [vmem:[#allocation2 + $0x80] sm:$0xf] %v1492
      %1603 = vst [vmem:[#allocation2 + $0x84] sm:$0xf] %v1493
      %1604 = vst [vmem:[#allocation2 + $0x88] sm:$0xf] %v1494
      %1605 = vst [vmem:[#allocation2 + $0x8c] sm:$0xf] %v1495
      %1606 = vst [vmem:[#allocation2 + $0x90] sm:$0xf] %v1496
      %1607 = vst [vmem:[#allocation2 + $0x94] sm:$0xf] %v1497
      %1608 = vst [vmem:[#allocation2 + $0x98] sm:$0xf] %v1498
      %1609 = vst [vmem:[#allocation2 + $0x9c] sm:$0xf] %v1499
      %1610 = vst [vmem:[#allocation2 + $0xa0] sm:$0xf] %v1500
      %1611 = vst [vmem:[#allocation2 + $0xa4] sm:$0xf] %v1501
      %1612 = vst [vmem:[#allocation2 + $0xa8] sm:$0xf] %v1502
      %1613 = vst [vmem:[#allocation2 + $0xac] sm:$0xf] %v1503
      %1614 = vst [vmem:[#allocation2 + $0xb0] sm:$0xf] %v1504
      %1615 = vst [vmem:[#allocation2 + $0xb4] sm:$0xf] %v1505
      %1616 = vst [vmem:[#allocation2 + $0xb8] sm:$0xf] %v1506
      %1617 = vst [vmem:[#allocation2 + $0xbc] sm:$0xf] %v1507
      %1618 = vst [vmem:[#allocation2 + $0xc0] sm:$0xf] %v1508
      %1619 = vst [vmem:[#allocation2 + $0xc4] sm:$0xf] %v1509
      %1620 = vst [vmem:[#allocation2 + $0xc8] sm:$0xf] %v1510
      %1621 = vst [vmem:[#allocation2 + $0xcc] sm:$0xf] %v1511
      %1622 = vst [vmem:[#allocation2 + $0xd0] sm:$0xf] %v1512
      %1623 = vst [vmem:[#allocation2 + $0xd4] sm:$0xf] %v1513
      %1624 = vst [vmem:[#allocation2 + $0xd8] sm:$0xf] %v1514
      %v1625 = vld [vmem:[#allocation2] sm:$0xf]
      %v1626 = vld [vmem:[#allocation2 + $0x4] sm:$0xf]
      %v1627 = vld [vmem:[#allocation2 + $0x8] sm:$0xf]
      %v1628 = vld [vmem:[#allocation2 + $0xc] sm:$0xf]
      %v1629 = vld [vmem:[#allocation2 + $0x10] sm:$0xf]
      %v1630 = vld [vmem:[#allocation2 + $0x14] sm:$0xf]
      %v1631 = vld [vmem:[#allocation2 + $0x18] sm:$0xf]
      %v1632 = vld [vmem:[#allocation2 + $0x1c] sm:$0xf]
      %v1633 = vld [vmem:[#allocation2 + $0x20] sm:$0xf]
      %v1634 = vld [vmem:[#allocation2 + $0x24] sm:$0xf]
      %v1635 = vld [vmem:[#allocation2 + $0x28] sm:$0xf]
      %v1636 = vld [vmem:[#allocation2 + $0x2c] sm:$0xf]
      %v1637 = vld [vmem:[#allocation2 + $0x30] sm:$0xf]
      %v1638 = vld [vmem:[#allocation2 + $0x34] sm:$0xf]
      %v1639 = vld [vmem:[#allocation2 + $0x38] sm:$0xf]
      %v1640 = vld [vmem:[#allocation2 + $0x3c] sm:$0xf]
      %v1641 = vld [vmem:[#allocation2 + $0x40] sm:$0xf]
      %v1642 = vld [vmem:[#allocation2 + $0x44] sm:$0xf]
      %v1643 = vld [vmem:[#allocation2 + $0x48] sm:$0xf]
      %v1644 = vld [vmem:[#allocation2 + $0x4c] sm:$0xf]
      %v1645 = vld [vmem:[#allocation2 + $0x50] sm:$0xf]
      %v1646 = vld [vmem:[#allocation2 + $0x54] sm:$0xf]
      %v1647 = vld [vmem:[#allocation2 + $0x58] sm:$0xf]
      %v1648 = vld [vmem:[#allocation2 + $0x5c] sm:$0xf]
      %v1649 = vld [vmem:[#allocation2 + $0x60] sm:$0xf]
      %v1650 = vld [vmem:[#allocation2 + $0x64] sm:$0xf]
      %v1651 = vld [vmem:[#allocation2 + $0x68] sm:$0xf]
      %v1652 = vld [vmem:[#allocation2 + $0x6c] sm:$0xf]
      %v1653 = vld [vmem:[#allocation2 + $0x70] sm:$0xf]
      %v1654 = vld [vmem:[#allocation2 + $0x74] sm:$0xf]
      %v1655 = vld [vmem:[#allocation2 + $0x78] sm:$0xf]
      %v1656 = vld [vmem:[#allocation2 + $0x7c] sm:$0xf]
      %v1657 = vld [vmem:[#allocation2 + $0x80] sm:$0xf]
      %v1658 = vld [vmem:[#allocation2 + $0x84] sm:$0xf]
      %v1659 = vld [vmem:[#allocation2 + $0x88] sm:$0xf]
      %v1660 = vld [vmem:[#allocation2 + $0x8c] sm:$0xf]
      %v1661 = vld [vmem:[#allocation2 + $0x90] sm:$0xf]
      %v1662 = vld [vmem:[#allocation2 + $0x94] sm:$0xf]
      %v1663 = vld [vmem:[#allocation2 + $0x98] sm:$0xf]
      %v1664 = vld [vmem:[#allocation2 + $0x9c] sm:$0xf]
      %v1665 = vld [vmem:[#allocation2 + $0xa0] sm:$0xf]
      %v1666 = vld [vmem:[#allocation2 + $0xa4] sm:$0xf]
      %v1667 = vld [vmem:[#allocation2 + $0xa8] sm:$0xf]
      %v1668 = vld [vmem:[#allocation2 + $0xac] sm:$0xf]
      %v1669 = vld [vmem:[#allocation2 + $0xb0] sm:$0xf]
      %v1670 = vld [vmem:[#allocation2 + $0xb4] sm:$0xf]
      %v1671 = vld [vmem:[#allocation2 + $0xb8] sm:$0xf]
      %v1672 = vld [vmem:[#allocation2 + $0xbc] sm:$0xf]
      %v1673 = vld [vmem:[%s4] sm:$0xf]
      %v1674 = vld [vmem:[%s4 + $0x4] sm:$0xf]
      %v1675 = vld [vmem:[%s4 + $0x8] sm:$0xf]
      %v1676 = vld [vmem:[%s4 + $0xc] sm:$0xf]
      %v1677 = vld [vmem:[%s4 + $0x10] sm:$0xf]
      %v1678 = vld [vmem:[%s4 + $0x14] sm:$0xf]
      %v1679 = vld [vmem:[%s4 + $0x18] sm:$0xf]
      %v1680 = vld [vmem:[%s4 + $0x1c] sm:$0xf]
      %v1681 = vld [vmem:[%s4 + $0x20] sm:$0xf]
      %v1682 = vld [vmem:[%s4 + $0x24] sm:$0xf]
      %v1683 = vld [vmem:[%s4 + $0x28] sm:$0xf]
      %v1684 = vld [vmem:[%s4 + $0x2c] sm:$0xf]
      %v1685 = vld [vmem:[%s4 + $0x30] sm:$0xf]
      %v1686 = vld [vmem:[%s4 + $0x34] sm:$0xf]
      %v1687 = vld [vmem:[%s4 + $0x38] sm:$0xf]
      %v1688 = vld [vmem:[%s4 + $0x3c] sm:$0xf]
      %v1737 = vunpack.c.l.b16 %v1625
      %v1738 = vunpack.c.l.b16 %v1626
      %v1739 = vunpack.c.l.b16 %v1627
      %v1740 = vunpack.c.l.b16 %v1628
      %v1741 = vunpack.c.l.b16 %v1629
      %v1742 = vunpack.c.l.b16 %v1630
      %v1743 = vunpack.c.l.b16 %v1631
      %v1744 = vunpack.c.l.b16 %v1632
      %v1745 = vunpack.c.l.b16 %v1633
      %v1746 = vunpack.c.l.b16 %v1634
      %v1747 = vunpack.c.l.b16 %v1635
      %v1748 = vunpack.c.l.b16 %v1636
      %v1749 = vunpack.c.l.b16 %v1637
      %v1750 = vunpack.c.l.b16 %v1638
      %v1751 = vunpack.c.l.b16 %v1639
      %v1752 = vunpack.c.l.b16 %v1640
      %v1753 = vunpack.c.l.b16 %v1641
      %v1754 = vunpack.c.l.b16 %v1642
      %v1755 = vunpack.c.l.b16 %v1643
      %v1756 = vunpack.c.l.b16 %v1644
      %v1757 = vunpack.c.l.b16 %v1645
      %v1758 = vunpack.c.l.b16 %v1646
      %v1759 = vunpack.c.l.b16 %v1647
      %v1760 = vunpack.c.l.b16 %v1648
      %v1761 = vunpack.c.l.b16 %v1649
      %v1762 = vunpack.c.l.b16 %v1650
      %v1763 = vunpack.c.l.b16 %v1651
      %v1764 = vunpack.c.l.b16 %v1652
      %v1765 = vunpack.c.l.b16 %v1653
      %v1766 = vunpack.c.l.b16 %v1654
      %v1767 = vunpack.c.l.b16 %v1655
      %v1768 = vunpack.c.l.b16 %v1656
      %v1769 = vunpack.c.l.b16 %v1657
      %v1770 = vunpack.c.l.b16 %v1658
      %v1771 = vunpack.c.l.b16 %v1659
      %v1772 = vunpack.c.l.b16 %v1660
      %v1773 = vunpack.c.l.b16 %v1661
      %v1774 = vunpack.c.l.b16 %v1662
      %v1775 = vunpack.c.l.b16 %v1663
      %v1776 = vunpack.c.l.b16 %v1664
      %v1777 = vunpack.c.l.b16 %v1665
      %v1778 = vunpack.c.l.b16 %v1666
      %v1779 = vunpack.c.l.b16 %v1667
      %v1780 = vunpack.c.l.b16 %v1668
      %v1781 = vunpack.c.l.b16 %v1669
      %v1782 = vunpack.c.l.b16 %v1670
      %v1783 = vunpack.c.l.b16 %v1671
      %v1784 = vunpack.c.l.b16 %v1672
      %v1785 = vpack.c.b16 %v1738, %v1737
      %v1786 = vpack.c.b16 %v1740, %v1739
      %v1787 = vpack.c.b16 %v1742, %v1741
      %v1788 = vpack.c.b16 %v1744, %v1743
      %v1789 = vpack.c.b16 %v1746, %v1745
      %v1790 = vpack.c.b16 %v1748, %v1747
      %v1791 = vpack.c.b16 %v1750, %v1749
      %v1792 = vpack.c.b16 %v1752, %v1751
      %v1793 = vpack.c.b16 %v1754, %v1753
      %v1794 = vpack.c.b16 %v1756, %v1755
      %v1795 = vpack.c.b16 %v1758, %v1757
      %v1796 = vpack.c.b16 %v1760, %v1759
      %v1797 = vpack.c.b16 %v1762, %v1761
      %v1798 = vpack.c.b16 %v1764, %v1763
      %v1799 = vpack.c.b16 %v1766, %v1765
      %v1800 = vpack.c.b16 %v1768, %v1767
      %v1801 = vpack.c.b16 %v1770, %v1769
      %v1802 = vpack.c.b16 %v1772, %v1771
      %v1803 = vpack.c.b16 %v1774, %v1773
      %v1804 = vpack.c.b16 %v1776, %v1775
      %v1805 = vpack.c.b16 %v1778, %v1777
      %v1806 = vpack.c.b16 %v1780, %v1779
      %v1807 = vpack.c.b16 %v1782, %v1781
      %v1808 = vpack.c.b16 %v1784, %v1783
      %v1849 = vunpack.c.l.b16 %v1673
      %v1850 = vunpack.c.l.b16 %v1674
      %v1851 = vunpack.c.l.b16 %v1675
      %v1852 = vunpack.c.l.b16 %v1676
      %v1853 = vunpack.c.l.b16 %v1677
      %v1854 = vunpack.c.l.b16 %v1678
      %v1855 = vunpack.c.l.b16 %v1679
      %v1856 = vunpack.c.l.b16 %v1680
      %v1857 = vunpack.c.l.b16 %v1681
      %v1858 = vunpack.c.l.b16 %v1682
      %v1859 = vunpack.c.l.b16 %v1683
      %v1860 = vunpack.c.l.b16 %v1684
      %v1861 = vunpack.c.l.b16 %v1685
      %v1862 = vunpack.c.l.b16 %v1686
      %v1863 = vunpack.c.l.b16 %v1687
      %v1864 = vunpack.c.l.b16 %v1688
      %v1865 = vpack.c.b16 %v1850, %v1849
      %v1866 = vpack.c.b16 %v1852, %v1851
      %v1867 = vpack.c.b16 %v1854, %v1853
      %v1868 = vpack.c.b16 %v1856, %v1855
      %v1869 = vpack.c.b16 %v1858, %v1857
      %v1870 = vpack.c.b16 %v1860, %v1859
      %v1871 = vpack.c.b16 %v1862, %v1861
      %v1872 = vpack.c.b16 %v1864, %v1863
      %1881 = vmatprep.subr.bf16.mxu0 0
      %1882 = vmatpush1.bf16.msra.mxu0 %v1865
      %1883 = vmatprep.subr.bf16.mxu0 0
      %1884 = vmatpush1.bf16.msra.mxu0 %v1866
      %1885 = vmatprep.subr.bf16.mxu0 0
      %1886 = vmatpush1.bf16.msra.mxu0 %v1867
      %1887 = vmatprep.subr.bf16.mxu0 0
      %1888 = vmatpush1.bf16.msra.mxu0 %v1868
      %1889 = vmatprep.subr.bf16.mxu0 0
      %1890 = vmatpush1.bf16.msra.mxu0 %v1869
      %1891 = vmatprep.subr.bf16.mxu0 0
      %1892 = vmatpush1.bf16.msra.mxu0 %v1870
      %1893 = vmatprep.subr.bf16.mxu0 0
      %1894 = vmatpush1.bf16.msra.mxu0 %v1871
      %1895 = vmatprep.subr.bf16.mxu0 0
      %1896 = vmatpush1.bf16.msra.mxu0 %v1872
      %1897 = vmatprep.subr.bf16.mxu0 0
      %1898 = vmatpush1.bf16.msra.mxu0 0
      %1899 = vmatprep.subr.bf16.mxu0 0
      %1900 = vmatpush1.bf16.msra.mxu0 0
      %1901 = vmatprep.subr.bf16.mxu0 0
      %1902 = vmatpush1.bf16.msra.mxu0 0
      %1903 = vmatprep.subr.bf16.mxu0 0
      %1904 = vmatpush1.bf16.msra.mxu0 0
      %1905 = vmatprep.subr.bf16.mxu0 0
      %1906 = vmatpush1.bf16.msra.mxu0 0
      %1907 = vmatprep.subr.bf16.mxu0 0
      %1908 = vmatpush1.bf16.msra.mxu0 0
      %1909 = vmatprep.subr.bf16.mxu0 0
      %1910 = vmatpush1.bf16.msra.mxu0 0
      %1911 = vmatprep.subr.bf16.mxu0 0
      %1912 = vmatpush1.bf16.msra.mxu0 0
      %1913 = vmatprep.mubr.bf16.mxu0 0
      %1914 = vmatmul.mubr.bf16.gmra.mrb[0].mxu0 %v1785
      %v1915 = vpop.f32.mrb[0].mxu0
      %v1916 = vadd.f32 0.0, %v1915
      %v1917 = vpop.f32.mrb[0].mxu0
      %v1918 = vpop.f32.mrb[0].mxu0
      %v1919 = vadd.f32 0.0, %v1918
      %v1920 = vpop.f32.mrb[0].mxu0
      %1921 = vmatprep.mubr.bf16.mxu0 0
      %1922 = vmatmul.mubr.bf16.gmra.mrb[0].mxu0 %v1786
      %v1923 = vpop.f32.mrb[0].mxu0
      %v1924 = vadd.f32 0.0, %v1923
      %v1925 = vpop.f32.mrb[0].mxu0
      %v1926 = vpop.f32.mrb[0].mxu0
      %v1927 = vadd.f32 0.0, %v1926
      %v1928 = vpop.f32.mrb[0].mxu0
      %1929 = vmatprep.mubr.bf16.mxu0 0
      %1930 = vmatmul.mubr.bf16.gmra.mrb[0].mxu0 %v1787
      %v1931 = vpop.f32.mrb[0].mxu0
      %v1932 = vadd.f32 0.0, %v1931
      %v1933 = vpop.f32.mrb[0].mxu0
      %v1934 = vpop.f32.mrb[0].mxu0
      %v1935 = vadd.f32 0.0, %v1934
      %v1936 = vpop.f32.mrb[0].mxu0
      %1937 = vmatprep.mubr.bf16.mxu0 0
      %1938 = vmatmul.mubr.bf16.gmra.mrb[0].mxu0 %v1788
      %v1939 = vpop.f32.mrb[0].mxu0
      %v1940 = vadd.f32 0.0, %v1939
      %v1941 = vpop.f32.mrb[0].mxu0
      %v1942 = vpop.f32.mrb[0].mxu0
      %v1943 = vadd.f32 0.0, %v1942
      %v1944 = vpop.f32.mrb[0].mxu0
      %1945 = vmatprep.mubr.bf16.mxu0 0
      %1946 = vmatmul.mubr.bf16.gmra.mrb[0].mxu0 %v1789
      %v1947 = vpop.f32.mrb[0].mxu0
      %v1948 = vadd.f32 0.0, %v1947
      %v1949 = vpop.f32.mrb[0].mxu0
      %v1950 = vpop.f32.mrb[0].mxu0
      %v1951 = vadd.f32 0.0, %v1950
      %v1952 = vpop.f32.mrb[0].mxu0
      %1953 = vmatprep.mubr.bf16.mxu0 0
      %1954 = vmatmul.mubr.bf16.gmra.mrb[0].mxu0 %v1790
      %v1955 = vpop.f32.mrb[0].mxu0
      %v1956 = vadd.f32 0.0, %v1955
      %v1957 = vpop.f32.mrb[0].mxu0
      %v1958 = vpop.f32.mrb[0].mxu0
      %v1959 = vadd.f32 0.0, %v1958
      %v1960 = vpop.f32.mrb[0].mxu0
      %1961 = vmatprep.mubr.bf16.mxu0 0
      %1962 = vmatmul.mubr.bf16.gmra.mrb[0].mxu0 %v1791
      %v1963 = vpop.f32.mrb[0].mxu0
      %v1964 = vadd.f32 0.0, %v1963
      %v1965 = vpop.f32.mrb[0].mxu0
      %v1966 = vpop.f32.mrb[0].mxu0
      %v1967 = vadd.f32 0.0, %v1966
      %v1968 = vpop.f32.mrb[0].mxu0
      %1969 = vmatprep.mubr.bf16.mxu0 0
      %1970 = vmatmul.mubr.bf16.gmra.mrb[0].mxu0 %v1792
      %v1971 = vpop.f32.mrb[0].mxu0
      %v1972 = vadd.f32 0.0, %v1971
      %v1973 = vpop.f32.mrb[0].mxu0
      %v1974 = vpop.f32.mrb[0].mxu0
      %v1975 = vadd.f32 0.0, %v1974
      %v1976 = vpop.f32.mrb[0].mxu0
      %1977 = vmatprep.mubr.bf16.mxu0 0
      %1978 = vmatmul.mubr.bf16.gmra.mrb[0].mxu0 %v1793
      %v1979 = vpop.f32.mrb[0].mxu0
      %v1980 = vadd.f32 0.0, %v1979
      %v1981 = vpop.f32.mrb[0].mxu0
      %v1982 = vpop.f32.mrb[0].mxu0
      %v1983 = vadd.f32 0.0, %v1982
      %v1984 = vpop.f32.mrb[0].mxu0
      %1985 = vmatprep.mubr.bf16.mxu0 0
      %1986 = vmatmul.mubr.bf16.gmra.mrb[0].mxu0 %v1794
      %v1987 = vpop.f32.mrb[0].mxu0
      %v1988 = vadd.f32 0.0, %v1987
      %v1989 = vpop.f32.mrb[0].mxu0
      %v1990 = vpop.f32.mrb[0].mxu0
      %v1991 = vadd.f32 0.0, %v1990
      %v1992 = vpop.f32.mrb[0].mxu0
      %1993 = vmatprep.mubr.bf16.mxu0 0
      %1994 = vmatmul.mubr.bf16.gmra.mrb[0].mxu0 %v1795
      %v1995 = vpop.f32.mrb[0].mxu0
      %v1996 = vadd.f32 0.0, %v1995
      %v1997 = vpop.f32.mrb[0].mxu0
      %v1998 = vpop.f32.mrb[0].mxu0
      %v1999 = vadd.f32 0.0, %v1998
      %v2000 = vpop.f32.mrb[0].mxu0
      %2001 = vmatprep.mubr.bf16.mxu0 0
      %2002 = vmatmul.mubr.bf16.gmra.mrb[0].mxu0 %v1796
      %v2003 = vpop.f32.mrb[0].mxu0
      %v2004 = vadd.f32 0.0, %v2003
      %v2005 = vpop.f32.mrb[0].mxu0
      %v2006 = vpop.f32.mrb[0].mxu0
      %v2007 = vadd.f32 0.0, %v2006
      %v2008 = vpop.f32.mrb[0].mxu0
      %2009 = vmatprep.mubr.bf16.mxu0 0
      %2010 = vmatmul.mubr.bf16.gmra.mrb[0].mxu0 %v1797
      %v2011 = vpop.f32.mrb[0].mxu0
      %v2012 = vadd.f32 0.0, %v2011
      %v2013 = vpop.f32.mrb[0].mxu0
      %v2014 = vpop.f32.mrb[0].mxu0
      %v2015 = vadd.f32 0.0, %v2014
      %v2016 = vpop.f32.mrb[0].mxu0
      %2017 = vmatprep.mubr.bf16.mxu0 0
      %2018 = vmatmul.mubr.bf16.gmra.mrb[0].mxu0 %v1798
      %v2019 = vpop.f32.mrb[0].mxu0
      %v2020 = vadd.f32 0.0, %v2019
      %v2021 = vpop.f32.mrb[0].mxu0
      %v2022 = vpop.f32.mrb[0].mxu0
      %v2023 = vadd.f32 0.0, %v2022
      %v2024 = vpop.f32.mrb[0].mxu0
      %2025 = vmatprep.mubr.bf16.mxu0 0
      %2026 = vmatmul.mubr.bf16.gmra.mrb[0].mxu0 %v1799
      %v2027 = vpop.f32.mrb[0].mxu0
      %v2028 = vadd.f32 0.0, %v2027
      %v2029 = vpop.f32.mrb[0].mxu0
      %v2030 = vpop.f32.mrb[0].mxu0
      %v2031 = vadd.f32 0.0, %v2030
      %v2032 = vpop.f32.mrb[0].mxu0
      %2033 = vmatprep.mubr.bf16.mxu0 0
      %2034 = vmatmul.mubr.bf16.gmra.mrb[0].mxu0 %v1800
      %v2035 = vpop.f32.mrb[0].mxu0
      %v2036 = vadd.f32 0.0, %v2035
      %v2037 = vpop.f32.mrb[0].mxu0
      %v2038 = vpop.f32.mrb[0].mxu0
      %v2039 = vadd.f32 0.0, %v2038
      %v2040 = vpop.f32.mrb[0].mxu0
      %2041 = vmatprep.mubr.bf16.mxu0 0
      %2042 = vmatmul.mubr.bf16.gmra.mrb[0].mxu0 %v1801
      %v2043 = vpop.f32.mrb[0].mxu0
      %v2044 = vadd.f32 0.0, %v2043
      %v2045 = vpop.f32.mrb[0].mxu0
      %v2046 = vpop.f32.mrb[0].mxu0
      %v2047 = vadd.f32 0.0, %v2046
      %v2048 = vpop.f32.mrb[0].mxu0
      %2049 = vmatprep.mubr.bf16.mxu0 0
      %2050 = vmatmul.mubr.bf16.gmra.mrb[0].mxu0 %v1802
      %v2051 = vpop.f32.mrb[0].mxu0
      %v2052 = vadd.f32 0.0, %v2051
      %v2053 = vpop.f32.mrb[0].mxu0
      %v2054 = vpop.f32.mrb[0].mxu0
      %v2055 = vadd.f32 0.0, %v2054
      %v2056 = vpop.f32.mrb[0].mxu0
      %2057 = vmatprep.mubr.bf16.mxu0 0
      %2058 = vmatmul.mubr.bf16.gmra.mrb[0].mxu0 %v1803
      %v2059 = vpop.f32.mrb[0].mxu0
      %v2060 = vadd.f32 0.0, %v2059
      %v2061 = vpop.f32.mrb[0].mxu0
      %v2062 = vpop.f32.mrb[0].mxu0
      %v2063 = vadd.f32 0.0, %v2062
      %v2064 = vpop.f32.mrb[0].mxu0
      %2065 = vmatprep.mubr.bf16.mxu0 0
      %2066 = vmatmul.mubr.bf16.gmra.mrb[0].mxu0 %v1804
      %v2067 = vpop.f32.mrb[0].mxu0
      %v2068 = vadd.f32 0.0, %v2067
      %v2069 = vpop.f32.mrb[0].mxu0
      %v2070 = vpop.f32.mrb[0].mxu0
      %v2071 = vadd.f32 0.0, %v2070
      %v2072 = vpop.f32.mrb[0].mxu0
      %2073 = vmatprep.mubr.bf16.mxu0 0
      %2074 = vmatmul.mubr.bf16.gmra.mrb[0].mxu0 %v1805
      %v2075 = vpop.f32.mrb[0].mxu0
      %v2076 = vadd.f32 0.0, %v2075
      %v2077 = vpop.f32.mrb[0].mxu0
      %v2078 = vpop.f32.mrb[0].mxu0
      %v2079 = vadd.f32 0.0, %v2078
      %v2080 = vpop.f32.mrb[0].mxu0
      %2081 = vmatprep.mubr.bf16.mxu0 0
      %2082 = vmatmul.mubr.bf16.gmra.mrb[0].mxu0 %v1806
      %v2083 = vpop.f32.mrb[0].mxu0
      %v2084 = vadd.f32 0.0, %v2083
      %v2085 = vpop.f32.mrb[0].mxu0
      %v2086 = vpop.f32.mrb[0].mxu0
      %v2087 = vadd.f32 0.0, %v2086
      %v2088 = vpop.f32.mrb[0].mxu0
      %2089 = vmatprep.mubr.bf16.mxu0 0
      %2090 = vmatmul.mubr.bf16.gmra.mrb[0].mxu0 %v1807
      %v2091 = vpop.f32.mrb[0].mxu0
      %v2092 = vadd.f32 0.0, %v2091
      %v2093 = vpop.f32.mrb[0].mxu0
      %v2094 = vpop.f32.mrb[0].mxu0
      %v2095 = vadd.f32 0.0, %v2094
      %v2096 = vpop.f32.mrb[0].mxu0
      %2097 = vmatprep.mubr.bf16.mxu0 0
      %2098 = vmatmul.mubr.bf16.gmra.mrb[0].mxu0 %v1808
      %v2099 = vpop.f32.mrb[0].mxu0
      %v2100 = vadd.f32 0.0, %v2099
      %v2101 = vpop.f32.mrb[0].mxu0
      %v2102 = vpop.f32.mrb[0].mxu0
      %v2103 = vadd.f32 0.0, %v2102
      %v2104 = vpop.f32.mrb[0].mxu0
      %2105 = vdwg.mxu0
      %2106 = vst [vmem:[#allocation4] sm:$0xff] %v1916
      %2107 = vst [vmem:[#allocation4 + $0x8] sm:$0xff] %v1919
      %2108 = vst [vmem:[#allocation4 + $0x10] sm:$0xff] %v1924
      %2109 = vst [vmem:[#allocation4 + $0x18] sm:$0xff] %v1927
      %2110 = vst [vmem:[#allocation4 + $0x20] sm:$0xff] %v1932
      %2111 = vst [vmem:[#allocation4 + $0x28] sm:$0xff] %v1935
      %2112 = vst [vmem:[#allocation4 + $0x30] sm:$0xff] %v1940
      %2113 = vst [vmem:[#allocation4 + $0x38] sm:$0xff] %v1943
      %2114 = vst [vmem:[#allocation4 + $0x40] sm:$0xff] %v1948
      %2115 = vst [vmem:[#allocation4 + $0x48] sm:$0xff] %v1951
      %2116 = vst [vmem:[#allocation4 + $0x50] sm:$0xff] %v1956
      %2117 = vst [vmem:[#allocation4 + $0x58] sm:$0xff] %v1959
      %2118 = vst [vmem:[#allocation4 + $0x60] sm:$0xff] %v1964
      %2119 = vst [vmem:[#allocation4 + $0x68] sm:$0xff] %v1967
      %2120 = vst [vmem:[#allocation4 + $0x70] sm:$0xff] %v1972
      %2121 = vst [vmem:[#allocation4 + $0x78] sm:$0xff] %v1975
      %2122 = vst [vmem:[#allocation4 + $0x80] sm:$0xff] %v1980
      %2123 = vst [vmem:[#allocation4 + $0x88] sm:$0xff] %v1983
      %2124 = vst [vmem:[#allocation4 + $0x90] sm:$0xff] %v1988
      %2125 = vst [vmem:[#allocation4 + $0x98] sm:$0xff] %v1991
      %2126 = vst [vmem:[#allocation4 + $0xa0] sm:$0xff] %v1996
      %2127 = vst [vmem:[#allocation4 + $0xa8] sm:$0xff] %v1999
      %2128 = vst [vmem:[#allocation4 + $0xb0] sm:$0xff] %v2004
      %2129 = vst [vmem:[#allocation4 + $0xb8] sm:$0xff] %v2007
      %2130 = vst [vmem:[#allocation4 + $0xc0] sm:$0xff] %v2012
      %2131 = vst [vmem:[#allocation4 + $0xc8] sm:$0xff] %v2015
      %2132 = vst [vmem:[#allocation4 + $0xd0] sm:$0xff] %v2020
      %2133 = vst [vmem:[#allocation4 + $0xd8] sm:$0xff] %v2023
      %2134 = vst [vmem:[#allocation4 + $0xe0] sm:$0xff] %v2028
      %2135 = vst [vmem:[#allocation4 + $0xe8] sm:$0xff] %v2031
      %2136 = vst [vmem:[#allocation4 + $0xf0] sm:$0xff] %v2036
      %2137 = vst [vmem:[#allocation4 + $0xf8] sm:$0xff] %v2039
      %2138 = vst [vmem:[#allocation4 + $0x100] sm:$0xff] %v2044
      %2139 = vst [vmem:[#allocation4 + $0x108] sm:$0xff] %v2047
      %2140 = vst [vmem:[#allocation4 + $0x110] sm:$0xff] %v2052
      %2141 = vst [vmem:[#allocation4 + $0x118] sm:$0xff] %v2055
      %2142 = vst [vmem:[#allocation4 + $0x120] sm:$0xff] %v2060
      %2143 = vst [vmem:[#allocation4 + $0x128] sm:$0xff] %v2063
      %2144 = vst [vmem:[#allocation4 + $0x130] sm:$0xff] %v2068
      %2145 = vst [vmem:[#allocation4 + $0x138] sm:$0xff] %v2071
      %2146 = vst [vmem:[#allocation4 + $0x140] sm:$0xff] %v2076
      %2147 = vst [vmem:[#allocation4 + $0x148] sm:$0xff] %v2079
      %2148 = vst [vmem:[#allocation4 + $0x150] sm:$0xff] %v2084
      %2149 = vst [vmem:[#allocation4 + $0x158] sm:$0xff] %v2087
      %2150 = vst [vmem:[#allocation4 + $0x160] sm:$0xff] %v2092
      %2151 = vst [vmem:[#allocation4 + $0x168] sm:$0xff] %v2095
      %2152 = vst [vmem:[#allocation4 + $0x170] sm:$0xff] %v2100
      %2153 = vst [vmem:[#allocation4 + $0x178] sm:$0xff] %v2103
      %v2154 = vld [vmem:[#allocation2] sm:$0xf]
      %v2155 = vld [vmem:[#allocation2 + $0x4] sm:$0xf]
      %v2156 = vld [vmem:[#allocation2 + $0x8] sm:$0xf]
      %v2157 = vld [vmem:[#allocation2 + $0xc] sm:$0xf]
      %v2158 = vld [vmem:[#allocation2 + $0x10] sm:$0xf]
      %v2159 = vld [vmem:[#allocation2 + $0x14] sm:$0xf]
      %v2160 = vld [vmem:[#allocation2 + $0x18] sm:$0xf]
      %v2161 = vld [vmem:[#allocation2 + $0x1c] sm:$0xf]
      %v2162 = vld [vmem:[#allocation2 + $0x20] sm:$0xf]
      %v2163 = vld [vmem:[#allocation2 + $0x24] sm:$0xf]
      %v2164 = vld [vmem:[#allocation2 + $0x28] sm:$0xf]
      %v2165 = vld [vmem:[#allocation2 + $0x2c] sm:$0xf]
      %v2166 = vld [vmem:[#allocation2 + $0x30] sm:$0xf]
      %v2167 = vld [vmem:[#allocation2 + $0x34] sm:$0xf]
      %v2168 = vld [vmem:[#allocation2 + $0x38] sm:$0xf]
      %v2169 = vld [vmem:[#allocation2 + $0x3c] sm:$0xf]
      %v2170 = vld [vmem:[#allocation2 + $0x40] sm:$0xf]
      %v2171 = vld [vmem:[#allocation2 + $0x44] sm:$0xf]
      %v2172 = vld [vmem:[#allocation2 + $0x48] sm:$0xf]
      %v2173 = vld [vmem:[#allocation2 + $0x4c] sm:$0xf]
      %v2174 = vld [vmem:[#allocation2 + $0x50] sm:$0xf]
      %v2175 = vld [vmem:[#allocation2 + $0x54] sm:$0xf]
      %v2176 = vld [vmem:[#allocation2 + $0x58] sm:$0xf]
      %v2177 = vld [vmem:[#allocation2 + $0x5c] sm:$0xf]
      %v2178 = vld [vmem:[#allocation2 + $0x60] sm:$0xf]
      %v2179 = vld [vmem:[#allocation2 + $0x64] sm:$0xf]
      %v2180 = vld [vmem:[#allocation2 + $0x68] sm:$0xf]
      %v2181 = vld [vmem:[#allocation2 + $0x6c] sm:$0xf]
      %v2182 = vld [vmem:[#allocation2 + $0x70] sm:$0xf]
      %v2183 = vld [vmem:[#allocation2 + $0x74] sm:$0xf]
      %v2184 = vld [vmem:[#allocation2 + $0x78] sm:$0xf]
      %v2185 = vld [vmem:[#allocation2 + $0x7c] sm:$0xf]
      %v2186 = vld [vmem:[#allocation2 + $0x80] sm:$0xf]
      %v2187 = vld [vmem:[#allocation2 + $0x84] sm:$0xf]
      %v2188 = vld [vmem:[#allocation2 + $0x88] sm:$0xf]
      %v2189 = vld [vmem:[#allocation2 + $0x8c] sm:$0xf]
      %v2190 = vld [vmem:[#allocation2 + $0x90] sm:$0xf]
      %v2191 = vld [vmem:[#allocation2 + $0x94] sm:$0xf]
      %v2192 = vld [vmem:[#allocation2 + $0x98] sm:$0xf]
      %v2193 = vld [vmem:[#allocation2 + $0x9c] sm:$0xf]
      %v2194 = vld [vmem:[#allocation2 + $0xa0] sm:$0xf]
      %v2195 = vld [vmem:[#allocation2 + $0xa4] sm:$0xf]
      %v2196 = vld [vmem:[#allocation2 + $0xa8] sm:$0xf]
      %v2197 = vld [vmem:[#allocation2 + $0xac] sm:$0xf]
      %v2198 = vld [vmem:[#allocation2 + $0xb0] sm:$0xf]
      %v2199 = vld [vmem:[#allocation2 + $0xb4] sm:$0xf]
      %v2200 = vld [vmem:[#allocation2 + $0xb8] sm:$0xf]
      %v2201 = vld [vmem:[#allocation2 + $0xbc] sm:$0xf]
      %v2202 = vld [vmem:[#allocation2 + $0xc0] sm:$0x1]
      %s2203 = scalar_lea.vmem %s4, 64
      %v2204 = vld [vmem:[%s2203] sm:$0xf]
      %v2205 = vld [vmem:[%s2203 + $0x4] sm:$0xf]
      %v2206 = vld [vmem:[%s2203 + $0x8] sm:$0xf]
      %v2207 = vld [vmem:[%s2203 + $0xc] sm:$0xf]
      %v2208 = vld [vmem:[%s2203 + $0x10] sm:$0xf]
      %v2209 = vld [vmem:[%s2203 + $0x14] sm:$0xf]
      %v2210 = vld [vmem:[%s2203 + $0x18] sm:$0xf]
      %v2211 = vld [vmem:[%s2203 + $0x1c] sm:$0xf]
      %v2212 = vld [vmem:[%s2203 + $0x20] sm:$0xf]
      %v2213 = vld [vmem:[%s2203 + $0x24] sm:$0xf]
      %v2214 = vld [vmem:[%s2203 + $0x28] sm:$0xf]
      %v2215 = vld [vmem:[%s2203 + $0x2c] sm:$0xf]
      %v2216 = vld [vmem:[%s2203 + $0x30] sm:$0xf]
      %v2217 = vld [vmem:[%s2203 + $0x34] sm:$0xf]
      %v2218 = vld [vmem:[%s2203 + $0x38] sm:$0xf]
      %v2219 = vld [vmem:[%s2203 + $0x3c] sm:$0xf]
      %v2269 = vunpack.c.l.b16 %v2154
      %v2270 = vunpack.c.l.b16 %v2155
      %v2271 = vunpack.c.l.b16 %v2156
      %v2272 = vunpack.c.l.b16 %v2157
      %v2273 = vunpack.c.l.b16 %v2158
      %v2274 = vunpack.c.l.b16 %v2159
      %v2275 = vunpack.c.l.b16 %v2160
      %v2276 = vunpack.c.l.b16 %v2161
      %v2277 = vunpack.c.l.b16 %v2162
      %v2278 = vunpack.c.l.b16 %v2163
      %v2279 = vunpack.c.l.b16 %v2164
      %v2280 = vunpack.c.l.b16 %v2165
      %v2281 = vunpack.c.l.b16 %v2166
      %v2282 = vunpack.c.l.b16 %v2167
      %v2283 = vunpack.c.l.b16 %v2168
      %v2284 = vunpack.c.l.b16 %v2169
      %v2285 = vunpack.c.l.b16 %v2170
      %v2286 = vunpack.c.l.b16 %v2171
      %v2287 = vunpack.c.l.b16 %v2172
      %v2288 = vunpack.c.l.b16 %v2173
      %v2289 = vunpack.c.l.b16 %v2174
      %v2290 = vunpack.c.l.b16 %v2175
      %v2291 = vunpack.c.l.b16 %v2176
      %v2292 = vunpack.c.l.b16 %v2177
      %v2293 = vunpack.c.l.b16 %v2178
      %v2294 = vunpack.c.l.b16 %v2179
      %v2295 = vunpack.c.l.b16 %v2180
      %v2296 = vunpack.c.l.b16 %v2181
      %v2297 = vunpack.c.l.b16 %v2182
      %v2298 = vunpack.c.l.b16 %v2183
      %v2299 = vunpack.c.l.b16 %v2184
      %v2300 = vunpack.c.l.b16 %v2185
      %v2301 = vunpack.c.l.b16 %v2186
      %v2302 = vunpack.c.l.b16 %v2187
      %v2303 = vunpack.c.l.b16 %v2188
      %v2304 = vunpack.c.l.b16 %v2189
      %v2305 = vunpack.c.l.b16 %v2190
      %v2306 = vunpack.c.l.b16 %v2191
      %v2307 = vunpack.c.l.b16 %v2192
      %v2308 = vunpack.c.l.b16 %v2193
      %v2309 = vunpack.c.l.b16 %v2194
      %v2310 = vunpack.c.l.b16 %v2195
      %v2311 = vunpack.c.l.b16 %v2196
      %v2312 = vunpack.c.l.b16 %v2197
      %v2313 = vunpack.c.l.b16 %v2198
      %v2314 = vunpack.c.l.b16 %v2199
      %v2315 = vunpack.c.l.b16 %v2200
      %v2316 = vunpack.c.l.b16 %v2201
      %v2317 = vunpack.c.l.b16 %v2202
      %v2318 = vpack.c.b16 %v2270, %v2269
      %v2319 = vpack.c.b16 %v2272, %v2271
      %v2320 = vpack.c.b16 %v2274, %v2273
      %v2321 = vpack.c.b16 %v2276, %v2275
      %v2322 = vpack.c.b16 %v2278, %v2277
      %v2323 = vpack.c.b16 %v2280, %v2279
      %v2324 = vpack.c.b16 %v2282, %v2281
      %v2325 = vpack.c.b16 %v2284, %v2283
      %v2326 = vpack.c.b16 %v2286, %v2285
      %v2327 = vpack.c.b16 %v2288, %v2287
      %v2328 = vpack.c.b16 %v2290, %v2289
      %v2329 = vpack.c.b16 %v2292, %v2291
      %v2330 = vpack.c.b16 %v2294, %v2293
      %v2331 = vpack.c.b16 %v2296, %v2295
      %v2332 = vpack.c.b16 %v2298, %v2297
      %v2333 = vpack.c.b16 %v2300, %v2299
      %v2334 = vpack.c.b16 %v2302, %v2301
      %v2335 = vpack.c.b16 %v2304, %v2303
      %v2336 = vpack.c.b16 %v2306, %v2305
      %v2337 = vpack.c.b16 %v2308, %v2307
      %v2338 = vpack.c.b16 %v2310, %v2309
      %v2339 = vpack.c.b16 %v2312, %v2311
      %v2340 = vpack.c.b16 %v2314, %v2313
      %v2341 = vpack.c.b16 %v2316, %v2315
      %v2342 = vpack.c.b16 %v2317, %v2317
      %vm2343 = vsmask.f32 7424
      %v2345 = vshrl.u32 %v2318, 16
      %v2347 = vshll.u32 %v2318, 16
      %v2349 = vrot.slane %v2347, 1
      %v2350 = vor.u32 %v2345, %v2349
      %v2352 = vshll.u32 %v2319, 16
      %v2354 = vrot.slane %v2352, 1
      %v2355 = vsel %vm2343, %v2350, %v2354
      %v2356 = vshrl.u32 %v2319, 16
      %v2358 = vor.u32 %v2356, %v2354
      %v2360 = vshll.u32 %v2320, 16
      %v2362 = vrot.slane %v2360, 1
      %v2363 = vsel %vm2343, %v2358, %v2362
      %v2364 = vshrl.u32 %v2320, 16
      %v2366 = vor.u32 %v2364, %v2362
      %v2368 = vshll.u32 %v2321, 16
      %v2370 = vrot.slane %v2368, 1
      %v2371 = vsel %vm2343, %v2366, %v2370
      %v2372 = vshrl.u32 %v2321, 16
      %v2374 = vor.u32 %v2372, %v2370
      %v2376 = vshll.u32 %v2322, 16
      %v2378 = vrot.slane %v2376, 1
      %v2379 = vsel %vm2343, %v2374, %v2378
      %v2380 = vshrl.u32 %v2322, 16
      %v2382 = vor.u32 %v2380, %v2378
      %v2384 = vshll.u32 %v2323, 16
      %v2386 = vrot.slane %v2384, 1
      %v2387 = vsel %vm2343, %v2382, %v2386
      %v2388 = vshrl.u32 %v2323, 16
      %v2390 = vor.u32 %v2388, %v2386
      %v2392 = vshll.u32 %v2324, 16
      %v2394 = vrot.slane %v2392, 1
      %v2395 = vsel %vm2343, %v2390, %v2394
      %v2396 = vshrl.u32 %v2324, 16
      %v2398 = vor.u32 %v2396, %v2394
      %v2400 = vshll.u32 %v2325, 16
      %v2402 = vrot.slane %v2400, 1
      %v2403 = vsel %vm2343, %v2398, %v2402
      %v2404 = vshrl.u32 %v2325, 16
      %v2406 = vor.u32 %v2404, %v2402
      %v2408 = vshll.u32 %v2326, 16
      %v2410 = vrot.slane %v2408, 1
      %v2411 = vsel %vm2343, %v2406, %v2410
      %v2412 = vshrl.u32 %v2326, 16
      %v2414 = vor.u32 %v2412, %v2410
      %v2416 = vshll.u32 %v2327, 16
      %v2418 = vrot.slane %v2416, 1
      %v2419 = vsel %vm2343, %v2414, %v2418
      %v2420 = vshrl.u32 %v2327, 16
      %v2422 = vor.u32 %v2420, %v2418
      %v2424 = vshll.u32 %v2328, 16
      %v2426 = vrot.slane %v2424, 1
      %v2427 = vsel %vm2343, %v2422, %v2426
      %v2428 = vshrl.u32 %v2328, 16
      %v2430 = vor.u32 %v2428, %v2426
      %v2432 = vshll.u32 %v2329, 16
      %v2434 = vrot.slane %v2432, 1
      %v2435 = vsel %vm2343, %v2430, %v2434
      %v2436 = vshrl.u32 %v2329, 16
      %v2438 = vor.u32 %v2436, %v2434
      %v2440 = vshll.u32 %v2330, 16
      %v2442 = vrot.slane %v2440, 1
      %v2443 = vsel %vm2343, %v2438, %v2442
      %v2444 = vshrl.u32 %v2330, 16
      %v2446 = vor.u32 %v2444, %v2442
      %v2448 = vshll.u32 %v2331, 16
      %v2450 = vrot.slane %v2448, 1
      %v2451 = vsel %vm2343, %v2446, %v2450
      %v2452 = vshrl.u32 %v2331, 16
      %v2454 = vor.u32 %v2452, %v2450
      %v2456 = vshll.u32 %v2332, 16
      %v2458 = vrot.slane %v2456, 1
      %v2459 = vsel %vm2343, %v2454, %v2458
      %v2460 = vshrl.u32 %v2332, 16
      %v2462 = vor.u32 %v2460, %v2458
      %v2464 = vshll.u32 %v2333, 16
      %v2466 = vrot.slane %v2464, 1
      %v2467 = vsel %vm2343, %v2462, %v2466
      %v2468 = vshrl.u32 %v2333, 16
      %v2470 = vor.u32 %v2468, %v2466
      %v2472 = vshll.u32 %v2334, 16
      %v2474 = vrot.slane %v2472, 1
      %v2475 = vsel %vm2343, %v2470, %v2474
      %v2476 = vshrl.u32 %v2334, 16
      %v2478 = vor.u32 %v2476, %v2474
      %v2480 = vshll.u32 %v2335, 16
      %v2482 = vrot.slane %v2480, 1
      %v2483 = vsel %vm2343, %v2478, %v2482
      %v2484 = vshrl.u32 %v2335, 16
      %v2486 = vor.u32 %v2484, %v2482
      %v2488 = vshll.u32 %v2336, 16
      %v2490 = vrot.slane %v2488, 1
      %v2491 = vsel %vm2343, %v2486, %v2490
      %v2492 = vshrl.u32 %v2336, 16
      %v2494 = vor.u32 %v2492, %v2490
      %v2496 = vshll.u32 %v2337, 16
      %v2498 = vrot.slane %v2496, 1
      %v2499 = vsel %vm2343, %v2494, %v2498
      %v2500 = vshrl.u32 %v2337, 16
      %v2502 = vor.u32 %v2500, %v2498
      %v2504 = vshll.u32 %v2338, 16
      %v2506 = vrot.slane %v2504, 1
      %v2507 = vsel %vm2343, %v2502, %v2506
      %v2508 = vshrl.u32 %v2338, 16
      %v2510 = vor.u32 %v2508, %v2506
      %v2512 = vshll.u32 %v2339, 16
      %v2514 = vrot.slane %v2512, 1
      %v2515 = vsel %vm2343, %v2510, %v2514
      %v2516 = vshrl.u32 %v2339, 16
      %v2518 = vor.u32 %v2516, %v2514
      %v2520 = vshll.u32 %v2340, 16
      %v2522 = vrot.slane %v2520, 1
      %v2523 = vsel %vm2343, %v2518, %v2522
      %v2524 = vshrl.u32 %v2340, 16
      %v2526 = vor.u32 %v2524, %v2522
      %v2528 = vshll.u32 %v2341, 16
      %v2530 = vrot.slane %v2528, 1
      %v2531 = vsel %vm2343, %v2526, %v2530
      %v2532 = vshrl.u32 %v2341, 16
      %v2534 = vor.u32 %v2532, %v2530
      %v2536 = vshll.u32 %v2342, 16
      %v2538 = vrot.slane %v2536, 1
      %v2539 = vsel %vm2343, %v2534, %v2538
      %v2580 = vunpack.c.l.b16 %v2204
      %v2581 = vunpack.c.l.b16 %v2205
      %v2582 = vunpack.c.l.b16 %v2206
      %v2583 = vunpack.c.l.b16 %v2207
      %v2584 = vunpack.c.l.b16 %v2208
      %v2585 = vunpack.c.l.b16 %v2209
      %v2586 = vunpack.c.l.b16 %v2210
      %v2587 = vunpack.c.l.b16 %v2211
      %v2588 = vunpack.c.l.b16 %v2212
      %v2589 = vunpack.c.l.b16 %v2213
      %v2590 = vunpack.c.l.b16 %v2214
      %v2591 = vunpack.c.l.b16 %v2215
      %v2592 = vunpack.c.l.b16 %v2216
      %v2593 = vunpack.c.l.b16 %v2217
      %v2594 = vunpack.c.l.b16 %v2218
      %v2595 = vunpack.c.l.b16 %v2219
      %v2596 = vpack.c.b16 %v2581, %v2580
      %v2597 = vpack.c.b16 %v2583, %v2582
      %v2598 = vpack.c.b16 %v2585, %v2584
      %v2599 = vpack.c.b16 %v2587, %v2586
      %v2600 = vpack.c.b16 %v2589, %v2588
      %v2601 = vpack.c.b16 %v2591, %v2590
      %v2602 = vpack.c.b16 %v2593, %v2592
      %v2603 = vpack.c.b16 %v2595, %v2594
      %2612 = vmatprep.subr.bf16.mxu0 0
      %2613 = vmatpush1.bf16.msra.mxu0 %v2596
      %2614 = vmatprep.subr.bf16.mxu0 0
      %2615 = vmatpush1.bf16.msra.mxu0 %v2597
      %2616 = vmatprep.subr.bf16.mxu0 0
      %2617 = vmatpush1.bf16.msra.mxu0 %v2598
      %2618 = vmatprep.subr.bf16.mxu0 0
      %2619 = vmatpush1.bf16.msra.mxu0 %v2599
      %2620 = vmatprep.subr.bf16.mxu0 0
      %2621 = vmatpush1.bf16.msra.mxu0 %v2600
      %2622 = vmatprep.subr.bf16.mxu0 0
      %2623 = vmatpush1.bf16.msra.mxu0 %v2601
      %2624 = vmatprep.subr.bf16.mxu0 0
      %2625 = vmatpush1.bf16.msra.mxu0 %v2602
      %2626 = vmatprep.subr.bf16.mxu0 0
      %2627 = vmatpush1.bf16.msra.mxu0 %v2603
      %2628 = vmatprep.subr.bf16.mxu0 0
      %2629 = vmatpush1.bf16.msra.mxu0 0
      %2630 = vmatprep.subr.bf16.mxu0 0
      %2631 = vmatpush1.bf16.msra.mxu0 0
      %2632 = vmatprep.subr.bf16.mxu0 0
      %2633 = vmatpush1.bf16.msra.mxu0 0
      %2634 = vmatprep.subr.bf16.mxu0 0
      %2635 = vmatpush1.bf16.msra.mxu0 0
      %2636 = vmatprep.subr.bf16.mxu0 0
      %2637 = vmatpush1.bf16.msra.mxu0 0
      %2638 = vmatprep.subr.bf16.mxu0 0
      %2639 = vmatpush1.bf16.msra.mxu0 0
      %2640 = vmatprep.subr.bf16.mxu0 0
      %2641 = vmatpush1.bf16.msra.mxu0 0
      %2642 = vmatprep.subr.bf16.mxu0 0
      %2643 = vmatpush1.bf16.msra.mxu0 0
      %2644 = vmatprep.mubr.bf16.mxu0 0
      %2645 = vmatmul.mubr.bf16.gmra.mrb[0].mxu0 %v2355
      %v2646 = vpop.f32.mrb[0].mxu0
      %v2647 = vadd.f32 0.0, %v2646
      %v2648 = vpop.f32.mrb[0].mxu0
      %v2649 = vpop.f32.mrb[0].mxu0
      %v2650 = vadd.f32 0.0, %v2649
      %v2651 = vpop.f32.mrb[0].mxu0
      %2652 = vmatprep.mubr.bf16.mxu0 0
      %2653 = vmatmul.mubr.bf16.gmra.mrb[0].mxu0 %v2363
      %v2654 = vpop.f32.mrb[0].mxu0
      %v2655 = vadd.f32 0.0, %v2654
      %v2656 = vpop.f32.mrb[0].mxu0
      %v2657 = vpop.f32.mrb[0].mxu0
      %v2658 = vadd.f32 0.0, %v2657
      %v2659 = vpop.f32.mrb[0].mxu0
      %2660 = vmatprep.mubr.bf16.mxu0 0
      %2661 = vmatmul.mubr.bf16.gmra.mrb[0].mxu0 %v2371
      %v2662 = vpop.f32.mrb[0].mxu0
      %v2663 = vadd.f32 0.0, %v2662
      %v2664 = vpop.f32.mrb[0].mxu0
      %v2665 = vpop.f32.mrb[0].mxu0
      %v2666 = vadd.f32 0.0, %v2665
      %v2667 = vpop.f32.mrb[0].mxu0
      %2668 = vmatprep.mubr.bf16.mxu0 0
      %2669 = vmatmul.mubr.bf16.gmra.mrb[0].mxu0 %v2379
      %v2670 = vpop.f32.mrb[0].mxu0
      %v2671 = vadd.f32 0.0, %v2670
      %v2672 = vpop.f32.mrb[0].mxu0
      %v2673 = vpop.f32.mrb[0].mxu0
      %v2674 = vadd.f32 0.0, %v2673
      %v2675 = vpop.f32.mrb[0].mxu0
      %2676 = vmatprep.mubr.bf16.mxu0 0
      %2677 = vmatmul.mubr.bf16.gmra.mrb[0].mxu0 %v2387
      %v2678 = vpop.f32.mrb[0].mxu0
      %v2679 = vadd.f32 0.0, %v2678
      %v2680 = vpop.f32.mrb[0].mxu0
      %v2681 = vpop.f32.mrb[0].mxu0
      %v2682 = vadd.f32 0.0, %v2681
      %v2683 = vpop.f32.mrb[0].mxu0
      %2684 = vmatprep.mubr.bf16.mxu0 0
      %2685 = vmatmul.mubr.bf16.gmra.mrb[0].mxu0 %v2395
      %v2686 = vpop.f32.mrb[0].mxu0
      %v2687 = vadd.f32 0.0, %v2686
      %v2688 = vpop.f32.mrb[0].mxu0
      %v2689 = vpop.f32.mrb[0].mxu0
      %v2690 = vadd.f32 0.0, %v2689
      %v2691 = vpop.f32.mrb[0].mxu0
      %2692 = vmatprep.mubr.bf16.mxu0 0
      %2693 = vmatmul.mubr.bf16.gmra.mrb[0].mxu0 %v2403
      %v2694 = vpop.f32.mrb[0].mxu0
      %v2695 = vadd.f32 0.0, %v2694
      %v2696 = vpop.f32.mrb[0].mxu0
      %v2697 = vpop.f32.mrb[0].mxu0
      %v2698 = vadd.f32 0.0, %v2697
      %v2699 = vpop.f32.mrb[0].mxu0
      %2700 = vmatprep.mubr.bf16.mxu0 0
      %2701 = vmatmul.mubr.bf16.gmra.mrb[0].mxu0 %v2411
      %v2702 = vpop.f32.mrb[0].mxu0
      %v2703 = vadd.f32 0.0, %v2702
      %v2704 = vpop.f32.mrb[0].mxu0
      %v2705 = vpop.f32.mrb[0].mxu0
      %v2706 = vadd.f32 0.0, %v2705
      %v2707 = vpop.f32.mrb[0].mxu0
      %2708 = vmatprep.mubr.bf16.mxu0 0
      %2709 = vmatmul.mubr.bf16.gmra.mrb[0].mxu0 %v2419
      %v2710 = vpop.f32.mrb[0].mxu0
      %v2711 = vadd.f32 0.0, %v2710
      %v2712 = vpop.f32.mrb[0].mxu0
      %v2713 = vpop.f32.mrb[0].mxu0
      %v2714 = vadd.f32 0.0, %v2713
      %v2715 = vpop.f32.mrb[0].mxu0
      %2716 = vmatprep.mubr.bf16.mxu0 0
      %2717 = vmatmul.mubr.bf16.gmra.mrb[0].mxu0 %v2427
      %v2718 = vpop.f32.mrb[0].mxu0
      %v2719 = vadd.f32 0.0, %v2718
      %v2720 = vpop.f32.mrb[0].mxu0
      %v2721 = vpop.f32.mrb[0].mxu0
      %v2722 = vadd.f32 0.0, %v2721
      %v2723 = vpop.f32.mrb[0].mxu0
      %2724 = vmatprep.mubr.bf16.mxu0 0
      %2725 = vmatmul.mubr.bf16.gmra.mrb[0].mxu0 %v2435
      %v2726 = vpop.f32.mrb[0].mxu0
      %v2727 = vadd.f32 0.0, %v2726
      %v2728 = vpop.f32.mrb[0].mxu0
      %v2729 = vpop.f32.mrb[0].mxu0
      %v2730 = vadd.f32 0.0, %v2729
      %v2731 = vpop.f32.mrb[0].mxu0
      %2732 = vmatprep.mubr.bf16.mxu0 0
      %2733 = vmatmul.mubr.bf16.gmra.mrb[0].mxu0 %v2443
      %v2734 = vpop.f32.mrb[0].mxu0
      %v2735 = vadd.f32 0.0, %v2734
      %v2736 = vpop.f32.mrb[0].mxu0
      %v2737 = vpop.f32.mrb[0].mxu0
      %v2738 = vadd.f32 0.0, %v2737
      %v2739 = vpop.f32.mrb[0].mxu0
      %2740 = vmatprep.mubr.bf16.mxu0 0
      %2741 = vmatmul.mubr.bf16.gmra.mrb[0].mxu0 %v2451
      %v2742 = vpop.f32.mrb[0].mxu0
      %v2743 = vadd.f32 0.0, %v2742
      %v2744 = vpop.f32.mrb[0].mxu0
      %v2745 = vpop.f32.mrb[0].mxu0
      %v2746 = vadd.f32 0.0, %v2745
      %v2747 = vpop.f32.mrb[0].mxu0
      %2748 = vmatprep.mubr.bf16.mxu0 0
      %2749 = vmatmul.mubr.bf16.gmra.mrb[0].mxu0 %v2459
      %v2750 = vpop.f32.mrb[0].mxu0
      %v2751 = vadd.f32 0.0, %v2750
      %v2752 = vpop.f32.mrb[0].mxu0
      %v2753 = vpop.f32.mrb[0].mxu0
      %v2754 = vadd.f32 0.0, %v2753
      %v2755 = vpop.f32.mrb[0].mxu0
      %2756 = vmatprep.mubr.bf16.mxu0 0
      %2757 = vmatmul.mubr.bf16.gmra.mrb[0].mxu0 %v2467
      %v2758 = vpop.f32.mrb[0].mxu0
      %v2759 = vadd.f32 0.0, %v2758
      %v2760 = vpop.f32.mrb[0].mxu0
      %v2761 = vpop.f32.mrb[0].mxu0
      %v2762 = vadd.f32 0.0, %v2761
      %v2763 = vpop.f32.mrb[0].mxu0
      %2764 = vmatprep.mubr.bf16.mxu0 0
      %2765 = vmatmul.mubr.bf16.gmra.mrb[0].mxu0 %v2475
      %v2766 = vpop.f32.mrb[0].mxu0
      %v2767 = vadd.f32 0.0, %v2766
      %v2768 = vpop.f32.mrb[0].mxu0
      %v2769 = vpop.f32.mrb[0].mxu0
      %v2770 = vadd.f32 0.0, %v2769
      %v2771 = vpop.f32.mrb[0].mxu0
      %2772 = vmatprep.mubr.bf16.mxu0 0
      %2773 = vmatmul.mubr.bf16.gmra.mrb[0].mxu0 %v2483
      %v2774 = vpop.f32.mrb[0].mxu0
      %v2775 = vadd.f32 0.0, %v2774
      %v2776 = vpop.f32.mrb[0].mxu0
      %v2777 = vpop.f32.mrb[0].mxu0
      %v2778 = vadd.f32 0.0, %v2777
      %v2779 = vpop.f32.mrb[0].mxu0
      %2780 = vmatprep.mubr.bf16.mxu0 0
      %2781 = vmatmul.mubr.bf16.gmra.mrb[0].mxu0 %v2491
      %v2782 = vpop.f32.mrb[0].mxu0
      %v2783 = vadd.f32 0.0, %v2782
      %v2784 = vpop.f32.mrb[0].mxu0
      %v2785 = vpop.f32.mrb[0].mxu0
      %v2786 = vadd.f32 0.0, %v2785
      %v2787 = vpop.f32.mrb[0].mxu0
      %2788 = vmatprep.mubr.bf16.mxu0 0
      %2789 = vmatmul.mubr.bf16.gmra.mrb[0].mxu0 %v2499
      %v2790 = vpop.f32.mrb[0].mxu0
      %v2791 = vadd.f32 0.0, %v2790
      %v2792 = vpop.f32.mrb[0].mxu0
      %v2793 = vpop.f32.mrb[0].mxu0
      %v2794 = vadd.f32 0.0, %v2793
      %v2795 = vpop.f32.mrb[0].mxu0
      %2796 = vmatprep.mubr.bf16.mxu0 0
      %2797 = vmatmul.mubr.bf16.gmra.mrb[0].mxu0 %v2507
      %v2798 = vpop.f32.mrb[0].mxu0
      %v2799 = vadd.f32 0.0, %v2798
      %v2800 = vpop.f32.mrb[0].mxu0
      %v2801 = vpop.f32.mrb[0].mxu0
      %v2802 = vadd.f32 0.0, %v2801
      %v2803 = vpop.f32.mrb[0].mxu0
      %2804 = vmatprep.mubr.bf16.mxu0 0
      %2805 = vmatmul.mubr.bf16.gmra.mrb[0].mxu0 %v2515
      %v2806 = vpop.f32.mrb[0].mxu0
      %v2807 = vadd.f32 0.0, %v2806
      %v2808 = vpop.f32.mrb[0].mxu0
      %v2809 = vpop.f32.mrb[0].mxu0
      %v2810 = vadd.f32 0.0, %v2809
      %v2811 = vpop.f32.mrb[0].mxu0
      %2812 = vmatprep.mubr.bf16.mxu0 0
      %2813 = vmatmul.mubr.bf16.gmra.mrb[0].mxu0 %v2523
      %v2814 = vpop.f32.mrb[0].mxu0
      %v2815 = vadd.f32 0.0, %v2814
      %v2816 = vpop.f32.mrb[0].mxu0
      %v2817 = vpop.f32.mrb[0].mxu0
      %v2818 = vadd.f32 0.0, %v2817
      %v2819 = vpop.f32.mrb[0].mxu0
      %2820 = vmatprep.mubr.bf16.mxu0 0
      %2821 = vmatmul.mubr.bf16.gmra.mrb[0].mxu0 %v2531
      %v2822 = vpop.f32.mrb[0].mxu0
      %v2823 = vadd.f32 0.0, %v2822
      %v2824 = vpop.f32.mrb[0].mxu0
      %v2825 = vpop.f32.mrb[0].mxu0
      %v2826 = vadd.f32 0.0, %v2825
      %v2827 = vpop.f32.mrb[0].mxu0
      %2828 = vmatprep.mubr.bf16.mxu0 0
      %2829 = vmatmul.mubr.bf16.gmra.mrb[0].mxu0 %v2539
      %v2830 = vpop.f32.mrb[0].mxu0
      %v2831 = vadd.f32 0.0, %v2830
      %v2832 = vpop.f32.mrb[0].mxu0
      %v2833 = vpop.f32.mrb[0].mxu0
      %v2834 = vadd.f32 0.0, %v2833
      %v2835 = vpop.f32.mrb[0].mxu0
      %2836 = vdwg.mxu0
      %v2837 = vld [vmem:[#allocation4] sm:$0xff]
      %v2838 = vld [vmem:[#allocation4 + $0x8] sm:$0xff]
      %v2839 = vld [vmem:[#allocation4 + $0x10] sm:$0xff]
      %v2840 = vld [vmem:[#allocation4 + $0x18] sm:$0xff]
      %v2841 = vld [vmem:[#allocation4 + $0x20] sm:$0xff]
      %v2842 = vld [vmem:[#allocation4 + $0x28] sm:$0xff]
      %v2843 = vld [vmem:[#allocation4 + $0x30] sm:$0xff]
      %v2844 = vld [vmem:[#allocation4 + $0x38] sm:$0xff]
      %v2845 = vld [vmem:[#allocation4 + $0x40] sm:$0xff]
      %v2846 = vld [vmem:[#allocation4 + $0x48] sm:$0xff]
      %v2847 = vld [vmem:[#allocation4 + $0x50] sm:$0xff]
      %v2848 = vld [vmem:[#allocation4 + $0x58] sm:$0xff]
      %v2849 = vld [vmem:[#allocation4 + $0x60] sm:$0xff]
      %v2850 = vld [vmem:[#allocation4 + $0x68] sm:$0xff]
      %v2851 = vld [vmem:[#allocation4 + $0x70] sm:$0xff]
      %v2852 = vld [vmem:[#allocation4 + $0x78] sm:$0xff]
      %v2853 = vld [vmem:[#allocation4 + $0x80] sm:$0xff]
      %v2854 = vld [vmem:[#allocation4 + $0x88] sm:$0xff]
      %v2855 = vld [vmem:[#allocation4 + $0x90] sm:$0xff]
      %v2856 = vld [vmem:[#allocation4 + $0x98] sm:$0xff]
      %v2857 = vld [vmem:[#allocation4 + $0xa0] sm:$0xff]
      %v2858 = vld [vmem:[#allocation4 + $0xa8] sm:$0xff]
      %v2859 = vld [vmem:[#allocation4 + $0xb0] sm:$0xff]
      %v2860 = vld [vmem:[#allocation4 + $0xb8] sm:$0xff]
      %v2861 = vld [vmem:[#allocation4 + $0xc0] sm:$0xff]
      %v2862 = vld [vmem:[#allocation4 + $0xc8] sm:$0xff]
      %v2863 = vld [vmem:[#allocation4 + $0xd0] sm:$0xff]
      %v2864 = vld [vmem:[#allocation4 + $0xd8] sm:$0xff]
      %v2865 = vld [vmem:[#allocation4 + $0xe0] sm:$0xff]
      %v2866 = vld [vmem:[#allocation4 + $0xe8] sm:$0xff]
      %v2867 = vld [vmem:[#allocation4 + $0xf0] sm:$0xff]
      %v2868 = vld [vmem:[#allocation4 + $0xf8] sm:$0xff]
      %v2869 = vld [vmem:[#allocation4 + $0x100] sm:$0xff]
      %v2870 = vld [vmem:[#allocation4 + $0x108] sm:$0xff]
      %v2871 = vld [vmem:[#allocation4 + $0x110] sm:$0xff]
      %v2872 = vld [vmem:[#allocation4 + $0x118] sm:$0xff]
      %v2873 = vld [vmem:[#allocation4 + $0x120] sm:$0xff]
      %v2874 = vld [vmem:[#allocation4 + $0x128] sm:$0xff]
      %v2875 = vld [vmem:[#allocation4 + $0x130] sm:$0xff]
      %v2876 = vld [vmem:[#allocation4 + $0x138] sm:$0xff]
      %v2877 = vld [vmem:[#allocation4 + $0x140] sm:$0xff]
      %v2878 = vld [vmem:[#allocation4 + $0x148] sm:$0xff]
      %v2879 = vld [vmem:[#allocation4 + $0x150] sm:$0xff]
      %v2880 = vld [vmem:[#allocation4 + $0x158] sm:$0xff]
      %v2881 = vld [vmem:[#allocation4 + $0x160] sm:$0xff]
      %v2882 = vld [vmem:[#allocation4 + $0x168] sm:$0xff]
      %v2883 = vld [vmem:[#allocation4 + $0x170] sm:$0xff]
      %v2884 = vld [vmem:[#allocation4 + $0x178] sm:$0xff]
      %v2885 = vadd.f32 %v2837, %v2647
      %v2886 = vadd.f32 %v2838, %v2650
      %v2887 = vadd.f32 %v2839, %v2655
      %v2888 = vadd.f32 %v2840, %v2658
      %v2889 = vadd.f32 %v2841, %v2663
      %v2890 = vadd.f32 %v2842, %v2666
      %v2891 = vadd.f32 %v2843, %v2671
      %v2892 = vadd.f32 %v2844, %v2674
      %v2893 = vadd.f32 %v2845, %v2679
      %v2894 = vadd.f32 %v2846, %v2682
      %v2895 = vadd.f32 %v2847, %v2687
      %v2896 = vadd.f32 %v2848, %v2690
      %v2897 = vadd.f32 %v2849, %v2695
      %v2898 = vadd.f32 %v2850, %v2698
      %v2899 = vadd.f32 %v2851, %v2703
      %v2900 = vadd.f32 %v2852, %v2706
      %v2901 = vadd.f32 %v2853, %v2711
      %v2902 = vadd.f32 %v2854, %v2714
      %v2903 = vadd.f32 %v2855, %v2719
      %v2904 = vadd.f32 %v2856, %v2722
      %v2905 = vadd.f32 %v2857, %v2727
      %v2906 = vadd.f32 %v2858, %v2730
      %v2907 = vadd.f32 %v2859, %v2735
      %v2908 = vadd.f32 %v2860, %v2738
      %v2909 = vadd.f32 %v2861, %v2743
      %v2910 = vadd.f32 %v2862, %v2746
      %v2911 = vadd.f32 %v2863, %v2751
      %v2912 = vadd.f32 %v2864, %v2754
      %v2913 = vadd.f32 %v2865, %v2759
      %v2914 = vadd.f32 %v2866, %v2762
      %v2915 = vadd.f32 %v2867, %v2767
      %v2916 = vadd.f32 %v2868, %v2770
      %v2917 = vadd.f32 %v2869, %v2775
      %v2918 = vadd.f32 %v2870, %v2778
      %v2919 = vadd.f32 %v2871, %v2783
      %v2920 = vadd.f32 %v2872, %v2786
      %v2921 = vadd.f32 %v2873, %v2791
      %v2922 = vadd.f32 %v2874, %v2794
      %v2923 = vadd.f32 %v2875, %v2799
      %v2924 = vadd.f32 %v2876, %v2802
      %v2925 = vadd.f32 %v2877, %v2807
      %v2926 = vadd.f32 %v2878, %v2810
      %v2927 = vadd.f32 %v2879, %v2815
      %v2928 = vadd.f32 %v2880, %v2818
      %v2929 = vadd.f32 %v2881, %v2823
      %v2930 = vadd.f32 %v2882, %v2826
      %v2931 = vadd.f32 %v2883, %v2831
      %v2932 = vadd.f32 %v2884, %v2834
      %2933 = vst [vmem:[#allocation4] sm:$0xff] %v2885
      %2934 = vst [vmem:[#allocation4 + $0x8] sm:$0xff] %v2886
      %2935 = vst [vmem:[#allocation4 + $0x10] sm:$0xff] %v2887
      %2936 = vst [vmem:[#allocation4 + $0x18] sm:$0xff] %v2888
      %2937 = vst [vmem:[#allocation4 + $0x20] sm:$0xff] %v2889
      %2938 = vst [vmem:[#allocation4 + $0x28] sm:$0xff] %v2890
      %2939 = vst [vmem:[#allocation4 + $0x30] sm:$0xff] %v2891
      %2940 = vst [vmem:[#allocation4 + $0x38] sm:$0xff] %v2892
      %2941 = vst [vmem:[#allocation4 + $0x40] sm:$0xff] %v2893
      %2942 = vst [vmem:[#allocation4 + $0x48] sm:$0xff] %v2894
      %2943 = vst [vmem:[#allocation4 + $0x50] sm:$0xff] %v2895
      %2944 = vst [vmem:[#allocation4 + $0x58] sm:$0xff] %v2896
      %2945 = vst [vmem:[#allocation4 + $0x60] sm:$0xff] %v2897
      %2946 = vst [vmem:[#allocation4 + $0x68] sm:$0xff] %v2898
      %2947 = vst [vmem:[#allocation4 + $0x70] sm:$0xff] %v2899
      %2948 = vst [vmem:[#allocation4 + $0x78] sm:$0xff] %v2900
      %2949 = vst [vmem:[#allocation4 + $0x80] sm:$0xff] %v2901
      %2950 = vst [vmem:[#allocation4 + $0x88] sm:$0xff] %v2902
      %2951 = vst [vmem:[#allocation4 + $0x90] sm:$0xff] %v2903
      %2952 = vst [vmem:[#allocation4 + $0x98] sm:$0xff] %v2904
      %2953 = vst [vmem:[#allocation4 + $0xa0] sm:$0xff] %v2905
      %2954 = vst [vmem:[#allocation4 + $0xa8] sm:$0xff] %v2906
      %2955 = vst [vmem:[#allocation4 + $0xb0] sm:$0xff] %v2907
      %2956 = vst [vmem:[#allocation4 + $0xb8] sm:$0xff] %v2908
      %2957 = vst [vmem:[#allocation4 + $0xc0] sm:$0xff] %v2909
      %2958 = vst [vmem:[#allocation4 + $0xc8] sm:$0xff] %v2910
      %2959 = vst [vmem:[#allocation4 + $0xd0] sm:$0xff] %v2911
      %2960 = vst [vmem:[#allocation4 + $0xd8] sm:$0xff] %v2912
      %2961 = vst [vmem:[#allocation4 + $0xe0] sm:$0xff] %v2913
      %2962 = vst [vmem:[#allocation4 + $0xe8] sm:$0xff] %v2914
      %2963 = vst [vmem:[#allocation4 + $0xf0] sm:$0xff] %v2915
      %2964 = vst [vmem:[#allocation4 + $0xf8] sm:$0xff] %v2916
      %2965 = vst [vmem:[#allocation4 + $0x100] sm:$0xff] %v2917
      %2966 = vst [vmem:[#allocation4 + $0x108] sm:$0xff] %v2918
      %2967 = vst [vmem:[#allocation4 + $0x110] sm:$0xff] %v2919
      %2968 = vst [vmem:[#allocation4 + $0x118] sm:$0xff] %v2920
      %2969 = vst [vmem:[#allocation4 + $0x120] sm:$0xff] %v2921
      %2970 = vst [vmem:[#allocation4 + $0x128] sm:$0xff] %v2922
      %2971 = vst [vmem:[#allocation4 + $0x130] sm:$0xff] %v2923
      %2972 = vst [vmem:[#allocation4 + $0x138] sm:$0xff] %v2924
      %2973 = vst [vmem:[#allocation4 + $0x140] sm:$0xff] %v2925
      %2974 = vst [vmem:[#allocation4 + $0x148] sm:$0xff] %v2926
      %2975 = vst [vmem:[#allocation4 + $0x150] sm:$0xff] %v2927
      %2976 = vst [vmem:[#allocation4 + $0x158] sm:$0xff] %v2928
      %2977 = vst [vmem:[#allocation4 + $0x160] sm:$0xff] %v2929
      %2978 = vst [vmem:[#allocation4 + $0x168] sm:$0xff] %v2930
      %2979 = vst [vmem:[#allocation4 + $0x170] sm:$0xff] %v2931
      %2980 = vst [vmem:[#allocation4 + $0x178] sm:$0xff] %v2932
      %v2981 = vld [vmem:[#allocation2] sm:$0xe]
      %v2982 = vld [vmem:[#allocation2 + $0x4] sm:$0xf]
      %v2983 = vld [vmem:[#allocation2 + $0x8] sm:$0xf]
      %v2984 = vld [vmem:[#allocation2 + $0xc] sm:$0xf]
      %v2985 = vld [vmem:[#allocation2 + $0x10] sm:$0xf]
      %v2986 = vld [vmem:[#allocation2 + $0x14] sm:$0xf]
      %v2987 = vld [vmem:[#allocation2 + $0x18] sm:$0xf]
      %v2988 = vld [vmem:[#allocation2 + $0x1c] sm:$0xf]
      %v2989 = vld [vmem:[#allocation2 + $0x20] sm:$0xf]
      %v2990 = vld [vmem:[#allocation2 + $0x24] sm:$0xf]
      %v2991 = vld [vmem:[#allocation2 + $0x28] sm:$0xf]
      %v2992 = vld [vmem:[#allocation2 + $0x2c] sm:$0xf]
      %v2993 = vld [vmem:[#allocation2 + $0x30] sm:$0xf]
      %v2994 = vld [vmem:[#allocation2 + $0x34] sm:$0xf]
      %v2995 = vld [vmem:[#allocation2 + $0x38] sm:$0xf]
      %v2996 = vld [vmem:[#allocation2 + $0x3c] sm:$0xf]
      %v2997 = vld [vmem:[#allocation2 + $0x40] sm:$0xf]
      %v2998 = vld [vmem:[#allocation2 + $0x44] sm:$0xf]
      %v2999 = vld [vmem:[#allocation2 + $0x48] sm:$0xf]
      %v3000 = vld [vmem:[#allocation2 + $0x4c] sm:$0xf]
      %v3001 = vld [vmem:[#allocation2 + $0x50] sm:$0xf]
      %v3002 = vld [vmem:[#allocation2 + $0x54] sm:$0xf]
      %v3003 = vld [vmem:[#allocation2 + $0x58] sm:$0xf]
      %v3004 = vld [vmem:[#allocation2 + $0x5c] sm:$0xf]
      %v3005 = vld [vmem:[#allocation2 + $0x60] sm:$0xf]
      %v3006 = vld [vmem:[#allocation2 + $0x64] sm:$0xf]
      %v3007 = vld [vmem:[#allocation2 + $0x68] sm:$0xf]
      %v3008 = vld [vmem:[#allocation2 + $0x6c] sm:$0xf]
      %v3009 = vld [vmem:[#allocation2 + $0x70] sm:$0xf]
      %v3010 = vld [vmem:[#allocation2 + $0x74] sm:$0xf]
      %v3011 = vld [vmem:[#allocation2 + $0x78] sm:$0xf]
      %v3012 = vld [vmem:[#allocation2 + $0x7c] sm:$0xf]
      %v3013 = vld [vmem:[#allocation2 + $0x80] sm:$0xf]
      %v3014 = vld [vmem:[#allocation2 + $0x84] sm:$0xf]
      %v3015 = vld [vmem:[#allocation2 + $0x88] sm:$0xf]
      %v3016 = vld [vmem:[#allocation2 + $0x8c] sm:$0xf]
      %v3017 = vld [vmem:[#allocation2 + $0x90] sm:$0xf]
      %v3018 = vld [vmem:[#allocation2 + $0x94] sm:$0xf]
      %v3019 = vld [vmem:[#allocation2 + $0x98] sm:$0xf]
      %v3020 = vld [vmem:[#allocation2 + $0x9c] sm:$0xf]
      %v3021 = vld [vmem:[#allocation2 + $0xa0] sm:$0xf]
      %v3022 = vld [vmem:[#allocation2 + $0xa4] sm:$0xf]
      %v3023 = vld [vmem:[#allocation2 + $0xa8] sm:$0xf]
      %v3024 = vld [vmem:[#allocation2 + $0xac] sm:$0xf]
      %v3025 = vld [vmem:[#allocation2 + $0xb0] sm:$0xf]
      %v3026 = vld [vmem:[#allocation2 + $0xb4] sm:$0xf]
      %v3027 = vld [vmem:[#allocation2 + $0xb8] sm:$0xf]
      %v3028 = vld [vmem:[#allocation2 + $0xbc] sm:$0xf]
      %v3029 = vld [vmem:[#allocation2 + $0xc0] sm:$0x1]
      %s3030 = scalar_lea.vmem %s4, 128
      %v3031 = vld [vmem:[%s3030] sm:$0xf]
      %v3032 = vld [vmem:[%s3030 + $0x4] sm:$0xf]
      %v3033 = vld [vmem:[%s3030 + $0x8] sm:$0xf]
      %v3034 = vld [vmem:[%s3030 + $0xc] sm:$0xf]
      %v3035 = vld [vmem:[%s3030 + $0x10] sm:$0xf]
      %v3036 = vld [vmem:[%s3030 + $0x14] sm:$0xf]
      %v3037 = vld [vmem:[%s3030 + $0x18] sm:$0xf]
      %v3038 = vld [vmem:[%s3030 + $0x1c] sm:$0xf]
      %v3039 = vld [vmem:[%s3030 + $0x20] sm:$0xf]
      %v3040 = vld [vmem:[%s3030 + $0x24] sm:$0xf]
      %v3041 = vld [vmem:[%s3030 + $0x28] sm:$0xf]
      %v3042 = vld [vmem:[%s3030 + $0x2c] sm:$0xf]
      %v3043 = vld [vmem:[%s3030 + $0x30] sm:$0xf]
      %v3044 = vld [vmem:[%s3030 + $0x34] sm:$0xf]
      %v3045 = vld [vmem:[%s3030 + $0x38] sm:$0xf]
      %v3046 = vld [vmem:[%s3030 + $0x3c] sm:$0xf]
      %v3096 = vunpack.c.l.b16 %v2981
      %v3097 = vunpack.c.l.b16 %v2982
      %v3098 = vunpack.c.l.b16 %v2983
      %v3099 = vunpack.c.l.b16 %v2984
      %v3100 = vunpack.c.l.b16 %v2985
      %v3101 = vunpack.c.l.b16 %v2986
      %v3102 = vunpack.c.l.b16 %v2987
      %v3103 = vunpack.c.l.b16 %v2988
      %v3104 = vunpack.c.l.b16 %v2989
      %v3105 = vunpack.c.l.b16 %v2990
      %v3106 = vunpack.c.l.b16 %v2991
      %v3107 = vunpack.c.l.b16 %v2992
      %v3108 = vunpack.c.l.b16 %v2993
      %v3109 = vunpack.c.l.b16 %v2994
      %v3110 = vunpack.c.l.b16 %v2995
      %v3111 = vunpack.c.l.b16 %v2996
      %v3112 = vunpack.c.l.b16 %v2997
      %v3113 = vunpack.c.l.b16 %v2998
      %v3114 = vunpack.c.l.b16 %v2999
      %v3115 = vunpack.c.l.b16 %v3000
      %v3116 = vunpack.c.l.b16 %v3001
      %v3117 = vunpack.c.l.b16 %v3002
      %v3118 = vunpack.c.l.b16 %v3003
      %v3119 = vunpack.c.l.b16 %v3004
      %v3120 = vunpack.c.l.b16 %v3005
      %v3121 = vunpack.c.l.b16 %v3006
      %v3122 = vunpack.c.l.b16 %v3007
      %v3123 = vunpack.c.l.b16 %v3008
      %v3124 = vunpack.c.l.b16 %v3009
      %v3125 = vunpack.c.l.b16 %v3010
      %v3126 = vunpack.c.l.b16 %v3011
      %v3127 = vunpack.c.l.b16 %v3012
      %v3128 = vunpack.c.l.b16 %v3013
      %v3129 = vunpack.c.l.b16 %v3014
      %v3130 = vunpack.c.l.b16 %v3015
      %v3131 = vunpack.c.l.b16 %v3016
      %v3132 = vunpack.c.l.b16 %v3017
      %v3133 = vunpack.c.l.b16 %v3018
      %v3134 = vunpack.c.l.b16 %v3019
      %v3135 = vunpack.c.l.b16 %v3020
      %v3136 = vunpack.c.l.b16 %v3021
      %v3137 = vunpack.c.l.b16 %v3022
      %v3138 = vunpack.c.l.b16 %v3023
      %v3139 = vunpack.c.l.b16 %v3024
      %v3140 = vunpack.c.l.b16 %v3025
      %v3141 = vunpack.c.l.b16 %v3026
      %v3142 = vunpack.c.l.b16 %v3027
      %v3143 = vunpack.c.l.b16 %v3028
      %v3144 = vunpack.c.l.b16 %v3029
      %v3145 = vpack.c.b16 %v3097, %v3096
      %v3146 = vpack.c.b16 %v3099, %v3098
      %v3147 = vpack.c.b16 %v3101, %v3100
      %v3148 = vpack.c.b16 %v3103, %v3102
      %v3149 = vpack.c.b16 %v3105, %v3104
      %v3150 = vpack.c.b16 %v3107, %v3106
      %v3151 = vpack.c.b16 %v3109, %v3108
      %v3152 = vpack.c.b16 %v3111, %v3110
      %v3153 = vpack.c.b16 %v3113, %v3112
      %v3154 = vpack.c.b16 %v3115, %v3114
      %v3155 = vpack.c.b16 %v3117, %v3116
      %v3156 = vpack.c.b16 %v3119, %v3118
      %v3157 = vpack.c.b16 %v3121, %v3120
      %v3158 = vpack.c.b16 %v3123, %v3122
      %v3159 = vpack.c.b16 %v3125, %v3124
      %v3160 = vpack.c.b16 %v3127, %v3126
      %v3161 = vpack.c.b16 %v3129, %v3128
      %v3162 = vpack.c.b16 %v3131, %v3130
      %v3163 = vpack.c.b16 %v3133, %v3132
      %v3164 = vpack.c.b16 %v3135, %v3134
      %v3165 = vpack.c.b16 %v3137, %v3136
      %v3166 = vpack.c.b16 %v3139, %v3138
      %v3167 = vpack.c.b16 %v3141, %v3140
      %v3168 = vpack.c.b16 %v3143, %v3142
      %v3169 = vpack.c.b16 %v3144, %v3144
      %vm3170 = vcmask 1046528
      %v3171 = vrot.slane %v3145, 1
      %v3172 = vrot.slane %v3146, 1
      %v3173 = vsel %vm3170, %v3171, %v3172
      %v3174 = vrot.slane %v3147, 1
      %v3175 = vsel %vm3170, %v3172, %v3174
      %v3176 = vrot.slane %v3148, 1
      %v3177 = vsel %vm3170, %v3174, %v3176
      %v3178 = vrot.slane %v3149, 1
      %v3179 = vsel %vm3170, %v3176, %v3178
      %v3180 = vrot.slane %v3150, 1
      %v3181 = vsel %vm3170, %v3178, %v3180
      %v3182 = vrot.slane %v3151, 1
      %v3183 = vsel %vm3170, %v3180, %v3182
      %v3184 = vrot.slane %v3152, 1
      %v3185 = vsel %vm3170, %v3182, %v3184
      %v3186 = vrot.slane %v3153, 1
      %v3187 = vsel %vm3170, %v3184, %v3186
      %v3188 = vrot.slane %v3154, 1
      %v3189 = vsel %vm3170, %v3186, %v3188
      %v3190 = vrot.slane %v3155, 1
      %v3191 = vsel %vm3170, %v3188, %v3190
      %v3192 = vrot.slane %v3156, 1
      %v3193 = vsel %vm3170, %v3190, %v3192
      %v3194 = vrot.slane %v3157, 1
      %v3195 = vsel %vm3170, %v3192, %v3194
      %v3196 = vrot.slane %v3158, 1
      %v3197 = vsel %vm3170, %v3194, %v3196
      %v3198 = vrot.slane %v3159, 1
      %v3199 = vsel %vm3170, %v3196, %v3198
      %v3200 = vrot.slane %v3160, 1
      %v3201 = vsel %vm3170, %v3198, %v3200
      %v3202 = vrot.slane %v3161, 1
      %v3203 = vsel %vm3170, %v3200, %v3202
      %v3204 = vrot.slane %v3162, 1
      %v3205 = vsel %vm3170, %v3202, %v3204
      %v3206 = vrot.slane %v3163, 1
      %v3207 = vsel %vm3170, %v3204, %v3206
      %v3208 = vrot.slane %v3164, 1
      %v3209 = vsel %vm3170, %v3206, %v3208
      %v3210 = vrot.slane %v3165, 1
      %v3211 = vsel %vm3170, %v3208, %v3210
      %v3212 = vrot.slane %v3166, 1
      %v3213 = vsel %vm3170, %v3210, %v3212
      %v3214 = vrot.slane %v3167, 1
      %v3215 = vsel %vm3170, %v3212, %v3214
      %v3216 = vrot.slane %v3168, 1
      %v3217 = vsel %vm3170, %v3214, %v3216
      %v3218 = vrot.slane %v3169, 1
      %v3219 = vsel %vm3170, %v3216, %v3218
      %v3260 = vunpack.c.l.b16 %v3031
      %v3261 = vunpack.c.l.b16 %v3032
      %v3262 = vunpack.c.l.b16 %v3033
      %v3263 = vunpack.c.l.b16 %v3034
      %v3264 = vunpack.c.l.b16 %v3035
      %v3265 = vunpack.c.l.b16 %v3036
      %v3266 = vunpack.c.l.b16 %v3037
      %v3267 = vunpack.c.l.b16 %v3038
      %v3268 = vunpack.c.l.b16 %v3039
      %v3269 = vunpack.c.l.b16 %v3040
      %v3270 = vunpack.c.l.b16 %v3041
      %v3271 = vunpack.c.l.b16 %v3042
      %v3272 = vunpack.c.l.b16 %v3043
      %v3273 = vunpack.c.l.b16 %v3044
      %v3274 = vunpack.c.l.b16 %v3045
      %v3275 = vunpack.c.l.b16 %v3046
      %v3276 = vpack.c.b16 %v3261, %v3260
      %v3277 = vpack.c.b16 %v3263, %v3262
      %v3278 = vpack.c.b16 %v3265, %v3264
      %v3279 = vpack.c.b16 %v3267, %v3266
      %v3280 = vpack.c.b16 %v3269, %v3268
      %v3281 = vpack.c.b16 %v3271, %v3270
      %v3282 = vpack.c.b16 %v3273, %v3272
      %v3283 = vpack.c.b16 %v3275, %v3274
      %3292 = vmatprep.subr.bf16.mxu0 0
      %3293 = vmatpush1.bf16.msra.mxu0 %v3276
      %3294 = vmatprep.subr.bf16.mxu0 0
      %3295 = vmatpush1.bf16.msra.mxu0 %v3277
      %3296 = vmatprep.subr.bf16.mxu0 0
      %3297 = vmatpush1.bf16.msra.mxu0 %v3278
      %3298 = vmatprep.subr.bf16.mxu0 0
      %3299 = vmatpush1.bf16.msra.mxu0 %v3279
      %3300 = vmatprep.subr.bf16.mxu0 0
      %3301 = vmatpush1.bf16.msra.mxu0 %v3280
      %3302 = vmatprep.subr.bf16.mxu0 0
      %3303 = vmatpush1.bf16.msra.mxu0 %v3281
      %3304 = vmatprep.subr.bf16.mxu0 0
      %3305 = vmatpush1.bf16.msra.mxu0 %v3282
      %3306 = vmatprep.subr.bf16.mxu0 0
      %3307 = vmatpush1.bf16.msra.mxu0 %v3283
      %3308 = vmatprep.subr.bf16.mxu0 0
      %3309 = vmatpush1.bf16.msra.mxu0 0
      %3310 = vmatprep.subr.bf16.mxu0 0
      %3311 = vmatpush1.bf16.msra.mxu0 0
      %3312 = vmatprep.subr.bf16.mxu0 0
      %3313 = vmatpush1.bf16.msra.mxu0 0
      %3314 = vmatprep.subr.bf16.mxu0 0
      %3315 = vmatpush1.bf16.msra.mxu0 0
      %3316 = vmatprep.subr.bf16.mxu0 0
      %3317 = vmatpush1.bf16.msra.mxu0 0
      %3318 = vmatprep.subr.bf16.mxu0 0
      %3319 = vmatpush1.bf16.msra.mxu0 0
      %3320 = vmatprep.subr.bf16.mxu0 0
      %3321 = vmatpush1.bf16.msra.mxu0 0
      %3322 = vmatprep.subr.bf16.mxu0 0
      %3323 = vmatpush1.bf16.msra.mxu0 0
      %3324 = vmatprep.mubr.bf16.mxu0 0
      %3325 = vmatmul.mubr.bf16.gmra.mrb[0].mxu0 %v3173
      %v3326 = vpop.f32.mrb[0].mxu0
      %v3327 = vadd.f32 0.0, %v3326
      %v3328 = vpop.f32.mrb[0].mxu0
      %v3329 = vpop.f32.mrb[0].mxu0
      %v3330 = vadd.f32 0.0, %v3329
      %v3331 = vpop.f32.mrb[0].mxu0
      %3332 = vmatprep.mubr.bf16.mxu0 0
      %3333 = vmatmul.mubr.bf16.gmra.mrb[0].mxu0 %v3175
      %v3334 = vpop.f32.mrb[0].mxu0
      %v3335 = vadd.f32 0.0, %v3334
      %v3336 = vpop.f32.mrb[0].mxu0
      %v3337 = vpop.f32.mrb[0].mxu0
      %v3338 = vadd.f32 0.0, %v3337
      %v3339 = vpop.f32.mrb[0].mxu0
      %3340 = vmatprep.mubr.bf16.mxu0 0
      %3341 = vmatmul.mubr.bf16.gmra.mrb[0].mxu0 %v3177
      %v3342 = vpop.f32.mrb[0].mxu0
      %v3343 = vadd.f32 0.0, %v3342
      %v3344 = vpop.f32.mrb[0].mxu0
      %v3345 = vpop.f32.mrb[0].mxu0
      %v3346 = vadd.f32 0.0, %v3345
      %v3347 = vpop.f32.mrb[0].mxu0
      %3348 = vmatprep.mubr.bf16.mxu0 0
      %3349 = vmatmul.mubr.bf16.gmra.mrb[0].mxu0 %v3179
      %v3350 = vpop.f32.mrb[0].mxu0
      %v3351 = vadd.f32 0.0, %v3350
      %v3352 = vpop.f32.mrb[0].mxu0
      %v3353 = vpop.f32.mrb[0].mxu0
      %v3354 = vadd.f32 0.0, %v3353
      %v3355 = vpop.f32.mrb[0].mxu0
      %3356 = vmatprep.mubr.bf16.mxu0 0
      %3357 = vmatmul.mubr.bf16.gmra.mrb[0].mxu0 %v3181
      %v3358 = vpop.f32.mrb[0].mxu0
      %v3359 = vadd.f32 0.0, %v3358
      %v3360 = vpop.f32.mrb[0].mxu0
      %v3361 = vpop.f32.mrb[0].mxu0
      %v3362 = vadd.f32 0.0, %v3361
      %v3363 = vpop.f32.mrb[0].mxu0
      %3364 = vmatprep.mubr.bf16.mxu0 0
      %3365 = vmatmul.mubr.bf16.gmra.mrb[0].mxu0 %v3183
      %v3366 = vpop.f32.mrb[0].mxu0
      %v3367 = vadd.f32 0.0, %v3366
      %v3368 = vpop.f32.mrb[0].mxu0
      %v3369 = vpop.f32.mrb[0].mxu0
      %v3370 = vadd.f32 0.0, %v3369
      %v3371 = vpop.f32.mrb[0].mxu0
      %3372 = vmatprep.mubr.bf16.mxu0 0
      %3373 = vmatmul.mubr.bf16.gmra.mrb[0].mxu0 %v3185
      %v3374 = vpop.f32.mrb[0].mxu0
      %v3375 = vadd.f32 0.0, %v3374
      %v3376 = vpop.f32.mrb[0].mxu0
      %v3377 = vpop.f32.mrb[0].mxu0
      %v3378 = vadd.f32 0.0, %v3377
      %v3379 = vpop.f32.mrb[0].mxu0
      %3380 = vmatprep.mubr.bf16.mxu0 0
      %3381 = vmatmul.mubr.bf16.gmra.mrb[0].mxu0 %v3187
      %v3382 = vpop.f32.mrb[0].mxu0
      %v3383 = vadd.f32 0.0, %v3382
      %v3384 = vpop.f32.mrb[0].mxu0
      %v3385 = vpop.f32.mrb[0].mxu0
      %v3386 = vadd.f32 0.0, %v3385
      %v3387 = vpop.f32.mrb[0].mxu0
      %3388 = vmatprep.mubr.bf16.mxu0 0
      %3389 = vmatmul.mubr.bf16.gmra.mrb[0].mxu0 %v3189
      %v3390 = vpop.f32.mrb[0].mxu0
      %v3391 = vadd.f32 0.0, %v3390
      %v3392 = vpop.f32.mrb[0].mxu0
      %v3393 = vpop.f32.mrb[0].mxu0
      %v3394 = vadd.f32 0.0, %v3393
      %v3395 = vpop.f32.mrb[0].mxu0
      %3396 = vmatprep.mubr.bf16.mxu0 0
      %3397 = vmatmul.mubr.bf16.gmra.mrb[0].mxu0 %v3191
      %v3398 = vpop.f32.mrb[0].mxu0
      %v3399 = vadd.f32 0.0, %v3398
      %v3400 = vpop.f32.mrb[0].mxu0
      %v3401 = vpop.f32.mrb[0].mxu0
      %v3402 = vadd.f32 0.0, %v3401
      %v3403 = vpop.f32.mrb[0].mxu0
      %3404 = vmatprep.mubr.bf16.mxu0 0
      %3405 = vmatmul.mubr.bf16.gmra.mrb[0].mxu0 %v3193
      %v3406 = vpop.f32.mrb[0].mxu0
      %v3407 = vadd.f32 0.0, %v3406
      %v3408 = vpop.f32.mrb[0].mxu0
      %v3409 = vpop.f32.mrb[0].mxu0
      %v3410 = vadd.f32 0.0, %v3409
      %v3411 = vpop.f32.mrb[0].mxu0
      %3412 = vmatprep.mubr.bf16.mxu0 0
      %3413 = vmatmul.mubr.bf16.gmra.mrb[0].mxu0 %v3195
      %v3414 = vpop.f32.mrb[0].mxu0
      %v3415 = vadd.f32 0.0, %v3414
      %v3416 = vpop.f32.mrb[0].mxu0
      %v3417 = vpop.f32.mrb[0].mxu0
      %v3418 = vadd.f32 0.0, %v3417
      %v3419 = vpop.f32.mrb[0].mxu0
      %3420 = vmatprep.mubr.bf16.mxu0 0
      %3421 = vmatmul.mubr.bf16.gmra.mrb[0].mxu0 %v3197
      %v3422 = vpop.f32.mrb[0].mxu0
      %v3423 = vadd.f32 0.0, %v3422
      %v3424 = vpop.f32.mrb[0].mxu0
      %v3425 = vpop.f32.mrb[0].mxu0
      %v3426 = vadd.f32 0.0, %v3425
      %v3427 = vpop.f32.mrb[0].mxu0
      %3428 = vmatprep.mubr.bf16.mxu0 0
      %3429 = vmatmul.mubr.bf16.gmra.mrb[0].mxu0 %v3199
      %v3430 = vpop.f32.mrb[0].mxu0
      %v3431 = vadd.f32 0.0, %v3430
      %v3432 = vpop.f32.mrb[0].mxu0
      %v3433 = vpop.f32.mrb[0].mxu0
      %v3434 = vadd.f32 0.0, %v3433
      %v3435 = vpop.f32.mrb[0].mxu0
      %3436 = vmatprep.mubr.bf16.mxu0 0
      %3437 = vmatmul.mubr.bf16.gmra.mrb[0].mxu0 %v3201
      %v3438 = vpop.f32.mrb[0].mxu0
      %v3439 = vadd.f32 0.0, %v3438
      %v3440 = vpop.f32.mrb[0].mxu0
      %v3441 = vpop.f32.mrb[0].mxu0
      %v3442 = vadd.f32 0.0, %v3441
      %v3443 = vpop.f32.mrb[0].mxu0
      %3444 = vmatprep.mubr.bf16.mxu0 0
      %3445 = vmatmul.mubr.bf16.gmra.mrb[0].mxu0 %v3203
      %v3446 = vpop.f32.mrb[0].mxu0
      %v3447 = vadd.f32 0.0, %v3446
      %v3448 = vpop.f32.mrb[0].mxu0
      %v3449 = vpop.f32.mrb[0].mxu0
      %v3450 = vadd.f32 0.0, %v3449
      %v3451 = vpop.f32.mrb[0].mxu0
      %3452 = vmatprep.mubr.bf16.mxu0 0
      %3453 = vmatmul.mubr.bf16.gmra.mrb[0].mxu0 %v3205
      %v3454 = vpop.f32.mrb[0].mxu0
      %v3455 = vadd.f32 0.0, %v3454
      %v3456 = vpop.f32.mrb[0].mxu0
      %v3457 = vpop.f32.mrb[0].mxu0
      %v3458 = vadd.f32 0.0, %v3457
      %v3459 = vpop.f32.mrb[0].mxu0
      %3460 = vmatprep.mubr.bf16.mxu0 0
      %3461 = vmatmul.mubr.bf16.gmra.mrb[0].mxu0 %v3207
      %v3462 = vpop.f32.mrb[0].mxu0
      %v3463 = vadd.f32 0.0, %v3462
      %v3464 = vpop.f32.mrb[0].mxu0
      %v3465 = vpop.f32.mrb[0].mxu0
      %v3466 = vadd.f32 0.0, %v3465
      %v3467 = vpop.f32.mrb[0].mxu0
      %3468 = vmatprep.mubr.bf16.mxu0 0
      %3469 = vmatmul.mubr.bf16.gmra.mrb[0].mxu0 %v3209
      %v3470 = vpop.f32.mrb[0].mxu0
      %v3471 = vadd.f32 0.0, %v3470
      %v3472 = vpop.f32.mrb[0].mxu0
      %v3473 = vpop.f32.mrb[0].mxu0
      %v3474 = vadd.f32 0.0, %v3473
      %v3475 = vpop.f32.mrb[0].mxu0
      %3476 = vmatprep.mubr.bf16.mxu0 0
      %3477 = vmatmul.mubr.bf16.gmra.mrb[0].mxu0 %v3211
      %v3478 = vpop.f32.mrb[0].mxu0
      %v3479 = vadd.f32 0.0, %v3478
      %v3480 = vpop.f32.mrb[0].mxu0
      %v3481 = vpop.f32.mrb[0].mxu0
      %v3482 = vadd.f32 0.0, %v3481
      %v3483 = vpop.f32.mrb[0].mxu0
      %3484 = vmatprep.mubr.bf16.mxu0 0
      %3485 = vmatmul.mubr.bf16.gmra.mrb[0].mxu0 %v3213
      %v3486 = vpop.f32.mrb[0].mxu0
      %v3487 = vadd.f32 0.0, %v3486
      %v3488 = vpop.f32.mrb[0].mxu0
      %v3489 = vpop.f32.mrb[0].mxu0
      %v3490 = vadd.f32 0.0, %v3489
      %v3491 = vpop.f32.mrb[0].mxu0
      %3492 = vmatprep.mubr.bf16.mxu0 0
      %3493 = vmatmul.mubr.bf16.gmra.mrb[0].mxu0 %v3215
      %v3494 = vpop.f32.mrb[0].mxu0
      %v3495 = vadd.f32 0.0, %v3494
      %v3496 = vpop.f32.mrb[0].mxu0
      %v3497 = vpop.f32.mrb[0].mxu0
      %v3498 = vadd.f32 0.0, %v3497
      %v3499 = vpop.f32.mrb[0].mxu0
      %3500 = vmatprep.mubr.bf16.mxu0 0
      %3501 = vmatmul.mubr.bf16.gmra.mrb[0].mxu0 %v3217
      %v3502 = vpop.f32.mrb[0].mxu0
      %v3503 = vadd.f32 0.0, %v3502
      %v3504 = vpop.f32.mrb[0].mxu0
      %v3505 = vpop.f32.mrb[0].mxu0
      %v3506 = vadd.f32 0.0, %v3505
      %v3507 = vpop.f32.mrb[0].mxu0
      %3508 = vmatprep.mubr.bf16.mxu0 0
      %3509 = vmatmul.mubr.bf16.gmra.mrb[0].mxu0 %v3219
      %v3510 = vpop.f32.mrb[0].mxu0
      %v3511 = vadd.f32 0.0, %v3510
      %v3512 = vpop.f32.mrb[0].mxu0
      %v3513 = vpop.f32.mrb[0].mxu0
      %v3514 = vadd.f32 0.0, %v3513
      %v3515 = vpop.f32.mrb[0].mxu0
      %3516 = vdwg.mxu0
      %v3517 = vld [vmem:[#allocation4] sm:$0xff]
      %v3518 = vld [vmem:[#allocation4 + $0x8] sm:$0xff]
      %v3519 = vld [vmem:[#allocation4 + $0x10] sm:$0xff]
      %v3520 = vld [vmem:[#allocation4 + $0x18] sm:$0xff]
      %v3521 = vld [vmem:[#allocation4 + $0x20] sm:$0xff]
      %v3522 = vld [vmem:[#allocation4 + $0x28] sm:$0xff]
      %v3523 = vld [vmem:[#allocation4 + $0x30] sm:$0xff]
      %v3524 = vld [vmem:[#allocation4 + $0x38] sm:$0xff]
      %v3525 = vld [vmem:[#allocation4 + $0x40] sm:$0xff]
      %v3526 = vld [vmem:[#allocation4 + $0x48] sm:$0xff]
      %v3527 = vld [vmem:[#allocation4 + $0x50] sm:$0xff]
      %v3528 = vld [vmem:[#allocation4 + $0x58] sm:$0xff]
      %v3529 = vld [vmem:[#allocation4 + $0x60] sm:$0xff]
      %v3530 = vld [vmem:[#allocation4 + $0x68] sm:$0xff]
      %v3531 = vld [vmem:[#allocation4 + $0x70] sm:$0xff]
      %v3532 = vld [vmem:[#allocation4 + $0x78] sm:$0xff]
      %v3533 = vld [vmem:[#allocation4 + $0x80] sm:$0xff]
      %v3534 = vld [vmem:[#allocation4 + $0x88] sm:$0xff]
      %v3535 = vld [vmem:[#allocation4 + $0x90] sm:$0xff]
      %v3536 = vld [vmem:[#allocation4 + $0x98] sm:$0xff]
      %v3537 = vld [vmem:[#allocation4 + $0xa0] sm:$0xff]
      %v3538 = vld [vmem:[#allocation4 + $0xa8] sm:$0xff]
      %v3539 = vld [vmem:[#allocation4 + $0xb0] sm:$0xff]
      %v3540 = vld [vmem:[#allocation4 + $0xb8] sm:$0xff]
      %v3541 = vld [vmem:[#allocation4 + $0xc0] sm:$0xff]
      %v3542 = vld [vmem:[#allocation4 + $0xc8] sm:$0xff]
      %v3543 = vld [vmem:[#allocation4 + $0xd0] sm:$0xff]
      %v3544 = vld [vmem:[#allocation4 + $0xd8] sm:$0xff]
      %v3545 = vld [vmem:[#allocation4 + $0xe0] sm:$0xff]
      %v3546 = vld [vmem:[#allocation4 + $0xe8] sm:$0xff]
      %v3547 = vld [vmem:[#allocation4 + $0xf0] sm:$0xff]
      %v3548 = vld [vmem:[#allocation4 + $0xf8] sm:$0xff]
      %v3549 = vld [vmem:[#allocation4 + $0x100] sm:$0xff]
      %v3550 = vld [vmem:[#allocation4 + $0x108] sm:$0xff]
      %v3551 = vld [vmem:[#allocation4 + $0x110] sm:$0xff]
      %v3552 = vld [vmem:[#allocation4 + $0x118] sm:$0xff]
      %v3553 = vld [vmem:[#allocation4 + $0x120] sm:$0xff]
      %v3554 = vld [vmem:[#allocation4 + $0x128] sm:$0xff]
      %v3555 = vld [vmem:[#allocation4 + $0x130] sm:$0xff]
      %v3556 = vld [vmem:[#allocation4 + $0x138] sm:$0xff]
      %v3557 = vld [vmem:[#allocation4 + $0x140] sm:$0xff]
      %v3558 = vld [vmem:[#allocation4 + $0x148] sm:$0xff]
      %v3559 = vld [vmem:[#allocation4 + $0x150] sm:$0xff]
      %v3560 = vld [vmem:[#allocation4 + $0x158] sm:$0xff]
      %v3561 = vld [vmem:[#allocation4 + $0x160] sm:$0xff]
      %v3562 = vld [vmem:[#allocation4 + $0x168] sm:$0xff]
      %v3563 = vld [vmem:[#allocation4 + $0x170] sm:$0xff]
      %v3564 = vld [vmem:[#allocation4 + $0x178] sm:$0xff]
      %v3565 = vadd.f32 %v3517, %v3327
      %v3566 = vadd.f32 %v3518, %v3330
      %v3567 = vadd.f32 %v3519, %v3335
      %v3568 = vadd.f32 %v3520, %v3338
      %v3569 = vadd.f32 %v3521, %v3343
      %v3570 = vadd.f32 %v3522, %v3346
      %v3571 = vadd.f32 %v3523, %v3351
      %v3572 = vadd.f32 %v3524, %v3354
      %v3573 = vadd.f32 %v3525, %v3359
      %v3574 = vadd.f32 %v3526, %v3362
      %v3575 = vadd.f32 %v3527, %v3367
      %v3576 = vadd.f32 %v3528, %v3370
      %v3577 = vadd.f32 %v3529, %v3375
      %v3578 = vadd.f32 %v3530, %v3378
      %v3579 = vadd.f32 %v3531, %v3383
      %v3580 = vadd.f32 %v3532, %v3386
      %v3581 = vadd.f32 %v3533, %v3391
      %v3582 = vadd.f32 %v3534, %v3394
      %v3583 = vadd.f32 %v3535, %v3399
      %v3584 = vadd.f32 %v3536, %v3402
      %v3585 = vadd.f32 %v3537, %v3407
      %v3586 = vadd.f32 %v3538, %v3410
      %v3587 = vadd.f32 %v3539, %v3415
      %v3588 = vadd.f32 %v3540, %v3418
      %v3589 = vadd.f32 %v3541, %v3423
      %v3590 = vadd.f32 %v3542, %v3426
      %v3591 = vadd.f32 %v3543, %v3431
      %v3592 = vadd.f32 %v3544, %v3434
      %v3593 = vadd.f32 %v3545, %v3439
      %v3594 = vadd.f32 %v3546, %v3442
      %v3595 = vadd.f32 %v3547, %v3447
      %v3596 = vadd.f32 %v3548, %v3450
      %v3597 = vadd.f32 %v3549, %v3455
      %v3598 = vadd.f32 %v3550, %v3458
      %v3599 = vadd.f32 %v3551, %v3463
      %v3600 = vadd.f32 %v3552, %v3466
      %v3601 = vadd.f32 %v3553, %v3471
      %v3602 = vadd.f32 %v3554, %v3474
      %v3603 = vadd.f32 %v3555, %v3479
      %v3604 = vadd.f32 %v3556, %v3482
      %v3605 = vadd.f32 %v3557, %v3487
      %v3606 = vadd.f32 %v3558, %v3490
      %v3607 = vadd.f32 %v3559, %v3495
      %v3608 = vadd.f32 %v3560, %v3498
      %v3609 = vadd.f32 %v3561, %v3503
      %v3610 = vadd.f32 %v3562, %v3506
      %v3611 = vadd.f32 %v3563, %v3511
      %v3612 = vadd.f32 %v3564, %v3514
      %3613 = vst [vmem:[#allocation4] sm:$0xff] %v3565
      %3614 = vst [vmem:[#allocation4 + $0x8] sm:$0xff] %v3566
      %3615 = vst [vmem:[#allocation4 + $0x10] sm:$0xff] %v3567
      %3616 = vst [vmem:[#allocation4 + $0x18] sm:$0xff] %v3568
      %3617 = vst [vmem:[#allocation4 + $0x20] sm:$0xff] %v3569
      %3618 = vst [vmem:[#allocation4 + $0x28] sm:$0xff] %v3570
      %3619 = vst [vmem:[#allocation4 + $0x30] sm:$0xff] %v3571
      %3620 = vst [vmem:[#allocation4 + $0x38] sm:$0xff] %v3572
      %3621 = vst [vmem:[#allocation4 + $0x40] sm:$0xff] %v3573
      %3622 = vst [vmem:[#allocation4 + $0x48] sm:$0xff] %v3574
      %3623 = vst [vmem:[#allocation4 + $0x50] sm:$0xff] %v3575
      %3624 = vst [vmem:[#allocation4 + $0x58] sm:$0xff] %v3576
      %3625 = vst [vmem:[#allocation4 + $0x60] sm:$0xff] %v3577
      %3626 = vst [vmem:[#allocation4 + $0x68] sm:$0xff] %v3578
      %3627 = vst [vmem:[#allocation4 + $0x70] sm:$0xff] %v3579
      %3628 = vst [vmem:[#allocation4 + $0x78] sm:$0xff] %v3580
      %3629 = vst [vmem:[#allocation4 + $0x80] sm:$0xff] %v3581
      %3630 = vst [vmem:[#allocation4 + $0x88] sm:$0xff] %v3582
      %3631 = vst [vmem:[#allocation4 + $0x90] sm:$0xff] %v3583
      %3632 = vst [vmem:[#allocation4 + $0x98] sm:$0xff] %v3584
      %3633 = vst [vmem:[#allocation4 + $0xa0] sm:$0xff] %v3585
      %3634 = vst [vmem:[#allocation4 + $0xa8] sm:$0xff] %v3586
      %3635 = vst [vmem:[#allocation4 + $0xb0] sm:$0xff] %v3587
      %3636 = vst [vmem:[#allocation4 + $0xb8] sm:$0xff] %v3588
      %3637 = vst [vmem:[#allocation4 + $0xc0] sm:$0xff] %v3589
      %3638 = vst [vmem:[#allocation4 + $0xc8] sm:$0xff] %v3590
      %3639 = vst [vmem:[#allocation4 + $0xd0] sm:$0xff] %v3591
      %3640 = vst [vmem:[#allocation4 + $0xd8] sm:$0xff] %v3592
      %3641 = vst [vmem:[#allocation4 + $0xe0] sm:$0xff] %v3593
      %3642 = vst [vmem:[#allocation4 + $0xe8] sm:$0xff] %v3594
      %3643 = vst [vmem:[#allocation4 + $0xf0] sm:$0xff] %v3595
      %3644 = vst [vmem:[#allocation4 + $0xf8] sm:$0xff] %v3596
      %3645 = vst [vmem:[#allocation4 + $0x100] sm:$0xff] %v3597
      %3646 = vst [vmem:[#allocation4 + $0x108] sm:$0xff] %v3598
      %3647 = vst [vmem:[#allocation4 + $0x110] sm:$0xff] %v3599
      %3648 = vst [vmem:[#allocation4 + $0x118] sm:$0xff] %v3600
      %3649 = vst [vmem:[#allocation4 + $0x120] sm:$0xff] %v3601
      %3650 = vst [vmem:[#allocation4 + $0x128] sm:$0xff] %v3602
      %3651 = vst [vmem:[#allocation4 + $0x130] sm:$0xff] %v3603
      %3652 = vst [vmem:[#allocation4 + $0x138] sm:$0xff] %v3604
      %3653 = vst [vmem:[#allocation4 + $0x140] sm:$0xff] %v3605
      %3654 = vst [vmem:[#allocation4 + $0x148] sm:$0xff] %v3606
      %3655 = vst [vmem:[#allocation4 + $0x150] sm:$0xff] %v3607
      %3656 = vst [vmem:[#allocation4 + $0x158] sm:$0xff] %v3608
      %3657 = vst [vmem:[#allocation4 + $0x160] sm:$0xff] %v3609
      %3658 = vst [vmem:[#allocation4 + $0x168] sm:$0xff] %v3610
      %3659 = vst [vmem:[#allocation4 + $0x170] sm:$0xff] %v3611
      %3660 = vst [vmem:[#allocation4 + $0x178] sm:$0xff] %v3612
      %v3661 = vld [vmem:[#allocation2 + $0xc] sm:$0xf]
      %v3662 = vld [vmem:[#allocation2 + $0x10] sm:$0xf]
      %v3663 = vld [vmem:[#allocation2 + $0x14] sm:$0xf]
      %v3664 = vld [vmem:[#allocation2 + $0x18] sm:$0xf]
      %v3665 = vld [vmem:[#allocation2 + $0x1c] sm:$0xf]
      %v3666 = vld [vmem:[#allocation2 + $0x20] sm:$0xf]
      %v3667 = vld [vmem:[#allocation2 + $0x24] sm:$0xf]
      %v3668 = vld [vmem:[#allocation2 + $0x28] sm:$0xf]
      %v3669 = vld [vmem:[#allocation2 + $0x2c] sm:$0xf]
      %v3670 = vld [vmem:[#allocation2 + $0x30] sm:$0xf]
      %v3671 = vld [vmem:[#allocation2 + $0x34] sm:$0xf]
      %v3672 = vld [vmem:[#allocation2 + $0x38] sm:$0xf]
      %v3673 = vld [vmem:[#allocation2 + $0x3c] sm:$0xf]
      %v3674 = vld [vmem:[#allocation2 + $0x40] sm:$0xf]
      %v3675 = vld [vmem:[#allocation2 + $0x44] sm:$0xf]
      %v3676 = vld [vmem:[#allocation2 + $0x48] sm:$0xf]
      %v3677 = vld [vmem:[#allocation2 + $0x4c] sm:$0xf]
      %v3678 = vld [vmem:[#allocation2 + $0x50] sm:$0xf]
      %v3679 = vld [vmem:[#allocation2 + $0x54] sm:$0xf]
      %v3680 = vld [vmem:[#allocation2 + $0x58] sm:$0xf]
      %v3681 = vld [vmem:[#allocation2 + $0x5c] sm:$0xf]
      %v3682 = vld [vmem:[#allocation2 + $0x60] sm:$0xf]
      %v3683 = vld [vmem:[#allocation2 + $0x64] sm:$0xf]
      %v3684 = vld [vmem:[#allocation2 + $0x68] sm:$0xf]
      %v3685 = vld [vmem:[#allocation2 + $0x6c] sm:$0xf]
      %v3686 = vld [vmem:[#allocation2 + $0x70] sm:$0xf]
      %v3687 = vld [vmem:[#allocation2 + $0x74] sm:$0xf]
      %v3688 = vld [vmem:[#allocation2 + $0x78] sm:$0xf]
      %v3689 = vld [vmem:[#allocation2 + $0x7c] sm:$0xf]
      %v3690 = vld [vmem:[#allocation2 + $0x80] sm:$0xf]
      %v3691 = vld [vmem:[#allocation2 + $0x84] sm:$0xf]
      %v3692 = vld [vmem:[#allocation2 + $0x88] sm:$0xf]
      %v3693 = vld [vmem:[#allocation2 + $0x8c] sm:$0xf]
      %v3694 = vld [vmem:[#allocation2 + $0x90] sm:$0xf]
      %v3695 = vld [vmem:[#allocation2 + $0x94] sm:$0xf]
      %v3696 = vld [vmem:[#allocation2 + $0x98] sm:$0xf]
      %v3697 = vld [vmem:[#allocation2 + $0x9c] sm:$0xf]
      %v3698 = vld [vmem:[#allocation2 + $0xa0] sm:$0xf]
      %v3699 = vld [vmem:[#allocation2 + $0xa4] sm:$0xf]
      %v3700 = vld [vmem:[#allocation2 + $0xa8] sm:$0xf]
      %v3701 = vld [vmem:[#allocation2 + $0xac] sm:$0xf]
      %v3702 = vld [vmem:[#allocation2 + $0xb0] sm:$0xf]
      %v3703 = vld [vmem:[#allocation2 + $0xb4] sm:$0xf]
      %v3704 = vld [vmem:[#allocation2 + $0xb8] sm:$0xf]
      %v3705 = vld [vmem:[#allocation2 + $0xbc] sm:$0xf]
      %v3706 = vld [vmem:[#allocation2 + $0xc0] sm:$0xf]
      %v3707 = vld [vmem:[#allocation2 + $0xc4] sm:$0xf]
      %v3708 = vld [vmem:[#allocation2 + $0xc8] sm:$0xf]
      %s3709 = scalar_lea.vmem %s4, 192
      %v3710 = vld [vmem:[%s3709] sm:$0xf]
      %v3711 = vld [vmem:[%s3709 + $0x4] sm:$0xf]
      %v3712 = vld [vmem:[%s3709 + $0x8] sm:$0xf]
      %v3713 = vld [vmem:[%s3709 + $0xc] sm:$0xf]
      %v3714 = vld [vmem:[%s3709 + $0x10] sm:$0xf]
      %v3715 = vld [vmem:[%s3709 + $0x14] sm:$0xf]
      %v3716 = vld [vmem:[%s3709 + $0x18] sm:$0xf]
      %v3717 = vld [vmem:[%s3709 + $0x1c] sm:$0xf]
      %v3718 = vld [vmem:[%s3709 + $0x20] sm:$0xf]
      %v3719 = vld [vmem:[%s3709 + $0x24] sm:$0xf]
      %v3720 = vld [vmem:[%s3709 + $0x28] sm:$0xf]
      %v3721 = vld [vmem:[%s3709 + $0x2c] sm:$0xf]
      %v3722 = vld [vmem:[%s3709 + $0x30] sm:$0xf]
      %v3723 = vld [vmem:[%s3709 + $0x34] sm:$0xf]
      %v3724 = vld [vmem:[%s3709 + $0x38] sm:$0xf]
      %v3725 = vld [vmem:[%s3709 + $0x3c] sm:$0xf]
      %v3774 = vunpack.c.l.b16 %v3661
      %v3775 = vunpack.c.l.b16 %v3662
      %v3776 = vunpack.c.l.b16 %v3663
      %v3777 = vunpack.c.l.b16 %v3664
      %v3778 = vunpack.c.l.b16 %v3665
      %v3779 = vunpack.c.l.b16 %v3666
      %v3780 = vunpack.c.l.b16 %v3667
      %v3781 = vunpack.c.l.b16 %v3668
      %v3782 = vunpack.c.l.b16 %v3669
      %v3783 = vunpack.c.l.b16 %v3670
      %v3784 = vunpack.c.l.b16 %v3671
      %v3785 = vunpack.c.l.b16 %v3672
      %v3786 = vunpack.c.l.b16 %v3673
      %v3787 = vunpack.c.l.b16 %v3674
      %v3788 = vunpack.c.l.b16 %v3675
      %v3789 = vunpack.c.l.b16 %v3676
      %v3790 = vunpack.c.l.b16 %v3677
      %v3791 = vunpack.c.l.b16 %v3678
      %v3792 = vunpack.c.l.b16 %v3679
      %v3793 = vunpack.c.l.b16 %v3680
      %v3794 = vunpack.c.l.b16 %v3681
      %v3795 = vunpack.c.l.b16 %v3682
      %v3796 = vunpack.c.l.b16 %v3683
      %v3797 = vunpack.c.l.b16 %v3684
      %v3798 = vunpack.c.l.b16 %v3685
      %v3799 = vunpack.c.l.b16 %v3686
      %v3800 = vunpack.c.l.b16 %v3687
      %v3801 = vunpack.c.l.b16 %v3688
      %v3802 = vunpack.c.l.b16 %v3689
      %v3803 = vunpack.c.l.b16 %v3690
      %v3804 = vunpack.c.l.b16 %v3691
      %v3805 = vunpack.c.l.b16 %v3692
      %v3806 = vunpack.c.l.b16 %v3693
      %v3807 = vunpack.c.l.b16 %v3694
      %v3808 = vunpack.c.l.b16 %v3695
      %v3809 = vunpack.c.l.b16 %v3696
      %v3810 = vunpack.c.l.b16 %v3697
      %v3811 = vunpack.c.l.b16 %v3698
      %v3812 = vunpack.c.l.b16 %v3699
      %v3813 = vunpack.c.l.b16 %v3700
      %v3814 = vunpack.c.l.b16 %v3701
      %v3815 = vunpack.c.l.b16 %v3702
      %v3816 = vunpack.c.l.b16 %v3703
      %v3817 = vunpack.c.l.b16 %v3704
      %v3818 = vunpack.c.l.b16 %v3705
      %v3819 = vunpack.c.l.b16 %v3706
      %v3820 = vunpack.c.l.b16 %v3707
      %v3821 = vunpack.c.l.b16 %v3708
      %v3822 = vpack.c.b16 %v3775, %v3774
      %v3823 = vpack.c.b16 %v3777, %v3776
      %v3824 = vpack.c.b16 %v3779, %v3778
      %v3825 = vpack.c.b16 %v3781, %v3780
      %v3826 = vpack.c.b16 %v3783, %v3782
      %v3827 = vpack.c.b16 %v3785, %v3784
      %v3828 = vpack.c.b16 %v3787, %v3786
      %v3829 = vpack.c.b16 %v3789, %v3788
      %v3830 = vpack.c.b16 %v3791, %v3790
      %v3831 = vpack.c.b16 %v3793, %v3792
      %v3832 = vpack.c.b16 %v3795, %v3794
      %v3833 = vpack.c.b16 %v3797, %v3796
      %v3834 = vpack.c.b16 %v3799, %v3798
      %v3835 = vpack.c.b16 %v3801, %v3800
      %v3836 = vpack.c.b16 %v3803, %v3802
      %v3837 = vpack.c.b16 %v3805, %v3804
      %v3838 = vpack.c.b16 %v3807, %v3806
      %v3839 = vpack.c.b16 %v3809, %v3808
      %v3840 = vpack.c.b16 %v3811, %v3810
      %v3841 = vpack.c.b16 %v3813, %v3812
      %v3842 = vpack.c.b16 %v3815, %v3814
      %v3843 = vpack.c.b16 %v3817, %v3816
      %v3844 = vpack.c.b16 %v3819, %v3818
      %v3845 = vpack.c.b16 %v3821, %v3820
      %v3886 = vunpack.c.l.b16 %v3710
      %v3887 = vunpack.c.l.b16 %v3711
      %v3888 = vunpack.c.l.b16 %v3712
      %v3889 = vunpack.c.l.b16 %v3713
      %v3890 = vunpack.c.l.b16 %v3714
      %v3891 = vunpack.c.l.b16 %v3715
      %v3892 = vunpack.c.l.b16 %v3716
      %v3893 = vunpack.c.l.b16 %v3717
      %v3894 = vunpack.c.l.b16 %v3718
      %v3895 = vunpack.c.l.b16 %v3719
      %v3896 = vunpack.c.l.b16 %v3720
      %v3897 = vunpack.c.l.b16 %v3721
      %v3898 = vunpack.c.l.b16 %v3722
      %v3899 = vunpack.c.l.b16 %v3723
      %v3900 = vunpack.c.l.b16 %v3724
      %v3901 = vunpack.c.l.b16 %v3725
      %v3902 = vpack.c.b16 %v3887, %v3886
      %v3903 = vpack.c.b16 %v3889, %v3888
      %v3904 = vpack.c.b16 %v3891, %v3890
      %v3905 = vpack.c.b16 %v3893, %v3892
      %v3906 = vpack.c.b16 %v3895, %v3894
      %v3907 = vpack.c.b16 %v3897, %v3896
      %v3908 = vpack.c.b16 %v3899, %v3898
      %v3909 = vpack.c.b16 %v3901, %v3900
      %3918 = vmatprep.subr.bf16.mxu0 0
      %3919 = vmatpush1.bf16.msra.mxu0 %v3902
      %3920 = vmatprep.subr.bf16.mxu0 0
      %3921 = vmatpush1.bf16.msra.mxu0 %v3903
      %3922 = vmatprep.subr.bf16.mxu0 0
      %3923 = vmatpush1.bf16.msra.mxu0 %v3904
      %3924 = vmatprep.subr.bf16.mxu0 0
      %3925 = vmatpush1.bf16.msra.mxu0 %v3905
      %3926 = vmatprep.subr.bf16.mxu0 0
      %3927 = vmatpush1.bf16.msra.mxu0 %v3906
      %3928 = vmatprep.subr.bf16.mxu0 0
      %3929 = vmatpush1.bf16.msra.mxu0 %v3907
      %3930 = vmatprep.subr.bf16.mxu0 0
      %3931 = vmatpush1.bf16.msra.mxu0 %v3908
      %3932 = vmatprep.subr.bf16.mxu0 0
      %3933 = vmatpush1.bf16.msra.mxu0 %v3909
      %3934 = vmatprep.subr.bf16.mxu0 0
      %3935 = vmatpush1.bf16.msra.mxu0 0
      %3936 = vmatprep.subr.bf16.mxu0 0
      %3937 = vmatpush1.bf16.msra.mxu0 0
      %3938 = vmatprep.subr.bf16.mxu0 0
      %3939 = vmatpush1.bf16.msra.mxu0 0
      %3940 = vmatprep.subr.bf16.mxu0 0
      %3941 = vmatpush1.bf16.msra.mxu0 0
      %3942 = vmatprep.subr.bf16.mxu0 0
      %3943 = vmatpush1.bf16.msra.mxu0 0
      %3944 = vmatprep.subr.bf16.mxu0 0
      %3945 = vmatpush1.bf16.msra.mxu0 0
      %3946 = vmatprep.subr.bf16.mxu0 0
      %3947 = vmatpush1.bf16.msra.mxu0 0
      %3948 = vmatprep.subr.bf16.mxu0 0
      %3949 = vmatpush1.bf16.msra.mxu0 0
      %3950 = vmatprep.mubr.bf16.mxu0 0
      %3951 = vmatmul.mubr.bf16.gmra.mrb[0].mxu0 %v3822
      %v3952 = vpop.f32.mrb[0].mxu0
      %v3953 = vadd.f32 0.0, %v3952
      %v3954 = vpop.f32.mrb[0].mxu0
      %v3955 = vpop.f32.mrb[0].mxu0
      %v3956 = vadd.f32 0.0, %v3955
      %v3957 = vpop.f32.mrb[0].mxu0
      %3958 = vmatprep.mubr.bf16.mxu0 0
      %3959 = vmatmul.mubr.bf16.gmra.mrb[0].mxu0 %v3823
      %v3960 = vpop.f32.mrb[0].mxu0
      %v3961 = vadd.f32 0.0, %v3960
      %v3962 = vpop.f32.mrb[0].mxu0
      %v3963 = vpop.f32.mrb[0].mxu0
      %v3964 = vadd.f32 0.0, %v3963
      %v3965 = vpop.f32.mrb[0].mxu0
      %3966 = vmatprep.mubr.bf16.mxu0 0
      %3967 = vmatmul.mubr.bf16.gmra.mrb[0].mxu0 %v3824
      %v3968 = vpop.f32.mrb[0].mxu0
      %v3969 = vadd.f32 0.0, %v3968
      %v3970 = vpop.f32.mrb[0].mxu0
      %v3971 = vpop.f32.mrb[0].mxu0
      %v3972 = vadd.f32 0.0, %v3971
      %v3973 = vpop.f32.mrb[0].mxu0
      %3974 = vmatprep.mubr.bf16.mxu0 0
      %3975 = vmatmul.mubr.bf16.gmra.mrb[0].mxu0 %v3825
      %v3976 = vpop.f32.mrb[0].mxu0
      %v3977 = vadd.f32 0.0, %v3976
      %v3978 = vpop.f32.mrb[0].mxu0
      %v3979 = vpop.f32.mrb[0].mxu0
      %v3980 = vadd.f32 0.0, %v3979
      %v3981 = vpop.f32.mrb[0].mxu0
      %3982 = vmatprep.mubr.bf16.mxu0 0
      %3983 = vmatmul.mubr.bf16.gmra.mrb[0].mxu0 %v3826
      %v3984 = vpop.f32.mrb[0].mxu0
      %v3985 = vadd.f32 0.0, %v3984
      %v3986 = vpop.f32.mrb[0].mxu0
      %v3987 = vpop.f32.mrb[0].mxu0
      %v3988 = vadd.f32 0.0, %v3987
      %v3989 = vpop.f32.mrb[0].mxu0
      %3990 = vmatprep.mubr.bf16.mxu0 0
      %3991 = vmatmul.mubr.bf16.gmra.mrb[0].mxu0 %v3827
      %v3992 = vpop.f32.mrb[0].mxu0
      %v3993 = vadd.f32 0.0, %v3992
      %v3994 = vpop.f32.mrb[0].mxu0
      %v3995 = vpop.f32.mrb[0].mxu0
      %v3996 = vadd.f32 0.0, %v3995
      %v3997 = vpop.f32.mrb[0].mxu0
      %3998 = vmatprep.mubr.bf16.mxu0 0
      %3999 = vmatmul.mubr.bf16.gmra.mrb[0].mxu0 %v3828
      %v4000 = vpop.f32.mrb[0].mxu0
      %v4001 = vadd.f32 0.0, %v4000
      %v4002 = vpop.f32.mrb[0].mxu0
      %v4003 = vpop.f32.mrb[0].mxu0
      %v4004 = vadd.f32 0.0, %v4003
      %v4005 = vpop.f32.mrb[0].mxu0
      %4006 = vmatprep.mubr.bf16.mxu0 0
      %4007 = vmatmul.mubr.bf16.gmra.mrb[0].mxu0 %v3829
      %v4008 = vpop.f32.mrb[0].mxu0
      %v4009 = vadd.f32 0.0, %v4008
      %v4010 = vpop.f32.mrb[0].mxu0
      %v4011 = vpop.f32.mrb[0].mxu0
      %v4012 = vadd.f32 0.0, %v4011
      %v4013 = vpop.f32.mrb[0].mxu0
      %4014 = vmatprep.mubr.bf16.mxu0 0
      %4015 = vmatmul.mubr.bf16.gmra.mrb[0].mxu0 %v3830
      %v4016 = vpop.f32.mrb[0].mxu0
      %v4017 = vadd.f32 0.0, %v4016
      %v4018 = vpop.f32.mrb[0].mxu0
      %v4019 = vpop.f32.mrb[0].mxu0
      %v4020 = vadd.f32 0.0, %v4019
      %v4021 = vpop.f32.mrb[0].mxu0
      %4022 = vmatprep.mubr.bf16.mxu0 0
      %4023 = vmatmul.mubr.bf16.gmra.mrb[0].mxu0 %v3831
      %v4024 = vpop.f32.mrb[0].mxu0
      %v4025 = vadd.f32 0.0, %v4024
      %v4026 = vpop.f32.mrb[0].mxu0
      %v4027 = vpop.f32.mrb[0].mxu0
      %v4028 = vadd.f32 0.0, %v4027
      %v4029 = vpop.f32.mrb[0].mxu0
      %4030 = vmatprep.mubr.bf16.mxu0 0
      %4031 = vmatmul.mubr.bf16.gmra.mrb[0].mxu0 %v3832
      %v4032 = vpop.f32.mrb[0].mxu0
      %v4033 = vadd.f32 0.0, %v4032
      %v4034 = vpop.f32.mrb[0].mxu0
      %v4035 = vpop.f32.mrb[0].mxu0
      %v4036 = vadd.f32 0.0, %v4035
      %v4037 = vpop.f32.mrb[0].mxu0
      %4038 = vmatprep.mubr.bf16.mxu0 0
      %4039 = vmatmul.mubr.bf16.gmra.mrb[0].mxu0 %v3833
      %v4040 = vpop.f32.mrb[0].mxu0
      %v4041 = vadd.f32 0.0, %v4040
      %v4042 = vpop.f32.mrb[0].mxu0
      %v4043 = vpop.f32.mrb[0].mxu0
      %v4044 = vadd.f32 0.0, %v4043
      %v4045 = vpop.f32.mrb[0].mxu0
      %4046 = vmatprep.mubr.bf16.mxu0 0
      %4047 = vmatmul.mubr.bf16.gmra.mrb[0].mxu0 %v3834
      %v4048 = vpop.f32.mrb[0].mxu0
      %v4049 = vadd.f32 0.0, %v4048
      %v4050 = vpop.f32.mrb[0].mxu0
      %v4051 = vpop.f32.mrb[0].mxu0
      %v4052 = vadd.f32 0.0, %v4051
      %v4053 = vpop.f32.mrb[0].mxu0
      %4054 = vmatprep.mubr.bf16.mxu0 0
      %4055 = vmatmul.mubr.bf16.gmra.mrb[0].mxu0 %v3835
      %v4056 = vpop.f32.mrb[0].mxu0
      %v4057 = vadd.f32 0.0, %v4056
      %v4058 = vpop.f32.mrb[0].mxu0
      %v4059 = vpop.f32.mrb[0].mxu0
      %v4060 = vadd.f32 0.0, %v4059
      %v4061 = vpop.f32.mrb[0].mxu0
      %4062 = vmatprep.mubr.bf16.mxu0 0
      %4063 = vmatmul.mubr.bf16.gmra.mrb[0].mxu0 %v3836
      %v4064 = vpop.f32.mrb[0].mxu0
      %v4065 = vadd.f32 0.0, %v4064
      %v4066 = vpop.f32.mrb[0].mxu0
      %v4067 = vpop.f32.mrb[0].mxu0
      %v4068 = vadd.f32 0.0, %v4067
      %v4069 = vpop.f32.mrb[0].mxu0
      %4070 = vmatprep.mubr.bf16.mxu0 0
      %4071 = vmatmul.mubr.bf16.gmra.mrb[0].mxu0 %v3837
      %v4072 = vpop.f32.mrb[0].mxu0
      %v4073 = vadd.f32 0.0, %v4072
      %v4074 = vpop.f32.mrb[0].mxu0
      %v4075 = vpop.f32.mrb[0].mxu0
      %v4076 = vadd.f32 0.0, %v4075
      %v4077 = vpop.f32.mrb[0].mxu0
      %4078 = vmatprep.mubr.bf16.mxu0 0
      %4079 = vmatmul.mubr.bf16.gmra.mrb[0].mxu0 %v3838
      %v4080 = vpop.f32.mrb[0].mxu0
      %v4081 = vadd.f32 0.0, %v4080
      %v4082 = vpop.f32.mrb[0].mxu0
      %v4083 = vpop.f32.mrb[0].mxu0
      %v4084 = vadd.f32 0.0, %v4083
      %v4085 = vpop.f32.mrb[0].mxu0
      %4086 = vmatprep.mubr.bf16.mxu0 0
      %4087 = vmatmul.mubr.bf16.gmra.mrb[0].mxu0 %v3839
      %v4088 = vpop.f32.mrb[0].mxu0
      %v4089 = vadd.f32 0.0, %v4088
      %v4090 = vpop.f32.mrb[0].mxu0
      %v4091 = vpop.f32.mrb[0].mxu0
      %v4092 = vadd.f32 0.0, %v4091
      %v4093 = vpop.f32.mrb[0].mxu0
      %4094 = vmatprep.mubr.bf16.mxu0 0
      %4095 = vmatmul.mubr.bf16.gmra.mrb[0].mxu0 %v3840
      %v4096 = vpop.f32.mrb[0].mxu0
      %v4097 = vadd.f32 0.0, %v4096
      %v4098 = vpop.f32.mrb[0].mxu0
      %v4099 = vpop.f32.mrb[0].mxu0
      %v4100 = vadd.f32 0.0, %v4099
      %v4101 = vpop.f32.mrb[0].mxu0
      %4102 = vmatprep.mubr.bf16.mxu0 0
      %4103 = vmatmul.mubr.bf16.gmra.mrb[0].mxu0 %v3841
      %v4104 = vpop.f32.mrb[0].mxu0
      %v4105 = vadd.f32 0.0, %v4104
      %v4106 = vpop.f32.mrb[0].mxu0
      %v4107 = vpop.f32.mrb[0].mxu0
      %v4108 = vadd.f32 0.0, %v4107
      %v4109 = vpop.f32.mrb[0].mxu0
      %4110 = vmatprep.mubr.bf16.mxu0 0
      %4111 = vmatmul.mubr.bf16.gmra.mrb[0].mxu0 %v3842
      %v4112 = vpop.f32.mrb[0].mxu0
      %v4113 = vadd.f32 0.0, %v4112
      %v4114 = vpop.f32.mrb[0].mxu0
      %v4115 = vpop.f32.mrb[0].mxu0
      %v4116 = vadd.f32 0.0, %v4115
      %v4117 = vpop.f32.mrb[0].mxu0
      %4118 = vmatprep.mubr.bf16.mxu0 0
      %4119 = vmatmul.mubr.bf16.gmra.mrb[0].mxu0 %v3843
      %v4120 = vpop.f32.mrb[0].mxu0
      %v4121 = vadd.f32 0.0, %v4120
      %v4122 = vpop.f32.mrb[0].mxu0
      %v4123 = vpop.f32.mrb[0].mxu0
      %v4124 = vadd.f32 0.0, %v4123
      %v4125 = vpop.f32.mrb[0].mxu0
      %4126 = vmatprep.mubr.bf16.mxu0 0
      %4127 = vmatmul.mubr.bf16.gmra.mrb[0].mxu0 %v3844
      %v4128 = vpop.f32.mrb[0].mxu0
      %v4129 = vadd.f32 0.0, %v4128
      %v4130 = vpop.f32.mrb[0].mxu0
      %v4131 = vpop.f32.mrb[0].mxu0
      %v4132 = vadd.f32 0.0, %v4131
      %v4133 = vpop.f32.mrb[0].mxu0
      %4134 = vmatprep.mubr.bf16.mxu0 0
      %4135 = vmatmul.mubr.bf16.gmra.mrb[0].mxu0 %v3845
      %v4136 = vpop.f32.mrb[0].mxu0
      %v4137 = vadd.f32 0.0, %v4136
      %v4138 = vpop.f32.mrb[0].mxu0
      %v4139 = vpop.f32.mrb[0].mxu0
      %v4140 = vadd.f32 0.0, %v4139
      %v4141 = vpop.f32.mrb[0].mxu0
      %4142 = vdwg.mxu0
      %v4143 = vld [vmem:[#allocation4] sm:$0xff]
      %v4144 = vld [vmem:[#allocation4 + $0x8] sm:$0xff]
      %v4145 = vld [vmem:[#allocation4 + $0x10] sm:$0xff]
      %v4146 = vld [vmem:[#allocation4 + $0x18] sm:$0xff]
      %v4147 = vld [vmem:[#allocation4 + $0x20] sm:$0xff]
      %v4148 = vld [vmem:[#allocation4 + $0x28] sm:$0xff]
      %v4149 = vld [vmem:[#allocation4 + $0x30] sm:$0xff]
      %v4150 = vld [vmem:[#allocation4 + $0x38] sm:$0xff]
      %v4151 = vld [vmem:[#allocation4 + $0x40] sm:$0xff]
      %v4152 = vld [vmem:[#allocation4 + $0x48] sm:$0xff]
      %v4153 = vld [vmem:[#allocation4 + $0x50] sm:$0xff]
      %v4154 = vld [vmem:[#allocation4 + $0x58] sm:$0xff]
      %v4155 = vld [vmem:[#allocation4 + $0x60] sm:$0xff]
      %v4156 = vld [vmem:[#allocation4 + $0x68] sm:$0xff]
      %v4157 = vld [vmem:[#allocation4 + $0x70] sm:$0xff]
      %v4158 = vld [vmem:[#allocation4 + $0x78] sm:$0xff]
      %v4159 = vld [vmem:[#allocation4 + $0x80] sm:$0xff]
      %v4160 = vld [vmem:[#allocation4 + $0x88] sm:$0xff]
      %v4161 = vld [vmem:[#allocation4 + $0x90] sm:$0xff]
      %v4162 = vld [vmem:[#allocation4 + $0x98] sm:$0xff]
      %v4163 = vld [vmem:[#allocation4 + $0xa0] sm:$0xff]
      %v4164 = vld [vmem:[#allocation4 + $0xa8] sm:$0xff]
      %v4165 = vld [vmem:[#allocation4 + $0xb0] sm:$0xff]
      %v4166 = vld [vmem:[#allocation4 + $0xb8] sm:$0xff]
      %v4167 = vld [vmem:[#allocation4 + $0xc0] sm:$0xff]
      %v4168 = vld [vmem:[#allocation4 + $0xc8] sm:$0xff]
      %v4169 = vld [vmem:[#allocation4 + $0xd0] sm:$0xff]
      %v4170 = vld [vmem:[#allocation4 + $0xd8] sm:$0xff]
      %v4171 = vld [vmem:[#allocation4 + $0xe0] sm:$0xff]
      %v4172 = vld [vmem:[#allocation4 + $0xe8] sm:$0xff]
      %v4173 = vld [vmem:[#allocation4 + $0xf0] sm:$0xff]
      %v4174 = vld [vmem:[#allocation4 + $0xf8] sm:$0xff]
      %v4175 = vld [vmem:[#allocation4 + $0x100] sm:$0xff]
      %v4176 = vld [vmem:[#allocation4 + $0x108] sm:$0xff]
      %v4177 = vld [vmem:[#allocation4 + $0x110] sm:$0xff]
      %v4178 = vld [vmem:[#allocation4 + $0x118] sm:$0xff]
      %v4179 = vld [vmem:[#allocation4 + $0x120] sm:$0xff]
      %v4180 = vld [vmem:[#allocation4 + $0x128] sm:$0xff]
      %v4181 = vld [vmem:[#allocation4 + $0x130] sm:$0xff]
      %v4182 = vld [vmem:[#allocation4 + $0x138] sm:$0xff]
      %v4183 = vld [vmem:[#allocation4 + $0x140] sm:$0xff]
      %v4184 = vld [vmem:[#allocation4 + $0x148] sm:$0xff]
      %v4185 = vld [vmem:[#allocation4 + $0x150] sm:$0xff]
      %v4186 = vld [vmem:[#allocation4 + $0x158] sm:$0xff]
      %v4187 = vld [vmem:[#allocation4 + $0x160] sm:$0xff]
      %v4188 = vld [vmem:[#allocation4 + $0x168] sm:$0xff]
      %v4189 = vld [vmem:[#allocation4 + $0x170] sm:$0xff]
      %v4190 = vld [vmem:[#allocation4 + $0x178] sm:$0xff]
      %v4191 = vadd.f32 %v4143, %v3953
      %v4192 = vadd.f32 %v4144, %v3956
      %v4193 = vadd.f32 %v4145, %v3961
      %v4194 = vadd.f32 %v4146, %v3964
      %v4195 = vadd.f32 %v4147, %v3969
      %v4196 = vadd.f32 %v4148, %v3972
      %v4197 = vadd.f32 %v4149, %v3977
      %v4198 = vadd.f32 %v4150, %v3980
      %v4199 = vadd.f32 %v4151, %v3985
      %v4200 = vadd.f32 %v4152, %v3988
      %v4201 = vadd.f32 %v4153, %v3993
      %v4202 = vadd.f32 %v4154, %v3996
      %v4203 = vadd.f32 %v4155, %v4001
      %v4204 = vadd.f32 %v4156, %v4004
      %v4205 = vadd.f32 %v4157, %v4009
      %v4206 = vadd.f32 %v4158, %v4012
      %v4207 = vadd.f32 %v4159, %v4017
      %v4208 = vadd.f32 %v4160, %v4020
      %v4209 = vadd.f32 %v4161, %v4025
      %v4210 = vadd.f32 %v4162, %v4028
      %v4211 = vadd.f32 %v4163, %v4033
      %v4212 = vadd.f32 %v4164, %v4036
      %v4213 = vadd.f32 %v4165, %v4041
      %v4214 = vadd.f32 %v4166, %v4044
      %v4215 = vadd.f32 %v4167, %v4049
      %v4216 = vadd.f32 %v4168, %v4052
      %v4217 = vadd.f32 %v4169, %v4057
      %v4218 = vadd.f32 %v4170, %v4060
      %v4219 = vadd.f32 %v4171, %v4065
      %v4220 = vadd.f32 %v4172, %v4068
      %v4221 = vadd.f32 %v4173, %v4073
      %v4222 = vadd.f32 %v4174, %v4076
      %v4223 = vadd.f32 %v4175, %v4081
      %v4224 = vadd.f32 %v4176, %v4084
      %v4225 = vadd.f32 %v4177, %v4089
      %v4226 = vadd.f32 %v4178, %v4092
      %v4227 = vadd.f32 %v4179, %v4097
      %v4228 = vadd.f32 %v4180, %v4100
      %v4229 = vadd.f32 %v4181, %v4105
      %v4230 = vadd.f32 %v4182, %v4108
      %v4231 = vadd.f32 %v4183, %v4113
      %v4232 = vadd.f32 %v4184, %v4116
      %v4233 = vadd.f32 %v4185, %v4121
      %v4234 = vadd.f32 %v4186, %v4124
      %v4235 = vadd.f32 %v4187, %v4129
      %v4236 = vadd.f32 %v4188, %v4132
      %v4237 = vadd.f32 %v4189, %v4137
      %v4238 = vadd.f32 %v4190, %v4140
      %4239 = vst [vmem:[#allocation4] sm:$0xff] %v4191
      %4240 = vst [vmem:[#allocation4 + $0x8] sm:$0xff] %v4192
      %4241 = vst [vmem:[#allocation4 + $0x10] sm:$0xff] %v4193
      %4242 = vst [vmem:[#allocation4 + $0x18] sm:$0xff] %v4194
      %4243 = vst [vmem:[#allocation4 + $0x20] sm:$0xff] %v4195
      %4244 = vst [vmem:[#allocation4 + $0x28] sm:$0xff] %v4196
      %4245 = vst [vmem:[#allocation4 + $0x30] sm:$0xff] %v4197
      %4246 = vst [vmem:[#allocation4 + $0x38] sm:$0xff] %v4198
      %4247 = vst [vmem:[#allocation4 + $0x40] sm:$0xff] %v4199
      %4248 = vst [vmem:[#allocation4 + $0x48] sm:$0xff] %v4200
      %4249 = vst [vmem:[#allocation4 + $0x50] sm:$0xff] %v4201
      %4250 = vst [vmem:[#allocation4 + $0x58] sm:$0xff] %v4202
      %4251 = vst [vmem:[#allocation4 + $0x60] sm:$0xff] %v4203
      %4252 = vst [vmem:[#allocation4 + $0x68] sm:$0xff] %v4204
      %4253 = vst [vmem:[#allocation4 + $0x70] sm:$0xff] %v4205
      %4254 = vst [vmem:[#allocation4 + $0x78] sm:$0xff] %v4206
      %4255 = vst [vmem:[#allocation4 + $0x80] sm:$0xff] %v4207
      %4256 = vst [vmem:[#allocation4 + $0x88] sm:$0xff] %v4208
      %4257 = vst [vmem:[#allocation4 + $0x90] sm:$0xff] %v4209
      %4258 = vst [vmem:[#allocation4 + $0x98] sm:$0xff] %v4210
      %4259 = vst [vmem:[#allocation4 + $0xa0] sm:$0xff] %v4211
      %4260 = vst [vmem:[#allocation4 + $0xa8] sm:$0xff] %v4212
      %4261 = vst [vmem:[#allocation4 + $0xb0] sm:$0xff] %v4213
      %4262 = vst [vmem:[#allocation4 + $0xb8] sm:$0xff] %v4214
      %4263 = vst [vmem:[#allocation4 + $0xc0] sm:$0xff] %v4215
      %4264 = vst [vmem:[#allocation4 + $0xc8] sm:$0xff] %v4216
      %4265 = vst [vmem:[#allocation4 + $0xd0] sm:$0xff] %v4217
      %4266 = vst [vmem:[#allocation4 + $0xd8] sm:$0xff] %v4218
      %4267 = vst [vmem:[#allocation4 + $0xe0] sm:$0xff] %v4219
      %4268 = vst [vmem:[#allocation4 + $0xe8] sm:$0xff] %v4220
      %4269 = vst [vmem:[#allocation4 + $0xf0] sm:$0xff] %v4221
      %4270 = vst [vmem:[#allocation4 + $0xf8] sm:$0xff] %v4222
      %4271 = vst [vmem:[#allocation4 + $0x100] sm:$0xff] %v4223
      %4272 = vst [vmem:[#allocation4 + $0x108] sm:$0xff] %v4224
      %4273 = vst [vmem:[#allocation4 + $0x110] sm:$0xff] %v4225
      %4274 = vst [vmem:[#allocation4 + $0x118] sm:$0xff] %v4226
      %4275 = vst [vmem:[#allocation4 + $0x120] sm:$0xff] %v4227
      %4276 = vst [vmem:[#allocation4 + $0x128] sm:$0xff] %v4228
      %4277 = vst [vmem:[#allocation4 + $0x130] sm:$0xff] %v4229
      %4278 = vst [vmem:[#allocation4 + $0x138] sm:$0xff] %v4230
      %4279 = vst [vmem:[#allocation4 + $0x140] sm:$0xff] %v4231
      %4280 = vst [vmem:[#allocation4 + $0x148] sm:$0xff] %v4232
      %4281 = vst [vmem:[#allocation4 + $0x150] sm:$0xff] %v4233
      %4282 = vst [vmem:[#allocation4 + $0x158] sm:$0xff] %v4234
      %4283 = vst [vmem:[#allocation4 + $0x160] sm:$0xff] %v4235
      %4284 = vst [vmem:[#allocation4 + $0x168] sm:$0xff] %v4236
      %4285 = vst [vmem:[#allocation4 + $0x170] sm:$0xff] %v4237
      %4286 = vst [vmem:[#allocation4 + $0x178] sm:$0xff] %v4238
      %v4287 = vld [vmem:[#allocation2 + $0xc] sm:$0xf]
      %v4288 = vld [vmem:[#allocation2 + $0x10] sm:$0xf]
      %v4289 = vld [vmem:[#allocation2 + $0x14] sm:$0xf]
      %v4290 = vld [vmem:[#allocation2 + $0x18] sm:$0xf]
      %v4291 = vld [vmem:[#allocation2 + $0x1c] sm:$0xf]
      %v4292 = vld [vmem:[#allocation2 + $0x20] sm:$0xf]
      %v4293 = vld [vmem:[#allocation2 + $0x24] sm:$0xf]
      %v4294 = vld [vmem:[#allocation2 + $0x28] sm:$0xf]
      %v4295 = vld [vmem:[#allocation2 + $0x2c] sm:$0xf]
      %v4296 = vld [vmem:[#allocation2 + $0x30] sm:$0xf]
      %v4297 = vld [vmem:[#allocation2 + $0x34] sm:$0xf]
      %v4298 = vld [vmem:[#allocation2 + $0x38] sm:$0xf]
      %v4299 = vld [vmem:[#allocation2 + $0x3c] sm:$0xf]
      %v4300 = vld [vmem:[#allocation2 + $0x40] sm:$0xf]
      %v4301 = vld [vmem:[#allocation2 + $0x44] sm:$0xf]
      %v4302 = vld [vmem:[#allocation2 + $0x48] sm:$0xf]
      %v4303 = vld [vmem:[#allocation2 + $0x4c] sm:$0xf]
      %v4304 = vld [vmem:[#allocation2 + $0x50] sm:$0xf]
      %v4305 = vld [vmem:[#allocation2 + $0x54] sm:$0xf]
      %v4306 = vld [vmem:[#allocation2 + $0x58] sm:$0xf]
      %v4307 = vld [vmem:[#allocation2 + $0x5c] sm:$0xf]
      %v4308 = vld [vmem:[#allocation2 + $0x60] sm:$0xf]
      %v4309 = vld [vmem:[#allocation2 + $0x64] sm:$0xf]
      %v4310 = vld [vmem:[#allocation2 + $0x68] sm:$0xf]
      %v4311 = vld [vmem:[#allocation2 + $0x6c] sm:$0xf]
      %v4312 = vld [vmem:[#allocation2 + $0x70] sm:$0xf]
      %v4313 = vld [vmem:[#allocation2 + $0x74] sm:$0xf]
      %v4314 = vld [vmem:[#allocation2 + $0x78] sm:$0xf]
      %v4315 = vld [vmem:[#allocation2 + $0x7c] sm:$0xf]
      %v4316 = vld [vmem:[#allocation2 + $0x80] sm:$0xf]
      %v4317 = vld [vmem:[#allocation2 + $0x84] sm:$0xf]
      %v4318 = vld [vmem:[#allocation2 + $0x88] sm:$0xf]
      %v4319 = vld [vmem:[#allocation2 + $0x8c] sm:$0xf]
      %v4320 = vld [vmem:[#allocation2 + $0x90] sm:$0xf]
      %v4321 = vld [vmem:[#allocation2 + $0x94] sm:$0xf]
      %v4322 = vld [vmem:[#allocation2 + $0x98] sm:$0xf]
      %v4323 = vld [vmem:[#allocation2 + $0x9c] sm:$0xf]
      %v4324 = vld [vmem:[#allocation2 + $0xa0] sm:$0xf]
      %v4325 = vld [vmem:[#allocation2 + $0xa4] sm:$0xf]
      %v4326 = vld [vmem:[#allocation2 + $0xa8] sm:$0xf]
      %v4327 = vld [vmem:[#allocation2 + $0xac] sm:$0xf]
      %v4328 = vld [vmem:[#allocation2 + $0xb0] sm:$0xf]
      %v4329 = vld [vmem:[#allocation2 + $0xb4] sm:$0xf]
      %v4330 = vld [vmem:[#allocation2 + $0xb8] sm:$0xf]
      %v4331 = vld [vmem:[#allocation2 + $0xbc] sm:$0xf]
      %v4332 = vld [vmem:[#allocation2 + $0xc0] sm:$0xf]
      %v4333 = vld [vmem:[#allocation2 + $0xc4] sm:$0xf]
      %v4334 = vld [vmem:[#allocation2 + $0xc8] sm:$0xf]
      %v4335 = vld [vmem:[#allocation2 + $0xcc] sm:$0x1]
      %s4336 = scalar_lea.vmem %s4, 256
      %v4337 = vld [vmem:[%s4336] sm:$0xf]
      %v4338 = vld [vmem:[%s4336 + $0x4] sm:$0xf]
      %v4339 = vld [vmem:[%s4336 + $0x8] sm:$0xf]
      %v4340 = vld [vmem:[%s4336 + $0xc] sm:$0xf]
      %v4341 = vld [vmem:[%s4336 + $0x10] sm:$0xf]
      %v4342 = vld [vmem:[%s4336 + $0x14] sm:$0xf]
      %v4343 = vld [vmem:[%s4336 + $0x18] sm:$0xf]
      %v4344 = vld [vmem:[%s4336 + $0x1c] sm:$0xf]
      %v4345 = vld [vmem:[%s4336 + $0x20] sm:$0xf]
      %v4346 = vld [vmem:[%s4336 + $0x24] sm:$0xf]
      %v4347 = vld [vmem:[%s4336 + $0x28] sm:$0xf]
      %v4348 = vld [vmem:[%s4336 + $0x2c] sm:$0xf]
      %v4349 = vld [vmem:[%s4336 + $0x30] sm:$0xf]
      %v4350 = vld [vmem:[%s4336 + $0x34] sm:$0xf]
      %v4351 = vld [vmem:[%s4336 + $0x38] sm:$0xf]
      %v4352 = vld [vmem:[%s4336 + $0x3c] sm:$0xf]
      %v4402 = vunpack.c.l.b16 %v4287
      %v4403 = vunpack.c.l.b16 %v4288
      %v4404 = vunpack.c.l.b16 %v4289
      %v4405 = vunpack.c.l.b16 %v4290
      %v4406 = vunpack.c.l.b16 %v4291
      %v4407 = vunpack.c.l.b16 %v4292
      %v4408 = vunpack.c.l.b16 %v4293
      %v4409 = vunpack.c.l.b16 %v4294
      %v4410 = vunpack.c.l.b16 %v4295
      %v4411 = vunpack.c.l.b16 %v4296
      %v4412 = vunpack.c.l.b16 %v4297
      %v4413 = vunpack.c.l.b16 %v4298
      %v4414 = vunpack.c.l.b16 %v4299
      %v4415 = vunpack.c.l.b16 %v4300
      %v4416 = vunpack.c.l.b16 %v4301
      %v4417 = vunpack.c.l.b16 %v4302
      %v4418 = vunpack.c.l.b16 %v4303
      %v4419 = vunpack.c.l.b16 %v4304
      %v4420 = vunpack.c.l.b16 %v4305
      %v4421 = vunpack.c.l.b16 %v4306
      %v4422 = vunpack.c.l.b16 %v4307
      %v4423 = vunpack.c.l.b16 %v4308
      %v4424 = vunpack.c.l.b16 %v4309
      %v4425 = vunpack.c.l.b16 %v4310
      %v4426 = vunpack.c.l.b16 %v4311
      %v4427 = vunpack.c.l.b16 %v4312
      %v4428 = vunpack.c.l.b16 %v4313
      %v4429 = vunpack.c.l.b16 %v4314
      %v4430 = vunpack.c.l.b16 %v4315
      %v4431 = vunpack.c.l.b16 %v4316
      %v4432 = vunpack.c.l.b16 %v4317
      %v4433 = vunpack.c.l.b16 %v4318
      %v4434 = vunpack.c.l.b16 %v4319
      %v4435 = vunpack.c.l.b16 %v4320
      %v4436 = vunpack.c.l.b16 %v4321
      %v4437 = vunpack.c.l.b16 %v4322
      %v4438 = vunpack.c.l.b16 %v4323
      %v4439 = vunpack.c.l.b16 %v4324
      %v4440 = vunpack.c.l.b16 %v4325
      %v4441 = vunpack.c.l.b16 %v4326
      %v4442 = vunpack.c.l.b16 %v4327
      %v4443 = vunpack.c.l.b16 %v4328
      %v4444 = vunpack.c.l.b16 %v4329
      %v4445 = vunpack.c.l.b16 %v4330
      %v4446 = vunpack.c.l.b16 %v4331
      %v4447 = vunpack.c.l.b16 %v4332
      %v4448 = vunpack.c.l.b16 %v4333
      %v4449 = vunpack.c.l.b16 %v4334
      %v4450 = vunpack.c.l.b16 %v4335
      %v4451 = vpack.c.b16 %v4403, %v4402
      %v4452 = vpack.c.b16 %v4405, %v4404
      %v4453 = vpack.c.b16 %v4407, %v4406
      %v4454 = vpack.c.b16 %v4409, %v4408
      %v4455 = vpack.c.b16 %v4411, %v4410
      %v4456 = vpack.c.b16 %v4413, %v4412
      %v4457 = vpack.c.b16 %v4415, %v4414
      %v4458 = vpack.c.b16 %v4417, %v4416
      %v4459 = vpack.c.b16 %v4419, %v4418
      %v4460 = vpack.c.b16 %v4421, %v4420
      %v4461 = vpack.c.b16 %v4423, %v4422
      %v4462 = vpack.c.b16 %v4425, %v4424
      %v4463 = vpack.c.b16 %v4427, %v4426
      %v4464 = vpack.c.b16 %v4429, %v4428
      %v4465 = vpack.c.b16 %v4431, %v4430
      %v4466 = vpack.c.b16 %v4433, %v4432
      %v4467 = vpack.c.b16 %v4435, %v4434
      %v4468 = vpack.c.b16 %v4437, %v4436
      %v4469 = vpack.c.b16 %v4439, %v4438
      %v4470 = vpack.c.b16 %v4441, %v4440
      %v4471 = vpack.c.b16 %v4443, %v4442
      %v4472 = vpack.c.b16 %v4445, %v4444
      %v4473 = vpack.c.b16 %v4447, %v4446
      %v4474 = vpack.c.b16 %v4449, %v4448
      %v4475 = vpack.c.b16 %v4450, %v4450
      %v4477 = vshrl.u32 %v4451, 16
      %v4479 = vshll.u32 %v4451, 16
      %v4481 = vrot.slane %v4479, 1
      %v4482 = vor.u32 %v4477, %v4481
      %v4484 = vshll.u32 %v4452, 16
      %v4486 = vrot.slane %v4484, 1
      %v4487 = vsel %vm2343, %v4482, %v4486
      %v4488 = vshrl.u32 %v4452, 16
      %v4490 = vor.u32 %v4488, %v4486
      %v4492 = vshll.u32 %v4453, 16
      %v4494 = vrot.slane %v4492, 1
      %v4495 = vsel %vm2343, %v4490, %v4494
      %v4496 = vshrl.u32 %v4453, 16
      %v4498 = vor.u32 %v4496, %v4494
      %v4500 = vshll.u32 %v4454, 16
      %v4502 = vrot.slane %v4500, 1
      %v4503 = vsel %vm2343, %v4498, %v4502
      %v4504 = vshrl.u32 %v4454, 16
      %v4506 = vor.u32 %v4504, %v4502
      %v4508 = vshll.u32 %v4455, 16
      %v4510 = vrot.slane %v4508, 1
      %v4511 = vsel %vm2343, %v4506, %v4510
      %v4512 = vshrl.u32 %v4455, 16
      %v4514 = vor.u32 %v4512, %v4510
      %v4516 = vshll.u32 %v4456, 16
      %v4518 = vrot.slane %v4516, 1
      %v4519 = vsel %vm2343, %v4514, %v4518
      %v4520 = vshrl.u32 %v4456, 16
      %v4522 = vor.u32 %v4520, %v4518
      %v4524 = vshll.u32 %v4457, 16
      %v4526 = vrot.slane %v4524, 1
      %v4527 = vsel %vm2343, %v4522, %v4526
      %v4528 = vshrl.u32 %v4457, 16
      %v4530 = vor.u32 %v4528, %v4526
      %v4532 = vshll.u32 %v4458, 16
      %v4534 = vrot.slane %v4532, 1
      %v4535 = vsel %vm2343, %v4530, %v4534
      %v4536 = vshrl.u32 %v4458, 16
      %v4538 = vor.u32 %v4536, %v4534
      %v4540 = vshll.u32 %v4459, 16
      %v4542 = vrot.slane %v4540, 1
      %v4543 = vsel %vm2343, %v4538, %v4542
      %v4544 = vshrl.u32 %v4459, 16
      %v4546 = vor.u32 %v4544, %v4542
      %v4548 = vshll.u32 %v4460, 16
      %v4550 = vrot.slane %v4548, 1
      %v4551 = vsel %vm2343, %v4546, %v4550
      %v4552 = vshrl.u32 %v4460, 16
      %v4554 = vor.u32 %v4552, %v4550
      %v4556 = vshll.u32 %v4461, 16
      %v4558 = vrot.slane %v4556, 1
      %v4559 = vsel %vm2343, %v4554, %v4558
      %v4560 = vshrl.u32 %v4461, 16
      %v4562 = vor.u32 %v4560, %v4558
      %v4564 = vshll.u32 %v4462, 16
      %v4566 = vrot.slane %v4564, 1
      %v4567 = vsel %vm2343, %v4562, %v4566
      %v4568 = vshrl.u32 %v4462, 16
      %v4570 = vor.u32 %v4568, %v4566
      %v4572 = vshll.u32 %v4463, 16
      %v4574 = vrot.slane %v4572, 1
      %v4575 = vsel %vm2343, %v4570, %v4574
      %v4576 = vshrl.u32 %v4463, 16
      %v4578 = vor.u32 %v4576, %v4574
      %v4580 = vshll.u32 %v4464, 16
      %v4582 = vrot.slane %v4580, 1
      %v4583 = vsel %vm2343, %v4578, %v4582
      %v4584 = vshrl.u32 %v4464, 16
      %v4586 = vor.u32 %v4584, %v4582
      %v4588 = vshll.u32 %v4465, 16
      %v4590 = vrot.slane %v4588, 1
      %v4591 = vsel %vm2343, %v4586, %v4590
      %v4592 = vshrl.u32 %v4465, 16
      %v4594 = vor.u32 %v4592, %v4590
      %v4596 = vshll.u32 %v4466, 16
      %v4598 = vrot.slane %v4596, 1
      %v4599 = vsel %vm2343, %v4594, %v4598
      %v4600 = vshrl.u32 %v4466, 16
      %v4602 = vor.u32 %v4600, %v4598
      %v4604 = vshll.u32 %v4467, 16
      %v4606 = vrot.slane %v4604, 1
      %v4607 = vsel %vm2343, %v4602, %v4606
      %v4608 = vshrl.u32 %v4467, 16
      %v4610 = vor.u32 %v4608, %v4606
      %v4612 = vshll.u32 %v4468, 16
      %v4614 = vrot.slane %v4612, 1
      %v4615 = vsel %vm2343, %v4610, %v4614
      %v4616 = vshrl.u32 %v4468, 16
      %v4618 = vor.u32 %v4616, %v4614
      %v4620 = vshll.u32 %v4469, 16
      %v4622 = vrot.slane %v4620, 1
      %v4623 = vsel %vm2343, %v4618, %v4622
      %v4624 = vshrl.u32 %v4469, 16
      %v4626 = vor.u32 %v4624, %v4622
      %v4628 = vshll.u32 %v4470, 16
      %v4630 = vrot.slane %v4628, 1
      %v4631 = vsel %vm2343, %v4626, %v4630
      %v4632 = vshrl.u32 %v4470, 16
      %v4634 = vor.u32 %v4632, %v4630
      %v4636 = vshll.u32 %v4471, 16
      %v4638 = vrot.slane %v4636, 1
      %v4639 = vsel %vm2343, %v4634, %v4638
      %v4640 = vshrl.u32 %v4471, 16
      %v4642 = vor.u32 %v4640, %v4638
      %v4644 = vshll.u32 %v4472, 16
      %v4646 = vrot.slane %v4644, 1
      %v4647 = vsel %vm2343, %v4642, %v4646
      %v4648 = vshrl.u32 %v4472, 16
      %v4650 = vor.u32 %v4648, %v4646
      %v4652 = vshll.u32 %v4473, 16
      %v4654 = vrot.slane %v4652, 1
      %v4655 = vsel %vm2343, %v4650, %v4654
      %v4656 = vshrl.u32 %v4473, 16
      %v4658 = vor.u32 %v4656, %v4654
      %v4660 = vshll.u32 %v4474, 16
      %v4662 = vrot.slane %v4660, 1
      %v4663 = vsel %vm2343, %v4658, %v4662
      %v4664 = vshrl.u32 %v4474, 16
      %v4666 = vor.u32 %v4664, %v4662
      %v4668 = vshll.u32 %v4475, 16
      %v4670 = vrot.slane %v4668, 1
      %v4671 = vsel %vm2343, %v4666, %v4670
      %v4712 = vunpack.c.l.b16 %v4337
      %v4713 = vunpack.c.l.b16 %v4338
      %v4714 = vunpack.c.l.b16 %v4339
      %v4715 = vunpack.c.l.b16 %v4340
      %v4716 = vunpack.c.l.b16 %v4341
      %v4717 = vunpack.c.l.b16 %v4342
      %v4718 = vunpack.c.l.b16 %v4343
      %v4719 = vunpack.c.l.b16 %v4344
      %v4720 = vunpack.c.l.b16 %v4345
      %v4721 = vunpack.c.l.b16 %v4346
      %v4722 = vunpack.c.l.b16 %v4347
      %v4723 = vunpack.c.l.b16 %v4348
      %v4724 = vunpack.c.l.b16 %v4349
      %v4725 = vunpack.c.l.b16 %v4350
      %v4726 = vunpack.c.l.b16 %v4351
      %v4727 = vunpack.c.l.b16 %v4352
      %v4728 = vpack.c.b16 %v4713, %v4712
      %v4729 = vpack.c.b16 %v4715, %v4714
      %v4730 = vpack.c.b16 %v4717, %v4716
      %v4731 = vpack.c.b16 %v4719, %v4718
      %v4732 = vpack.c.b16 %v4721, %v4720
      %v4733 = vpack.c.b16 %v4723, %v4722
      %v4734 = vpack.c.b16 %v4725, %v4724
      %v4735 = vpack.c.b16 %v4727, %v4726
      %4744 = vmatprep.subr.bf16.mxu0 0
      %4745 = vmatpush1.bf16.msra.mxu0 %v4728
      %4746 = vmatprep.subr.bf16.mxu0 0
      %4747 = vmatpush1.bf16.msra.mxu0 %v4729
      %4748 = vmatprep.subr.bf16.mxu0 0
      %4749 = vmatpush1.bf16.msra.mxu0 %v4730
      %4750 = vmatprep.subr.bf16.mxu0 0
      %4751 = vmatpush1.bf16.msra.mxu0 %v4731
      %4752 = vmatprep.subr.bf16.mxu0 0
      %4753 = vmatpush1.bf16.msra.mxu0 %v4732
      %4754 = vmatprep.subr.bf16.mxu0 0
      %4755 = vmatpush1.bf16.msra.mxu0 %v4733
      %4756 = vmatprep.subr.bf16.mxu0 0
      %4757 = vmatpush1.bf16.msra.mxu0 %v4734
      %4758 = vmatprep.subr.bf16.mxu0 0
      %4759 = vmatpush1.bf16.msra.mxu0 %v4735
      %4760 = vmatprep.subr.bf16.mxu0 0
      %4761 = vmatpush1.bf16.msra.mxu0 0
      %4762 = vmatprep.subr.bf16.mxu0 0
      %4763 = vmatpush1.bf16.msra.mxu0 0
      %4764 = vmatprep.subr.bf16.mxu0 0
      %4765 = vmatpush1.bf16.msra.mxu0 0
      %4766 = vmatprep.subr.bf16.mxu0 0
      %4767 = vmatpush1.bf16.msra.mxu0 0
      %4768 = vmatprep.subr.bf16.mxu0 0
      %4769 = vmatpush1.bf16.msra.mxu0 0
      %4770 = vmatprep.subr.bf16.mxu0 0
      %4771 = vmatpush1.bf16.msra.mxu0 0
      %4772 = vmatprep.subr.bf16.mxu0 0
      %4773 = vmatpush1.bf16.msra.mxu0 0
      %4774 = vmatprep.subr.bf16.mxu0 0
      %4775 = vmatpush1.bf16.msra.mxu0 0
      %4776 = vmatprep.mubr.bf16.mxu0 0
      %4777 = vmatmul.mubr.bf16.gmra.mrb[0].mxu0 %v4487
      %v4778 = vpop.f32.mrb[0].mxu0
      %v4779 = vadd.f32 0.0, %v4778
      %v4780 = vpop.f32.mrb[0].mxu0
      %v4781 = vpop.f32.mrb[0].mxu0
      %v4782 = vadd.f32 0.0, %v4781
      %v4783 = vpop.f32.mrb[0].mxu0
      %4784 = vmatprep.mubr.bf16.mxu0 0
      %4785 = vmatmul.mubr.bf16.gmra.mrb[0].mxu0 %v4495
      %v4786 = vpop.f32.mrb[0].mxu0
      %v4787 = vadd.f32 0.0, %v4786
      %v4788 = vpop.f32.mrb[0].mxu0
      %v4789 = vpop.f32.mrb[0].mxu0
      %v4790 = vadd.f32 0.0, %v4789
      %v4791 = vpop.f32.mrb[0].mxu0
      %4792 = vmatprep.mubr.bf16.mxu0 0
      %4793 = vmatmul.mubr.bf16.gmra.mrb[0].mxu0 %v4503
      %v4794 = vpop.f32.mrb[0].mxu0
      %v4795 = vadd.f32 0.0, %v4794
      %v4796 = vpop.f32.mrb[0].mxu0
      %v4797 = vpop.f32.mrb[0].mxu0
      %v4798 = vadd.f32 0.0, %v4797
      %v4799 = vpop.f32.mrb[0].mxu0
      %4800 = vmatprep.mubr.bf16.mxu0 0
      %4801 = vmatmul.mubr.bf16.gmra.mrb[0].mxu0 %v4511
      %v4802 = vpop.f32.mrb[0].mxu0
      %v4803 = vadd.f32 0.0, %v4802
      %v4804 = vpop.f32.mrb[0].mxu0
      %v4805 = vpop.f32.mrb[0].mxu0
      %v4806 = vadd.f32 0.0, %v4805
      %v4807 = vpop.f32.mrb[0].mxu0
      %4808 = vmatprep.mubr.bf16.mxu0 0
      %4809 = vmatmul.mubr.bf16.gmra.mrb[0].mxu0 %v4519
      %v4810 = vpop.f32.mrb[0].mxu0
      %v4811 = vadd.f32 0.0, %v4810
      %v4812 = vpop.f32.mrb[0].mxu0
      %v4813 = vpop.f32.mrb[0].mxu0
      %v4814 = vadd.f32 0.0, %v4813
      %v4815 = vpop.f32.mrb[0].mxu0
      %4816 = vmatprep.mubr.bf16.mxu0 0
      %4817 = vmatmul.mubr.bf16.gmra.mrb[0].mxu0 %v4527
      %v4818 = vpop.f32.mrb[0].mxu0
      %v4819 = vadd.f32 0.0, %v4818
      %v4820 = vpop.f32.mrb[0].mxu0
      %v4821 = vpop.f32.mrb[0].mxu0
      %v4822 = vadd.f32 0.0, %v4821
      %v4823 = vpop.f32.mrb[0].mxu0
      %4824 = vmatprep.mubr.bf16.mxu0 0
      %4825 = vmatmul.mubr.bf16.gmra.mrb[0].mxu0 %v4535
      %v4826 = vpop.f32.mrb[0].mxu0
      %v4827 = vadd.f32 0.0, %v4826
      %v4828 = vpop.f32.mrb[0].mxu0
      %v4829 = vpop.f32.mrb[0].mxu0
      %v4830 = vadd.f32 0.0, %v4829
      %v4831 = vpop.f32.mrb[0].mxu0
      %4832 = vmatprep.mubr.bf16.mxu0 0
      %4833 = vmatmul.mubr.bf16.gmra.mrb[0].mxu0 %v4543
      %v4834 = vpop.f32.mrb[0].mxu0
      %v4835 = vadd.f32 0.0, %v4834
      %v4836 = vpop.f32.mrb[0].mxu0
      %v4837 = vpop.f32.mrb[0].mxu0
      %v4838 = vadd.f32 0.0, %v4837
      %v4839 = vpop.f32.mrb[0].mxu0
      %4840 = vmatprep.mubr.bf16.mxu0 0
      %4841 = vmatmul.mubr.bf16.gmra.mrb[0].mxu0 %v4551
      %v4842 = vpop.f32.mrb[0].mxu0
      %v4843 = vadd.f32 0.0, %v4842
      %v4844 = vpop.f32.mrb[0].mxu0
      %v4845 = vpop.f32.mrb[0].mxu0
      %v4846 = vadd.f32 0.0, %v4845
      %v4847 = vpop.f32.mrb[0].mxu0
      %4848 = vmatprep.mubr.bf16.mxu0 0
      %4849 = vmatmul.mubr.bf16.gmra.mrb[0].mxu0 %v4559
      %v4850 = vpop.f32.mrb[0].mxu0
      %v4851 = vadd.f32 0.0, %v4850
      %v4852 = vpop.f32.mrb[0].mxu0
      %v4853 = vpop.f32.mrb[0].mxu0
      %v4854 = vadd.f32 0.0, %v4853
      %v4855 = vpop.f32.mrb[0].mxu0
      %4856 = vmatprep.mubr.bf16.mxu0 0
      %4857 = vmatmul.mubr.bf16.gmra.mrb[0].mxu0 %v4567
      %v4858 = vpop.f32.mrb[0].mxu0
      %v4859 = vadd.f32 0.0, %v4858
      %v4860 = vpop.f32.mrb[0].mxu0
      %v4861 = vpop.f32.mrb[0].mxu0
      %v4862 = vadd.f32 0.0, %v4861
      %v4863 = vpop.f32.mrb[0].mxu0
      %4864 = vmatprep.mubr.bf16.mxu0 0
      %4865 = vmatmul.mubr.bf16.gmra.mrb[0].mxu0 %v4575
      %v4866 = vpop.f32.mrb[0].mxu0
      %v4867 = vadd.f32 0.0, %v4866
      %v4868 = vpop.f32.mrb[0].mxu0
      %v4869 = vpop.f32.mrb[0].mxu0
      %v4870 = vadd.f32 0.0, %v4869
      %v4871 = vpop.f32.mrb[0].mxu0
      %4872 = vmatprep.mubr.bf16.mxu0 0
      %4873 = vmatmul.mubr.bf16.gmra.mrb[0].mxu0 %v4583
      %v4874 = vpop.f32.mrb[0].mxu0
      %v4875 = vadd.f32 0.0, %v4874
      %v4876 = vpop.f32.mrb[0].mxu0
      %v4877 = vpop.f32.mrb[0].mxu0
      %v4878 = vadd.f32 0.0, %v4877
      %v4879 = vpop.f32.mrb[0].mxu0
      %4880 = vmatprep.mubr.bf16.mxu0 0
      %4881 = vmatmul.mubr.bf16.gmra.mrb[0].mxu0 %v4591
      %v4882 = vpop.f32.mrb[0].mxu0
      %v4883 = vadd.f32 0.0, %v4882
      %v4884 = vpop.f32.mrb[0].mxu0
      %v4885 = vpop.f32.mrb[0].mxu0
      %v4886 = vadd.f32 0.0, %v4885
      %v4887 = vpop.f32.mrb[0].mxu0
      %4888 = vmatprep.mubr.bf16.mxu0 0
      %4889 = vmatmul.mubr.bf16.gmra.mrb[0].mxu0 %v4599
      %v4890 = vpop.f32.mrb[0].mxu0
      %v4891 = vadd.f32 0.0, %v4890
      %v4892 = vpop.f32.mrb[0].mxu0
      %v4893 = vpop.f32.mrb[0].mxu0
      %v4894 = vadd.f32 0.0, %v4893
      %v4895 = vpop.f32.mrb[0].mxu0
      %4896 = vmatprep.mubr.bf16.mxu0 0
      %4897 = vmatmul.mubr.bf16.gmra.mrb[0].mxu0 %v4607
      %v4898 = vpop.f32.mrb[0].mxu0
      %v4899 = vadd.f32 0.0, %v4898
      %v4900 = vpop.f32.mrb[0].mxu0
      %v4901 = vpop.f32.mrb[0].mxu0
      %v4902 = vadd.f32 0.0, %v4901
      %v4903 = vpop.f32.mrb[0].mxu0
      %4904 = vmatprep.mubr.bf16.mxu0 0
      %4905 = vmatmul.mubr.bf16.gmra.mrb[0].mxu0 %v4615
      %v4906 = vpop.f32.mrb[0].mxu0
      %v4907 = vadd.f32 0.0, %v4906
      %v4908 = vpop.f32.mrb[0].mxu0
      %v4909 = vpop.f32.mrb[0].mxu0
      %v4910 = vadd.f32 0.0, %v4909
      %v4911 = vpop.f32.mrb[0].mxu0
      %4912 = vmatprep.mubr.bf16.mxu0 0
      %4913 = vmatmul.mubr.bf16.gmra.mrb[0].mxu0 %v4623
      %v4914 = vpop.f32.mrb[0].mxu0
      %v4915 = vadd.f32 0.0, %v4914
      %v4916 = vpop.f32.mrb[0].mxu0
      %v4917 = vpop.f32.mrb[0].mxu0
      %v4918 = vadd.f32 0.0, %v4917
      %v4919 = vpop.f32.mrb[0].mxu0
      %4920 = vmatprep.mubr.bf16.mxu0 0
      %4921 = vmatmul.mubr.bf16.gmra.mrb[0].mxu0 %v4631
      %v4922 = vpop.f32.mrb[0].mxu0
      %v4923 = vadd.f32 0.0, %v4922
      %v4924 = vpop.f32.mrb[0].mxu0
      %v4925 = vpop.f32.mrb[0].mxu0
      %v4926 = vadd.f32 0.0, %v4925
      %v4927 = vpop.f32.mrb[0].mxu0
      %4928 = vmatprep.mubr.bf16.mxu0 0
      %4929 = vmatmul.mubr.bf16.gmra.mrb[0].mxu0 %v4639
      %v4930 = vpop.f32.mrb[0].mxu0
      %v4931 = vadd.f32 0.0, %v4930
      %v4932 = vpop.f32.mrb[0].mxu0
      %v4933 = vpop.f32.mrb[0].mxu0
      %v4934 = vadd.f32 0.0, %v4933
      %v4935 = vpop.f32.mrb[0].mxu0
      %4936 = vmatprep.mubr.bf16.mxu0 0
      %4937 = vmatmul.mubr.bf16.gmra.mrb[0].mxu0 %v4647
      %v4938 = vpop.f32.mrb[0].mxu0
      %v4939 = vadd.f32 0.0, %v4938
      %v4940 = vpop.f32.mrb[0].mxu0
      %v4941 = vpop.f32.mrb[0].mxu0
      %v4942 = vadd.f32 0.0, %v4941
      %v4943 = vpop.f32.mrb[0].mxu0
      %4944 = vmatprep.mubr.bf16.mxu0 0
      %4945 = vmatmul.mubr.bf16.gmra.mrb[0].mxu0 %v4655
      %v4946 = vpop.f32.mrb[0].mxu0
      %v4947 = vadd.f32 0.0, %v4946
      %v4948 = vpop.f32.mrb[0].mxu0
      %v4949 = vpop.f32.mrb[0].mxu0
      %v4950 = vadd.f32 0.0, %v4949
      %v4951 = vpop.f32.mrb[0].mxu0
      %4952 = vmatprep.mubr.bf16.mxu0 0
      %4953 = vmatmul.mubr.bf16.gmra.mrb[0].mxu0 %v4663
      %v4954 = vpop.f32.mrb[0].mxu0
      %v4955 = vadd.f32 0.0, %v4954
      %v4956 = vpop.f32.mrb[0].mxu0
      %v4957 = vpop.f32.mrb[0].mxu0
      %v4958 = vadd.f32 0.0, %v4957
      %v4959 = vpop.f32.mrb[0].mxu0
      %4960 = vmatprep.mubr.bf16.mxu0 0
      %4961 = vmatmul.mubr.bf16.gmra.mrb[0].mxu0 %v4671
      %v4962 = vpop.f32.mrb[0].mxu0
      %v4963 = vadd.f32 0.0, %v4962
      %v4964 = vpop.f32.mrb[0].mxu0
      %v4965 = vpop.f32.mrb[0].mxu0
      %v4966 = vadd.f32 0.0, %v4965
      %v4967 = vpop.f32.mrb[0].mxu0
      %4968 = vdwg.mxu0
      %v4969 = vld [vmem:[#allocation4] sm:$0xff]
      %v4970 = vld [vmem:[#allocation4 + $0x8] sm:$0xff]
      %v4971 = vld [vmem:[#allocation4 + $0x10] sm:$0xff]
      %v4972 = vld [vmem:[#allocation4 + $0x18] sm:$0xff]
      %v4973 = vld [vmem:[#allocation4 + $0x20] sm:$0xff]
      %v4974 = vld [vmem:[#allocation4 + $0x28] sm:$0xff]
      %v4975 = vld [vmem:[#allocation4 + $0x30] sm:$0xff]
      %v4976 = vld [vmem:[#allocation4 + $0x38] sm:$0xff]
      %v4977 = vld [vmem:[#allocation4 + $0x40] sm:$0xff]
      %v4978 = vld [vmem:[#allocation4 + $0x48] sm:$0xff]
      %v4979 = vld [vmem:[#allocation4 + $0x50] sm:$0xff]
      %v4980 = vld [vmem:[#allocation4 + $0x58] sm:$0xff]
      %v4981 = vld [vmem:[#allocation4 + $0x60] sm:$0xff]
      %v4982 = vld [vmem:[#allocation4 + $0x68] sm:$0xff]
      %v4983 = vld [vmem:[#allocation4 + $0x70] sm:$0xff]
      %v4984 = vld [vmem:[#allocation4 + $0x78] sm:$0xff]
      %v4985 = vld [vmem:[#allocation4 + $0x80] sm:$0xff]
      %v4986 = vld [vmem:[#allocation4 + $0x88] sm:$0xff]
      %v4987 = vld [vmem:[#allocation4 + $0x90] sm:$0xff]
      %v4988 = vld [vmem:[#allocation4 + $0x98] sm:$0xff]
      %v4989 = vld [vmem:[#allocation4 + $0xa0] sm:$0xff]
      %v4990 = vld [vmem:[#allocation4 + $0xa8] sm:$0xff]
      %v4991 = vld [vmem:[#allocation4 + $0xb0] sm:$0xff]
      %v4992 = vld [vmem:[#allocation4 + $0xb8] sm:$0xff]
      %v4993 = vld [vmem:[#allocation4 + $0xc0] sm:$0xff]
      %v4994 = vld [vmem:[#allocation4 + $0xc8] sm:$0xff]
      %v4995 = vld [vmem:[#allocation4 + $0xd0] sm:$0xff]
      %v4996 = vld [vmem:[#allocation4 + $0xd8] sm:$0xff]
      %v4997 = vld [vmem:[#allocation4 + $0xe0] sm:$0xff]
      %v4998 = vld [vmem:[#allocation4 + $0xe8] sm:$0xff]
      %v4999 = vld [vmem:[#allocation4 + $0xf0] sm:$0xff]
      %v5000 = vld [vmem:[#allocation4 + $0xf8] sm:$0xff]
      %v5001 = vld [vmem:[#allocation4 + $0x100] sm:$0xff]
      %v5002 = vld [vmem:[#allocation4 + $0x108] sm:$0xff]
      %v5003 = vld [vmem:[#allocation4 + $0x110] sm:$0xff]
      %v5004 = vld [vmem:[#allocation4 + $0x118] sm:$0xff]
      %v5005 = vld [vmem:[#allocation4 + $0x120] sm:$0xff]
      %v5006 = vld [vmem:[#allocation4 + $0x128] sm:$0xff]
      %v5007 = vld [vmem:[#allocation4 + $0x130] sm:$0xff]
      %v5008 = vld [vmem:[#allocation4 + $0x138] sm:$0xff]
      %v5009 = vld [vmem:[#allocation4 + $0x140] sm:$0xff]
      %v5010 = vld [vmem:[#allocation4 + $0x148] sm:$0xff]
      %v5011 = vld [vmem:[#allocation4 + $0x150] sm:$0xff]
      %v5012 = vld [vmem:[#allocation4 + $0x158] sm:$0xff]
      %v5013 = vld [vmem:[#allocation4 + $0x160] sm:$0xff]
      %v5014 = vld [vmem:[#allocation4 + $0x168] sm:$0xff]
      %v5015 = vld [vmem:[#allocation4 + $0x170] sm:$0xff]
      %v5016 = vld [vmem:[#allocation4 + $0x178] sm:$0xff]
      %v5017 = vadd.f32 %v4969, %v4779
      %v5018 = vadd.f32 %v4970, %v4782
      %v5019 = vadd.f32 %v4971, %v4787
      %v5020 = vadd.f32 %v4972, %v4790
      %v5021 = vadd.f32 %v4973, %v4795
      %v5022 = vadd.f32 %v4974, %v4798
      %v5023 = vadd.f32 %v4975, %v4803
      %v5024 = vadd.f32 %v4976, %v4806
      %v5025 = vadd.f32 %v4977, %v4811
      %v5026 = vadd.f32 %v4978, %v4814
      %v5027 = vadd.f32 %v4979, %v4819
      %v5028 = vadd.f32 %v4980, %v4822
      %v5029 = vadd.f32 %v4981, %v4827
      %v5030 = vadd.f32 %v4982, %v4830
      %v5031 = vadd.f32 %v4983, %v4835
      %v5032 = vadd.f32 %v4984, %v4838
      %v5033 = vadd.f32 %v4985, %v4843
      %v5034 = vadd.f32 %v4986, %v4846
      %v5035 = vadd.f32 %v4987, %v4851
      %v5036 = vadd.f32 %v4988, %v4854
      %v5037 = vadd.f32 %v4989, %v4859
      %v5038 = vadd.f32 %v4990, %v4862
      %v5039 = vadd.f32 %v4991, %v4867
      %v5040 = vadd.f32 %v4992, %v4870
      %v5041 = vadd.f32 %v4993, %v4875
      %v5042 = vadd.f32 %v4994, %v4878
      %v5043 = vadd.f32 %v4995, %v4883
      %v5044 = vadd.f32 %v4996, %v4886
      %v5045 = vadd.f32 %v4997, %v4891
      %v5046 = vadd.f32 %v4998, %v4894
      %v5047 = vadd.f32 %v4999, %v4899
      %v5048 = vadd.f32 %v5000, %v4902
      %v5049 = vadd.f32 %v5001, %v4907
      %v5050 = vadd.f32 %v5002, %v4910
      %v5051 = vadd.f32 %v5003, %v4915
      %v5052 = vadd.f32 %v5004, %v4918
      %v5053 = vadd.f32 %v5005, %v4923
      %v5054 = vadd.f32 %v5006, %v4926
      %v5055 = vadd.f32 %v5007, %v4931
      %v5056 = vadd.f32 %v5008, %v4934
      %v5057 = vadd.f32 %v5009, %v4939
      %v5058 = vadd.f32 %v5010, %v4942
      %v5059 = vadd.f32 %v5011, %v4947
      %v5060 = vadd.f32 %v5012, %v4950
      %v5061 = vadd.f32 %v5013, %v4955
      %v5062 = vadd.f32 %v5014, %v4958
      %v5063 = vadd.f32 %v5015, %v4963
      %v5064 = vadd.f32 %v5016, %v4966
      %5065 = vst [vmem:[#allocation4] sm:$0xff] %v5017
      %5066 = vst [vmem:[#allocation4 + $0x8] sm:$0xff] %v5018
      %5067 = vst [vmem:[#allocation4 + $0x10] sm:$0xff] %v5019
      %5068 = vst [vmem:[#allocation4 + $0x18] sm:$0xff] %v5020
      %5069 = vst [vmem:[#allocation4 + $0x20] sm:$0xff] %v5021
      %5070 = vst [vmem:[#allocation4 + $0x28] sm:$0xff] %v5022
      %5071 = vst [vmem:[#allocation4 + $0x30] sm:$0xff] %v5023
      %5072 = vst [vmem:[#allocation4 + $0x38] sm:$0xff] %v5024
      %5073 = vst [vmem:[#allocation4 + $0x40] sm:$0xff] %v5025
      %5074 = vst [vmem:[#allocation4 + $0x48] sm:$0xff] %v5026
      %5075 = vst [vmem:[#allocation4 + $0x50] sm:$0xff] %v5027
      %5076 = vst [vmem:[#allocation4 + $0x58] sm:$0xff] %v5028
      %5077 = vst [vmem:[#allocation4 + $0x60] sm:$0xff] %v5029
      %5078 = vst [vmem:[#allocation4 + $0x68] sm:$0xff] %v5030
      %5079 = vst [vmem:[#allocation4 + $0x70] sm:$0xff] %v5031
      %5080 = vst [vmem:[#allocation4 + $0x78] sm:$0xff] %v5032
      %5081 = vst [vmem:[#allocation4 + $0x80] sm:$0xff] %v5033
      %5082 = vst [vmem:[#allocation4 + $0x88] sm:$0xff] %v5034
      %5083 = vst [vmem:[#allocation4 + $0x90] sm:$0xff] %v5035
      %5084 = vst [vmem:[#allocation4 + $0x98] sm:$0xff] %v5036
      %5085 = vst [vmem:[#allocation4 + $0xa0] sm:$0xff] %v5037
      %5086 = vst [vmem:[#allocation4 + $0xa8] sm:$0xff] %v5038
      %5087 = vst [vmem:[#allocation4 + $0xb0] sm:$0xff] %v5039
      %5088 = vst [vmem:[#allocation4 + $0xb8] sm:$0xff] %v5040
      %5089 = vst [vmem:[#allocation4 + $0xc0] sm:$0xff] %v5041
      %5090 = vst [vmem:[#allocation4 + $0xc8] sm:$0xff] %v5042
      %5091 = vst [vmem:[#allocation4 + $0xd0] sm:$0xff] %v5043
      %5092 = vst [vmem:[#allocation4 + $0xd8] sm:$0xff] %v5044
      %5093 = vst [vmem:[#allocation4 + $0xe0] sm:$0xff] %v5045
      %5094 = vst [vmem:[#allocation4 + $0xe8] sm:$0xff] %v5046
      %5095 = vst [vmem:[#allocation4 + $0xf0] sm:$0xff] %v5047
      %5096 = vst [vmem:[#allocation4 + $0xf8] sm:$0xff] %v5048
      %5097 = vst [vmem:[#allocation4 + $0x100] sm:$0xff] %v5049
      %5098 = vst [vmem:[#allocation4 + $0x108] sm:$0xff] %v5050
      %5099 = vst [vmem:[#allocation4 + $0x110] sm:$0xff] %v5051
      %5100 = vst [vmem:[#allocation4 + $0x118] sm:$0xff] %v5052
      %5101 = vst [vmem:[#allocation4 + $0x120] sm:$0xff] %v5053
      %5102 = vst [vmem:[#allocation4 + $0x128] sm:$0xff] %v5054
      %5103 = vst [vmem:[#allocation4 + $0x130] sm:$0xff] %v5055
      %5104 = vst [vmem:[#allocation4 + $0x138] sm:$0xff] %v5056
      %5105 = vst [vmem:[#allocation4 + $0x140] sm:$0xff] %v5057
      %5106 = vst [vmem:[#allocation4 + $0x148] sm:$0xff] %v5058
      %5107 = vst [vmem:[#allocation4 + $0x150] sm:$0xff] %v5059
      %5108 = vst [vmem:[#allocation4 + $0x158] sm:$0xff] %v5060
      %5109 = vst [vmem:[#allocation4 + $0x160] sm:$0xff] %v5061
      %5110 = vst [vmem:[#allocation4 + $0x168] sm:$0xff] %v5062
      %5111 = vst [vmem:[#allocation4 + $0x170] sm:$0xff] %v5063
      %5112 = vst [vmem:[#allocation4 + $0x178] sm:$0xff] %v5064
      %v5113 = vld [vmem:[#allocation2 + $0xc] sm:$0xe]
      %v5114 = vld [vmem:[#allocation2 + $0x10] sm:$0xf]
      %v5115 = vld [vmem:[#allocation2 + $0x14] sm:$0xf]
      %v5116 = vld [vmem:[#allocation2 + $0x18] sm:$0xf]
      %v5117 = vld [vmem:[#allocation2 + $0x1c] sm:$0xf]
      %v5118 = vld [vmem:[#allocation2 + $0x20] sm:$0xf]
      %v5119 = vld [vmem:[#allocation2 + $0x24] sm:$0xf]
      %v5120 = vld [vmem:[#allocation2 + $0x28] sm:$0xf]
      %v5121 = vld [vmem:[#allocation2 + $0x2c] sm:$0xf]
      %v5122 = vld [vmem:[#allocation2 + $0x30] sm:$0xf]
      %v5123 = vld [vmem:[#allocation2 + $0x34] sm:$0xf]
      %v5124 = vld [vmem:[#allocation2 + $0x38] sm:$0xf]
      %v5125 = vld [vmem:[#allocation2 + $0x3c] sm:$0xf]
      %v5126 = vld [vmem:[#allocation2 + $0x40] sm:$0xf]
      %v5127 = vld [vmem:[#allocation2 + $0x44] sm:$0xf]
      %v5128 = vld [vmem:[#allocation2 + $0x48] sm:$0xf]
      %v5129 = vld [vmem:[#allocation2 + $0x4c] sm:$0xf]
      %v5130 = vld [vmem:[#allocation2 + $0x50] sm:$0xf]
      %v5131 = vld [vmem:[#allocation2 + $0x54] sm:$0xf]
      %v5132 = vld [vmem:[#allocation2 + $0x58] sm:$0xf]
      %v5133 = vld [vmem:[#allocation2 + $0x5c] sm:$0xf]
      %v5134 = vld [vmem:[#allocation2 + $0x60] sm:$0xf]
      %v5135 = vld [vmem:[#allocation2 + $0x64] sm:$0xf]
      %v5136 = vld [vmem:[#allocation2 + $0x68] sm:$0xf]
      %v5137 = vld [vmem:[#allocation2 + $0x6c] sm:$0xf]
      %v5138 = vld [vmem:[#allocation2 + $0x70] sm:$0xf]
      %v5139 = vld [vmem:[#allocation2 + $0x74] sm:$0xf]
      %v5140 = vld [vmem:[#allocation2 + $0x78] sm:$0xf]
      %v5141 = vld [vmem:[#allocation2 + $0x7c] sm:$0xf]
      %v5142 = vld [vmem:[#allocation2 + $0x80] sm:$0xf]
      %v5143 = vld [vmem:[#allocation2 + $0x84] sm:$0xf]
      %v5144 = vld [vmem:[#allocation2 + $0x88] sm:$0xf]
      %v5145 = vld [vmem:[#allocation2 + $0x8c] sm:$0xf]
      %v5146 = vld [vmem:[#allocation2 + $0x90] sm:$0xf]
      %v5147 = vld [vmem:[#allocation2 + $0x94] sm:$0xf]
      %v5148 = vld [vmem:[#allocation2 + $0x98] sm:$0xf]
      %v5149 = vld [vmem:[#allocation2 + $0x9c] sm:$0xf]
      %v5150 = vld [vmem:[#allocation2 + $0xa0] sm:$0xf]
      %v5151 = vld [vmem:[#allocation2 + $0xa4] sm:$0xf]
      %v5152 = vld [vmem:[#allocation2 + $0xa8] sm:$0xf]
      %v5153 = vld [vmem:[#allocation2 + $0xac] sm:$0xf]
      %v5154 = vld [vmem:[#allocation2 + $0xb0] sm:$0xf]
      %v5155 = vld [vmem:[#allocation2 + $0xb4] sm:$0xf]
      %v5156 = vld [vmem:[#allocation2 + $0xb8] sm:$0xf]
      %v5157 = vld [vmem:[#allocation2 + $0xbc] sm:$0xf]
      %v5158 = vld [vmem:[#allocation2 + $0xc0] sm:$0xf]
      %v5159 = vld [vmem:[#allocation2 + $0xc4] sm:$0xf]
      %v5160 = vld [vmem:[#allocation2 + $0xc8] sm:$0xf]
      %v5161 = vld [vmem:[#allocation2 + $0xcc] sm:$0x1]
      %s5162 = scalar_lea.vmem %s4, 320
      %v5163 = vld [vmem:[%s5162] sm:$0xf]
      %v5164 = vld [vmem:[%s5162 + $0x4] sm:$0xf]
      %v5165 = vld [vmem:[%s5162 + $0x8] sm:$0xf]
      %v5166 = vld [vmem:[%s5162 + $0xc] sm:$0xf]
      %v5167 = vld [vmem:[%s5162 + $0x10] sm:$0xf]
      %v5168 = vld [vmem:[%s5162 + $0x14] sm:$0xf]
      %v5169 = vld [vmem:[%s5162 + $0x18] sm:$0xf]
      %v5170 = vld [vmem:[%s5162 + $0x1c] sm:$0xf]
      %v5171 = vld [vmem:[%s5162 + $0x20] sm:$0xf]
      %v5172 = vld [vmem:[%s5162 + $0x24] sm:$0xf]
      %v5173 = vld [vmem:[%s5162 + $0x28] sm:$0xf]
      %v5174 = vld [vmem:[%s5162 + $0x2c] sm:$0xf]
      %v5175 = vld [vmem:[%s5162 + $0x30] sm:$0xf]
      %v5176 = vld [vmem:[%s5162 + $0x34] sm:$0xf]
      %v5177 = vld [vmem:[%s5162 + $0x38] sm:$0xf]
      %v5178 = vld [vmem:[%s5162 + $0x3c] sm:$0xf]
      %v5228 = vunpack.c.l.b16 %v5113
      %v5229 = vunpack.c.l.b16 %v5114
      %v5230 = vunpack.c.l.b16 %v5115
      %v5231 = vunpack.c.l.b16 %v5116
      %v5232 = vunpack.c.l.b16 %v5117
      %v5233 = vunpack.c.l.b16 %v5118
      %v5234 = vunpack.c.l.b16 %v5119
      %v5235 = vunpack.c.l.b16 %v5120
      %v5236 = vunpack.c.l.b16 %v5121
      %v5237 = vunpack.c.l.b16 %v5122
      %v5238 = vunpack.c.l.b16 %v5123
      %v5239 = vunpack.c.l.b16 %v5124
      %v5240 = vunpack.c.l.b16 %v5125
      %v5241 = vunpack.c.l.b16 %v5126
      %v5242 = vunpack.c.l.b16 %v5127
      %v5243 = vunpack.c.l.b16 %v5128
      %v5244 = vunpack.c.l.b16 %v5129
      %v5245 = vunpack.c.l.b16 %v5130
      %v5246 = vunpack.c.l.b16 %v5131
      %v5247 = vunpack.c.l.b16 %v5132
      %v5248 = vunpack.c.l.b16 %v5133
      %v5249 = vunpack.c.l.b16 %v5134
      %v5250 = vunpack.c.l.b16 %v5135
      %v5251 = vunpack.c.l.b16 %v5136
      %v5252 = vunpack.c.l.b16 %v5137
      %v5253 = vunpack.c.l.b16 %v5138
      %v5254 = vunpack.c.l.b16 %v5139
      %v5255 = vunpack.c.l.b16 %v5140
      %v5256 = vunpack.c.l.b16 %v5141
      %v5257 = vunpack.c.l.b16 %v5142
      %v5258 = vunpack.c.l.b16 %v5143
      %v5259 = vunpack.c.l.b16 %v5144
      %v5260 = vunpack.c.l.b16 %v5145
      %v5261 = vunpack.c.l.b16 %v5146
      %v5262 = vunpack.c.l.b16 %v5147
      %v5263 = vunpack.c.l.b16 %v5148
      %v5264 = vunpack.c.l.b16 %v5149
      %v5265 = vunpack.c.l.b16 %v5150
      %v5266 = vunpack.c.l.b16 %v5151
      %v5267 = vunpack.c.l.b16 %v5152
      %v5268 = vunpack.c.l.b16 %v5153
      %v5269 = vunpack.c.l.b16 %v5154
      %v5270 = vunpack.c.l.b16 %v5155
      %v5271 = vunpack.c.l.b16 %v5156
      %v5272 = vunpack.c.l.b16 %v5157
      %v5273 = vunpack.c.l.b16 %v5158
      %v5274 = vunpack.c.l.b16 %v5159
      %v5275 = vunpack.c.l.b16 %v5160
      %v5276 = vunpack.c.l.b16 %v5161
      %v5277 = vpack.c.b16 %v5229, %v5228
      %v5278 = vpack.c.b16 %v5231, %v5230
      %v5279 = vpack.c.b16 %v5233, %v5232
      %v5280 = vpack.c.b16 %v5235, %v5234
      %v5281 = vpack.c.b16 %v5237, %v5236
      %v5282 = vpack.c.b16 %v5239, %v5238
      %v5283 = vpack.c.b16 %v5241, %v5240
      %v5284 = vpack.c.b16 %v5243, %v5242
      %v5285 = vpack.c.b16 %v5245, %v5244
      %v5286 = vpack.c.b16 %v5247, %v5246
      %v5287 = vpack.c.b16 %v5249, %v5248
      %v5288 = vpack.c.b16 %v5251, %v5250
      %v5289 = vpack.c.b16 %v5253, %v5252
      %v5290 = vpack.c.b16 %v5255, %v5254
      %v5291 = vpack.c.b16 %v5257, %v5256
      %v5292 = vpack.c.b16 %v5259, %v5258
      %v5293 = vpack.c.b16 %v5261, %v5260
      %v5294 = vpack.c.b16 %v5263, %v5262
      %v5295 = vpack.c.b16 %v5265, %v5264
      %v5296 = vpack.c.b16 %v5267, %v5266
      %v5297 = vpack.c.b16 %v5269, %v5268
      %v5298 = vpack.c.b16 %v5271, %v5270
      %v5299 = vpack.c.b16 %v5273, %v5272
      %v5300 = vpack.c.b16 %v5275, %v5274
      %v5301 = vpack.c.b16 %v5276, %v5276
      %v5302 = vrot.slane %v5277, 1
      %v5303 = vrot.slane %v5278, 1
      %v5304 = vsel %vm3170, %v5302, %v5303
      %v5305 = vrot.slane %v5279, 1
      %v5306 = vsel %vm3170, %v5303, %v5305
      %v5307 = vrot.slane %v5280, 1
      %v5308 = vsel %vm3170, %v5305, %v5307
      %v5309 = vrot.slane %v5281, 1
      %v5310 = vsel %vm3170, %v5307, %v5309
      %v5311 = vrot.slane %v5282, 1
      %v5312 = vsel %vm3170, %v5309, %v5311
      %v5313 = vrot.slane %v5283, 1
      %v5314 = vsel %vm3170, %v5311, %v5313
      %v5315 = vrot.slane %v5284, 1
      %v5316 = vsel %vm3170, %v5313, %v5315
      %v5317 = vrot.slane %v5285, 1
      %v5318 = vsel %vm3170, %v5315, %v5317
      %v5319 = vrot.slane %v5286, 1
      %v5320 = vsel %vm3170, %v5317, %v5319
      %v5321 = vrot.slane %v5287, 1
      %v5322 = vsel %vm3170, %v5319, %v5321
      %v5323 = vrot.slane %v5288, 1
      %v5324 = vsel %vm3170, %v5321, %v5323
      %v5325 = vrot.slane %v5289, 1
      %v5326 = vsel %vm3170, %v5323, %v5325
      %v5327 = vrot.slane %v5290, 1
      %v5328 = vsel %vm3170, %v5325, %v5327
      %v5329 = vrot.slane %v5291, 1
      %v5330 = vsel %vm3170, %v5327, %v5329
      %v5331 = vrot.slane %v5292, 1
      %v5332 = vsel %vm3170, %v5329, %v5331
      %v5333 = vrot.slane %v5293, 1
      %v5334 = vsel %vm3170, %v5331, %v5333
      %v5335 = vrot.slane %v5294, 1
      %v5336 = vsel %vm3170, %v5333, %v5335
      %v5337 = vrot.slane %v5295, 1
      %v5338 = vsel %vm3170, %v5335, %v5337
      %v5339 = vrot.slane %v5296, 1
      %v5340 = vsel %vm3170, %v5337, %v5339
      %v5341 = vrot.slane %v5297, 1
      %v5342 = vsel %vm3170, %v5339, %v5341
      %v5343 = vrot.slane %v5298, 1
      %v5344 = vsel %vm3170, %v5341, %v5343
      %v5345 = vrot.slane %v5299, 1
      %v5346 = vsel %vm3170, %v5343, %v5345
      %v5347 = vrot.slane %v5300, 1
      %v5348 = vsel %vm3170, %v5345, %v5347
      %v5349 = vrot.slane %v5301, 1
      %v5350 = vsel %vm3170, %v5347, %v5349
      %v5391 = vunpack.c.l.b16 %v5163
      %v5392 = vunpack.c.l.b16 %v5164
      %v5393 = vunpack.c.l.b16 %v5165
      %v5394 = vunpack.c.l.b16 %v5166
      %v5395 = vunpack.c.l.b16 %v5167
      %v5396 = vunpack.c.l.b16 %v5168
      %v5397 = vunpack.c.l.b16 %v5169
      %v5398 = vunpack.c.l.b16 %v5170
      %v5399 = vunpack.c.l.b16 %v5171
      %v5400 = vunpack.c.l.b16 %v5172
      %v5401 = vunpack.c.l.b16 %v5173
      %v5402 = vunpack.c.l.b16 %v5174
      %v5403 = vunpack.c.l.b16 %v5175
      %v5404 = vunpack.c.l.b16 %v5176
      %v5405 = vunpack.c.l.b16 %v5177
      %v5406 = vunpack.c.l.b16 %v5178
      %v5407 = vpack.c.b16 %v5392, %v5391
      %v5408 = vpack.c.b16 %v5394, %v5393
      %v5409 = vpack.c.b16 %v5396, %v5395
      %v5410 = vpack.c.b16 %v5398, %v5397
      %v5411 = vpack.c.b16 %v5400, %v5399
      %v5412 = vpack.c.b16 %v5402, %v5401
      %v5413 = vpack.c.b16 %v5404, %v5403
      %v5414 = vpack.c.b16 %v5406, %v5405
      %5423 = vmatprep.subr.bf16.mxu0 0
      %5424 = vmatpush1.bf16.msra.mxu0 %v5407
      %5425 = vmatprep.subr.bf16.mxu0 0
      %5426 = vmatpush1.bf16.msra.mxu0 %v5408
      %5427 = vmatprep.subr.bf16.mxu0 0
      %5428 = vmatpush1.bf16.msra.mxu0 %v5409
      %5429 = vmatprep.subr.bf16.mxu0 0
      %5430 = vmatpush1.bf16.msra.mxu0 %v5410
      %5431 = vmatprep.subr.bf16.mxu0 0
      %5432 = vmatpush1.bf16.msra.mxu0 %v5411
      %5433 = vmatprep.subr.bf16.mxu0 0
      %5434 = vmatpush1.bf16.msra.mxu0 %v5412
      %5435 = vmatprep.subr.bf16.mxu0 0
      %5436 = vmatpush1.bf16.msra.mxu0 %v5413
      %5437 = vmatprep.subr.bf16.mxu0 0
      %5438 = vmatpush1.bf16.msra.mxu0 %v5414
      %5439 = vmatprep.subr.bf16.mxu0 0
      %5440 = vmatpush1.bf16.msra.mxu0 0
      %5441 = vmatprep.subr.bf16.mxu0 0
      %5442 = vmatpush1.bf16.msra.mxu0 0
      %5443 = vmatprep.subr.bf16.mxu0 0
      %5444 = vmatpush1.bf16.msra.mxu0 0
      %5445 = vmatprep.subr.bf16.mxu0 0
      %5446 = vmatpush1.bf16.msra.mxu0 0
      %5447 = vmatprep.subr.bf16.mxu0 0
      %5448 = vmatpush1.bf16.msra.mxu0 0
      %5449 = vmatprep.subr.bf16.mxu0 0
      %5450 = vmatpush1.bf16.msra.mxu0 0
      %5451 = vmatprep.subr.bf16.mxu0 0
      %5452 = vmatpush1.bf16.msra.mxu0 0
      %5453 = vmatprep.subr.bf16.mxu0 0
      %5454 = vmatpush1.bf16.msra.mxu0 0
      %5455 = vmatprep.mubr.bf16.mxu0 0
      %5456 = vmatmul.mubr.bf16.gmra.mrb[0].mxu0 %v5304
      %v5457 = vpop.f32.mrb[0].mxu0
      %v5458 = vadd.f32 0.0, %v5457
      %v5459 = vpop.f32.mrb[0].mxu0
      %v5460 = vpop.f32.mrb[0].mxu0
      %v5461 = vadd.f32 0.0, %v5460
      %v5462 = vpop.f32.mrb[0].mxu0
      %5463 = vmatprep.mubr.bf16.mxu0 0
      %5464 = vmatmul.mubr.bf16.gmra.mrb[0].mxu0 %v5306
      %v5465 = vpop.f32.mrb[0].mxu0
      %v5466 = vadd.f32 0.0, %v5465
      %v5467 = vpop.f32.mrb[0].mxu0
      %v5468 = vpop.f32.mrb[0].mxu0
      %v5469 = vadd.f32 0.0, %v5468
      %v5470 = vpop.f32.mrb[0].mxu0
      %5471 = vmatprep.mubr.bf16.mxu0 0
      %5472 = vmatmul.mubr.bf16.gmra.mrb[0].mxu0 %v5308
      %v5473 = vpop.f32.mrb[0].mxu0
      %v5474 = vadd.f32 0.0, %v5473
      %v5475 = vpop.f32.mrb[0].mxu0
      %v5476 = vpop.f32.mrb[0].mxu0
      %v5477 = vadd.f32 0.0, %v5476
      %v5478 = vpop.f32.mrb[0].mxu0
      %5479 = vmatprep.mubr.bf16.mxu0 0
      %5480 = vmatmul.mubr.bf16.gmra.mrb[0].mxu0 %v5310
      %v5481 = vpop.f32.mrb[0].mxu0
      %v5482 = vadd.f32 0.0, %v5481
      %v5483 = vpop.f32.mrb[0].mxu0
      %v5484 = vpop.f32.mrb[0].mxu0
      %v5485 = vadd.f32 0.0, %v5484
      %v5486 = vpop.f32.mrb[0].mxu0
      %5487 = vmatprep.mubr.bf16.mxu0 0
      %5488 = vmatmul.mubr.bf16.gmra.mrb[0].mxu0 %v5312
      %v5489 = vpop.f32.mrb[0].mxu0
      %v5490 = vadd.f32 0.0, %v5489
      %v5491 = vpop.f32.mrb[0].mxu0
      %v5492 = vpop.f32.mrb[0].mxu0
      %v5493 = vadd.f32 0.0, %v5492
      %v5494 = vpop.f32.mrb[0].mxu0
      %5495 = vmatprep.mubr.bf16.mxu0 0
      %5496 = vmatmul.mubr.bf16.gmra.mrb[0].mxu0 %v5314
      %v5497 = vpop.f32.mrb[0].mxu0
      %v5498 = vadd.f32 0.0, %v5497
      %v5499 = vpop.f32.mrb[0].mxu0
      %v5500 = vpop.f32.mrb[0].mxu0
      %v5501 = vadd.f32 0.0, %v5500
      %v5502 = vpop.f32.mrb[0].mxu0
      %5503 = vmatprep.mubr.bf16.mxu0 0
      %5504 = vmatmul.mubr.bf16.gmra.mrb[0].mxu0 %v5316
      %v5505 = vpop.f32.mrb[0].mxu0
      %v5506 = vadd.f32 0.0, %v5505
      %v5507 = vpop.f32.mrb[0].mxu0
      %v5508 = vpop.f32.mrb[0].mxu0
      %v5509 = vadd.f32 0.0, %v5508
      %v5510 = vpop.f32.mrb[0].mxu0
      %5511 = vmatprep.mubr.bf16.mxu0 0
      %5512 = vmatmul.mubr.bf16.gmra.mrb[0].mxu0 %v5318
      %v5513 = vpop.f32.mrb[0].mxu0
      %v5514 = vadd.f32 0.0, %v5513
      %v5515 = vpop.f32.mrb[0].mxu0
      %v5516 = vpop.f32.mrb[0].mxu0
      %v5517 = vadd.f32 0.0, %v5516
      %v5518 = vpop.f32.mrb[0].mxu0
      %5519 = vmatprep.mubr.bf16.mxu0 0
      %5520 = vmatmul.mubr.bf16.gmra.mrb[0].mxu0 %v5320
      %v5521 = vpop.f32.mrb[0].mxu0
      %v5522 = vadd.f32 0.0, %v5521
      %v5523 = vpop.f32.mrb[0].mxu0
      %v5524 = vpop.f32.mrb[0].mxu0
      %v5525 = vadd.f32 0.0, %v5524
      %v5526 = vpop.f32.mrb[0].mxu0
      %5527 = vmatprep.mubr.bf16.mxu0 0
      %5528 = vmatmul.mubr.bf16.gmra.mrb[0].mxu0 %v5322
      %v5529 = vpop.f32.mrb[0].mxu0
      %v5530 = vadd.f32 0.0, %v5529
      %v5531 = vpop.f32.mrb[0].mxu0
      %v5532 = vpop.f32.mrb[0].mxu0
      %v5533 = vadd.f32 0.0, %v5532
      %v5534 = vpop.f32.mrb[0].mxu0
      %5535 = vmatprep.mubr.bf16.mxu0 0
      %5536 = vmatmul.mubr.bf16.gmra.mrb[0].mxu0 %v5324
      %v5537 = vpop.f32.mrb[0].mxu0
      %v5538 = vadd.f32 0.0, %v5537
      %v5539 = vpop.f32.mrb[0].mxu0
      %v5540 = vpop.f32.mrb[0].mxu0
      %v5541 = vadd.f32 0.0, %v5540
      %v5542 = vpop.f32.mrb[0].mxu0
      %5543 = vmatprep.mubr.bf16.mxu0 0
      %5544 = vmatmul.mubr.bf16.gmra.mrb[0].mxu0 %v5326
      %v5545 = vpop.f32.mrb[0].mxu0
      %v5546 = vadd.f32 0.0, %v5545
      %v5547 = vpop.f32.mrb[0].mxu0
      %v5548 = vpop.f32.mrb[0].mxu0
      %v5549 = vadd.f32 0.0, %v5548
      %v5550 = vpop.f32.mrb[0].mxu0
      %5551 = vmatprep.mubr.bf16.mxu0 0
      %5552 = vmatmul.mubr.bf16.gmra.mrb[0].mxu0 %v5328
      %v5553 = vpop.f32.mrb[0].mxu0
      %v5554 = vadd.f32 0.0, %v5553
      %v5555 = vpop.f32.mrb[0].mxu0
      %v5556 = vpop.f32.mrb[0].mxu0
      %v5557 = vadd.f32 0.0, %v5556
      %v5558 = vpop.f32.mrb[0].mxu0
      %5559 = vmatprep.mubr.bf16.mxu0 0
      %5560 = vmatmul.mubr.bf16.gmra.mrb[0].mxu0 %v5330
      %v5561 = vpop.f32.mrb[0].mxu0
      %v5562 = vadd.f32 0.0, %v5561
      %v5563 = vpop.f32.mrb[0].mxu0
      %v5564 = vpop.f32.mrb[0].mxu0
      %v5565 = vadd.f32 0.0, %v5564
      %v5566 = vpop.f32.mrb[0].mxu0
      %5567 = vmatprep.mubr.bf16.mxu0 0
      %5568 = vmatmul.mubr.bf16.gmra.mrb[0].mxu0 %v5332
      %v5569 = vpop.f32.mrb[0].mxu0
      %v5570 = vadd.f32 0.0, %v5569
      %v5571 = vpop.f32.mrb[0].mxu0
      %v5572 = vpop.f32.mrb[0].mxu0
      %v5573 = vadd.f32 0.0, %v5572
      %v5574 = vpop.f32.mrb[0].mxu0
      %5575 = vmatprep.mubr.bf16.mxu0 0
      %5576 = vmatmul.mubr.bf16.gmra.mrb[0].mxu0 %v5334
      %v5577 = vpop.f32.mrb[0].mxu0
      %v5578 = vadd.f32 0.0, %v5577
      %v5579 = vpop.f32.mrb[0].mxu0
      %v5580 = vpop.f32.mrb[0].mxu0
      %v5581 = vadd.f32 0.0, %v5580
      %v5582 = vpop.f32.mrb[0].mxu0
      %5583 = vmatprep.mubr.bf16.mxu0 0
      %5584 = vmatmul.mubr.bf16.gmra.mrb[0].mxu0 %v5336
      %v5585 = vpop.f32.mrb[0].mxu0
      %v5586 = vadd.f32 0.0, %v5585
      %v5587 = vpop.f32.mrb[0].mxu0
      %v5588 = vpop.f32.mrb[0].mxu0
      %v5589 = vadd.f32 0.0, %v5588
      %v5590 = vpop.f32.mrb[0].mxu0
      %5591 = vmatprep.mubr.bf16.mxu0 0
      %5592 = vmatmul.mubr.bf16.gmra.mrb[0].mxu0 %v5338
      %v5593 = vpop.f32.mrb[0].mxu0
      %v5594 = vadd.f32 0.0, %v5593
      %v5595 = vpop.f32.mrb[0].mxu0
      %v5596 = vpop.f32.mrb[0].mxu0
      %v5597 = vadd.f32 0.0, %v5596
      %v5598 = vpop.f32.mrb[0].mxu0
      %5599 = vmatprep.mubr.bf16.mxu0 0
      %5600 = vmatmul.mubr.bf16.gmra.mrb[0].mxu0 %v5340
      %v5601 = vpop.f32.mrb[0].mxu0
      %v5602 = vadd.f32 0.0, %v5601
      %v5603 = vpop.f32.mrb[0].mxu0
      %v5604 = vpop.f32.mrb[0].mxu0
      %v5605 = vadd.f32 0.0, %v5604
      %v5606 = vpop.f32.mrb[0].mxu0
      %5607 = vmatprep.mubr.bf16.mxu0 0
      %5608 = vmatmul.mubr.bf16.gmra.mrb[0].mxu0 %v5342
      %v5609 = vpop.f32.mrb[0].mxu0
      %v5610 = vadd.f32 0.0, %v5609
      %v5611 = vpop.f32.mrb[0].mxu0
      %v5612 = vpop.f32.mrb[0].mxu0
      %v5613 = vadd.f32 0.0, %v5612
      %v5614 = vpop.f32.mrb[0].mxu0
      %5615 = vmatprep.mubr.bf16.mxu0 0
      %5616 = vmatmul.mubr.bf16.gmra.mrb[0].mxu0 %v5344
      %v5617 = vpop.f32.mrb[0].mxu0
      %v5618 = vadd.f32 0.0, %v5617
      %v5619 = vpop.f32.mrb[0].mxu0
      %v5620 = vpop.f32.mrb[0].mxu0
      %v5621 = vadd.f32 0.0, %v5620
      %v5622 = vpop.f32.mrb[0].mxu0
      %5623 = vmatprep.mubr.bf16.mxu0 0
      %5624 = vmatmul.mubr.bf16.gmra.mrb[0].mxu0 %v5346
      %v5625 = vpop.f32.mrb[0].mxu0
      %v5626 = vadd.f32 0.0, %v5625
      %v5627 = vpop.f32.mrb[0].mxu0
      %v5628 = vpop.f32.mrb[0].mxu0
      %v5629 = vadd.f32 0.0, %v5628
      %v5630 = vpop.f32.mrb[0].mxu0
      %5631 = vmatprep.mubr.bf16.mxu0 0
      %5632 = vmatmul.mubr.bf16.gmra.mrb[0].mxu0 %v5348
      %v5633 = vpop.f32.mrb[0].mxu0
      %v5634 = vadd.f32 0.0, %v5633
      %v5635 = vpop.f32.mrb[0].mxu0
      %v5636 = vpop.f32.mrb[0].mxu0
      %v5637 = vadd.f32 0.0, %v5636
      %v5638 = vpop.f32.mrb[0].mxu0
      %5639 = vmatprep.mubr.bf16.mxu0 0
      %5640 = vmatmul.mubr.bf16.gmra.mrb[0].mxu0 %v5350
      %v5641 = vpop.f32.mrb[0].mxu0
      %v5642 = vadd.f32 0.0, %v5641
      %v5643 = vpop.f32.mrb[0].mxu0
      %v5644 = vpop.f32.mrb[0].mxu0
      %v5645 = vadd.f32 0.0, %v5644
      %v5646 = vpop.f32.mrb[0].mxu0
      %5647 = vdwg.mxu0
      %v5648 = vld [vmem:[#allocation4] sm:$0xff]
      %v5649 = vld [vmem:[#allocation4 + $0x8] sm:$0xff]
      %v5650 = vld [vmem:[#allocation4 + $0x10] sm:$0xff]
      %v5651 = vld [vmem:[#allocation4 + $0x18] sm:$0xff]
      %v5652 = vld [vmem:[#allocation4 + $0x20] sm:$0xff]
      %v5653 = vld [vmem:[#allocation4 + $0x28] sm:$0xff]
      %v5654 = vld [vmem:[#allocation4 + $0x30] sm:$0xff]
      %v5655 = vld [vmem:[#allocation4 + $0x38] sm:$0xff]
      %v5656 = vld [vmem:[#allocation4 + $0x40] sm:$0xff]
      %v5657 = vld [vmem:[#allocation4 + $0x48] sm:$0xff]
      %v5658 = vld [vmem:[#allocation4 + $0x50] sm:$0xff]
      %v5659 = vld [vmem:[#allocation4 + $0x58] sm:$0xff]
      %v5660 = vld [vmem:[#allocation4 + $0x60] sm:$0xff]
      %v5661 = vld [vmem:[#allocation4 + $0x68] sm:$0xff]
      %v5662 = vld [vmem:[#allocation4 + $0x70] sm:$0xff]
      %v5663 = vld [vmem:[#allocation4 + $0x78] sm:$0xff]
      %v5664 = vld [vmem:[#allocation4 + $0x80] sm:$0xff]
      %v5665 = vld [vmem:[#allocation4 + $0x88] sm:$0xff]
      %v5666 = vld [vmem:[#allocation4 + $0x90] sm:$0xff]
      %v5667 = vld [vmem:[#allocation4 + $0x98] sm:$0xff]
      %v5668 = vld [vmem:[#allocation4 + $0xa0] sm:$0xff]
      %v5669 = vld [vmem:[#allocation4 + $0xa8] sm:$0xff]
      %v5670 = vld [vmem:[#allocation4 + $0xb0] sm:$0xff]
      %v5671 = vld [vmem:[#allocation4 + $0xb8] sm:$0xff]
      %v5672 = vld [vmem:[#allocation4 + $0xc0] sm:$0xff]
      %v5673 = vld [vmem:[#allocation4 + $0xc8] sm:$0xff]
      %v5674 = vld [vmem:[#allocation4 + $0xd0] sm:$0xff]
      %v5675 = vld [vmem:[#allocation4 + $0xd8] sm:$0xff]
      %v5676 = vld [vmem:[#allocation4 + $0xe0] sm:$0xff]
      %v5677 = vld [vmem:[#allocation4 + $0xe8] sm:$0xff]
      %v5678 = vld [vmem:[#allocation4 + $0xf0] sm:$0xff]
      %v5679 = vld [vmem:[#allocation4 + $0xf8] sm:$0xff]
      %v5680 = vld [vmem:[#allocation4 + $0x100] sm:$0xff]
      %v5681 = vld [vmem:[#allocation4 + $0x108] sm:$0xff]
      %v5682 = vld [vmem:[#allocation4 + $0x110] sm:$0xff]
      %v5683 = vld [vmem:[#allocation4 + $0x118] sm:$0xff]
      %v5684 = vld [vmem:[#allocation4 + $0x120] sm:$0xff]
      %v5685 = vld [vmem:[#allocation4 + $0x128] sm:$0xff]
      %v5686 = vld [vmem:[#allocation4 + $0x130] sm:$0xff]
      %v5687 = vld [vmem:[#allocation4 + $0x138] sm:$0xff]
      %v5688 = vld [vmem:[#allocation4 + $0x140] sm:$0xff]
      %v5689 = vld [vmem:[#allocation4 + $0x148] sm:$0xff]
      %v5690 = vld [vmem:[#allocation4 + $0x150] sm:$0xff]
      %v5691 = vld [vmem:[#allocation4 + $0x158] sm:$0xff]
      %v5692 = vld [vmem:[#allocation4 + $0x160] sm:$0xff]
      %v5693 = vld [vmem:[#allocation4 + $0x168] sm:$0xff]
      %v5694 = vld [vmem:[#allocation4 + $0x170] sm:$0xff]
      %v5695 = vld [vmem:[#allocation4 + $0x178] sm:$0xff]
      %v5696 = vadd.f32 %v5648, %v5458
      %v5697 = vadd.f32 %v5649, %v5461
      %v5698 = vadd.f32 %v5650, %v5466
      %v5699 = vadd.f32 %v5651, %v5469
      %v5700 = vadd.f32 %v5652, %v5474
      %v5701 = vadd.f32 %v5653, %v5477
      %v5702 = vadd.f32 %v5654, %v5482
      %v5703 = vadd.f32 %v5655, %v5485
      %v5704 = vadd.f32 %v5656, %v5490
      %v5705 = vadd.f32 %v5657, %v5493
      %v5706 = vadd.f32 %v5658, %v5498
      %v5707 = vadd.f32 %v5659, %v5501
      %v5708 = vadd.f32 %v5660, %v5506
      %v5709 = vadd.f32 %v5661, %v5509
      %v5710 = vadd.f32 %v5662, %v5514
      %v5711 = vadd.f32 %v5663, %v5517
      %v5712 = vadd.f32 %v5664, %v5522
      %v5713 = vadd.f32 %v5665, %v5525
      %v5714 = vadd.f32 %v5666, %v5530
      %v5715 = vadd.f32 %v5667, %v5533
      %v5716 = vadd.f32 %v5668, %v5538
      %v5717 = vadd.f32 %v5669, %v5541
      %v5718 = vadd.f32 %v5670, %v5546
      %v5719 = vadd.f32 %v5671, %v5549
      %v5720 = vadd.f32 %v5672, %v5554
      %v5721 = vadd.f32 %v5673, %v5557
      %v5722 = vadd.f32 %v5674, %v5562
      %v5723 = vadd.f32 %v5675, %v5565
      %v5724 = vadd.f32 %v5676, %v5570
      %v5725 = vadd.f32 %v5677, %v5573
      %v5726 = vadd.f32 %v5678, %v5578
      %v5727 = vadd.f32 %v5679, %v5581
      %v5728 = vadd.f32 %v5680, %v5586
      %v5729 = vadd.f32 %v5681, %v5589
      %v5730 = vadd.f32 %v5682, %v5594
      %v5731 = vadd.f32 %v5683, %v5597
      %v5732 = vadd.f32 %v5684, %v5602
      %v5733 = vadd.f32 %v5685, %v5605
      %v5734 = vadd.f32 %v5686, %v5610
      %v5735 = vadd.f32 %v5687, %v5613
      %v5736 = vadd.f32 %v5688, %v5618
      %v5737 = vadd.f32 %v5689, %v5621
      %v5738 = vadd.f32 %v5690, %v5626
      %v5739 = vadd.f32 %v5691, %v5629
      %v5740 = vadd.f32 %v5692, %v5634
      %v5741 = vadd.f32 %v5693, %v5637
      %v5742 = vadd.f32 %v5694, %v5642
      %v5743 = vadd.f32 %v5695, %v5645
      %5744 = vst [vmem:[#allocation4] sm:$0xff] %v5696
      %5745 = vst [vmem:[#allocation4 + $0x8] sm:$0xff] %v5697
      %5746 = vst [vmem:[#allocation4 + $0x10] sm:$0xff] %v5698
      %5747 = vst [vmem:[#allocation4 + $0x18] sm:$0xff] %v5699
      %5748 = vst [vmem:[#allocation4 + $0x20] sm:$0xff] %v5700
      %5749 = vst [vmem:[#allocation4 + $0x28] sm:$0xff] %v5701
      %5750 = vst [vmem:[#allocation4 + $0x30] sm:$0xff] %v5702
      %5751 = vst [vmem:[#allocation4 + $0x38] sm:$0xff] %v5703
      %5752 = vst [vmem:[#allocation4 + $0x40] sm:$0xff] %v5704
      %5753 = vst [vmem:[#allocation4 + $0x48] sm:$0xff] %v5705
      %5754 = vst [vmem:[#allocation4 + $0x50] sm:$0xff] %v5706
      %5755 = vst [vmem:[#allocation4 + $0x58] sm:$0xff] %v5707
      %5756 = vst [vmem:[#allocation4 + $0x60] sm:$0xff] %v5708
      %5757 = vst [vmem:[#allocation4 + $0x68] sm:$0xff] %v5709
      %5758 = vst [vmem:[#allocation4 + $0x70] sm:$0xff] %v5710
      %5759 = vst [vmem:[#allocation4 + $0x78] sm:$0xff] %v5711
      %5760 = vst [vmem:[#allocation4 + $0x80] sm:$0xff] %v5712
      %5761 = vst [vmem:[#allocation4 + $0x88] sm:$0xff] %v5713
      %5762 = vst [vmem:[#allocation4 + $0x90] sm:$0xff] %v5714
      %5763 = vst [vmem:[#allocation4 + $0x98] sm:$0xff] %v5715
      %5764 = vst [vmem:[#allocation4 + $0xa0] sm:$0xff] %v5716
      %5765 = vst [vmem:[#allocation4 + $0xa8] sm:$0xff] %v5717
      %5766 = vst [vmem:[#allocation4 + $0xb0] sm:$0xff] %v5718
      %5767 = vst [vmem:[#allocation4 + $0xb8] sm:$0xff] %v5719
      %5768 = vst [vmem:[#allocation4 + $0xc0] sm:$0xff] %v5720
      %5769 = vst [vmem:[#allocation4 + $0xc8] sm:$0xff] %v5721
      %5770 = vst [vmem:[#allocation4 + $0xd0] sm:$0xff] %v5722
      %5771 = vst [vmem:[#allocation4 + $0xd8] sm:$0xff] %v5723
      %5772 = vst [vmem:[#allocation4 + $0xe0] sm:$0xff] %v5724
      %5773 = vst [vmem:[#allocation4 + $0xe8] sm:$0xff] %v5725
      %5774 = vst [vmem:[#allocation4 + $0xf0] sm:$0xff] %v5726
      %5775 = vst [vmem:[#allocation4 + $0xf8] sm:$0xff] %v5727
      %5776 = vst [vmem:[#allocation4 + $0x100] sm:$0xff] %v5728
      %5777 = vst [vmem:[#allocation4 + $0x108] sm:$0xff] %v5729
      %5778 = vst [vmem:[#allocation4 + $0x110] sm:$0xff] %v5730
      %5779 = vst [vmem:[#allocation4 + $0x118] sm:$0xff] %v5731
      %5780 = vst [vmem:[#allocation4 + $0x120] sm:$0xff] %v5732
      %5781 = vst [vmem:[#allocation4 + $0x128] sm:$0xff] %v5733
      %5782 = vst [vmem:[#allocation4 + $0x130] sm:$0xff] %v5734
      %5783 = vst [vmem:[#allocation4 + $0x138] sm:$0xff] %v5735
      %5784 = vst [vmem:[#allocation4 + $0x140] sm:$0xff] %v5736
      %5785 = vst [vmem:[#allocation4 + $0x148] sm:$0xff] %v5737
      %5786 = vst [vmem:[#allocation4 + $0x150] sm:$0xff] %v5738
      %5787 = vst [vmem:[#allocation4 + $0x158] sm:$0xff] %v5739
      %5788 = vst [vmem:[#allocation4 + $0x160] sm:$0xff] %v5740
      %5789 = vst [vmem:[#allocation4 + $0x168] sm:$0xff] %v5741
      %5790 = vst [vmem:[#allocation4 + $0x170] sm:$0xff] %v5742
      %5791 = vst [vmem:[#allocation4 + $0x178] sm:$0xff] %v5743
      %v5792 = vld [vmem:[#allocation2 + $0x18] sm:$0xf]
      %v5793 = vld [vmem:[#allocation2 + $0x1c] sm:$0xf]
      %v5794 = vld [vmem:[#allocation2 + $0x20] sm:$0xf]
      %v5795 = vld [vmem:[#allocation2 + $0x24] sm:$0xf]
      %v5796 = vld [vmem:[#allocation2 + $0x28] sm:$0xf]
      %v5797 = vld [vmem:[#allocation2 + $0x2c] sm:$0xf]
      %v5798 = vld [vmem:[#allocation2 + $0x30] sm:$0xf]
      %v5799 = vld [vmem:[#allocation2 + $0x34] sm:$0xf]
      %v5800 = vld [vmem:[#allocation2 + $0x38] sm:$0xf]
      %v5801 = vld [vmem:[#allocation2 + $0x3c] sm:$0xf]
      %v5802 = vld [vmem:[#allocation2 + $0x40] sm:$0xf]
      %v5803 = vld [vmem:[#allocation2 + $0x44] sm:$0xf]
      %v5804 = vld [vmem:[#allocation2 + $0x48] sm:$0xf]
      %v5805 = vld [vmem:[#allocation2 + $0x4c] sm:$0xf]
      %v5806 = vld [vmem:[#allocation2 + $0x50] sm:$0xf]
      %v5807 = vld [vmem:[#allocation2 + $0x54] sm:$0xf]
      %v5808 = vld [vmem:[#allocation2 + $0x58] sm:$0xf]
      %v5809 = vld [vmem:[#allocation2 + $0x5c] sm:$0xf]
      %v5810 = vld [vmem:[#allocation2 + $0x60] sm:$0xf]
      %v5811 = vld [vmem:[#allocation2 + $0x64] sm:$0xf]
      %v5812 = vld [vmem:[#allocation2 + $0x68] sm:$0xf]
      %v5813 = vld [vmem:[#allocation2 + $0x6c] sm:$0xf]
      %v5814 = vld [vmem:[#allocation2 + $0x70] sm:$0xf]
      %v5815 = vld [vmem:[#allocation2 + $0x74] sm:$0xf]
      %v5816 = vld [vmem:[#allocation2 + $0x78] sm:$0xf]
      %v5817 = vld [vmem:[#allocation2 + $0x7c] sm:$0xf]
      %v5818 = vld [vmem:[#allocation2 + $0x80] sm:$0xf]
      %v5819 = vld [vmem:[#allocation2 + $0x84] sm:$0xf]
      %v5820 = vld [vmem:[#allocation2 + $0x88] sm:$0xf]
      %v5821 = vld [vmem:[#allocation2 + $0x8c] sm:$0xf]
      %v5822 = vld [vmem:[#allocation2 + $0x90] sm:$0xf]
      %v5823 = vld [vmem:[#allocation2 + $0x94] sm:$0xf]
      %v5824 = vld [vmem:[#allocation2 + $0x98] sm:$0xf]
      %v5825 = vld [vmem:[#allocation2 + $0x9c] sm:$0xf]
      %v5826 = vld [vmem:[#allocation2 + $0xa0] sm:$0xf]
      %v5827 = vld [vmem:[#allocation2 + $0xa4] sm:$0xf]
      %v5828 = vld [vmem:[#allocation2 + $0xa8] sm:$0xf]
      %v5829 = vld [vmem:[#allocation2 + $0xac] sm:$0xf]
      %v5830 = vld [vmem:[#allocation2 + $0xb0] sm:$0xf]
      %v5831 = vld [vmem:[#allocation2 + $0xb4] sm:$0xf]
      %v5832 = vld [vmem:[#allocation2 + $0xb8] sm:$0xf]
      %v5833 = vld [vmem:[#allocation2 + $0xbc] sm:$0xf]
      %v5834 = vld [vmem:[#allocation2 + $0xc0] sm:$0xf]
      %v5835 = vld [vmem:[#allocation2 + $0xc4] sm:$0xf]
      %v5836 = vld [vmem:[#allocation2 + $0xc8] sm:$0xf]
      %v5837 = vld [vmem:[#allocation2 + $0xcc] sm:$0xf]
      %v5838 = vld [vmem:[#allocation2 + $0xd0] sm:$0xf]
      %v5839 = vld [vmem:[#allocation2 + $0xd4] sm:$0xf]
      %s5840 = scalar_lea.vmem %s4, 384
      %v5841 = vld [vmem:[%s5840] sm:$0xf]
      %v5842 = vld [vmem:[%s5840 + $0x4] sm:$0xf]
      %v5843 = vld [vmem:[%s5840 + $0x8] sm:$0xf]
      %v5844 = vld [vmem:[%s5840 + $0xc] sm:$0xf]
      %v5845 = vld [vmem:[%s5840 + $0x10] sm:$0xf]
      %v5846 = vld [vmem:[%s5840 + $0x14] sm:$0xf]
      %v5847 = vld [vmem:[%s5840 + $0x18] sm:$0xf]
      %v5848 = vld [vmem:[%s5840 + $0x1c] sm:$0xf]
      %v5849 = vld [vmem:[%s5840 + $0x20] sm:$0xf]
      %v5850 = vld [vmem:[%s5840 + $0x24] sm:$0xf]
      %v5851 = vld [vmem:[%s5840 + $0x28] sm:$0xf]
      %v5852 = vld [vmem:[%s5840 + $0x2c] sm:$0xf]
      %v5853 = vld [vmem:[%s5840 + $0x30] sm:$0xf]
      %v5854 = vld [vmem:[%s5840 + $0x34] sm:$0xf]
      %v5855 = vld [vmem:[%s5840 + $0x38] sm:$0xf]
      %v5856 = vld [vmem:[%s5840 + $0x3c] sm:$0xf]
      %v5905 = vunpack.c.l.b16 %v5792
      %v5906 = vunpack.c.l.b16 %v5793
      %v5907 = vunpack.c.l.b16 %v5794
      %v5908 = vunpack.c.l.b16 %v5795
      %v5909 = vunpack.c.l.b16 %v5796
      %v5910 = vunpack.c.l.b16 %v5797
      %v5911 = vunpack.c.l.b16 %v5798
      %v5912 = vunpack.c.l.b16 %v5799
      %v5913 = vunpack.c.l.b16 %v5800
      %v5914 = vunpack.c.l.b16 %v5801
      %v5915 = vunpack.c.l.b16 %v5802
      %v5916 = vunpack.c.l.b16 %v5803
      %v5917 = vunpack.c.l.b16 %v5804
      %v5918 = vunpack.c.l.b16 %v5805
      %v5919 = vunpack.c.l.b16 %v5806
      %v5920 = vunpack.c.l.b16 %v5807
      %v5921 = vunpack.c.l.b16 %v5808
      %v5922 = vunpack.c.l.b16 %v5809
      %v5923 = vunpack.c.l.b16 %v5810
      %v5924 = vunpack.c.l.b16 %v5811
      %v5925 = vunpack.c.l.b16 %v5812
      %v5926 = vunpack.c.l.b16 %v5813
      %v5927 = vunpack.c.l.b16 %v5814
      %v5928 = vunpack.c.l.b16 %v5815
      %v5929 = vunpack.c.l.b16 %v5816
      %v5930 = vunpack.c.l.b16 %v5817
      %v5931 = vunpack.c.l.b16 %v5818
      %v5932 = vunpack.c.l.b16 %v5819
      %v5933 = vunpack.c.l.b16 %v5820
      %v5934 = vunpack.c.l.b16 %v5821
      %v5935 = vunpack.c.l.b16 %v5822
      %v5936 = vunpack.c.l.b16 %v5823
      %v5937 = vunpack.c.l.b16 %v5824
      %v5938 = vunpack.c.l.b16 %v5825
      %v5939 = vunpack.c.l.b16 %v5826
      %v5940 = vunpack.c.l.b16 %v5827
      %v5941 = vunpack.c.l.b16 %v5828
      %v5942 = vunpack.c.l.b16 %v5829
      %v5943 = vunpack.c.l.b16 %v5830
      %v5944 = vunpack.c.l.b16 %v5831
      %v5945 = vunpack.c.l.b16 %v5832
      %v5946 = vunpack.c.l.b16 %v5833
      %v5947 = vunpack.c.l.b16 %v5834
      %v5948 = vunpack.c.l.b16 %v5835
      %v5949 = vunpack.c.l.b16 %v5836
      %v5950 = vunpack.c.l.b16 %v5837
      %v5951 = vunpack.c.l.b16 %v5838
      %v5952 = vunpack.c.l.b16 %v5839
      %v5953 = vpack.c.b16 %v5906, %v5905
      %v5954 = vpack.c.b16 %v5908, %v5907
      %v5955 = vpack.c.b16 %v5910, %v5909
      %v5956 = vpack.c.b16 %v5912, %v5911
      %v5957 = vpack.c.b16 %v5914, %v5913
      %v5958 = vpack.c.b16 %v5916, %v5915
      %v5959 = vpack.c.b16 %v5918, %v5917
      %v5960 = vpack.c.b16 %v5920, %v5919
      %v5961 = vpack.c.b16 %v5922, %v5921
      %v5962 = vpack.c.b16 %v5924, %v5923
      %v5963 = vpack.c.b16 %v5926, %v5925
      %v5964 = vpack.c.b16 %v5928, %v5927
      %v5965 = vpack.c.b16 %v5930, %v5929
      %v5966 = vpack.c.b16 %v5932, %v5931
      %v5967 = vpack.c.b16 %v5934, %v5933
      %v5968 = vpack.c.b16 %v5936, %v5935
      %v5969 = vpack.c.b16 %v5938, %v5937
      %v5970 = vpack.c.b16 %v5940, %v5939
      %v5971 = vpack.c.b16 %v5942, %v5941
      %v5972 = vpack.c.b16 %v5944, %v5943
      %v5973 = vpack.c.b16 %v5946, %v5945
      %v5974 = vpack.c.b16 %v5948, %v5947
      %v5975 = vpack.c.b16 %v5950, %v5949
      %v5976 = vpack.c.b16 %v5952, %v5951
      %v6017 = vunpack.c.l.b16 %v5841
      %v6018 = vunpack.c.l.b16 %v5842
      %v6019 = vunpack.c.l.b16 %v5843
      %v6020 = vunpack.c.l.b16 %v5844
      %v6021 = vunpack.c.l.b16 %v5845
      %v6022 = vunpack.c.l.b16 %v5846
      %v6023 = vunpack.c.l.b16 %v5847
      %v6024 = vunpack.c.l.b16 %v5848
      %v6025 = vunpack.c.l.b16 %v5849
      %v6026 = vunpack.c.l.b16 %v5850
      %v6027 = vunpack.c.l.b16 %v5851
      %v6028 = vunpack.c.l.b16 %v5852
      %v6029 = vunpack.c.l.b16 %v5853
      %v6030 = vunpack.c.l.b16 %v5854
      %v6031 = vunpack.c.l.b16 %v5855
      %v6032 = vunpack.c.l.b16 %v5856
      %v6033 = vpack.c.b16 %v6018, %v6017
      %v6034 = vpack.c.b16 %v6020, %v6019
      %v6035 = vpack.c.b16 %v6022, %v6021
      %v6036 = vpack.c.b16 %v6024, %v6023
      %v6037 = vpack.c.b16 %v6026, %v6025
      %v6038 = vpack.c.b16 %v6028, %v6027
      %v6039 = vpack.c.b16 %v6030, %v6029
      %v6040 = vpack.c.b16 %v6032, %v6031
      %6049 = vmatprep.subr.bf16.mxu0 0
      %6050 = vmatpush1.bf16.msra.mxu0 %v6033
      %6051 = vmatprep.subr.bf16.mxu0 0
      %6052 = vmatpush1.bf16.msra.mxu0 %v6034
      %6053 = vmatprep.subr.bf16.mxu0 0
      %6054 = vmatpush1.bf16.msra.mxu0 %v6035
      %6055 = vmatprep.subr.bf16.mxu0 0
      %6056 = vmatpush1.bf16.msra.mxu0 %v6036
      %6057 = vmatprep.subr.bf16.mxu0 0
      %6058 = vmatpush1.bf16.msra.mxu0 %v6037
      %6059 = vmatprep.subr.bf16.mxu0 0
      %6060 = vmatpush1.bf16.msra.mxu0 %v6038
      %6061 = vmatprep.subr.bf16.mxu0 0
      %6062 = vmatpush1.bf16.msra.mxu0 %v6039
      %6063 = vmatprep.subr.bf16.mxu0 0
      %6064 = vmatpush1.bf16.msra.mxu0 %v6040
      %6065 = vmatprep.subr.bf16.mxu0 0
      %6066 = vmatpush1.bf16.msra.mxu0 0
      %6067 = vmatprep.subr.bf16.mxu0 0
      %6068 = vmatpush1.bf16.msra.mxu0 0
      %6069 = vmatprep.subr.bf16.mxu0 0
      %6070 = vmatpush1.bf16.msra.mxu0 0
      %6071 = vmatprep.subr.bf16.mxu0 0
      %6072 = vmatpush1.bf16.msra.mxu0 0
      %6073 = vmatprep.subr.bf16.mxu0 0
      %6074 = vmatpush1.bf16.msra.mxu0 0
      %6075 = vmatprep.subr.bf16.mxu0 0
      %6076 = vmatpush1.bf16.msra.mxu0 0
      %6077 = vmatprep.subr.bf16.mxu0 0
      %6078 = vmatpush1.bf16.msra.mxu0 0
      %6079 = vmatprep.subr.bf16.mxu0 0
      %6080 = vmatpush1.bf16.msra.mxu0 0
      %6081 = vmatprep.mubr.bf16.mxu0 0
      %6082 = vmatmul.mubr.bf16.gmra.mrb[0].mxu0 %v5953
      %v6083 = vpop.f32.mrb[0].mxu0
      %v6084 = vadd.f32 0.0, %v6083
      %v6085 = vpop.f32.mrb[0].mxu0
      %v6086 = vpop.f32.mrb[0].mxu0
      %v6087 = vadd.f32 0.0, %v6086
      %v6088 = vpop.f32.mrb[0].mxu0
      %6089 = vmatprep.mubr.bf16.mxu0 0
      %6090 = vmatmul.mubr.bf16.gmra.mrb[0].mxu0 %v5954
      %v6091 = vpop.f32.mrb[0].mxu0
      %v6092 = vadd.f32 0.0, %v6091
      %v6093 = vpop.f32.mrb[0].mxu0
      %v6094 = vpop.f32.mrb[0].mxu0
      %v6095 = vadd.f32 0.0, %v6094
      %v6096 = vpop.f32.mrb[0].mxu0
      %6097 = vmatprep.mubr.bf16.mxu0 0
      %6098 = vmatmul.mubr.bf16.gmra.mrb[0].mxu0 %v5955
      %v6099 = vpop.f32.mrb[0].mxu0
      %v6100 = vadd.f32 0.0, %v6099
      %v6101 = vpop.f32.mrb[0].mxu0
      %v6102 = vpop.f32.mrb[0].mxu0
      %v6103 = vadd.f32 0.0, %v6102
      %v6104 = vpop.f32.mrb[0].mxu0
      %6105 = vmatprep.mubr.bf16.mxu0 0
      %6106 = vmatmul.mubr.bf16.gmra.mrb[0].mxu0 %v5956
      %v6107 = vpop.f32.mrb[0].mxu0
      %v6108 = vadd.f32 0.0, %v6107
      %v6109 = vpop.f32.mrb[0].mxu0
      %v6110 = vpop.f32.mrb[0].mxu0
      %v6111 = vadd.f32 0.0, %v6110
      %v6112 = vpop.f32.mrb[0].mxu0
      %6113 = vmatprep.mubr.bf16.mxu0 0
      %6114 = vmatmul.mubr.bf16.gmra.mrb[0].mxu0 %v5957
      %v6115 = vpop.f32.mrb[0].mxu0
      %v6116 = vadd.f32 0.0, %v6115
      %v6117 = vpop.f32.mrb[0].mxu0
      %v6118 = vpop.f32.mrb[0].mxu0
      %v6119 = vadd.f32 0.0, %v6118
      %v6120 = vpop.f32.mrb[0].mxu0
      %6121 = vmatprep.mubr.bf16.mxu0 0
      %6122 = vmatmul.mubr.bf16.gmra.mrb[0].mxu0 %v5958
      %v6123 = vpop.f32.mrb[0].mxu0
      %v6124 = vadd.f32 0.0, %v6123
      %v6125 = vpop.f32.mrb[0].mxu0
      %v6126 = vpop.f32.mrb[0].mxu0
      %v6127 = vadd.f32 0.0, %v6126
      %v6128 = vpop.f32.mrb[0].mxu0
      %6129 = vmatprep.mubr.bf16.mxu0 0
      %6130 = vmatmul.mubr.bf16.gmra.mrb[0].mxu0 %v5959
      %v6131 = vpop.f32.mrb[0].mxu0
      %v6132 = vadd.f32 0.0, %v6131
      %v6133 = vpop.f32.mrb[0].mxu0
      %v6134 = vpop.f32.mrb[0].mxu0
      %v6135 = vadd.f32 0.0, %v6134
      %v6136 = vpop.f32.mrb[0].mxu0
      %6137 = vmatprep.mubr.bf16.mxu0 0
      %6138 = vmatmul.mubr.bf16.gmra.mrb[0].mxu0 %v5960
      %v6139 = vpop.f32.mrb[0].mxu0
      %v6140 = vadd.f32 0.0, %v6139
      %v6141 = vpop.f32.mrb[0].mxu0
      %v6142 = vpop.f32.mrb[0].mxu0
      %v6143 = vadd.f32 0.0, %v6142
      %v6144 = vpop.f32.mrb[0].mxu0
      %6145 = vmatprep.mubr.bf16.mxu0 0
      %6146 = vmatmul.mubr.bf16.gmra.mrb[0].mxu0 %v5961
      %v6147 = vpop.f32.mrb[0].mxu0
      %v6148 = vadd.f32 0.0, %v6147
      %v6149 = vpop.f32.mrb[0].mxu0
      %v6150 = vpop.f32.mrb[0].mxu0
      %v6151 = vadd.f32 0.0, %v6150
      %v6152 = vpop.f32.mrb[0].mxu0
      %6153 = vmatprep.mubr.bf16.mxu0 0
      %6154 = vmatmul.mubr.bf16.gmra.mrb[0].mxu0 %v5962
      %v6155 = vpop.f32.mrb[0].mxu0
      %v6156 = vadd.f32 0.0, %v6155
      %v6157 = vpop.f32.mrb[0].mxu0
      %v6158 = vpop.f32.mrb[0].mxu0
      %v6159 = vadd.f32 0.0, %v6158
      %v6160 = vpop.f32.mrb[0].mxu0
      %6161 = vmatprep.mubr.bf16.mxu0 0
      %6162 = vmatmul.mubr.bf16.gmra.mrb[0].mxu0 %v5963
      %v6163 = vpop.f32.mrb[0].mxu0
      %v6164 = vadd.f32 0.0, %v6163
      %v6165 = vpop.f32.mrb[0].mxu0
      %v6166 = vpop.f32.mrb[0].mxu0
      %v6167 = vadd.f32 0.0, %v6166
      %v6168 = vpop.f32.mrb[0].mxu0
      %6169 = vmatprep.mubr.bf16.mxu0 0
      %6170 = vmatmul.mubr.bf16.gmra.mrb[0].mxu0 %v5964
      %v6171 = vpop.f32.mrb[0].mxu0
      %v6172 = vadd.f32 0.0, %v6171
      %v6173 = vpop.f32.mrb[0].mxu0
      %v6174 = vpop.f32.mrb[0].mxu0
      %v6175 = vadd.f32 0.0, %v6174
      %v6176 = vpop.f32.mrb[0].mxu0
      %6177 = vmatprep.mubr.bf16.mxu0 0
      %6178 = vmatmul.mubr.bf16.gmra.mrb[0].mxu0 %v5965
      %v6179 = vpop.f32.mrb[0].mxu0
      %v6180 = vadd.f32 0.0, %v6179
      %v6181 = vpop.f32.mrb[0].mxu0
      %v6182 = vpop.f32.mrb[0].mxu0
      %v6183 = vadd.f32 0.0, %v6182
      %v6184 = vpop.f32.mrb[0].mxu0
      %6185 = vmatprep.mubr.bf16.mxu0 0
      %6186 = vmatmul.mubr.bf16.gmra.mrb[0].mxu0 %v5966
      %v6187 = vpop.f32.mrb[0].mxu0
      %v6188 = vadd.f32 0.0, %v6187
      %v6189 = vpop.f32.mrb[0].mxu0
      %v6190 = vpop.f32.mrb[0].mxu0
      %v6191 = vadd.f32 0.0, %v6190
      %v6192 = vpop.f32.mrb[0].mxu0
      %6193 = vmatprep.mubr.bf16.mxu0 0
      %6194 = vmatmul.mubr.bf16.gmra.mrb[0].mxu0 %v5967
      %v6195 = vpop.f32.mrb[0].mxu0
      %v6196 = vadd.f32 0.0, %v6195
      %v6197 = vpop.f32.mrb[0].mxu0
      %v6198 = vpop.f32.mrb[0].mxu0
      %v6199 = vadd.f32 0.0, %v6198
      %v6200 = vpop.f32.mrb[0].mxu0
      %6201 = vmatprep.mubr.bf16.mxu0 0
      %6202 = vmatmul.mubr.bf16.gmra.mrb[0].mxu0 %v5968
      %v6203 = vpop.f32.mrb[0].mxu0
      %v6204 = vadd.f32 0.0, %v6203
      %v6205 = vpop.f32.mrb[0].mxu0
      %v6206 = vpop.f32.mrb[0].mxu0
      %v6207 = vadd.f32 0.0, %v6206
      %v6208 = vpop.f32.mrb[0].mxu0
      %6209 = vmatprep.mubr.bf16.mxu0 0
      %6210 = vmatmul.mubr.bf16.gmra.mrb[0].mxu0 %v5969
      %v6211 = vpop.f32.mrb[0].mxu0
      %v6212 = vadd.f32 0.0, %v6211
      %v6213 = vpop.f32.mrb[0].mxu0
      %v6214 = vpop.f32.mrb[0].mxu0
      %v6215 = vadd.f32 0.0, %v6214
      %v6216 = vpop.f32.mrb[0].mxu0
      %6217 = vmatprep.mubr.bf16.mxu0 0
      %6218 = vmatmul.mubr.bf16.gmra.mrb[0].mxu0 %v5970
      %v6219 = vpop.f32.mrb[0].mxu0
      %v6220 = vadd.f32 0.0, %v6219
      %v6221 = vpop.f32.mrb[0].mxu0
      %v6222 = vpop.f32.mrb[0].mxu0
      %v6223 = vadd.f32 0.0, %v6222
      %v6224 = vpop.f32.mrb[0].mxu0
      %6225 = vmatprep.mubr.bf16.mxu0 0
      %6226 = vmatmul.mubr.bf16.gmra.mrb[0].mxu0 %v5971
      %v6227 = vpop.f32.mrb[0].mxu0
      %v6228 = vadd.f32 0.0, %v6227
      %v6229 = vpop.f32.mrb[0].mxu0
      %v6230 = vpop.f32.mrb[0].mxu0
      %v6231 = vadd.f32 0.0, %v6230
      %v6232 = vpop.f32.mrb[0].mxu0
      %6233 = vmatprep.mubr.bf16.mxu0 0
      %6234 = vmatmul.mubr.bf16.gmra.mrb[0].mxu0 %v5972
      %v6235 = vpop.f32.mrb[0].mxu0
      %v6236 = vadd.f32 0.0, %v6235
      %v6237 = vpop.f32.mrb[0].mxu0
      %v6238 = vpop.f32.mrb[0].mxu0
      %v6239 = vadd.f32 0.0, %v6238
      %v6240 = vpop.f32.mrb[0].mxu0
      %6241 = vmatprep.mubr.bf16.mxu0 0
      %6242 = vmatmul.mubr.bf16.gmra.mrb[0].mxu0 %v5973
      %v6243 = vpop.f32.mrb[0].mxu0
      %v6244 = vadd.f32 0.0, %v6243
      %v6245 = vpop.f32.mrb[0].mxu0
      %v6246 = vpop.f32.mrb[0].mxu0
      %v6247 = vadd.f32 0.0, %v6246
      %v6248 = vpop.f32.mrb[0].mxu0
      %6249 = vmatprep.mubr.bf16.mxu0 0
      %6250 = vmatmul.mubr.bf16.gmra.mrb[0].mxu0 %v5974
      %v6251 = vpop.f32.mrb[0].mxu0
      %v6252 = vadd.f32 0.0, %v6251
      %v6253 = vpop.f32.mrb[0].mxu0
      %v6254 = vpop.f32.mrb[0].mxu0
      %v6255 = vadd.f32 0.0, %v6254
      %v6256 = vpop.f32.mrb[0].mxu0
      %6257 = vmatprep.mubr.bf16.mxu0 0
      %6258 = vmatmul.mubr.bf16.gmra.mrb[0].mxu0 %v5975
      %v6259 = vpop.f32.mrb[0].mxu0
      %v6260 = vadd.f32 0.0, %v6259
      %v6261 = vpop.f32.mrb[0].mxu0
      %v6262 = vpop.f32.mrb[0].mxu0
      %v6263 = vadd.f32 0.0, %v6262
      %v6264 = vpop.f32.mrb[0].mxu0
      %6265 = vmatprep.mubr.bf16.mxu0 0
      %6266 = vmatmul.mubr.bf16.gmra.mrb[0].mxu0 %v5976
      %v6267 = vpop.f32.mrb[0].mxu0
      %v6268 = vadd.f32 0.0, %v6267
      %v6269 = vpop.f32.mrb[0].mxu0
      %v6270 = vpop.f32.mrb[0].mxu0
      %v6271 = vadd.f32 0.0, %v6270
      %v6272 = vpop.f32.mrb[0].mxu0
      %6273 = vdwg.mxu0
      %v6274 = vld [vmem:[#allocation4] sm:$0xff]
      %v6275 = vld [vmem:[#allocation4 + $0x8] sm:$0xff]
      %v6276 = vld [vmem:[#allocation4 + $0x10] sm:$0xff]
      %v6277 = vld [vmem:[#allocation4 + $0x18] sm:$0xff]
      %v6278 = vld [vmem:[#allocation4 + $0x20] sm:$0xff]
      %v6279 = vld [vmem:[#allocation4 + $0x28] sm:$0xff]
      %v6280 = vld [vmem:[#allocation4 + $0x30] sm:$0xff]
      %v6281 = vld [vmem:[#allocation4 + $0x38] sm:$0xff]
      %v6282 = vld [vmem:[#allocation4 + $0x40] sm:$0xff]
      %v6283 = vld [vmem:[#allocation4 + $0x48] sm:$0xff]
      %v6284 = vld [vmem:[#allocation4 + $0x50] sm:$0xff]
      %v6285 = vld [vmem:[#allocation4 + $0x58] sm:$0xff]
      %v6286 = vld [vmem:[#allocation4 + $0x60] sm:$0xff]
      %v6287 = vld [vmem:[#allocation4 + $0x68] sm:$0xff]
      %v6288 = vld [vmem:[#allocation4 + $0x70] sm:$0xff]
      %v6289 = vld [vmem:[#allocation4 + $0x78] sm:$0xff]
      %v6290 = vld [vmem:[#allocation4 + $0x80] sm:$0xff]
      %v6291 = vld [vmem:[#allocation4 + $0x88] sm:$0xff]
      %v6292 = vld [vmem:[#allocation4 + $0x90] sm:$0xff]
      %v6293 = vld [vmem:[#allocation4 + $0x98] sm:$0xff]
      %v6294 = vld [vmem:[#allocation4 + $0xa0] sm:$0xff]
      %v6295 = vld [vmem:[#allocation4 + $0xa8] sm:$0xff]
      %v6296 = vld [vmem:[#allocation4 + $0xb0] sm:$0xff]
      %v6297 = vld [vmem:[#allocation4 + $0xb8] sm:$0xff]
      %v6298 = vld [vmem:[#allocation4 + $0xc0] sm:$0xff]
      %v6299 = vld [vmem:[#allocation4 + $0xc8] sm:$0xff]
      %v6300 = vld [vmem:[#allocation4 + $0xd0] sm:$0xff]
      %v6301 = vld [vmem:[#allocation4 + $0xd8] sm:$0xff]
      %v6302 = vld [vmem:[#allocation4 + $0xe0] sm:$0xff]
      %v6303 = vld [vmem:[#allocation4 + $0xe8] sm:$0xff]
      %v6304 = vld [vmem:[#allocation4 + $0xf0] sm:$0xff]
      %v6305 = vld [vmem:[#allocation4 + $0xf8] sm:$0xff]
      %v6306 = vld [vmem:[#allocation4 + $0x100] sm:$0xff]
      %v6307 = vld [vmem:[#allocation4 + $0x108] sm:$0xff]
      %v6308 = vld [vmem:[#allocation4 + $0x110] sm:$0xff]
      %v6309 = vld [vmem:[#allocation4 + $0x118] sm:$0xff]
      %v6310 = vld [vmem:[#allocation4 + $0x120] sm:$0xff]
      %v6311 = vld [vmem:[#allocation4 + $0x128] sm:$0xff]
      %v6312 = vld [vmem:[#allocation4 + $0x130] sm:$0xff]
      %v6313 = vld [vmem:[#allocation4 + $0x138] sm:$0xff]
      %v6314 = vld [vmem:[#allocation4 + $0x140] sm:$0xff]
      %v6315 = vld [vmem:[#allocation4 + $0x148] sm:$0xff]
      %v6316 = vld [vmem:[#allocation4 + $0x150] sm:$0xff]
      %v6317 = vld [vmem:[#allocation4 + $0x158] sm:$0xff]
      %v6318 = vld [vmem:[#allocation4 + $0x160] sm:$0xff]
      %v6319 = vld [vmem:[#allocation4 + $0x168] sm:$0xff]
      %v6320 = vld [vmem:[#allocation4 + $0x170] sm:$0xff]
      %v6321 = vld [vmem:[#allocation4 + $0x178] sm:$0xff]
      %v6322 = vadd.f32 %v6274, %v6084
      %v6323 = vadd.f32 %v6275, %v6087
      %v6324 = vadd.f32 %v6276, %v6092
      %v6325 = vadd.f32 %v6277, %v6095
      %v6326 = vadd.f32 %v6278, %v6100
      %v6327 = vadd.f32 %v6279, %v6103
      %v6328 = vadd.f32 %v6280, %v6108
      %v6329 = vadd.f32 %v6281, %v6111
      %v6330 = vadd.f32 %v6282, %v6116
      %v6331 = vadd.f32 %v6283, %v6119
      %v6332 = vadd.f32 %v6284, %v6124
      %v6333 = vadd.f32 %v6285, %v6127
      %v6334 = vadd.f32 %v6286, %v6132
      %v6335 = vadd.f32 %v6287, %v6135
      %v6336 = vadd.f32 %v6288, %v6140
      %v6337 = vadd.f32 %v6289, %v6143
      %v6338 = vadd.f32 %v6290, %v6148
      %v6339 = vadd.f32 %v6291, %v6151
      %v6340 = vadd.f32 %v6292, %v6156
      %v6341 = vadd.f32 %v6293, %v6159
      %v6342 = vadd.f32 %v6294, %v6164
      %v6343 = vadd.f32 %v6295, %v6167
      %v6344 = vadd.f32 %v6296, %v6172
      %v6345 = vadd.f32 %v6297, %v6175
      %v6346 = vadd.f32 %v6298, %v6180
      %v6347 = vadd.f32 %v6299, %v6183
      %v6348 = vadd.f32 %v6300, %v6188
      %v6349 = vadd.f32 %v6301, %v6191
      %v6350 = vadd.f32 %v6302, %v6196
      %v6351 = vadd.f32 %v6303, %v6199
      %v6352 = vadd.f32 %v6304, %v6204
      %v6353 = vadd.f32 %v6305, %v6207
      %v6354 = vadd.f32 %v6306, %v6212
      %v6355 = vadd.f32 %v6307, %v6215
      %v6356 = vadd.f32 %v6308, %v6220
      %v6357 = vadd.f32 %v6309, %v6223
      %v6358 = vadd.f32 %v6310, %v6228
      %v6359 = vadd.f32 %v6311, %v6231
      %v6360 = vadd.f32 %v6312, %v6236
      %v6361 = vadd.f32 %v6313, %v6239
      %v6362 = vadd.f32 %v6314, %v6244
      %v6363 = vadd.f32 %v6315, %v6247
      %v6364 = vadd.f32 %v6316, %v6252
      %v6365 = vadd.f32 %v6317, %v6255
      %v6366 = vadd.f32 %v6318, %v6260
      %v6367 = vadd.f32 %v6319, %v6263
      %v6368 = vadd.f32 %v6320, %v6268
      %v6369 = vadd.f32 %v6321, %v6271
      %6370 = vst [vmem:[#allocation4] sm:$0xff] %v6322
      %6371 = vst [vmem:[#allocation4 + $0x8] sm:$0xff] %v6323
      %6372 = vst [vmem:[#allocation4 + $0x10] sm:$0xff] %v6324
      %6373 = vst [vmem:[#allocation4 + $0x18] sm:$0xff] %v6325
      %6374 = vst [vmem:[#allocation4 + $0x20] sm:$0xff] %v6326
      %6375 = vst [vmem:[#allocation4 + $0x28] sm:$0xff] %v6327
      %6376 = vst [vmem:[#allocation4 + $0x30] sm:$0xff] %v6328
      %6377 = vst [vmem:[#allocation4 + $0x38] sm:$0xff] %v6329
      %6378 = vst [vmem:[#allocation4 + $0x40] sm:$0xff] %v6330
      %6379 = vst [vmem:[#allocation4 + $0x48] sm:$0xff] %v6331
      %6380 = vst [vmem:[#allocation4 + $0x50] sm:$0xff] %v6332
      %6381 = vst [vmem:[#allocation4 + $0x58] sm:$0xff] %v6333
      %6382 = vst [vmem:[#allocation4 + $0x60] sm:$0xff] %v6334
      %6383 = vst [vmem:[#allocation4 + $0x68] sm:$0xff] %v6335
      %6384 = vst [vmem:[#allocation4 + $0x70] sm:$0xff] %v6336
      %6385 = vst [vmem:[#allocation4 + $0x78] sm:$0xff] %v6337
      %6386 = vst [vmem:[#allocation4 + $0x80] sm:$0xff] %v6338
      %6387 = vst [vmem:[#allocation4 + $0x88] sm:$0xff] %v6339
      %6388 = vst [vmem:[#allocation4 + $0x90] sm:$0xff] %v6340
      %6389 = vst [vmem:[#allocation4 + $0x98] sm:$0xff] %v6341
      %6390 = vst [vmem:[#allocation4 + $0xa0] sm:$0xff] %v6342
      %6391 = vst [vmem:[#allocation4 + $0xa8] sm:$0xff] %v6343
      %6392 = vst [vmem:[#allocation4 + $0xb0] sm:$0xff] %v6344
      %6393 = vst [vmem:[#allocation4 + $0xb8] sm:$0xff] %v6345
      %6394 = vst [vmem:[#allocation4 + $0xc0] sm:$0xff] %v6346
      %6395 = vst [vmem:[#allocation4 + $0xc8] sm:$0xff] %v6347
      %6396 = vst [vmem:[#allocation4 + $0xd0] sm:$0xff] %v6348
      %6397 = vst [vmem:[#allocation4 + $0xd8] sm:$0xff] %v6349
      %6398 = vst [vmem:[#allocation4 + $0xe0] sm:$0xff] %v6350
      %6399 = vst [vmem:[#allocation4 + $0xe8] sm:$0xff] %v6351
      %6400 = vst [vmem:[#allocation4 + $0xf0] sm:$0xff] %v6352
      %6401 = vst [vmem:[#allocation4 + $0xf8] sm:$0xff] %v6353
      %6402 = vst [vmem:[#allocation4 + $0x100] sm:$0xff] %v6354
      %6403 = vst [vmem:[#allocation4 + $0x108] sm:$0xff] %v6355
      %6404 = vst [vmem:[#allocation4 + $0x110] sm:$0xff] %v6356
      %6405 = vst [vmem:[#allocation4 + $0x118] sm:$0xff] %v6357
      %6406 = vst [vmem:[#allocation4 + $0x120] sm:$0xff] %v6358
      %6407 = vst [vmem:[#allocation4 + $0x128] sm:$0xff] %v6359
      %6408 = vst [vmem:[#allocation4 + $0x130] sm:$0xff] %v6360
      %6409 = vst [vmem:[#allocation4 + $0x138] sm:$0xff] %v6361
      %6410 = vst [vmem:[#allocation4 + $0x140] sm:$0xff] %v6362
      %6411 = vst [vmem:[#allocation4 + $0x148] sm:$0xff] %v6363
      %6412 = vst [vmem:[#allocation4 + $0x150] sm:$0xff] %v6364
      %6413 = vst [vmem:[#allocation4 + $0x158] sm:$0xff] %v6365
      %6414 = vst [vmem:[#allocation4 + $0x160] sm:$0xff] %v6366
      %6415 = vst [vmem:[#allocation4 + $0x168] sm:$0xff] %v6367
      %6416 = vst [vmem:[#allocation4 + $0x170] sm:$0xff] %v6368
      %6417 = vst [vmem:[#allocation4 + $0x178] sm:$0xff] %v6369
      %v6418 = vld [vmem:[#allocation2 + $0x18] sm:$0xf]
      %v6419 = vld [vmem:[#allocation2 + $0x1c] sm:$0xf]
      %v6420 = vld [vmem:[#allocation2 + $0x20] sm:$0xf]
      %v6421 = vld [vmem:[#allocation2 + $0x24] sm:$0xf]
      %v6422 = vld [vmem:[#allocation2 + $0x28] sm:$0xf]
      %v6423 = vld [vmem:[#allocation2 + $0x2c] sm:$0xf]
      %v6424 = vld [vmem:[#allocation2 + $0x30] sm:$0xf]
      %v6425 = vld [vmem:[#allocation2 + $0x34] sm:$0xf]
      %v6426 = vld [vmem:[#allocation2 + $0x38] sm:$0xf]
      %v6427 = vld [vmem:[#allocation2 + $0x3c] sm:$0xf]
      %v6428 = vld [vmem:[#allocation2 + $0x40] sm:$0xf]
      %v6429 = vld [vmem:[#allocation2 + $0x44] sm:$0xf]
      %v6430 = vld [vmem:[#allocation2 + $0x48] sm:$0xf]
      %v6431 = vld [vmem:[#allocation2 + $0x4c] sm:$0xf]
      %v6432 = vld [vmem:[#allocation2 + $0x50] sm:$0xf]
      %v6433 = vld [vmem:[#allocation2 + $0x54] sm:$0xf]
      %v6434 = vld [vmem:[#allocation2 + $0x58] sm:$0xf]
      %v6435 = vld [vmem:[#allocation2 + $0x5c] sm:$0xf]
      %v6436 = vld [vmem:[#allocation2 + $0x60] sm:$0xf]
      %v6437 = vld [vmem:[#allocation2 + $0x64] sm:$0xf]
      %v6438 = vld [vmem:[#allocation2 + $0x68] sm:$0xf]
      %v6439 = vld [vmem:[#allocation2 + $0x6c] sm:$0xf]
      %v6440 = vld [vmem:[#allocation2 + $0x70] sm:$0xf]
      %v6441 = vld [vmem:[#allocation2 + $0x74] sm:$0xf]
      %v6442 = vld [vmem:[#allocation2 + $0x78] sm:$0xf]
      %v6443 = vld [vmem:[#allocation2 + $0x7c] sm:$0xf]
      %v6444 = vld [vmem:[#allocation2 + $0x80] sm:$0xf]
      %v6445 = vld [vmem:[#allocation2 + $0x84] sm:$0xf]
      %v6446 = vld [vmem:[#allocation2 + $0x88] sm:$0xf]
      %v6447 = vld [vmem:[#allocation2 + $0x8c] sm:$0xf]
      %v6448 = vld [vmem:[#allocation2 + $0x90] sm:$0xf]
      %v6449 = vld [vmem:[#allocation2 + $0x94] sm:$0xf]
      %v6450 = vld [vmem:[#allocation2 + $0x98] sm:$0xf]
      %v6451 = vld [vmem:[#allocation2 + $0x9c] sm:$0xf]
      %v6452 = vld [vmem:[#allocation2 + $0xa0] sm:$0xf]
      %v6453 = vld [vmem:[#allocation2 + $0xa4] sm:$0xf]
      %v6454 = vld [vmem:[#allocation2 + $0xa8] sm:$0xf]
      %v6455 = vld [vmem:[#allocation2 + $0xac] sm:$0xf]
      %v6456 = vld [vmem:[#allocation2 + $0xb0] sm:$0xf]
      %v6457 = vld [vmem:[#allocation2 + $0xb4] sm:$0xf]
      %v6458 = vld [vmem:[#allocation2 + $0xb8] sm:$0xf]
      %v6459 = vld [vmem:[#allocation2 + $0xbc] sm:$0xf]
      %v6460 = vld [vmem:[#allocation2 + $0xc0] sm:$0xf]
      %v6461 = vld [vmem:[#allocation2 + $0xc4] sm:$0xf]
      %v6462 = vld [vmem:[#allocation2 + $0xc8] sm:$0xf]
      %v6463 = vld [vmem:[#allocation2 + $0xcc] sm:$0xf]
      %v6464 = vld [vmem:[#allocation2 + $0xd0] sm:$0xf]
      %v6465 = vld [vmem:[#allocation2 + $0xd4] sm:$0xf]
      %v6466 = vld [vmem:[#allocation2 + $0xd8] sm:$0x1]
      %s6467 = scalar_lea.vmem %s4, 448
      %v6468 = vld [vmem:[%s6467] sm:$0xf]
      %v6469 = vld [vmem:[%s6467 + $0x4] sm:$0xf]
      %v6470 = vld [vmem:[%s6467 + $0x8] sm:$0xf]
      %v6471 = vld [vmem:[%s6467 + $0xc] sm:$0xf]
      %v6472 = vld [vmem:[%s6467 + $0x10] sm:$0xf]
      %v6473 = vld [vmem:[%s6467 + $0x14] sm:$0xf]
      %v6474 = vld [vmem:[%s6467 + $0x18] sm:$0xf]
      %v6475 = vld [vmem:[%s6467 + $0x1c] sm:$0xf]
      %v6476 = vld [vmem:[%s6467 + $0x20] sm:$0xf]
      %v6477 = vld [vmem:[%s6467 + $0x24] sm:$0xf]
      %v6478 = vld [vmem:[%s6467 + $0x28] sm:$0xf]
      %v6479 = vld [vmem:[%s6467 + $0x2c] sm:$0xf]
      %v6480 = vld [vmem:[%s6467 + $0x30] sm:$0xf]
      %v6481 = vld [vmem:[%s6467 + $0x34] sm:$0xf]
      %v6482 = vld [vmem:[%s6467 + $0x38] sm:$0xf]
      %v6483 = vld [vmem:[%s6467 + $0x3c] sm:$0xf]
      %v6533 = vunpack.c.l.b16 %v6418
      %v6534 = vunpack.c.l.b16 %v6419
      %v6535 = vunpack.c.l.b16 %v6420
      %v6536 = vunpack.c.l.b16 %v6421
      %v6537 = vunpack.c.l.b16 %v6422
      %v6538 = vunpack.c.l.b16 %v6423
      %v6539 = vunpack.c.l.b16 %v6424
      %v6540 = vunpack.c.l.b16 %v6425
      %v6541 = vunpack.c.l.b16 %v6426
      %v6542 = vunpack.c.l.b16 %v6427
      %v6543 = vunpack.c.l.b16 %v6428
      %v6544 = vunpack.c.l.b16 %v6429
      %v6545 = vunpack.c.l.b16 %v6430
      %v6546 = vunpack.c.l.b16 %v6431
      %v6547 = vunpack.c.l.b16 %v6432
      %v6548 = vunpack.c.l.b16 %v6433
      %v6549 = vunpack.c.l.b16 %v6434
      %v6550 = vunpack.c.l.b16 %v6435
      %v6551 = vunpack.c.l.b16 %v6436
      %v6552 = vunpack.c.l.b16 %v6437
      %v6553 = vunpack.c.l.b16 %v6438
      %v6554 = vunpack.c.l.b16 %v6439
      %v6555 = vunpack.c.l.b16 %v6440
      %v6556 = vunpack.c.l.b16 %v6441
      %v6557 = vunpack.c.l.b16 %v6442
      %v6558 = vunpack.c.l.b16 %v6443
      %v6559 = vunpack.c.l.b16 %v6444
      %v6560 = vunpack.c.l.b16 %v6445
      %v6561 = vunpack.c.l.b16 %v6446
      %v6562 = vunpack.c.l.b16 %v6447
      %v6563 = vunpack.c.l.b16 %v6448
      %v6564 = vunpack.c.l.b16 %v6449
      %v6565 = vunpack.c.l.b16 %v6450
      %v6566 = vunpack.c.l.b16 %v6451
      %v6567 = vunpack.c.l.b16 %v6452
      %v6568 = vunpack.c.l.b16 %v6453
      %v6569 = vunpack.c.l.b16 %v6454
      %v6570 = vunpack.c.l.b16 %v6455
      %v6571 = vunpack.c.l.b16 %v6456
      %v6572 = vunpack.c.l.b16 %v6457
      %v6573 = vunpack.c.l.b16 %v6458
      %v6574 = vunpack.c.l.b16 %v6459
      %v6575 = vunpack.c.l.b16 %v6460
      %v6576 = vunpack.c.l.b16 %v6461
      %v6577 = vunpack.c.l.b16 %v6462
      %v6578 = vunpack.c.l.b16 %v6463
      %v6579 = vunpack.c.l.b16 %v6464
      %v6580 = vunpack.c.l.b16 %v6465
      %v6581 = vunpack.c.l.b16 %v6466
      %v6582 = vpack.c.b16 %v6534, %v6533
      %v6583 = vpack.c.b16 %v6536, %v6535
      %v6584 = vpack.c.b16 %v6538, %v6537
      %v6585 = vpack.c.b16 %v6540, %v6539
      %v6586 = vpack.c.b16 %v6542, %v6541
      %v6587 = vpack.c.b16 %v6544, %v6543
      %v6588 = vpack.c.b16 %v6546, %v6545
      %v6589 = vpack.c.b16 %v6548, %v6547
      %v6590 = vpack.c.b16 %v6550, %v6549
      %v6591 = vpack.c.b16 %v6552, %v6551
      %v6592 = vpack.c.b16 %v6554, %v6553
      %v6593 = vpack.c.b16 %v6556, %v6555
      %v6594 = vpack.c.b16 %v6558, %v6557
      %v6595 = vpack.c.b16 %v6560, %v6559
      %v6596 = vpack.c.b16 %v6562, %v6561
      %v6597 = vpack.c.b16 %v6564, %v6563
      %v6598 = vpack.c.b16 %v6566, %v6565
      %v6599 = vpack.c.b16 %v6568, %v6567
      %v6600 = vpack.c.b16 %v6570, %v6569
      %v6601 = vpack.c.b16 %v6572, %v6571
      %v6602 = vpack.c.b16 %v6574, %v6573
      %v6603 = vpack.c.b16 %v6576, %v6575
      %v6604 = vpack.c.b16 %v6578, %v6577
      %v6605 = vpack.c.b16 %v6580, %v6579
      %v6606 = vpack.c.b16 %v6581, %v6581
      %v6608 = vshrl.u32 %v6582, 16
      %v6610 = vshll.u32 %v6582, 16
      %v6612 = vrot.slane %v6610, 1
      %v6613 = vor.u32 %v6608, %v6612
      %v6615 = vshll.u32 %v6583, 16
      %v6617 = vrot.slane %v6615, 1
      %v6618 = vsel %vm2343, %v6613, %v6617
      %v6619 = vshrl.u32 %v6583, 16
      %v6621 = vor.u32 %v6619, %v6617
      %v6623 = vshll.u32 %v6584, 16
      %v6625 = vrot.slane %v6623, 1
      %v6626 = vsel %vm2343, %v6621, %v6625
      %v6627 = vshrl.u32 %v6584, 16
      %v6629 = vor.u32 %v6627, %v6625
      %v6631 = vshll.u32 %v6585, 16
      %v6633 = vrot.slane %v6631, 1
      %v6634 = vsel %vm2343, %v6629, %v6633
      %v6635 = vshrl.u32 %v6585, 16
      %v6637 = vor.u32 %v6635, %v6633
      %v6639 = vshll.u32 %v6586, 16
      %v6641 = vrot.slane %v6639, 1
      %v6642 = vsel %vm2343, %v6637, %v6641
      %v6643 = vshrl.u32 %v6586, 16
      %v6645 = vor.u32 %v6643, %v6641
      %v6647 = vshll.u32 %v6587, 16
      %v6649 = vrot.slane %v6647, 1
      %v6650 = vsel %vm2343, %v6645, %v6649
      %v6651 = vshrl.u32 %v6587, 16
      %v6653 = vor.u32 %v6651, %v6649
      %v6655 = vshll.u32 %v6588, 16
      %v6657 = vrot.slane %v6655, 1
      %v6658 = vsel %vm2343, %v6653, %v6657
      %v6659 = vshrl.u32 %v6588, 16
      %v6661 = vor.u32 %v6659, %v6657
      %v6663 = vshll.u32 %v6589, 16
      %v6665 = vrot.slane %v6663, 1
      %v6666 = vsel %vm2343, %v6661, %v6665
      %v6667 = vshrl.u32 %v6589, 16
      %v6669 = vor.u32 %v6667, %v6665
      %v6671 = vshll.u32 %v6590, 16
      %v6673 = vrot.slane %v6671, 1
      %v6674 = vsel %vm2343, %v6669, %v6673
      %v6675 = vshrl.u32 %v6590, 16
      %v6677 = vor.u32 %v6675, %v6673
      %v6679 = vshll.u32 %v6591, 16
      %v6681 = vrot.slane %v6679, 1
      %v6682 = vsel %vm2343, %v6677, %v6681
      %v6683 = vshrl.u32 %v6591, 16
      %v6685 = vor.u32 %v6683, %v6681
      %v6687 = vshll.u32 %v6592, 16
      %v6689 = vrot.slane %v6687, 1
      %v6690 = vsel %vm2343, %v6685, %v6689
      %v6691 = vshrl.u32 %v6592, 16
      %v6693 = vor.u32 %v6691, %v6689
      %v6695 = vshll.u32 %v6593, 16
      %v6697 = vrot.slane %v6695, 1
      %v6698 = vsel %vm2343, %v6693, %v6697
      %v6699 = vshrl.u32 %v6593, 16
      %v6701 = vor.u32 %v6699, %v6697
      %v6703 = vshll.u32 %v6594, 16
      %v6705 = vrot.slane %v6703, 1
      %v6706 = vsel %vm2343, %v6701, %v6705
      %v6707 = vshrl.u32 %v6594, 16
      %v6709 = vor.u32 %v6707, %v6705
      %v6711 = vshll.u32 %v6595, 16
      %v6713 = vrot.slane %v6711, 1
      %v6714 = vsel %vm2343, %v6709, %v6713
      %v6715 = vshrl.u32 %v6595, 16
      %v6717 = vor.u32 %v6715, %v6713
      %v6719 = vshll.u32 %v6596, 16
      %v6721 = vrot.slane %v6719, 1
      %v6722 = vsel %vm2343, %v6717, %v6721
      %v6723 = vshrl.u32 %v6596, 16
      %v6725 = vor.u32 %v6723, %v6721
      %v6727 = vshll.u32 %v6597, 16
      %v6729 = vrot.slane %v6727, 1
      %v6730 = vsel %vm2343, %v6725, %v6729
      %v6731 = vshrl.u32 %v6597, 16
      %v6733 = vor.u32 %v6731, %v6729
      %v6735 = vshll.u32 %v6598, 16
      %v6737 = vrot.slane %v6735, 1
      %v6738 = vsel %vm2343, %v6733, %v6737
      %v6739 = vshrl.u32 %v6598, 16
      %v6741 = vor.u32 %v6739, %v6737
      %v6743 = vshll.u32 %v6599, 16
      %v6745 = vrot.slane %v6743, 1
      %v6746 = vsel %vm2343, %v6741, %v6745
      %v6747 = vshrl.u32 %v6599, 16
      %v6749 = vor.u32 %v6747, %v6745
      %v6751 = vshll.u32 %v6600, 16
      %v6753 = vrot.slane %v6751, 1
      %v6754 = vsel %vm2343, %v6749, %v6753
      %v6755 = vshrl.u32 %v6600, 16
      %v6757 = vor.u32 %v6755, %v6753
      %v6759 = vshll.u32 %v6601, 16
      %v6761 = vrot.slane %v6759, 1
      %v6762 = vsel %vm2343, %v6757, %v6761
      %v6763 = vshrl.u32 %v6601, 16
      %v6765 = vor.u32 %v6763, %v6761
      %v6767 = vshll.u32 %v6602, 16
      %v6769 = vrot.slane %v6767, 1
      %v6770 = vsel %vm2343, %v6765, %v6769
      %v6771 = vshrl.u32 %v6602, 16
      %v6773 = vor.u32 %v6771, %v6769
      %v6775 = vshll.u32 %v6603, 16
      %v6777 = vrot.slane %v6775, 1
      %v6778 = vsel %vm2343, %v6773, %v6777
      %v6779 = vshrl.u32 %v6603, 16
      %v6781 = vor.u32 %v6779, %v6777
      %v6783 = vshll.u32 %v6604, 16
      %v6785 = vrot.slane %v6783, 1
      %v6786 = vsel %vm2343, %v6781, %v6785
      %v6787 = vshrl.u32 %v6604, 16
      %v6789 = vor.u32 %v6787, %v6785
      %v6791 = vshll.u32 %v6605, 16
      %v6793 = vrot.slane %v6791, 1
      %v6794 = vsel %vm2343, %v6789, %v6793
      %v6795 = vshrl.u32 %v6605, 16
      %v6797 = vor.u32 %v6795, %v6793
      %v6799 = vshll.u32 %v6606, 16
      %v6801 = vrot.slane %v6799, 1
      %v6802 = vsel %vm2343, %v6797, %v6801
      %v6843 = vunpack.c.l.b16 %v6468
      %v6844 = vunpack.c.l.b16 %v6469
      %v6845 = vunpack.c.l.b16 %v6470
      %v6846 = vunpack.c.l.b16 %v6471
      %v6847 = vunpack.c.l.b16 %v6472
      %v6848 = vunpack.c.l.b16 %v6473
      %v6849 = vunpack.c.l.b16 %v6474
      %v6850 = vunpack.c.l.b16 %v6475
      %v6851 = vunpack.c.l.b16 %v6476
      %v6852 = vunpack.c.l.b16 %v6477
      %v6853 = vunpack.c.l.b16 %v6478
      %v6854 = vunpack.c.l.b16 %v6479
      %v6855 = vunpack.c.l.b16 %v6480
      %v6856 = vunpack.c.l.b16 %v6481
      %v6857 = vunpack.c.l.b16 %v6482
      %v6858 = vunpack.c.l.b16 %v6483
      %v6859 = vpack.c.b16 %v6844, %v6843
      %v6860 = vpack.c.b16 %v6846, %v6845
      %v6861 = vpack.c.b16 %v6848, %v6847
      %v6862 = vpack.c.b16 %v6850, %v6849
      %v6863 = vpack.c.b16 %v6852, %v6851
      %v6864 = vpack.c.b16 %v6854, %v6853
      %v6865 = vpack.c.b16 %v6856, %v6855
      %v6866 = vpack.c.b16 %v6858, %v6857
      %6875 = vmatprep.subr.bf16.mxu0 0
      %6876 = vmatpush1.bf16.msra.mxu0 %v6859
      %6877 = vmatprep.subr.bf16.mxu0 0
      %6878 = vmatpush1.bf16.msra.mxu0 %v6860
      %6879 = vmatprep.subr.bf16.mxu0 0
      %6880 = vmatpush1.bf16.msra.mxu0 %v6861
      %6881 = vmatprep.subr.bf16.mxu0 0
      %6882 = vmatpush1.bf16.msra.mxu0 %v6862
      %6883 = vmatprep.subr.bf16.mxu0 0
      %6884 = vmatpush1.bf16.msra.mxu0 %v6863
      %6885 = vmatprep.subr.bf16.mxu0 0
      %6886 = vmatpush1.bf16.msra.mxu0 %v6864
      %6887 = vmatprep.subr.bf16.mxu0 0
      %6888 = vmatpush1.bf16.msra.mxu0 %v6865
      %6889 = vmatprep.subr.bf16.mxu0 0
      %6890 = vmatpush1.bf16.msra.mxu0 %v6866
      %6891 = vmatprep.subr.bf16.mxu0 0
      %6892 = vmatpush1.bf16.msra.mxu0 0
      %6893 = vmatprep.subr.bf16.mxu0 0
      %6894 = vmatpush1.bf16.msra.mxu0 0
      %6895 = vmatprep.subr.bf16.mxu0 0
      %6896 = vmatpush1.bf16.msra.mxu0 0
      %6897 = vmatprep.subr.bf16.mxu0 0
      %6898 = vmatpush1.bf16.msra.mxu0 0
      %6899 = vmatprep.subr.bf16.mxu0 0
      %6900 = vmatpush1.bf16.msra.mxu0 0
      %6901 = vmatprep.subr.bf16.mxu0 0
      %6902 = vmatpush1.bf16.msra.mxu0 0
      %6903 = vmatprep.subr.bf16.mxu0 0
      %6904 = vmatpush1.bf16.msra.mxu0 0
      %6905 = vmatprep.subr.bf16.mxu0 0
      %6906 = vmatpush1.bf16.msra.mxu0 0
      %6907 = vmatprep.mubr.bf16.mxu0 0
      %6908 = vmatmul.mubr.bf16.gmra.mrb[0].mxu0 %v6618
      %v6909 = vpop.f32.mrb[0].mxu0
      %v6910 = vadd.f32 0.0, %v6909
      %v6911 = vpop.f32.mrb[0].mxu0
      %v6912 = vpop.f32.mrb[0].mxu0
      %v6913 = vadd.f32 0.0, %v6912
      %v6914 = vpop.f32.mrb[0].mxu0
      %6915 = vmatprep.mubr.bf16.mxu0 0
      %6916 = vmatmul.mubr.bf16.gmra.mrb[0].mxu0 %v6626
      %v6917 = vpop.f32.mrb[0].mxu0
      %v6918 = vadd.f32 0.0, %v6917
      %v6919 = vpop.f32.mrb[0].mxu0
      %v6920 = vpop.f32.mrb[0].mxu0
      %v6921 = vadd.f32 0.0, %v6920
      %v6922 = vpop.f32.mrb[0].mxu0
      %6923 = vmatprep.mubr.bf16.mxu0 0
      %6924 = vmatmul.mubr.bf16.gmra.mrb[0].mxu0 %v6634
      %v6925 = vpop.f32.mrb[0].mxu0
      %v6926 = vadd.f32 0.0, %v6925
      %v6927 = vpop.f32.mrb[0].mxu0
      %v6928 = vpop.f32.mrb[0].mxu0
      %v6929 = vadd.f32 0.0, %v6928
      %v6930 = vpop.f32.mrb[0].mxu0
      %6931 = vmatprep.mubr.bf16.mxu0 0
      %6932 = vmatmul.mubr.bf16.gmra.mrb[0].mxu0 %v6642
      %v6933 = vpop.f32.mrb[0].mxu0
      %v6934 = vadd.f32 0.0, %v6933
      %v6935 = vpop.f32.mrb[0].mxu0
      %v6936 = vpop.f32.mrb[0].mxu0
      %v6937 = vadd.f32 0.0, %v6936
      %v6938 = vpop.f32.mrb[0].mxu0
      %6939 = vmatprep.mubr.bf16.mxu0 0
      %6940 = vmatmul.mubr.bf16.gmra.mrb[0].mxu0 %v6650
      %v6941 = vpop.f32.mrb[0].mxu0
      %v6942 = vadd.f32 0.0, %v6941
      %v6943 = vpop.f32.mrb[0].mxu0
      %v6944 = vpop.f32.mrb[0].mxu0
      %v6945 = vadd.f32 0.0, %v6944
      %v6946 = vpop.f32.mrb[0].mxu0
      %6947 = vmatprep.mubr.bf16.mxu0 0
      %6948 = vmatmul.mubr.bf16.gmra.mrb[0].mxu0 %v6658
      %v6949 = vpop.f32.mrb[0].mxu0
      %v6950 = vadd.f32 0.0, %v6949
      %v6951 = vpop.f32.mrb[0].mxu0
      %v6952 = vpop.f32.mrb[0].mxu0
      %v6953 = vadd.f32 0.0, %v6952
      %v6954 = vpop.f32.mrb[0].mxu0
      %6955 = vmatprep.mubr.bf16.mxu0 0
      %6956 = vmatmul.mubr.bf16.gmra.mrb[0].mxu0 %v6666
      %v6957 = vpop.f32.mrb[0].mxu0
      %v6958 = vadd.f32 0.0, %v6957
      %v6959 = vpop.f32.mrb[0].mxu0
      %v6960 = vpop.f32.mrb[0].mxu0
      %v6961 = vadd.f32 0.0, %v6960
      %v6962 = vpop.f32.mrb[0].mxu0
      %6963 = vmatprep.mubr.bf16.mxu0 0
      %6964 = vmatmul.mubr.bf16.gmra.mrb[0].mxu0 %v6674
      %v6965 = vpop.f32.mrb[0].mxu0
      %v6966 = vadd.f32 0.0, %v6965
      %v6967 = vpop.f32.mrb[0].mxu0
      %v6968 = vpop.f32.mrb[0].mxu0
      %v6969 = vadd.f32 0.0, %v6968
      %v6970 = vpop.f32.mrb[0].mxu0
      %6971 = vmatprep.mubr.bf16.mxu0 0
      %6972 = vmatmul.mubr.bf16.gmra.mrb[0].mxu0 %v6682
      %v6973 = vpop.f32.mrb[0].mxu0
      %v6974 = vadd.f32 0.0, %v6973
      %v6975 = vpop.f32.mrb[0].mxu0
      %v6976 = vpop.f32.mrb[0].mxu0
      %v6977 = vadd.f32 0.0, %v6976
      %v6978 = vpop.f32.mrb[0].mxu0
      %6979 = vmatprep.mubr.bf16.mxu0 0
      %6980 = vmatmul.mubr.bf16.gmra.mrb[0].mxu0 %v6690
      %v6981 = vpop.f32.mrb[0].mxu0
      %v6982 = vadd.f32 0.0, %v6981
      %v6983 = vpop.f32.mrb[0].mxu0
      %v6984 = vpop.f32.mrb[0].mxu0
      %v6985 = vadd.f32 0.0, %v6984
      %v6986 = vpop.f32.mrb[0].mxu0
      %6987 = vmatprep.mubr.bf16.mxu0 0
      %6988 = vmatmul.mubr.bf16.gmra.mrb[0].mxu0 %v6698
      %v6989 = vpop.f32.mrb[0].mxu0
      %v6990 = vadd.f32 0.0, %v6989
      %v6991 = vpop.f32.mrb[0].mxu0
      %v6992 = vpop.f32.mrb[0].mxu0
      %v6993 = vadd.f32 0.0, %v6992
      %v6994 = vpop.f32.mrb[0].mxu0
      %6995 = vmatprep.mubr.bf16.mxu0 0
      %6996 = vmatmul.mubr.bf16.gmra.mrb[0].mxu0 %v6706
      %v6997 = vpop.f32.mrb[0].mxu0
      %v6998 = vadd.f32 0.0, %v6997
      %v6999 = vpop.f32.mrb[0].mxu0
      %v7000 = vpop.f32.mrb[0].mxu0
      %v7001 = vadd.f32 0.0, %v7000
      %v7002 = vpop.f32.mrb[0].mxu0
      %7003 = vmatprep.mubr.bf16.mxu0 0
      %7004 = vmatmul.mubr.bf16.gmra.mrb[0].mxu0 %v6714
      %v7005 = vpop.f32.mrb[0].mxu0
      %v7006 = vadd.f32 0.0, %v7005
      %v7007 = vpop.f32.mrb[0].mxu0
      %v7008 = vpop.f32.mrb[0].mxu0
      %v7009 = vadd.f32 0.0, %v7008
      %v7010 = vpop.f32.mrb[0].mxu0
      %7011 = vmatprep.mubr.bf16.mxu0 0
      %7012 = vmatmul.mubr.bf16.gmra.mrb[0].mxu0 %v6722
      %v7013 = vpop.f32.mrb[0].mxu0
      %v7014 = vadd.f32 0.0, %v7013
      %v7015 = vpop.f32.mrb[0].mxu0
      %v7016 = vpop.f32.mrb[0].mxu0
      %v7017 = vadd.f32 0.0, %v7016
      %v7018 = vpop.f32.mrb[0].mxu0
      %7019 = vmatprep.mubr.bf16.mxu0 0
      %7020 = vmatmul.mubr.bf16.gmra.mrb[0].mxu0 %v6730
      %v7021 = vpop.f32.mrb[0].mxu0
      %v7022 = vadd.f32 0.0, %v7021
      %v7023 = vpop.f32.mrb[0].mxu0
      %v7024 = vpop.f32.mrb[0].mxu0
      %v7025 = vadd.f32 0.0, %v7024
      %v7026 = vpop.f32.mrb[0].mxu0
      %7027 = vmatprep.mubr.bf16.mxu0 0
      %7028 = vmatmul.mubr.bf16.gmra.mrb[0].mxu0 %v6738
      %v7029 = vpop.f32.mrb[0].mxu0
      %v7030 = vadd.f32 0.0, %v7029
      %v7031 = vpop.f32.mrb[0].mxu0
      %v7032 = vpop.f32.mrb[0].mxu0
      %v7033 = vadd.f32 0.0, %v7032
      %v7034 = vpop.f32.mrb[0].mxu0
      %7035 = vmatprep.mubr.bf16.mxu0 0
      %7036 = vmatmul.mubr.bf16.gmra.mrb[0].mxu0 %v6746
      %v7037 = vpop.f32.mrb[0].mxu0
      %v7038 = vadd.f32 0.0, %v7037
      %v7039 = vpop.f32.mrb[0].mxu0
      %v7040 = vpop.f32.mrb[0].mxu0
      %v7041 = vadd.f32 0.0, %v7040
      %v7042 = vpop.f32.mrb[0].mxu0
      %7043 = vmatprep.mubr.bf16.mxu0 0
      %7044 = vmatmul.mubr.bf16.gmra.mrb[0].mxu0 %v6754
      %v7045 = vpop.f32.mrb[0].mxu0
      %v7046 = vadd.f32 0.0, %v7045
      %v7047 = vpop.f32.mrb[0].mxu0
      %v7048 = vpop.f32.mrb[0].mxu0
      %v7049 = vadd.f32 0.0, %v7048
      %v7050 = vpop.f32.mrb[0].mxu0
      %7051 = vmatprep.mubr.bf16.mxu0 0
      %7052 = vmatmul.mubr.bf16.gmra.mrb[0].mxu0 %v6762
      %v7053 = vpop.f32.mrb[0].mxu0
      %v7054 = vadd.f32 0.0, %v7053
      %v7055 = vpop.f32.mrb[0].mxu0
      %v7056 = vpop.f32.mrb[0].mxu0
      %v7057 = vadd.f32 0.0, %v7056
      %v7058 = vpop.f32.mrb[0].mxu0
      %7059 = vmatprep.mubr.bf16.mxu0 0
      %7060 = vmatmul.mubr.bf16.gmra.mrb[0].mxu0 %v6770
      %v7061 = vpop.f32.mrb[0].mxu0
      %v7062 = vadd.f32 0.0, %v7061
      %v7063 = vpop.f32.mrb[0].mxu0
      %v7064 = vpop.f32.mrb[0].mxu0
      %v7065 = vadd.f32 0.0, %v7064
      %v7066 = vpop.f32.mrb[0].mxu0
      %7067 = vmatprep.mubr.bf16.mxu0 0
      %7068 = vmatmul.mubr.bf16.gmra.mrb[0].mxu0 %v6778
      %v7069 = vpop.f32.mrb[0].mxu0
      %v7070 = vadd.f32 0.0, %v7069
      %v7071 = vpop.f32.mrb[0].mxu0
      %v7072 = vpop.f32.mrb[0].mxu0
      %v7073 = vadd.f32 0.0, %v7072
      %v7074 = vpop.f32.mrb[0].mxu0
      %7075 = vmatprep.mubr.bf16.mxu0 0
      %7076 = vmatmul.mubr.bf16.gmra.mrb[0].mxu0 %v6786
      %v7077 = vpop.f32.mrb[0].mxu0
      %v7078 = vadd.f32 0.0, %v7077
      %v7079 = vpop.f32.mrb[0].mxu0
      %v7080 = vpop.f32.mrb[0].mxu0
      %v7081 = vadd.f32 0.0, %v7080
      %v7082 = vpop.f32.mrb[0].mxu0
      %7083 = vmatprep.mubr.bf16.mxu0 0
      %7084 = vmatmul.mubr.bf16.gmra.mrb[0].mxu0 %v6794
      %v7085 = vpop.f32.mrb[0].mxu0
      %v7086 = vadd.f32 0.0, %v7085
      %v7087 = vpop.f32.mrb[0].mxu0
      %v7088 = vpop.f32.mrb[0].mxu0
      %v7089 = vadd.f32 0.0, %v7088
      %v7090 = vpop.f32.mrb[0].mxu0
      %7091 = vmatprep.mubr.bf16.mxu0 0
      %7092 = vmatmul.mubr.bf16.gmra.mrb[0].mxu0 %v6802
      %v7093 = vpop.f32.mrb[0].mxu0
      %v7094 = vadd.f32 0.0, %v7093
      %v7095 = vpop.f32.mrb[0].mxu0
      %v7096 = vpop.f32.mrb[0].mxu0
      %v7097 = vadd.f32 0.0, %v7096
      %v7098 = vpop.f32.mrb[0].mxu0
      %7099 = vdwg.mxu0
      %v7100 = vld [vmem:[#allocation4] sm:$0xff]
      %v7101 = vld [vmem:[#allocation4 + $0x8] sm:$0xff]
      %v7102 = vld [vmem:[#allocation4 + $0x10] sm:$0xff]
      %v7103 = vld [vmem:[#allocation4 + $0x18] sm:$0xff]
      %v7104 = vld [vmem:[#allocation4 + $0x20] sm:$0xff]
      %v7105 = vld [vmem:[#allocation4 + $0x28] sm:$0xff]
      %v7106 = vld [vmem:[#allocation4 + $0x30] sm:$0xff]
      %v7107 = vld [vmem:[#allocation4 + $0x38] sm:$0xff]
      %v7108 = vld [vmem:[#allocation4 + $0x40] sm:$0xff]
      %v7109 = vld [vmem:[#allocation4 + $0x48] sm:$0xff]
      %v7110 = vld [vmem:[#allocation4 + $0x50] sm:$0xff]
      %v7111 = vld [vmem:[#allocation4 + $0x58] sm:$0xff]
      %v7112 = vld [vmem:[#allocation4 + $0x60] sm:$0xff]
      %v7113 = vld [vmem:[#allocation4 + $0x68] sm:$0xff]
      %v7114 = vld [vmem:[#allocation4 + $0x70] sm:$0xff]
      %v7115 = vld [vmem:[#allocation4 + $0x78] sm:$0xff]
      %v7116 = vld [vmem:[#allocation4 + $0x80] sm:$0xff]
      %v7117 = vld [vmem:[#allocation4 + $0x88] sm:$0xff]
      %v7118 = vld [vmem:[#allocation4 + $0x90] sm:$0xff]
      %v7119 = vld [vmem:[#allocation4 + $0x98] sm:$0xff]
      %v7120 = vld [vmem:[#allocation4 + $0xa0] sm:$0xff]
      %v7121 = vld [vmem:[#allocation4 + $0xa8] sm:$0xff]
      %v7122 = vld [vmem:[#allocation4 + $0xb0] sm:$0xff]
      %v7123 = vld [vmem:[#allocation4 + $0xb8] sm:$0xff]
      %v7124 = vld [vmem:[#allocation4 + $0xc0] sm:$0xff]
      %v7125 = vld [vmem:[#allocation4 + $0xc8] sm:$0xff]
      %v7126 = vld [vmem:[#allocation4 + $0xd0] sm:$0xff]
      %v7127 = vld [vmem:[#allocation4 + $0xd8] sm:$0xff]
      %v7128 = vld [vmem:[#allocation4 + $0xe0] sm:$0xff]
      %v7129 = vld [vmem:[#allocation4 + $0xe8] sm:$0xff]
      %v7130 = vld [vmem:[#allocation4 + $0xf0] sm:$0xff]
      %v7131 = vld [vmem:[#allocation4 + $0xf8] sm:$0xff]
      %v7132 = vld [vmem:[#allocation4 + $0x100] sm:$0xff]
      %v7133 = vld [vmem:[#allocation4 + $0x108] sm:$0xff]
      %v7134 = vld [vmem:[#allocation4 + $0x110] sm:$0xff]
      %v7135 = vld [vmem:[#allocation4 + $0x118] sm:$0xff]
      %v7136 = vld [vmem:[#allocation4 + $0x120] sm:$0xff]
      %v7137 = vld [vmem:[#allocation4 + $0x128] sm:$0xff]
      %v7138 = vld [vmem:[#allocation4 + $0x130] sm:$0xff]
      %v7139 = vld [vmem:[#allocation4 + $0x138] sm:$0xff]
      %v7140 = vld [vmem:[#allocation4 + $0x140] sm:$0xff]
      %v7141 = vld [vmem:[#allocation4 + $0x148] sm:$0xff]
      %v7142 = vld [vmem:[#allocation4 + $0x150] sm:$0xff]
      %v7143 = vld [vmem:[#allocation4 + $0x158] sm:$0xff]
      %v7144 = vld [vmem:[#allocation4 + $0x160] sm:$0xff]
      %v7145 = vld [vmem:[#allocation4 + $0x168] sm:$0xff]
      %v7146 = vld [vmem:[#allocation4 + $0x170] sm:$0xff]
      %v7147 = vld [vmem:[#allocation4 + $0x178] sm:$0xff]
      %v7148 = vadd.f32 %v7100, %v6910
      %v7149 = vadd.f32 %v7101, %v6913
      %v7150 = vadd.f32 %v7102, %v6918
      %v7151 = vadd.f32 %v7103, %v6921
      %v7152 = vadd.f32 %v7104, %v6926
      %v7153 = vadd.f32 %v7105, %v6929
      %v7154 = vadd.f32 %v7106, %v6934
      %v7155 = vadd.f32 %v7107, %v6937
      %v7156 = vadd.f32 %v7108, %v6942
      %v7157 = vadd.f32 %v7109, %v6945
      %v7158 = vadd.f32 %v7110, %v6950
      %v7159 = vadd.f32 %v7111, %v6953
      %v7160 = vadd.f32 %v7112, %v6958
      %v7161 = vadd.f32 %v7113, %v6961
      %v7162 = vadd.f32 %v7114, %v6966
      %v7163 = vadd.f32 %v7115, %v6969
      %v7164 = vadd.f32 %v7116, %v6974
      %v7165 = vadd.f32 %v7117, %v6977
      %v7166 = vadd.f32 %v7118, %v6982
      %v7167 = vadd.f32 %v7119, %v6985
      %v7168 = vadd.f32 %v7120, %v6990
      %v7169 = vadd.f32 %v7121, %v6993
      %v7170 = vadd.f32 %v7122, %v6998
      %v7171 = vadd.f32 %v7123, %v7001
      %v7172 = vadd.f32 %v7124, %v7006
      %v7173 = vadd.f32 %v7125, %v7009
      %v7174 = vadd.f32 %v7126, %v7014
      %v7175 = vadd.f32 %v7127, %v7017
      %v7176 = vadd.f32 %v7128, %v7022
      %v7177 = vadd.f32 %v7129, %v7025
      %v7178 = vadd.f32 %v7130, %v7030
      %v7179 = vadd.f32 %v7131, %v7033
      %v7180 = vadd.f32 %v7132, %v7038
      %v7181 = vadd.f32 %v7133, %v7041
      %v7182 = vadd.f32 %v7134, %v7046
      %v7183 = vadd.f32 %v7135, %v7049
      %v7184 = vadd.f32 %v7136, %v7054
      %v7185 = vadd.f32 %v7137, %v7057
      %v7186 = vadd.f32 %v7138, %v7062
      %v7187 = vadd.f32 %v7139, %v7065
      %v7188 = vadd.f32 %v7140, %v7070
      %v7189 = vadd.f32 %v7141, %v7073
      %v7190 = vadd.f32 %v7142, %v7078
      %v7191 = vadd.f32 %v7143, %v7081
      %v7192 = vadd.f32 %v7144, %v7086
      %v7193 = vadd.f32 %v7145, %v7089
      %v7194 = vadd.f32 %v7146, %v7094
      %v7195 = vadd.f32 %v7147, %v7097
      %7196 = vst [vmem:[#allocation4] sm:$0xff] %v7148
      %7197 = vst [vmem:[#allocation4 + $0x8] sm:$0xff] %v7149
      %7198 = vst [vmem:[#allocation4 + $0x10] sm:$0xff] %v7150
      %7199 = vst [vmem:[#allocation4 + $0x18] sm:$0xff] %v7151
      %7200 = vst [vmem:[#allocation4 + $0x20] sm:$0xff] %v7152
      %7201 = vst [vmem:[#allocation4 + $0x28] sm:$0xff] %v7153
      %7202 = vst [vmem:[#allocation4 + $0x30] sm:$0xff] %v7154
      %7203 = vst [vmem:[#allocation4 + $0x38] sm:$0xff] %v7155
      %7204 = vst [vmem:[#allocation4 + $0x40] sm:$0xff] %v7156
      %7205 = vst [vmem:[#allocation4 + $0x48] sm:$0xff] %v7157
      %7206 = vst [vmem:[#allocation4 + $0x50] sm:$0xff] %v7158
      %7207 = vst [vmem:[#allocation4 + $0x58] sm:$0xff] %v7159
      %7208 = vst [vmem:[#allocation4 + $0x60] sm:$0xff] %v7160
      %7209 = vst [vmem:[#allocation4 + $0x68] sm:$0xff] %v7161
      %7210 = vst [vmem:[#allocation4 + $0x70] sm:$0xff] %v7162
      %7211 = vst [vmem:[#allocation4 + $0x78] sm:$0xff] %v7163
      %7212 = vst [vmem:[#allocation4 + $0x80] sm:$0xff] %v7164
      %7213 = vst [vmem:[#allocation4 + $0x88] sm:$0xff] %v7165
      %7214 = vst [vmem:[#allocation4 + $0x90] sm:$0xff] %v7166
      %7215 = vst [vmem:[#allocation4 + $0x98] sm:$0xff] %v7167
      %7216 = vst [vmem:[#allocation4 + $0xa0] sm:$0xff] %v7168
      %7217 = vst [vmem:[#allocation4 + $0xa8] sm:$0xff] %v7169
      %7218 = vst [vmem:[#allocation4 + $0xb0] sm:$0xff] %v7170
      %7219 = vst [vmem:[#allocation4 + $0xb8] sm:$0xff] %v7171
      %7220 = vst [vmem:[#allocation4 + $0xc0] sm:$0xff] %v7172
      %7221 = vst [vmem:[#allocation4 + $0xc8] sm:$0xff] %v7173
      %7222 = vst [vmem:[#allocation4 + $0xd0] sm:$0xff] %v7174
      %7223 = vst [vmem:[#allocation4 + $0xd8] sm:$0xff] %v7175
      %7224 = vst [vmem:[#allocation4 + $0xe0] sm:$0xff] %v7176
      %7225 = vst [vmem:[#allocation4 + $0xe8] sm:$0xff] %v7177
      %7226 = vst [vmem:[#allocation4 + $0xf0] sm:$0xff] %v7178
      %7227 = vst [vmem:[#allocation4 + $0xf8] sm:$0xff] %v7179
      %7228 = vst [vmem:[#allocation4 + $0x100] sm:$0xff] %v7180
      %7229 = vst [vmem:[#allocation4 + $0x108] sm:$0xff] %v7181
      %7230 = vst [vmem:[#allocation4 + $0x110] sm:$0xff] %v7182
      %7231 = vst [vmem:[#allocation4 + $0x118] sm:$0xff] %v7183
      %7232 = vst [vmem:[#allocation4 + $0x120] sm:$0xff] %v7184
      %7233 = vst [vmem:[#allocation4 + $0x128] sm:$0xff] %v7185
      %7234 = vst [vmem:[#allocation4 + $0x130] sm:$0xff] %v7186
      %7235 = vst [vmem:[#allocation4 + $0x138] sm:$0xff] %v7187
      %7236 = vst [vmem:[#allocation4 + $0x140] sm:$0xff] %v7188
      %7237 = vst [vmem:[#allocation4 + $0x148] sm:$0xff] %v7189
      %7238 = vst [vmem:[#allocation4 + $0x150] sm:$0xff] %v7190
      %7239 = vst [vmem:[#allocation4 + $0x158] sm:$0xff] %v7191
      %7240 = vst [vmem:[#allocation4 + $0x160] sm:$0xff] %v7192
      %7241 = vst [vmem:[#allocation4 + $0x168] sm:$0xff] %v7193
      %7242 = vst [vmem:[#allocation4 + $0x170] sm:$0xff] %v7194
      %7243 = vst [vmem:[#allocation4 + $0x178] sm:$0xff] %v7195
      %v7244 = vld [vmem:[#allocation2 + $0x18] sm:$0xe]
      %v7245 = vld [vmem:[#allocation2 + $0x1c] sm:$0xf]
      %v7246 = vld [vmem:[#allocation2 + $0x20] sm:$0xf]
      %v7247 = vld [vmem:[#allocation2 + $0x24] sm:$0xf]
      %v7248 = vld [vmem:[#allocation2 + $0x28] sm:$0xf]
      %v7249 = vld [vmem:[#allocation2 + $0x2c] sm:$0xf]
      %v7250 = vld [vmem:[#allocation2 + $0x30] sm:$0xf]
      %v7251 = vld [vmem:[#allocation2 + $0x34] sm:$0xf]
      %v7252 = vld [vmem:[#allocation2 + $0x38] sm:$0xf]
      %v7253 = vld [vmem:[#allocation2 + $0x3c] sm:$0xf]
      %v7254 = vld [vmem:[#allocation2 + $0x40] sm:$0xf]
      %v7255 = vld [vmem:[#allocation2 + $0x44] sm:$0xf]
      %v7256 = vld [vmem:[#allocation2 + $0x48] sm:$0xf]
      %v7257 = vld [vmem:[#allocation2 + $0x4c] sm:$0xf]
      %v7258 = vld [vmem:[#allocation2 + $0x50] sm:$0xf]
      %v7259 = vld [vmem:[#allocation2 + $0x54] sm:$0xf]
      %v7260 = vld [vmem:[#allocation2 + $0x58] sm:$0xf]
      %v7261 = vld [vmem:[#allocation2 + $0x5c] sm:$0xf]
      %v7262 = vld [vmem:[#allocation2 + $0x60] sm:$0xf]
      %v7263 = vld [vmem:[#allocation2 + $0x64] sm:$0xf]
      %v7264 = vld [vmem:[#allocation2 + $0x68] sm:$0xf]
      %v7265 = vld [vmem:[#allocation2 + $0x6c] sm:$0xf]
      %v7266 = vld [vmem:[#allocation2 + $0x70] sm:$0xf]
      %v7267 = vld [vmem:[#allocation2 + $0x74] sm:$0xf]
      %v7268 = vld [vmem:[#allocation2 + $0x78] sm:$0xf]
      %v7269 = vld [vmem:[#allocation2 + $0x7c] sm:$0xf]
      %v7270 = vld [vmem:[#allocation2 + $0x80] sm:$0xf]
      %v7271 = vld [vmem:[#allocation2 + $0x84] sm:$0xf]
      %v7272 = vld [vmem:[#allocation2 + $0x88] sm:$0xf]
      %v7273 = vld [vmem:[#allocation2 + $0x8c] sm:$0xf]
      %v7274 = vld [vmem:[#allocation2 + $0x90] sm:$0xf]
      %v7275 = vld [vmem:[#allocation2 + $0x94] sm:$0xf]
      %v7276 = vld [vmem:[#allocation2 + $0x98] sm:$0xf]
      %v7277 = vld [vmem:[#allocation2 + $0x9c] sm:$0xf]
      %v7278 = vld [vmem:[#allocation2 + $0xa0] sm:$0xf]
      %v7279 = vld [vmem:[#allocation2 + $0xa4] sm:$0xf]
      %v7280 = vld [vmem:[#allocation2 + $0xa8] sm:$0xf]
      %v7281 = vld [vmem:[#allocation2 + $0xac] sm:$0xf]
      %v7282 = vld [vmem:[#allocation2 + $0xb0] sm:$0xf]
      %v7283 = vld [vmem:[#allocation2 + $0xb4] sm:$0xf]
      %v7284 = vld [vmem:[#allocation2 + $0xb8] sm:$0xf]
      %v7285 = vld [vmem:[#allocation2 + $0xbc] sm:$0xf]
      %v7286 = vld [vmem:[#allocation2 + $0xc0] sm:$0xf]
      %v7287 = vld [vmem:[#allocation2 + $0xc4] sm:$0xf]
      %v7288 = vld [vmem:[#allocation2 + $0xc8] sm:$0xf]
      %v7289 = vld [vmem:[#allocation2 + $0xcc] sm:$0xf]
      %v7290 = vld [vmem:[#allocation2 + $0xd0] sm:$0xf]
      %v7291 = vld [vmem:[#allocation2 + $0xd4] sm:$0xf]
      %v7292 = vld [vmem:[#allocation2 + $0xd8] sm:$0x1]
      %s7293 = scalar_lea.vmem %s4, 512
      %v7294 = vld [vmem:[%s7293] sm:$0xf]
      %v7295 = vld [vmem:[%s7293 + $0x4] sm:$0xf]
      %v7296 = vld [vmem:[%s7293 + $0x8] sm:$0xf]
      %v7297 = vld [vmem:[%s7293 + $0xc] sm:$0xf]
      %v7298 = vld [vmem:[%s7293 + $0x10] sm:$0xf]
      %v7299 = vld [vmem:[%s7293 + $0x14] sm:$0xf]
      %v7300 = vld [vmem:[%s7293 + $0x18] sm:$0xf]
      %v7301 = vld [vmem:[%s7293 + $0x1c] sm:$0xf]
      %v7302 = vld [vmem:[%s7293 + $0x20] sm:$0xf]
      %v7303 = vld [vmem:[%s7293 + $0x24] sm:$0xf]
      %v7304 = vld [vmem:[%s7293 + $0x28] sm:$0xf]
      %v7305 = vld [vmem:[%s7293 + $0x2c] sm:$0xf]
      %v7306 = vld [vmem:[%s7293 + $0x30] sm:$0xf]
      %v7307 = vld [vmem:[%s7293 + $0x34] sm:$0xf]
      %v7308 = vld [vmem:[%s7293 + $0x38] sm:$0xf]
      %v7309 = vld [vmem:[%s7293 + $0x3c] sm:$0xf]
      %v7359 = vunpack.c.l.b16 %v7244
      %v7360 = vunpack.c.l.b16 %v7245
      %v7361 = vunpack.c.l.b16 %v7246
      %v7362 = vunpack.c.l.b16 %v7247
      %v7363 = vunpack.c.l.b16 %v7248
      %v7364 = vunpack.c.l.b16 %v7249
      %v7365 = vunpack.c.l.b16 %v7250
      %v7366 = vunpack.c.l.b16 %v7251
      %v7367 = vunpack.c.l.b16 %v7252
      %v7368 = vunpack.c.l.b16 %v7253
      %v7369 = vunpack.c.l.b16 %v7254
      %v7370 = vunpack.c.l.b16 %v7255
      %v7371 = vunpack.c.l.b16 %v7256
      %v7372 = vunpack.c.l.b16 %v7257
      %v7373 = vunpack.c.l.b16 %v7258
      %v7374 = vunpack.c.l.b16 %v7259
      %v7375 = vunpack.c.l.b16 %v7260
      %v7376 = vunpack.c.l.b16 %v7261
      %v7377 = vunpack.c.l.b16 %v7262
      %v7378 = vunpack.c.l.b16 %v7263
      %v7379 = vunpack.c.l.b16 %v7264
      %v7380 = vunpack.c.l.b16 %v7265
      %v7381 = vunpack.c.l.b16 %v7266
      %v7382 = vunpack.c.l.b16 %v7267
      %v7383 = vunpack.c.l.b16 %v7268
      %v7384 = vunpack.c.l.b16 %v7269
      %v7385 = vunpack.c.l.b16 %v7270
      %v7386 = vunpack.c.l.b16 %v7271
      %v7387 = vunpack.c.l.b16 %v7272
      %v7388 = vunpack.c.l.b16 %v7273
      %v7389 = vunpack.c.l.b16 %v7274
      %v7390 = vunpack.c.l.b16 %v7275
      %v7391 = vunpack.c.l.b16 %v7276
      %v7392 = vunpack.c.l.b16 %v7277
      %v7393 = vunpack.c.l.b16 %v7278
      %v7394 = vunpack.c.l.b16 %v7279
      %v7395 = vunpack.c.l.b16 %v7280
      %v7396 = vunpack.c.l.b16 %v7281
      %v7397 = vunpack.c.l.b16 %v7282
      %v7398 = vunpack.c.l.b16 %v7283
      %v7399 = vunpack.c.l.b16 %v7284
      %v7400 = vunpack.c.l.b16 %v7285
      %v7401 = vunpack.c.l.b16 %v7286
      %v7402 = vunpack.c.l.b16 %v7287
      %v7403 = vunpack.c.l.b16 %v7288
      %v7404 = vunpack.c.l.b16 %v7289
      %v7405 = vunpack.c.l.b16 %v7290
      %v7406 = vunpack.c.l.b16 %v7291
      %v7407 = vunpack.c.l.b16 %v7292
      %v7408 = vpack.c.b16 %v7360, %v7359
      %v7409 = vpack.c.b16 %v7362, %v7361
      %v7410 = vpack.c.b16 %v7364, %v7363
      %v7411 = vpack.c.b16 %v7366, %v7365
      %v7412 = vpack.c.b16 %v7368, %v7367
      %v7413 = vpack.c.b16 %v7370, %v7369
      %v7414 = vpack.c.b16 %v7372, %v7371
      %v7415 = vpack.c.b16 %v7374, %v7373
      %v7416 = vpack.c.b16 %v7376, %v7375
      %v7417 = vpack.c.b16 %v7378, %v7377
      %v7418 = vpack.c.b16 %v7380, %v7379
      %v7419 = vpack.c.b16 %v7382, %v7381
      %v7420 = vpack.c.b16 %v7384, %v7383
      %v7421 = vpack.c.b16 %v7386, %v7385
      %v7422 = vpack.c.b16 %v7388, %v7387
      %v7423 = vpack.c.b16 %v7390, %v7389
      %v7424 = vpack.c.b16 %v7392, %v7391
      %v7425 = vpack.c.b16 %v7394, %v7393
      %v7426 = vpack.c.b16 %v7396, %v7395
      %v7427 = vpack.c.b16 %v7398, %v7397
      %v7428 = vpack.c.b16 %v7400, %v7399
      %v7429 = vpack.c.b16 %v7402, %v7401
      %v7430 = vpack.c.b16 %v7404, %v7403
      %v7431 = vpack.c.b16 %v7406, %v7405
      %v7432 = vpack.c.b16 %v7407, %v7407
      %v7433 = vrot.slane %v7408, 1
      %v7434 = vrot.slane %v7409, 1
      %v7435 = vsel %vm3170, %v7433, %v7434
      %v7436 = vrot.slane %v7410, 1
      %v7437 = vsel %vm3170, %v7434, %v7436
      %v7438 = vrot.slane %v7411, 1
      %v7439 = vsel %vm3170, %v7436, %v7438
      %v7440 = vrot.slane %v7412, 1
      %v7441 = vsel %vm3170, %v7438, %v7440
      %v7442 = vrot.slane %v7413, 1
      %v7443 = vsel %vm3170, %v7440, %v7442
      %v7444 = vrot.slane %v7414, 1
      %v7445 = vsel %vm3170, %v7442, %v7444
      %v7446 = vrot.slane %v7415, 1
      %v7447 = vsel %vm3170, %v7444, %v7446
      %v7448 = vrot.slane %v7416, 1
      %v7449 = vsel %vm3170, %v7446, %v7448
      %v7450 = vrot.slane %v7417, 1
      %v7451 = vsel %vm3170, %v7448, %v7450
      %v7452 = vrot.slane %v7418, 1
      %v7453 = vsel %vm3170, %v7450, %v7452
      %v7454 = vrot.slane %v7419, 1
      %v7455 = vsel %vm3170, %v7452, %v7454
      %v7456 = vrot.slane %v7420, 1
      %v7457 = vsel %vm3170, %v7454, %v7456
      %v7458 = vrot.slane %v7421, 1
      %v7459 = vsel %vm3170, %v7456, %v7458
      %v7460 = vrot.slane %v7422, 1
      %v7461 = vsel %vm3170, %v7458, %v7460
      %v7462 = vrot.slane %v7423, 1
      %v7463 = vsel %vm3170, %v7460, %v7462
      %v7464 = vrot.slane %v7424, 1
      %v7465 = vsel %vm3170, %v7462, %v7464
      %v7466 = vrot.slane %v7425, 1
      %v7467 = vsel %vm3170, %v7464, %v7466
      %v7468 = vrot.slane %v7426, 1
      %v7469 = vsel %vm3170, %v7466, %v7468
      %v7470 = vrot.slane %v7427, 1
      %v7471 = vsel %vm3170, %v7468, %v7470
      %v7472 = vrot.slane %v7428, 1
      %v7473 = vsel %vm3170, %v7470, %v7472
      %v7474 = vrot.slane %v7429, 1
      %v7475 = vsel %vm3170, %v7472, %v7474
      %v7476 = vrot.slane %v7430, 1
      %v7477 = vsel %vm3170, %v7474, %v7476
      %v7478 = vrot.slane %v7431, 1
      %v7479 = vsel %vm3170, %v7476, %v7478
      %v7480 = vrot.slane %v7432, 1
      %v7481 = vsel %vm3170, %v7478, %v7480
      %v7522 = vunpack.c.l.b16 %v7294
      %v7523 = vunpack.c.l.b16 %v7295
      %v7524 = vunpack.c.l.b16 %v7296
      %v7525 = vunpack.c.l.b16 %v7297
      %v7526 = vunpack.c.l.b16 %v7298
      %v7527 = vunpack.c.l.b16 %v7299
      %v7528 = vunpack.c.l.b16 %v7300
      %v7529 = vunpack.c.l.b16 %v7301
      %v7530 = vunpack.c.l.b16 %v7302
      %v7531 = vunpack.c.l.b16 %v7303
      %v7532 = vunpack.c.l.b16 %v7304
      %v7533 = vunpack.c.l.b16 %v7305
      %v7534 = vunpack.c.l.b16 %v7306
      %v7535 = vunpack.c.l.b16 %v7307
      %v7536 = vunpack.c.l.b16 %v7308
      %v7537 = vunpack.c.l.b16 %v7309
      %v7538 = vpack.c.b16 %v7523, %v7522
      %v7539 = vpack.c.b16 %v7525, %v7524
      %v7540 = vpack.c.b16 %v7527, %v7526
      %v7541 = vpack.c.b16 %v7529, %v7528
      %v7542 = vpack.c.b16 %v7531, %v7530
      %v7543 = vpack.c.b16 %v7533, %v7532
      %v7544 = vpack.c.b16 %v7535, %v7534
      %v7545 = vpack.c.b16 %v7537, %v7536
      %7554 = vmatprep.subr.bf16.mxu0 0
      %7555 = vmatpush1.bf16.msra.mxu0 %v7538
      %7556 = vmatprep.subr.bf16.mxu0 0
      %7557 = vmatpush1.bf16.msra.mxu0 %v7539
      %7558 = vmatprep.subr.bf16.mxu0 0
      %7559 = vmatpush1.bf16.msra.mxu0 %v7540
      %7560 = vmatprep.subr.bf16.mxu0 0
      %7561 = vmatpush1.bf16.msra.mxu0 %v7541
      %7562 = vmatprep.subr.bf16.mxu0 0
      %7563 = vmatpush1.bf16.msra.mxu0 %v7542
      %7564 = vmatprep.subr.bf16.mxu0 0
      %7565 = vmatpush1.bf16.msra.mxu0 %v7543
      %7566 = vmatprep.subr.bf16.mxu0 0
      %7567 = vmatpush1.bf16.msra.mxu0 %v7544
      %7568 = vmatprep.subr.bf16.mxu0 0
      %7569 = vmatpush1.bf16.msra.mxu0 %v7545
      %7570 = vmatprep.subr.bf16.mxu0 0
      %7571 = vmatpush1.bf16.msra.mxu0 0
      %7572 = vmatprep.subr.bf16.mxu0 0
      %7573 = vmatpush1.bf16.msra.mxu0 0
      %7574 = vmatprep.subr.bf16.mxu0 0
      %7575 = vmatpush1.bf16.msra.mxu0 0
      %7576 = vmatprep.subr.bf16.mxu0 0
      %7577 = vmatpush1.bf16.msra.mxu0 0
      %7578 = vmatprep.subr.bf16.mxu0 0
      %7579 = vmatpush1.bf16.msra.mxu0 0
      %7580 = vmatprep.subr.bf16.mxu0 0
      %7581 = vmatpush1.bf16.msra.mxu0 0
      %7582 = vmatprep.subr.bf16.mxu0 0
      %7583 = vmatpush1.bf16.msra.mxu0 0
      %7584 = vmatprep.subr.bf16.mxu0 0
      %7585 = vmatpush1.bf16.msra.mxu0 0
      %7586 = vmatprep.mubr.bf16.mxu0 0
      %7587 = vmatmul.mubr.bf16.gmra.mrb[0].mxu0 %v7435
      %v7588 = vpop.f32.mrb[0].mxu0
      %v7589 = vadd.f32 0.0, %v7588
      %v7590 = vpop.f32.mrb[0].mxu0
      %v7591 = vpop.f32.mrb[0].mxu0
      %v7592 = vadd.f32 0.0, %v7591
      %v7593 = vpop.f32.mrb[0].mxu0
      %7594 = vmatprep.mubr.bf16.mxu0 0
      %7595 = vmatmul.mubr.bf16.gmra.mrb[0].mxu0 %v7437
      %v7596 = vpop.f32.mrb[0].mxu0
      %v7597 = vadd.f32 0.0, %v7596
      %v7598 = vpop.f32.mrb[0].mxu0
      %v7599 = vpop.f32.mrb[0].mxu0
      %v7600 = vadd.f32 0.0, %v7599
      %v7601 = vpop.f32.mrb[0].mxu0
      %7602 = vmatprep.mubr.bf16.mxu0 0
      %7603 = vmatmul.mubr.bf16.gmra.mrb[0].mxu0 %v7439
      %v7604 = vpop.f32.mrb[0].mxu0
      %v7605 = vadd.f32 0.0, %v7604
      %v7606 = vpop.f32.mrb[0].mxu0
      %v7607 = vpop.f32.mrb[0].mxu0
      %v7608 = vadd.f32 0.0, %v7607
      %v7609 = vpop.f32.mrb[0].mxu0
      %7610 = vmatprep.mubr.bf16.mxu0 0
      %7611 = vmatmul.mubr.bf16.gmra.mrb[0].mxu0 %v7441
      %v7612 = vpop.f32.mrb[0].mxu0
      %v7613 = vadd.f32 0.0, %v7612
      %v7614 = vpop.f32.mrb[0].mxu0
      %v7615 = vpop.f32.mrb[0].mxu0
      %v7616 = vadd.f32 0.0, %v7615
      %v7617 = vpop.f32.mrb[0].mxu0
      %7618 = vmatprep.mubr.bf16.mxu0 0
      %7619 = vmatmul.mubr.bf16.gmra.mrb[0].mxu0 %v7443
      %v7620 = vpop.f32.mrb[0].mxu0
      %v7621 = vadd.f32 0.0, %v7620
      %v7622 = vpop.f32.mrb[0].mxu0
      %v7623 = vpop.f32.mrb[0].mxu0
      %v7624 = vadd.f32 0.0, %v7623
      %v7625 = vpop.f32.mrb[0].mxu0
      %7626 = vmatprep.mubr.bf16.mxu0 0
      %7627 = vmatmul.mubr.bf16.gmra.mrb[0].mxu0 %v7445
      %v7628 = vpop.f32.mrb[0].mxu0
      %v7629 = vadd.f32 0.0, %v7628
      %v7630 = vpop.f32.mrb[0].mxu0
      %v7631 = vpop.f32.mrb[0].mxu0
      %v7632 = vadd.f32 0.0, %v7631
      %v7633 = vpop.f32.mrb[0].mxu0
      %7634 = vmatprep.mubr.bf16.mxu0 0
      %7635 = vmatmul.mubr.bf16.gmra.mrb[0].mxu0 %v7447
      %v7636 = vpop.f32.mrb[0].mxu0
      %v7637 = vadd.f32 0.0, %v7636
      %v7638 = vpop.f32.mrb[0].mxu0
      %v7639 = vpop.f32.mrb[0].mxu0
      %v7640 = vadd.f32 0.0, %v7639
      %v7641 = vpop.f32.mrb[0].mxu0
      %7642 = vmatprep.mubr.bf16.mxu0 0
      %7643 = vmatmul.mubr.bf16.gmra.mrb[0].mxu0 %v7449
      %v7644 = vpop.f32.mrb[0].mxu0
      %v7645 = vadd.f32 0.0, %v7644
      %v7646 = vpop.f32.mrb[0].mxu0
      %v7647 = vpop.f32.mrb[0].mxu0
      %v7648 = vadd.f32 0.0, %v7647
      %v7649 = vpop.f32.mrb[0].mxu0
      %7650 = vmatprep.mubr.bf16.mxu0 0
      %7651 = vmatmul.mubr.bf16.gmra.mrb[0].mxu0 %v7451
      %v7652 = vpop.f32.mrb[0].mxu0
      %v7653 = vadd.f32 0.0, %v7652
      %v7654 = vpop.f32.mrb[0].mxu0
      %v7655 = vpop.f32.mrb[0].mxu0
      %v7656 = vadd.f32 0.0, %v7655
      %v7657 = vpop.f32.mrb[0].mxu0
      %7658 = vmatprep.mubr.bf16.mxu0 0
      %7659 = vmatmul.mubr.bf16.gmra.mrb[0].mxu0 %v7453
      %v7660 = vpop.f32.mrb[0].mxu0
      %v7661 = vadd.f32 0.0, %v7660
      %v7662 = vpop.f32.mrb[0].mxu0
      %v7663 = vpop.f32.mrb[0].mxu0
      %v7664 = vadd.f32 0.0, %v7663
      %v7665 = vpop.f32.mrb[0].mxu0
      %7666 = vmatprep.mubr.bf16.mxu0 0
      %7667 = vmatmul.mubr.bf16.gmra.mrb[0].mxu0 %v7455
      %v7668 = vpop.f32.mrb[0].mxu0
      %v7669 = vadd.f32 0.0, %v7668
      %v7670 = vpop.f32.mrb[0].mxu0
      %v7671 = vpop.f32.mrb[0].mxu0
      %v7672 = vadd.f32 0.0, %v7671
      %v7673 = vpop.f32.mrb[0].mxu0
      %7674 = vmatprep.mubr.bf16.mxu0 0
      %7675 = vmatmul.mubr.bf16.gmra.mrb[0].mxu0 %v7457
      %v7676 = vpop.f32.mrb[0].mxu0
      %v7677 = vadd.f32 0.0, %v7676
      %v7678 = vpop.f32.mrb[0].mxu0
      %v7679 = vpop.f32.mrb[0].mxu0
      %v7680 = vadd.f32 0.0, %v7679
      %v7681 = vpop.f32.mrb[0].mxu0
      %7682 = vmatprep.mubr.bf16.mxu0 0
      %7683 = vmatmul.mubr.bf16.gmra.mrb[0].mxu0 %v7459
      %v7684 = vpop.f32.mrb[0].mxu0
      %v7685 = vadd.f32 0.0, %v7684
      %v7686 = vpop.f32.mrb[0].mxu0
      %v7687 = vpop.f32.mrb[0].mxu0
      %v7688 = vadd.f32 0.0, %v7687
      %v7689 = vpop.f32.mrb[0].mxu0
      %7690 = vmatprep.mubr.bf16.mxu0 0
      %7691 = vmatmul.mubr.bf16.gmra.mrb[0].mxu0 %v7461
      %v7692 = vpop.f32.mrb[0].mxu0
      %v7693 = vadd.f32 0.0, %v7692
      %v7694 = vpop.f32.mrb[0].mxu0
      %v7695 = vpop.f32.mrb[0].mxu0
      %v7696 = vadd.f32 0.0, %v7695
      %v7697 = vpop.f32.mrb[0].mxu0
      %7698 = vmatprep.mubr.bf16.mxu0 0
      %7699 = vmatmul.mubr.bf16.gmra.mrb[0].mxu0 %v7463
      %v7700 = vpop.f32.mrb[0].mxu0
      %v7701 = vadd.f32 0.0, %v7700
      %v7702 = vpop.f32.mrb[0].mxu0
      %v7703 = vpop.f32.mrb[0].mxu0
      %v7704 = vadd.f32 0.0, %v7703
      %v7705 = vpop.f32.mrb[0].mxu0
      %7706 = vmatprep.mubr.bf16.mxu0 0
      %7707 = vmatmul.mubr.bf16.gmra.mrb[0].mxu0 %v7465
      %v7708 = vpop.f32.mrb[0].mxu0
      %v7709 = vadd.f32 0.0, %v7708
      %v7710 = vpop.f32.mrb[0].mxu0
      %v7711 = vpop.f32.mrb[0].mxu0
      %v7712 = vadd.f32 0.0, %v7711
      %v7713 = vpop.f32.mrb[0].mxu0
      %7714 = vmatprep.mubr.bf16.mxu0 0
      %7715 = vmatmul.mubr.bf16.gmra.mrb[0].mxu0 %v7467
      %v7716 = vpop.f32.mrb[0].mxu0
      %v7717 = vadd.f32 0.0, %v7716
      %v7718 = vpop.f32.mrb[0].mxu0
      %v7719 = vpop.f32.mrb[0].mxu0
      %v7720 = vadd.f32 0.0, %v7719
      %v7721 = vpop.f32.mrb[0].mxu0
      %7722 = vmatprep.mubr.bf16.mxu0 0
      %7723 = vmatmul.mubr.bf16.gmra.mrb[0].mxu0 %v7469
      %v7724 = vpop.f32.mrb[0].mxu0
      %v7725 = vadd.f32 0.0, %v7724
      %v7726 = vpop.f32.mrb[0].mxu0
      %v7727 = vpop.f32.mrb[0].mxu0
      %v7728 = vadd.f32 0.0, %v7727
      %v7729 = vpop.f32.mrb[0].mxu0
      %7730 = vmatprep.mubr.bf16.mxu0 0
      %7731 = vmatmul.mubr.bf16.gmra.mrb[0].mxu0 %v7471
      %v7732 = vpop.f32.mrb[0].mxu0
      %v7733 = vadd.f32 0.0, %v7732
      %v7734 = vpop.f32.mrb[0].mxu0
      %v7735 = vpop.f32.mrb[0].mxu0
      %v7736 = vadd.f32 0.0, %v7735
      %v7737 = vpop.f32.mrb[0].mxu0
      %7738 = vmatprep.mubr.bf16.mxu0 0
      %7739 = vmatmul.mubr.bf16.gmra.mrb[0].mxu0 %v7473
      %v7740 = vpop.f32.mrb[0].mxu0
      %v7741 = vadd.f32 0.0, %v7740
      %v7742 = vpop.f32.mrb[0].mxu0
      %v7743 = vpop.f32.mrb[0].mxu0
      %v7744 = vadd.f32 0.0, %v7743
      %v7745 = vpop.f32.mrb[0].mxu0
      %7746 = vmatprep.mubr.bf16.mxu0 0
      %7747 = vmatmul.mubr.bf16.gmra.mrb[0].mxu0 %v7475
      %v7748 = vpop.f32.mrb[0].mxu0
      %v7749 = vadd.f32 0.0, %v7748
      %v7750 = vpop.f32.mrb[0].mxu0
      %v7751 = vpop.f32.mrb[0].mxu0
      %v7752 = vadd.f32 0.0, %v7751
      %v7753 = vpop.f32.mrb[0].mxu0
      %7754 = vmatprep.mubr.bf16.mxu0 0
      %7755 = vmatmul.mubr.bf16.gmra.mrb[0].mxu0 %v7477
      %v7756 = vpop.f32.mrb[0].mxu0
      %v7757 = vadd.f32 0.0, %v7756
      %v7758 = vpop.f32.mrb[0].mxu0
      %v7759 = vpop.f32.mrb[0].mxu0
      %v7760 = vadd.f32 0.0, %v7759
      %v7761 = vpop.f32.mrb[0].mxu0
      %7762 = vmatprep.mubr.bf16.mxu0 0
      %7763 = vmatmul.mubr.bf16.gmra.mrb[0].mxu0 %v7479
      %v7764 = vpop.f32.mrb[0].mxu0
      %v7765 = vadd.f32 0.0, %v7764
      %v7766 = vpop.f32.mrb[0].mxu0
      %v7767 = vpop.f32.mrb[0].mxu0
      %v7768 = vadd.f32 0.0, %v7767
      %v7769 = vpop.f32.mrb[0].mxu0
      %7770 = vmatprep.mubr.bf16.mxu0 0
      %7771 = vmatmul.mubr.bf16.gmra.mrb[0].mxu0 %v7481
      %v7772 = vpop.f32.mrb[0].mxu0
      %v7773 = vadd.f32 0.0, %v7772
      %v7774 = vpop.f32.mrb[0].mxu0
      %v7775 = vpop.f32.mrb[0].mxu0
      %v7776 = vadd.f32 0.0, %v7775
      %v7777 = vpop.f32.mrb[0].mxu0
      %7778 = vdwg.mxu0
      %v7779 = vld [vmem:[#allocation4] sm:$0xff]
      %v7780 = vld [vmem:[#allocation4 + $0x8] sm:$0xff]
      %v7781 = vld [vmem:[#allocation4 + $0x10] sm:$0xff]
      %v7782 = vld [vmem:[#allocation4 + $0x18] sm:$0xff]
      %v7783 = vld [vmem:[#allocation4 + $0x20] sm:$0xff]
      %v7784 = vld [vmem:[#allocation4 + $0x28] sm:$0xff]
      %v7785 = vld [vmem:[#allocation4 + $0x30] sm:$0xff]
      %v7786 = vld [vmem:[#allocation4 + $0x38] sm:$0xff]
      %v7787 = vld [vmem:[#allocation4 + $0x40] sm:$0xff]
      %v7788 = vld [vmem:[#allocation4 + $0x48] sm:$0xff]
      %v7789 = vld [vmem:[#allocation4 + $0x50] sm:$0xff]
      %v7790 = vld [vmem:[#allocation4 + $0x58] sm:$0xff]
      %v7791 = vld [vmem:[#allocation4 + $0x60] sm:$0xff]
      %v7792 = vld [vmem:[#allocation4 + $0x68] sm:$0xff]
      %v7793 = vld [vmem:[#allocation4 + $0x70] sm:$0xff]
      %v7794 = vld [vmem:[#allocation4 + $0x78] sm:$0xff]
      %v7795 = vld [vmem:[#allocation4 + $0x80] sm:$0xff]
      %v7796 = vld [vmem:[#allocation4 + $0x88] sm:$0xff]
      %v7797 = vld [vmem:[#allocation4 + $0x90] sm:$0xff]
      %v7798 = vld [vmem:[#allocation4 + $0x98] sm:$0xff]
      %v7799 = vld [vmem:[#allocation4 + $0xa0] sm:$0xff]
      %v7800 = vld [vmem:[#allocation4 + $0xa8] sm:$0xff]
      %v7801 = vld [vmem:[#allocation4 + $0xb0] sm:$0xff]
      %v7802 = vld [vmem:[#allocation4 + $0xb8] sm:$0xff]
      %v7803 = vld [vmem:[#allocation4 + $0xc0] sm:$0xff]
      %v7804 = vld [vmem:[#allocation4 + $0xc8] sm:$0xff]
      %v7805 = vld [vmem:[#allocation4 + $0xd0] sm:$0xff]
      %v7806 = vld [vmem:[#allocation4 + $0xd8] sm:$0xff]
      %v7807 = vld [vmem:[#allocation4 + $0xe0] sm:$0xff]
      %v7808 = vld [vmem:[#allocation4 + $0xe8] sm:$0xff]
      %v7809 = vld [vmem:[#allocation4 + $0xf0] sm:$0xff]
      %v7810 = vld [vmem:[#allocation4 + $0xf8] sm:$0xff]
      %v7811 = vld [vmem:[#allocation4 + $0x100] sm:$0xff]
      %v7812 = vld [vmem:[#allocation4 + $0x108] sm:$0xff]
      %v7813 = vld [vmem:[#allocation4 + $0x110] sm:$0xff]
      %v7814 = vld [vmem:[#allocation4 + $0x118] sm:$0xff]
      %v7815 = vld [vmem:[#allocation4 + $0x120] sm:$0xff]
      %v7816 = vld [vmem:[#allocation4 + $0x128] sm:$0xff]
      %v7817 = vld [vmem:[#allocation4 + $0x130] sm:$0xff]
      %v7818 = vld [vmem:[#allocation4 + $0x138] sm:$0xff]
      %v7819 = vld [vmem:[#allocation4 + $0x140] sm:$0xff]
      %v7820 = vld [vmem:[#allocation4 + $0x148] sm:$0xff]
      %v7821 = vld [vmem:[#allocation4 + $0x150] sm:$0xff]
      %v7822 = vld [vmem:[#allocation4 + $0x158] sm:$0xff]
      %v7823 = vld [vmem:[#allocation4 + $0x160] sm:$0xff]
      %v7824 = vld [vmem:[#allocation4 + $0x168] sm:$0xff]
      %v7825 = vld [vmem:[#allocation4 + $0x170] sm:$0xff]
      %v7826 = vld [vmem:[#allocation4 + $0x178] sm:$0xff]
      %v7827 = vadd.f32 %v7779, %v7589
      %v7828 = vadd.f32 %v7780, %v7592
      %v7829 = vadd.f32 %v7781, %v7597
      %v7830 = vadd.f32 %v7782, %v7600
      %v7831 = vadd.f32 %v7783, %v7605
      %v7832 = vadd.f32 %v7784, %v7608
      %v7833 = vadd.f32 %v7785, %v7613
      %v7834 = vadd.f32 %v7786, %v7616
      %v7835 = vadd.f32 %v7787, %v7621
      %v7836 = vadd.f32 %v7788, %v7624
      %v7837 = vadd.f32 %v7789, %v7629
      %v7838 = vadd.f32 %v7790, %v7632
      %v7839 = vadd.f32 %v7791, %v7637
      %v7840 = vadd.f32 %v7792, %v7640
      %v7841 = vadd.f32 %v7793, %v7645
      %v7842 = vadd.f32 %v7794, %v7648
      %v7843 = vadd.f32 %v7795, %v7653
      %v7844 = vadd.f32 %v7796, %v7656
      %v7845 = vadd.f32 %v7797, %v7661
      %v7846 = vadd.f32 %v7798, %v7664
      %v7847 = vadd.f32 %v7799, %v7669
      %v7848 = vadd.f32 %v7800, %v7672
      %v7849 = vadd.f32 %v7801, %v7677
      %v7850 = vadd.f32 %v7802, %v7680
      %v7851 = vadd.f32 %v7803, %v7685
      %v7852 = vadd.f32 %v7804, %v7688
      %v7853 = vadd.f32 %v7805, %v7693
      %v7854 = vadd.f32 %v7806, %v7696
      %v7855 = vadd.f32 %v7807, %v7701
      %v7856 = vadd.f32 %v7808, %v7704
      %v7857 = vadd.f32 %v7809, %v7709
      %v7858 = vadd.f32 %v7810, %v7712
      %v7859 = vadd.f32 %v7811, %v7717
      %v7860 = vadd.f32 %v7812, %v7720
      %v7861 = vadd.f32 %v7813, %v7725
      %v7862 = vadd.f32 %v7814, %v7728
      %v7863 = vadd.f32 %v7815, %v7733
      %v7864 = vadd.f32 %v7816, %v7736
      %v7865 = vadd.f32 %v7817, %v7741
      %v7866 = vadd.f32 %v7818, %v7744
      %v7867 = vadd.f32 %v7819, %v7749
      %v7868 = vadd.f32 %v7820, %v7752
      %v7869 = vadd.f32 %v7821, %v7757
      %v7870 = vadd.f32 %v7822, %v7760
      %v7871 = vadd.f32 %v7823, %v7765
      %v7872 = vadd.f32 %v7824, %v7768
      %v7873 = vadd.f32 %v7825, %v7773
      %v7874 = vadd.f32 %v7826, %v7776
      %7875 = vst [vmem:[#allocation4] sm:$0xff] %v7827
      %7876 = vst [vmem:[#allocation4 + $0x8] sm:$0xff] %v7828
      %7877 = vst [vmem:[#allocation4 + $0x10] sm:$0xff] %v7829
      %7878 = vst [vmem:[#allocation4 + $0x18] sm:$0xff] %v7830
      %7879 = vst [vmem:[#allocation4 + $0x20] sm:$0xff] %v7831
      %7880 = vst [vmem:[#allocation4 + $0x28] sm:$0xff] %v7832
      %7881 = vst [vmem:[#allocation4 + $0x30] sm:$0xff] %v7833
      %7882 = vst [vmem:[#allocation4 + $0x38] sm:$0xff] %v7834
      %7883 = vst [vmem:[#allocation4 + $0x40] sm:$0xff] %v7835
      %7884 = vst [vmem:[#allocation4 + $0x48] sm:$0xff] %v7836
      %7885 = vst [vmem:[#allocation4 + $0x50] sm:$0xff] %v7837
      %7886 = vst [vmem:[#allocation4 + $0x58] sm:$0xff] %v7838
      %7887 = vst [vmem:[#allocation4 + $0x60] sm:$0xff] %v7839
      %7888 = vst [vmem:[#allocation4 + $0x68] sm:$0xff] %v7840
      %7889 = vst [vmem:[#allocation4 + $0x70] sm:$0xff] %v7841
      %7890 = vst [vmem:[#allocation4 + $0x78] sm:$0xff] %v7842
      %7891 = vst [vmem:[#allocation4 + $0x80] sm:$0xff] %v7843
      %7892 = vst [vmem:[#allocation4 + $0x88] sm:$0xff] %v7844
      %7893 = vst [vmem:[#allocation4 + $0x90] sm:$0xff] %v7845
      %7894 = vst [vmem:[#allocation4 + $0x98] sm:$0xff] %v7846
      %7895 = vst [vmem:[#allocation4 + $0xa0] sm:$0xff] %v7847
      %7896 = vst [vmem:[#allocation4 + $0xa8] sm:$0xff] %v7848
      %7897 = vst [vmem:[#allocation4 + $0xb0] sm:$0xff] %v7849
      %7898 = vst [vmem:[#allocation4 + $0xb8] sm:$0xff] %v7850
      %7899 = vst [vmem:[#allocation4 + $0xc0] sm:$0xff] %v7851
      %7900 = vst [vmem:[#allocation4 + $0xc8] sm:$0xff] %v7852
      %7901 = vst [vmem:[#allocation4 + $0xd0] sm:$0xff] %v7853
      %7902 = vst [vmem:[#allocation4 + $0xd8] sm:$0xff] %v7854
      %7903 = vst [vmem:[#allocation4 + $0xe0] sm:$0xff] %v7855
      %7904 = vst [vmem:[#allocation4 + $0xe8] sm:$0xff] %v7856
      %7905 = vst [vmem:[#allocation4 + $0xf0] sm:$0xff] %v7857
      %7906 = vst [vmem:[#allocation4 + $0xf8] sm:$0xff] %v7858
      %7907 = vst [vmem:[#allocation4 + $0x100] sm:$0xff] %v7859
      %7908 = vst [vmem:[#allocation4 + $0x108] sm:$0xff] %v7860
      %7909 = vst [vmem:[#allocation4 + $0x110] sm:$0xff] %v7861
      %7910 = vst [vmem:[#allocation4 + $0x118] sm:$0xff] %v7862
      %7911 = vst [vmem:[#allocation4 + $0x120] sm:$0xff] %v7863
      %7912 = vst [vmem:[#allocation4 + $0x128] sm:$0xff] %v7864
      %7913 = vst [vmem:[#allocation4 + $0x130] sm:$0xff] %v7865
      %7914 = vst [vmem:[#allocation4 + $0x138] sm:$0xff] %v7866
      %7915 = vst [vmem:[#allocation4 + $0x140] sm:$0xff] %v7867
      %7916 = vst [vmem:[#allocation4 + $0x148] sm:$0xff] %v7868
      %7917 = vst [vmem:[#allocation4 + $0x150] sm:$0xff] %v7869
      %7918 = vst [vmem:[#allocation4 + $0x158] sm:$0xff] %v7870
      %7919 = vst [vmem:[#allocation4 + $0x160] sm:$0xff] %v7871
      %7920 = vst [vmem:[#allocation4 + $0x168] sm:$0xff] %v7872
      %7921 = vst [vmem:[#allocation4 + $0x170] sm:$0xff] %v7873
      %7922 = vst [vmem:[#allocation4 + $0x178] sm:$0xff] %v7874
      %v7923 = vld [vmem:[#allocation4] sm:$0xff]
      %v7924 = vld [vmem:[#allocation4 + $0x8] sm:$0xff]
      %v7925 = vld [vmem:[#allocation4 + $0x10] sm:$0xff]
      %v7926 = vld [vmem:[#allocation4 + $0x18] sm:$0xff]
      %v7927 = vld [vmem:[#allocation4 + $0x20] sm:$0xff]
      %v7928 = vld [vmem:[#allocation4 + $0x28] sm:$0xff]
      %v7929 = vld [vmem:[#allocation4 + $0x30] sm:$0xff]
      %v7930 = vld [vmem:[#allocation4 + $0x38] sm:$0xff]
      %v7931 = vld [vmem:[#allocation4 + $0x40] sm:$0xff]
      %v7932 = vld [vmem:[#allocation4 + $0x48] sm:$0xff]
      %v7933 = vld [vmem:[#allocation4 + $0x50] sm:$0xff]
      %v7934 = vld [vmem:[#allocation4 + $0x58] sm:$0xff]
      %v7935 = vld [vmem:[#allocation4 + $0x60] sm:$0xff]
      %v7936 = vld [vmem:[#allocation4 + $0x68] sm:$0xff]
      %v7937 = vld [vmem:[#allocation4 + $0x70] sm:$0xff]
      %v7938 = vld [vmem:[#allocation4 + $0x78] sm:$0xff]
      %v7939 = vld [vmem:[#allocation4 + $0x80] sm:$0xff]
      %v7940 = vld [vmem:[#allocation4 + $0x88] sm:$0xff]
      %v7941 = vld [vmem:[#allocation4 + $0x90] sm:$0xff]
      %v7942 = vld [vmem:[#allocation4 + $0x98] sm:$0xff]
      %v7943 = vld [vmem:[#allocation4 + $0xa0] sm:$0xff]
      %v7944 = vld [vmem:[#allocation4 + $0xa8] sm:$0xff]
      %v7945 = vld [vmem:[#allocation4 + $0xb0] sm:$0xff]
      %v7946 = vld [vmem:[#allocation4 + $0xb8] sm:$0xff]
      %v7947 = vld [vmem:[#allocation4 + $0xc0] sm:$0xff]
      %v7948 = vld [vmem:[#allocation4 + $0xc8] sm:$0xff]
      %v7949 = vld [vmem:[#allocation4 + $0xd0] sm:$0xff]
      %v7950 = vld [vmem:[#allocation4 + $0xd8] sm:$0xff]
      %v7951 = vld [vmem:[#allocation4 + $0xe0] sm:$0xff]
      %v7952 = vld [vmem:[#allocation4 + $0xe8] sm:$0xff]
      %v7953 = vld [vmem:[#allocation4 + $0xf0] sm:$0xff]
      %v7954 = vld [vmem:[#allocation4 + $0xf8] sm:$0xff]
      %v7955 = vld [vmem:[#allocation4 + $0x100] sm:$0xff]
      %v7956 = vld [vmem:[#allocation4 + $0x108] sm:$0xff]
      %v7957 = vld [vmem:[#allocation4 + $0x110] sm:$0xff]
      %v7958 = vld [vmem:[#allocation4 + $0x118] sm:$0xff]
      %v7959 = vld [vmem:[#allocation4 + $0x120] sm:$0xff]
      %v7960 = vld [vmem:[#allocation4 + $0x128] sm:$0xff]
      %v7961 = vld [vmem:[#allocation4 + $0x130] sm:$0xff]
      %v7962 = vld [vmem:[#allocation4 + $0x138] sm:$0xff]
      %v7963 = vld [vmem:[#allocation4 + $0x140] sm:$0xff]
      %v7964 = vld [vmem:[#allocation4 + $0x148] sm:$0xff]
      %v7965 = vld [vmem:[#allocation4 + $0x150] sm:$0xff]
      %v7966 = vld [vmem:[#allocation4 + $0x158] sm:$0xff]
      %v7967 = vld [vmem:[#allocation4 + $0x160] sm:$0xff]
      %v7968 = vld [vmem:[#allocation4 + $0x168] sm:$0xff]
      %v7969 = vld [vmem:[#allocation4 + $0x170] sm:$0xff]
      %v7970 = vld [vmem:[#allocation4 + $0x178] sm:$0xff]
      %v7971 = vld [vmem:[%s5] sm:$0x1]
      %v7973 = vlaneseq
      %v7974 = vshrl.u32 %v7973, 7
      %v7975 = vsub.s32 0, %v7974
      %v7976 = vrot.slane %v7971, %v7975
      %v7978 = vadd.f32 %v7923, %v7976
      %v7979 = vadd.f32 %v7924, %v7976
      %v7980 = vadd.f32 %v7925, %v7976
      %v7981 = vadd.f32 %v7926, %v7976
      %v7982 = vadd.f32 %v7927, %v7976
      %v7983 = vadd.f32 %v7928, %v7976
      %v7984 = vadd.f32 %v7929, %v7976
      %v7985 = vadd.f32 %v7930, %v7976
      %v7986 = vadd.f32 %v7931, %v7976
      %v7987 = vadd.f32 %v7932, %v7976
      %v7988 = vadd.f32 %v7933, %v7976
      %v7989 = vadd.f32 %v7934, %v7976
      %v7990 = vadd.f32 %v7935, %v7976
      %v7991 = vadd.f32 %v7936, %v7976
      %v7992 = vadd.f32 %v7937, %v7976
      %v7993 = vadd.f32 %v7938, %v7976
      %v7994 = vadd.f32 %v7939, %v7976
      %v7995 = vadd.f32 %v7940, %v7976
      %v7996 = vadd.f32 %v7941, %v7976
      %v7997 = vadd.f32 %v7942, %v7976
      %v7998 = vadd.f32 %v7943, %v7976
      %v7999 = vadd.f32 %v7944, %v7976
      %v8000 = vadd.f32 %v7945, %v7976
      %v8001 = vadd.f32 %v7946, %v7976
      %v8002 = vadd.f32 %v7947, %v7976
      %v8003 = vadd.f32 %v7948, %v7976
      %v8004 = vadd.f32 %v7949, %v7976
      %v8005 = vadd.f32 %v7950, %v7976
      %v8006 = vadd.f32 %v7951, %v7976
      %v8007 = vadd.f32 %v7952, %v7976
      %v8008 = vadd.f32 %v7953, %v7976
      %v8009 = vadd.f32 %v7954, %v7976
      %v8010 = vadd.f32 %v7955, %v7976
      %v8011 = vadd.f32 %v7956, %v7976
      %v8012 = vadd.f32 %v7957, %v7976
      %v8013 = vadd.f32 %v7958, %v7976
      %v8014 = vadd.f32 %v7959, %v7976
      %v8015 = vadd.f32 %v7960, %v7976
      %v8016 = vadd.f32 %v7961, %v7976
      %v8017 = vadd.f32 %v7962, %v7976
      %v8018 = vadd.f32 %v7963, %v7976
      %v8019 = vadd.f32 %v7964, %v7976
      %v8020 = vadd.f32 %v7965, %v7976
      %v8021 = vadd.f32 %v7966, %v7976
      %v8022 = vadd.f32 %v7967, %v7976
      %v8023 = vadd.f32 %v7968, %v7976
      %v8024 = vadd.f32 %v7969, %v7976
      %v8025 = vadd.f32 %v7970, %v7976
      %v8026 = vmax.f32 %v7978, 0.0
      %v8027 = vmax.f32 %v7979, 0.0
      %v8028 = vmax.f32 %v7980, 0.0
      %v8029 = vmax.f32 %v7981, 0.0
      %v8030 = vmax.f32 %v7982, 0.0
      %v8031 = vmax.f32 %v7983, 0.0
      %v8032 = vmax.f32 %v7984, 0.0
      %v8033 = vmax.f32 %v7985, 0.0
      %v8034 = vmax.f32 %v7986, 0.0
      %v8035 = vmax.f32 %v7987, 0.0
      %v8036 = vmax.f32 %v7988, 0.0
      %v8037 = vmax.f32 %v7989, 0.0
      %v8038 = vmax.f32 %v7990, 0.0
      %v8039 = vmax.f32 %v7991, 0.0
      %v8040 = vmax.f32 %v7992, 0.0
      %v8041 = vmax.f32 %v7993, 0.0
      %v8042 = vmax.f32 %v7994, 0.0
      %v8043 = vmax.f32 %v7995, 0.0
      %v8044 = vmax.f32 %v7996, 0.0
      %v8045 = vmax.f32 %v7997, 0.0
      %v8046 = vmax.f32 %v7998, 0.0
      %v8047 = vmax.f32 %v7999, 0.0
      %v8048 = vmax.f32 %v8000, 0.0
      %v8049 = vmax.f32 %v8001, 0.0
      %v8050 = vmax.f32 %v8002, 0.0
      %v8051 = vmax.f32 %v8003, 0.0
      %v8052 = vmax.f32 %v8004, 0.0
      %v8053 = vmax.f32 %v8005, 0.0
      %v8054 = vmax.f32 %v8006, 0.0
      %v8055 = vmax.f32 %v8007, 0.0
      %v8056 = vmax.f32 %v8008, 0.0
      %v8057 = vmax.f32 %v8009, 0.0
      %v8058 = vmax.f32 %v8010, 0.0
      %v8059 = vmax.f32 %v8011, 0.0
      %v8060 = vmax.f32 %v8012, 0.0
      %v8061 = vmax.f32 %v8013, 0.0
      %v8062 = vmax.f32 %v8014, 0.0
      %v8063 = vmax.f32 %v8015, 0.0
      %v8064 = vmax.f32 %v8016, 0.0
      %v8065 = vmax.f32 %v8017, 0.0
      %v8066 = vmax.f32 %v8018, 0.0
      %v8067 = vmax.f32 %v8019, 0.0
      %v8068 = vmax.f32 %v8020, 0.0
      %v8069 = vmax.f32 %v8021, 0.0
      %v8070 = vmax.f32 %v8022, 0.0
      %v8071 = vmax.f32 %v8023, 0.0
      %v8072 = vmax.f32 %v8024, 0.0
      %v8073 = vmax.f32 %v8025, 0.0
      %v8074 = vpack.c.bf16 %v8027, %v8026
      %v8075 = vpack.c.bf16 %v8029, %v8028
      %v8076 = vpack.c.bf16 %v8031, %v8030
      %v8077 = vpack.c.bf16 %v8033, %v8032
      %v8078 = vpack.c.bf16 %v8035, %v8034
      %v8079 = vpack.c.bf16 %v8037, %v8036
      %v8080 = vpack.c.bf16 %v8039, %v8038
      %v8081 = vpack.c.bf16 %v8041, %v8040
      %v8082 = vpack.c.bf16 %v8043, %v8042
      %v8083 = vpack.c.bf16 %v8045, %v8044
      %v8084 = vpack.c.bf16 %v8047, %v8046
      %v8085 = vpack.c.bf16 %v8049, %v8048
      %v8086 = vpack.c.bf16 %v8051, %v8050
      %v8087 = vpack.c.bf16 %v8053, %v8052
      %v8088 = vpack.c.bf16 %v8055, %v8054
      %v8089 = vpack.c.bf16 %v8057, %v8056
      %v8090 = vpack.c.bf16 %v8059, %v8058
      %v8091 = vpack.c.bf16 %v8061, %v8060
      %v8092 = vpack.c.bf16 %v8063, %v8062
      %v8093 = vpack.c.bf16 %v8065, %v8064
      %v8094 = vpack.c.bf16 %v8067, %v8066
      %v8095 = vpack.c.bf16 %v8069, %v8068
      %v8096 = vpack.c.bf16 %v8071, %v8070
      %v8097 = vpack.c.bf16 %v8073, %v8072
      %8098 = vst [vmem:[#allocation3] sm:$0xff] %v8074
      %8099 = vst [vmem:[#allocation3 + $0x8] sm:$0xff] %v8075
      %8100 = vst [vmem:[#allocation3 + $0x10] sm:$0xff] %v8076
      %8101 = vst [vmem:[#allocation3 + $0x18] sm:$0xff] %v8077
      %8102 = vst [vmem:[#allocation3 + $0x20] sm:$0xff] %v8078
      %8103 = vst [vmem:[#allocation3 + $0x28] sm:$0xff] %v8079
      %8104 = vst [vmem:[#allocation3 + $0x30] sm:$0xff] %v8080
      %8105 = vst [vmem:[#allocation3 + $0x38] sm:$0xff] %v8081
      %8106 = vst [vmem:[#allocation3 + $0x40] sm:$0xff] %v8082
      %8107 = vst [vmem:[#allocation3 + $0x48] sm:$0xff] %v8083
      %8108 = vst [vmem:[#allocation3 + $0x50] sm:$0xff] %v8084
      %8109 = vst [vmem:[#allocation3 + $0x58] sm:$0xff] %v8085
      %8110 = vst [vmem:[#allocation3 + $0x60] sm:$0xff] %v8086
      %8111 = vst [vmem:[#allocation3 + $0x68] sm:$0xff] %v8087
      %8112 = vst [vmem:[#allocation3 + $0x70] sm:$0xff] %v8088
      %8113 = vst [vmem:[#allocation3 + $0x78] sm:$0xff] %v8089
      %8114 = vst [vmem:[#allocation3 + $0x80] sm:$0xff] %v8090
      %8115 = vst [vmem:[#allocation3 + $0x88] sm:$0xff] %v8091
      %8116 = vst [vmem:[#allocation3 + $0x90] sm:$0xff] %v8092
      %8117 = vst [vmem:[#allocation3 + $0x98] sm:$0xff] %v8093
      %8118 = vst [vmem:[#allocation3 + $0xa0] sm:$0xff] %v8094
      %8119 = vst [vmem:[#allocation3 + $0xa8] sm:$0xff] %v8095
      %8120 = vst [vmem:[#allocation3 + $0xb0] sm:$0xff] %v8096
      %8121 = vst [vmem:[#allocation3 + $0xb8] sm:$0xff] %v8097
      %v8122 = vld [vmem:[#allocation3] sm:$0xff]
      %v8123 = vld [vmem:[#allocation3 + $0x8] sm:$0xff]
      %v8124 = vld [vmem:[#allocation3 + $0x10] sm:$0xff]
      %v8125 = vld [vmem:[#allocation3 + $0x18] sm:$0xff]
      %v8126 = vld [vmem:[#allocation3 + $0x20] sm:$0xff]
      %v8127 = vld [vmem:[#allocation3 + $0x28] sm:$0xff]
      %v8128 = vld [vmem:[#allocation3 + $0x30] sm:$0xff]
      %v8129 = vld [vmem:[#allocation3 + $0x38] sm:$0xff]
      %v8130 = vld [vmem:[#allocation3 + $0x40] sm:$0xff]
      %v8131 = vld [vmem:[#allocation3 + $0x48] sm:$0xff]
      %v8132 = vld [vmem:[#allocation3 + $0x50] sm:$0xff]
      %v8133 = vld [vmem:[#allocation3 + $0x58] sm:$0xff]
      %v8134 = vld [vmem:[#allocation3 + $0x60] sm:$0xff]
      %v8135 = vld [vmem:[#allocation3 + $0x68] sm:$0xff]
      %v8136 = vld [vmem:[#allocation3 + $0x70] sm:$0xff]
      %v8137 = vld [vmem:[#allocation3 + $0x78] sm:$0xff]
      %v8138 = vld [vmem:[#allocation3 + $0x80] sm:$0xff]
      %v8139 = vld [vmem:[#allocation3 + $0x88] sm:$0xff]
      %v8140 = vld [vmem:[#allocation3 + $0x90] sm:$0xff]
      %v8141 = vld [vmem:[#allocation3 + $0x98] sm:$0xff]
      %v8142 = vld [vmem:[#allocation3 + $0xa0] sm:$0xff]
      %v8143 = vld [vmem:[#allocation3 + $0xa8] sm:$0xff]
      %v8144 = vld [vmem:[#allocation3 + $0xb0] sm:$0xff]
      %v8145 = vld [vmem:[#allocation3 + $0xb8] sm:$0xff]
      %v8146 = vld [vmem:[%s6] sm:$0xff]
      %v8147 = vld [vmem:[%s6 + $0x8] sm:$0xff]
      %v8148 = vld [vmem:[%s6 + $0x10] sm:$0xff]
      %v8149 = vld [vmem:[%s6 + $0x18] sm:$0xff]
      %v8150 = vld [vmem:[%s6 + $0x20] sm:$0xff]
      %v8151 = vld [vmem:[%s6 + $0x28] sm:$0xff]
      %v8152 = vld [vmem:[%s6 + $0x30] sm:$0xff]
      %v8153 = vld [vmem:[%s6 + $0x38] sm:$0xff]
      %v8154 = vld [vmem:[%s6 + $0x40] sm:$0xff]
      %v8155 = vld [vmem:[%s6 + $0x48] sm:$0xff]
      %v8156 = vld [vmem:[%s6 + $0x50] sm:$0xff]
      %v8157 = vld [vmem:[%s6 + $0x58] sm:$0xff]
      %v8158 = vld [vmem:[%s6 + $0x60] sm:$0xff]
      %v8159 = vld [vmem:[%s6 + $0x68] sm:$0xff]
      %v8160 = vld [vmem:[%s6 + $0x70] sm:$0xff]
      %v8161 = vld [vmem:[%s6 + $0x78] sm:$0xff]
      %v8162 = vld [vmem:[%s7] sm:$0x3]
      %v8164 = vlaneseq
      %v8165 = vshrl.u32 %v8164, 7
      %v8166 = vsub.s32 0, %v8165
      %v8167 = vrot.slane %v8162, %v8166
      %v8168 = vlaneseq
      %v8169 = vshrl.u32 %v8168, 7
      %v8170 = vsub.s32 1, %v8169
      %v8171 = vrot.slane %v8162, %v8170
      %v8190 = vunpack.c.l.b16 %v8146
      %v8191 = vunpack.c.h.b16 %v8146
      %v8192 = vunpack.c.l.b16 %v8147
      %v8193 = vunpack.c.h.b16 %v8147
      %v8194 = vunpack.c.l.b16 %v8148
      %v8195 = vunpack.c.h.b16 %v8148
      %v8196 = vunpack.c.l.b16 %v8149
      %v8197 = vunpack.c.h.b16 %v8149
      %v8198 = vunpack.c.l.b16 %v8150
      %v8199 = vunpack.c.h.b16 %v8150
      %v8200 = vunpack.c.l.b16 %v8151
      %v8201 = vunpack.c.h.b16 %v8151
      %v8202 = vunpack.c.l.b16 %v8152
      %v8203 = vunpack.c.h.b16 %v8152
      %v8204 = vunpack.c.l.b16 %v8153
      %v8205 = vunpack.c.h.b16 %v8153
      %v8206 = vunpack.c.l.b16 %v8154
      %v8207 = vunpack.c.h.b16 %v8154
      %v8208 = vunpack.c.l.b16 %v8155
      %v8209 = vunpack.c.h.b16 %v8155
      %v8210 = vunpack.c.l.b16 %v8156
      %v8211 = vunpack.c.h.b16 %v8156
      %v8212 = vunpack.c.l.b16 %v8157
      %v8213 = vunpack.c.h.b16 %v8157
      %v8214 = vunpack.c.l.b16 %v8158
      %v8215 = vunpack.c.h.b16 %v8158
      %v8216 = vunpack.c.l.b16 %v8159
      %v8217 = vunpack.c.h.b16 %v8159
      %v8218 = vunpack.c.l.b16 %v8160
      %v8219 = vunpack.c.h.b16 %v8160
      %v8220 = vunpack.c.l.b16 %v8161
      %v8221 = vunpack.c.h.b16 %v8161
      %v8222 = vpack.c.b16 %v8192, %v8190
      %v8223 = vpack.c.b16 %v8193, %v8191
      %v8224 = vpack.c.b16 %v8196, %v8194
      %v8225 = vpack.c.b16 %v8197, %v8195
      %v8226 = vpack.c.b16 %v8200, %v8198
      %v8227 = vpack.c.b16 %v8201, %v8199
      %v8228 = vpack.c.b16 %v8204, %v8202
      %v8229 = vpack.c.b16 %v8205, %v8203
      %v8230 = vpack.c.b16 %v8208, %v8206
      %v8231 = vpack.c.b16 %v8209, %v8207
      %v8232 = vpack.c.b16 %v8212, %v8210
      %v8233 = vpack.c.b16 %v8213, %v8211
      %v8234 = vpack.c.b16 %v8216, %v8214
      %v8235 = vpack.c.b16 %v8217, %v8215
      %v8236 = vpack.c.b16 %v8220, %v8218
      %v8237 = vpack.c.b16 %v8221, %v8219
      %8254 = vmatprep.subr.bf16.mxu0 %v8223
      %8255 = vmatpush1.bf16.msra.mxu0 %v8222
      %8256 = vmatprep.subr.bf16.mxu0 %v8225
      %8257 = vmatpush1.bf16.msra.mxu0 %v8224
      %8258 = vmatprep.subr.bf16.mxu0 %v8227
      %8259 = vmatpush1.bf16.msra.mxu0 %v8226
      %8260 = vmatprep.subr.bf16.mxu0 %v8229
      %8261 = vmatpush1.bf16.msra.mxu0 %v8228
      %8262 = vmatprep.subr.bf16.mxu0 %v8231
      %8263 = vmatpush1.bf16.msra.mxu0 %v8230
      %8264 = vmatprep.subr.bf16.mxu0 %v8233
      %8265 = vmatpush1.bf16.msra.mxu0 %v8232
      %8266 = vmatprep.subr.bf16.mxu0 %v8235
      %8267 = vmatpush1.bf16.msra.mxu0 %v8234
      %8268 = vmatprep.subr.bf16.mxu0 %v8237
      %8269 = vmatpush1.bf16.msra.mxu0 %v8236
      %8270 = vmatprep.subr.bf16.mxu0 0
      %8271 = vmatpush1.bf16.msra.mxu0 0
      %8272 = vmatprep.subr.bf16.mxu0 0
      %8273 = vmatpush1.bf16.msra.mxu0 0
      %8274 = vmatprep.subr.bf16.mxu0 0
      %8275 = vmatpush1.bf16.msra.mxu0 0
      %8276 = vmatprep.subr.bf16.mxu0 0
      %8277 = vmatpush1.bf16.msra.mxu0 0
      %8278 = vmatprep.subr.bf16.mxu0 0
      %8279 = vmatpush1.bf16.msra.mxu0 0
      %8280 = vmatprep.subr.bf16.mxu0 0
      %8281 = vmatpush1.bf16.msra.mxu0 0
      %8282 = vmatprep.subr.bf16.mxu0 0
      %8283 = vmatpush1.bf16.msra.mxu0 0
      %8284 = vmatprep.subr.bf16.mxu0 0
      %8285 = vmatpush1.bf16.msra.mxu0 0
      %8286 = vmatprep.mubr.bf16.mxu0 0
      %8287 = vmatmul.mubr.bf16.gmra.mrb[0].mxu0 %v8122
      %v8288 = vpop.f32.mrb[0].mxu0
      %v8289 = vadd.f32 %v8167, %v8288
      %v8290 = vpop.f32.mrb[0].mxu0
      %v8291 = vadd.f32 %v8171, %v8290
      %v8292 = vpop.f32.mrb[0].mxu0
      %v8293 = vadd.f32 %v8167, %v8292
      %v8294 = vpop.f32.mrb[0].mxu0
      %v8295 = vadd.f32 %v8171, %v8294
      %8296 = vmatprep.mubr.bf16.mxu0 0
      %8297 = vmatmul.mubr.bf16.gmra.mrb[0].mxu0 %v8123
      %v8298 = vpop.f32.mrb[0].mxu0
      %v8299 = vadd.f32 %v8167, %v8298
      %v8300 = vpop.f32.mrb[0].mxu0
      %v8301 = vadd.f32 %v8171, %v8300
      %v8302 = vpop.f32.mrb[0].mxu0
      %v8303 = vadd.f32 %v8167, %v8302
      %v8304 = vpop.f32.mrb[0].mxu0
      %v8305 = vadd.f32 %v8171, %v8304
      %8306 = vmatprep.mubr.bf16.mxu0 0
      %8307 = vmatmul.mubr.bf16.gmra.mrb[0].mxu0 %v8124
      %v8308 = vpop.f32.mrb[0].mxu0
      %v8309 = vadd.f32 %v8167, %v8308
      %v8310 = vpop.f32.mrb[0].mxu0
      %v8311 = vadd.f32 %v8171, %v8310
      %v8312 = vpop.f32.mrb[0].mxu0
      %v8313 = vadd.f32 %v8167, %v8312
      %v8314 = vpop.f32.mrb[0].mxu0
      %v8315 = vadd.f32 %v8171, %v8314
      %8316 = vmatprep.mubr.bf16.mxu0 0
      %8317 = vmatmul.mubr.bf16.gmra.mrb[0].mxu0 %v8125
      %v8318 = vpop.f32.mrb[0].mxu0
      %v8319 = vadd.f32 %v8167, %v8318
      %v8320 = vpop.f32.mrb[0].mxu0
      %v8321 = vadd.f32 %v8171, %v8320
      %v8322 = vpop.f32.mrb[0].mxu0
      %v8323 = vadd.f32 %v8167, %v8322
      %v8324 = vpop.f32.mrb[0].mxu0
      %v8325 = vadd.f32 %v8171, %v8324
      %8326 = vmatprep.mubr.bf16.mxu0 0
      %8327 = vmatmul.mubr.bf16.gmra.mrb[0].mxu0 %v8126
      %v8328 = vpop.f32.mrb[0].mxu0
      %v8329 = vadd.f32 %v8167, %v8328
      %v8330 = vpop.f32.mrb[0].mxu0
      %v8331 = vadd.f32 %v8171, %v8330
      %v8332 = vpop.f32.mrb[0].mxu0
      %v8333 = vadd.f32 %v8167, %v8332
      %v8334 = vpop.f32.mrb[0].mxu0
      %v8335 = vadd.f32 %v8171, %v8334
      %8336 = vmatprep.mubr.bf16.mxu0 0
      %8337 = vmatmul.mubr.bf16.gmra.mrb[0].mxu0 %v8127
      %v8338 = vpop.f32.mrb[0].mxu0
      %v8339 = vadd.f32 %v8167, %v8338
      %v8340 = vpop.f32.mrb[0].mxu0
      %v8341 = vadd.f32 %v8171, %v8340
      %v8342 = vpop.f32.mrb[0].mxu0
      %v8343 = vadd.f32 %v8167, %v8342
      %v8344 = vpop.f32.mrb[0].mxu0
      %v8345 = vadd.f32 %v8171, %v8344
      %8346 = vmatprep.mubr.bf16.mxu0 0
      %8347 = vmatmul.mubr.bf16.gmra.mrb[0].mxu0 %v8128
      %v8348 = vpop.f32.mrb[0].mxu0
      %v8349 = vadd.f32 %v8167, %v8348
      %v8350 = vpop.f32.mrb[0].mxu0
      %v8351 = vadd.f32 %v8171, %v8350
      %v8352 = vpop.f32.mrb[0].mxu0
      %v8353 = vadd.f32 %v8167, %v8352
      %v8354 = vpop.f32.mrb[0].mxu0
      %v8355 = vadd.f32 %v8171, %v8354
      %8356 = vmatprep.mubr.bf16.mxu0 0
      %8357 = vmatmul.mubr.bf16.gmra.mrb[0].mxu0 %v8129
      %v8358 = vpop.f32.mrb[0].mxu0
      %v8359 = vadd.f32 %v8167, %v8358
      %v8360 = vpop.f32.mrb[0].mxu0
      %v8361 = vadd.f32 %v8171, %v8360
      %v8362 = vpop.f32.mrb[0].mxu0
      %v8363 = vadd.f32 %v8167, %v8362
      %v8364 = vpop.f32.mrb[0].mxu0
      %v8365 = vadd.f32 %v8171, %v8364
      %8366 = vmatprep.mubr.bf16.mxu0 0
      %8367 = vmatmul.mubr.bf16.gmra.mrb[0].mxu0 %v8130
      %v8368 = vpop.f32.mrb[0].mxu0
      %v8369 = vadd.f32 %v8167, %v8368
      %v8370 = vpop.f32.mrb[0].mxu0
      %v8371 = vadd.f32 %v8171, %v8370
      %v8372 = vpop.f32.mrb[0].mxu0
      %v8373 = vadd.f32 %v8167, %v8372
      %v8374 = vpop.f32.mrb[0].mxu0
      %v8375 = vadd.f32 %v8171, %v8374
      %8376 = vmatprep.mubr.bf16.mxu0 0
      %8377 = vmatmul.mubr.bf16.gmra.mrb[0].mxu0 %v8131
      %v8378 = vpop.f32.mrb[0].mxu0
      %v8379 = vadd.f32 %v8167, %v8378
      %v8380 = vpop.f32.mrb[0].mxu0
      %v8381 = vadd.f32 %v8171, %v8380
      %v8382 = vpop.f32.mrb[0].mxu0
      %v8383 = vadd.f32 %v8167, %v8382
      %v8384 = vpop.f32.mrb[0].mxu0
      %v8385 = vadd.f32 %v8171, %v8384
      %8386 = vmatprep.mubr.bf16.mxu0 0
      %8387 = vmatmul.mubr.bf16.gmra.mrb[0].mxu0 %v8132
      %v8388 = vpop.f32.mrb[0].mxu0
      %v8389 = vadd.f32 %v8167, %v8388
      %v8390 = vpop.f32.mrb[0].mxu0
      %v8391 = vadd.f32 %v8171, %v8390
      %v8392 = vpop.f32.mrb[0].mxu0
      %v8393 = vadd.f32 %v8167, %v8392
      %v8394 = vpop.f32.mrb[0].mxu0
      %v8395 = vadd.f32 %v8171, %v8394
      %8396 = vmatprep.mubr.bf16.mxu0 0
      %8397 = vmatmul.mubr.bf16.gmra.mrb[0].mxu0 %v8133
      %v8398 = vpop.f32.mrb[0].mxu0
      %v8399 = vadd.f32 %v8167, %v8398
      %v8400 = vpop.f32.mrb[0].mxu0
      %v8401 = vadd.f32 %v8171, %v8400
      %v8402 = vpop.f32.mrb[0].mxu0
      %v8403 = vadd.f32 %v8167, %v8402
      %v8404 = vpop.f32.mrb[0].mxu0
      %v8405 = vadd.f32 %v8171, %v8404
      %8406 = vmatprep.mubr.bf16.mxu0 0
      %8407 = vmatmul.mubr.bf16.gmra.mrb[0].mxu0 %v8134
      %v8408 = vpop.f32.mrb[0].mxu0
      %v8409 = vadd.f32 %v8167, %v8408
      %v8410 = vpop.f32.mrb[0].mxu0
      %v8411 = vadd.f32 %v8171, %v8410
      %v8412 = vpop.f32.mrb[0].mxu0
      %v8413 = vadd.f32 %v8167, %v8412
      %v8414 = vpop.f32.mrb[0].mxu0
      %v8415 = vadd.f32 %v8171, %v8414
      %8416 = vmatprep.mubr.bf16.mxu0 0
      %8417 = vmatmul.mubr.bf16.gmra.mrb[0].mxu0 %v8135
      %v8418 = vpop.f32.mrb[0].mxu0
      %v8419 = vadd.f32 %v8167, %v8418
      %v8420 = vpop.f32.mrb[0].mxu0
      %v8421 = vadd.f32 %v8171, %v8420
      %v8422 = vpop.f32.mrb[0].mxu0
      %v8423 = vadd.f32 %v8167, %v8422
      %v8424 = vpop.f32.mrb[0].mxu0
      %v8425 = vadd.f32 %v8171, %v8424
      %8426 = vmatprep.mubr.bf16.mxu0 0
      %8427 = vmatmul.mubr.bf16.gmra.mrb[0].mxu0 %v8136
      %v8428 = vpop.f32.mrb[0].mxu0
      %v8429 = vadd.f32 %v8167, %v8428
      %v8430 = vpop.f32.mrb[0].mxu0
      %v8431 = vadd.f32 %v8171, %v8430
      %v8432 = vpop.f32.mrb[0].mxu0
      %v8433 = vadd.f32 %v8167, %v8432
      %v8434 = vpop.f32.mrb[0].mxu0
      %v8435 = vadd.f32 %v8171, %v8434
      %8436 = vmatprep.mubr.bf16.mxu0 0
      %8437 = vmatmul.mubr.bf16.gmra.mrb[0].mxu0 %v8137
      %v8438 = vpop.f32.mrb[0].mxu0
      %v8439 = vadd.f32 %v8167, %v8438
      %v8440 = vpop.f32.mrb[0].mxu0
      %v8441 = vadd.f32 %v8171, %v8440
      %v8442 = vpop.f32.mrb[0].mxu0
      %v8443 = vadd.f32 %v8167, %v8442
      %v8444 = vpop.f32.mrb[0].mxu0
      %v8445 = vadd.f32 %v8171, %v8444
      %8446 = vmatprep.mubr.bf16.mxu0 0
      %8447 = vmatmul.mubr.bf16.gmra.mrb[0].mxu0 %v8138
      %v8448 = vpop.f32.mrb[0].mxu0
      %v8449 = vadd.f32 %v8167, %v8448
      %v8450 = vpop.f32.mrb[0].mxu0
      %v8451 = vadd.f32 %v8171, %v8450
      %v8452 = vpop.f32.mrb[0].mxu0
      %v8453 = vadd.f32 %v8167, %v8452
      %v8454 = vpop.f32.mrb[0].mxu0
      %v8455 = vadd.f32 %v8171, %v8454
      %8456 = vmatprep.mubr.bf16.mxu0 0
      %8457 = vmatmul.mubr.bf16.gmra.mrb[0].mxu0 %v8139
      %v8458 = vpop.f32.mrb[0].mxu0
      %v8459 = vadd.f32 %v8167, %v8458
      %v8460 = vpop.f32.mrb[0].mxu0
      %v8461 = vadd.f32 %v8171, %v8460
      %v8462 = vpop.f32.mrb[0].mxu0
      %v8463 = vadd.f32 %v8167, %v8462
      %v8464 = vpop.f32.mrb[0].mxu0
      %v8465 = vadd.f32 %v8171, %v8464
      %8466 = vmatprep.mubr.bf16.mxu0 0
      %8467 = vmatmul.mubr.bf16.gmra.mrb[0].mxu0 %v8140
      %v8468 = vpop.f32.mrb[0].mxu0
      %v8469 = vadd.f32 %v8167, %v8468
      %v8470 = vpop.f32.mrb[0].mxu0
      %v8471 = vadd.f32 %v8171, %v8470
      %v8472 = vpop.f32.mrb[0].mxu0
      %v8473 = vadd.f32 %v8167, %v8472
      %v8474 = vpop.f32.mrb[0].mxu0
      %v8475 = vadd.f32 %v8171, %v8474
      %8476 = vmatprep.mubr.bf16.mxu0 0
      %8477 = vmatmul.mubr.bf16.gmra.mrb[0].mxu0 %v8141
      %v8478 = vpop.f32.mrb[0].mxu0
      %v8479 = vadd.f32 %v8167, %v8478
      %v8480 = vpop.f32.mrb[0].mxu0
      %v8481 = vadd.f32 %v8171, %v8480
      %v8482 = vpop.f32.mrb[0].mxu0
      %v8483 = vadd.f32 %v8167, %v8482
      %v8484 = vpop.f32.mrb[0].mxu0
      %v8485 = vadd.f32 %v8171, %v8484
      %8486 = vmatprep.mubr.bf16.mxu0 0
      %8487 = vmatmul.mubr.bf16.gmra.mrb[0].mxu0 %v8142
      %v8488 = vpop.f32.mrb[0].mxu0
      %v8489 = vadd.f32 %v8167, %v8488
      %v8490 = vpop.f32.mrb[0].mxu0
      %v8491 = vadd.f32 %v8171, %v8490
      %v8492 = vpop.f32.mrb[0].mxu0
      %v8493 = vadd.f32 %v8167, %v8492
      %v8494 = vpop.f32.mrb[0].mxu0
      %v8495 = vadd.f32 %v8171, %v8494
      %8496 = vmatprep.mubr.bf16.mxu0 0
      %8497 = vmatmul.mubr.bf16.gmra.mrb[0].mxu0 %v8143
      %v8498 = vpop.f32.mrb[0].mxu0
      %v8499 = vadd.f32 %v8167, %v8498
      %v8500 = vpop.f32.mrb[0].mxu0
      %v8501 = vadd.f32 %v8171, %v8500
      %v8502 = vpop.f32.mrb[0].mxu0
      %v8503 = vadd.f32 %v8167, %v8502
      %v8504 = vpop.f32.mrb[0].mxu0
      %v8505 = vadd.f32 %v8171, %v8504
      %8506 = vmatprep.mubr.bf16.mxu0 0
      %8507 = vmatmul.mubr.bf16.gmra.mrb[0].mxu0 %v8144
      %v8508 = vpop.f32.mrb[0].mxu0
      %v8509 = vadd.f32 %v8167, %v8508
      %v8510 = vpop.f32.mrb[0].mxu0
      %v8511 = vadd.f32 %v8171, %v8510
      %v8512 = vpop.f32.mrb[0].mxu0
      %v8513 = vadd.f32 %v8167, %v8512
      %v8514 = vpop.f32.mrb[0].mxu0
      %v8515 = vadd.f32 %v8171, %v8514
      %8516 = vmatprep.mubr.bf16.mxu0 0
      %8517 = vmatmul.mubr.bf16.gmra.mrb[0].mxu0 %v8145
      %v8518 = vpop.f32.mrb[0].mxu0
      %v8519 = vadd.f32 %v8167, %v8518
      %v8520 = vpop.f32.mrb[0].mxu0
      %v8521 = vadd.f32 %v8171, %v8520
      %v8522 = vpop.f32.mrb[0].mxu0
      %v8523 = vadd.f32 %v8167, %v8522
      %v8524 = vpop.f32.mrb[0].mxu0
      %v8525 = vadd.f32 %v8171, %v8524
      %8526 = vdwg.mxu0
      %v8527 = vld [vmem:[%s354 + $0xc] sm:$0xf]
      %v8528 = vld [vmem:[%s354 + $0x10] sm:$0xf]
      %v8529 = vld [vmem:[%s354 + $0x14] sm:$0xf]
      %v8530 = vld [vmem:[%s354 + $0x18] sm:$0xf]
      %v8531 = vld [vmem:[%s354 + $0x1c] sm:$0xf]
      %v8532 = vld [vmem:[%s354 + $0x20] sm:$0xf]
      %v8533 = vld [vmem:[%s354 + $0x24] sm:$0xf]
      %v8534 = vld [vmem:[%s354 + $0x28] sm:$0xf]
      %v8535 = vld [vmem:[%s354 + $0x2c] sm:$0xf]
      %v8536 = vld [vmem:[%s354 + $0x30] sm:$0xf]
      %v8537 = vld [vmem:[%s354 + $0x34] sm:$0xf]
      %v8538 = vld [vmem:[%s354 + $0x38] sm:$0xf]
      %v8539 = vld [vmem:[%s354 + $0x3c] sm:$0xf]
      %v8540 = vld [vmem:[%s354 + $0x40] sm:$0xf]
      %v8541 = vld [vmem:[%s354 + $0x44] sm:$0xf]
      %v8542 = vld [vmem:[%s354 + $0x48] sm:$0xf]
      %v8543 = vld [vmem:[%s354 + $0x4c] sm:$0xf]
      %v8544 = vld [vmem:[%s354 + $0x50] sm:$0xf]
      %v8545 = vld [vmem:[%s354 + $0x54] sm:$0xf]
      %v8546 = vld [vmem:[%s354 + $0x58] sm:$0xf]
      %v8547 = vld [vmem:[%s354 + $0x5c] sm:$0xf]
      %v8548 = vld [vmem:[%s354 + $0x60] sm:$0xf]
      %v8549 = vld [vmem:[%s354 + $0x64] sm:$0xf]
      %v8550 = vld [vmem:[%s354 + $0x68] sm:$0xf]
      %v8551 = vld [vmem:[%s354 + $0x6c] sm:$0xf]
      %v8552 = vld [vmem:[%s354 + $0x70] sm:$0xf]
      %v8553 = vld [vmem:[%s354 + $0x74] sm:$0xf]
      %v8554 = vld [vmem:[%s354 + $0x78] sm:$0xf]
      %v8555 = vld [vmem:[%s354 + $0x7c] sm:$0xf]
      %v8556 = vld [vmem:[%s354 + $0x80] sm:$0xf]
      %v8557 = vld [vmem:[%s354 + $0x84] sm:$0xf]
      %v8558 = vld [vmem:[%s354 + $0x88] sm:$0xf]
      %v8559 = vld [vmem:[%s354 + $0x8c] sm:$0xf]
      %v8560 = vld [vmem:[%s354 + $0x90] sm:$0xf]
      %v8561 = vld [vmem:[%s354 + $0x94] sm:$0xf]
      %v8562 = vld [vmem:[%s354 + $0x98] sm:$0xf]
      %v8563 = vld [vmem:[%s354 + $0x9c] sm:$0xf]
      %v8564 = vld [vmem:[%s354 + $0xa0] sm:$0xf]
      %v8565 = vld [vmem:[%s354 + $0xa4] sm:$0xf]
      %v8566 = vld [vmem:[%s354 + $0xa8] sm:$0xf]
      %v8567 = vld [vmem:[%s354 + $0xac] sm:$0xf]
      %v8568 = vld [vmem:[%s354 + $0xb0] sm:$0xf]
      %v8569 = vld [vmem:[%s354 + $0xb4] sm:$0xf]
      %v8570 = vld [vmem:[%s354 + $0xb8] sm:$0xf]
      %v8571 = vld [vmem:[%s354 + $0xbc] sm:$0xf]
      %v8572 = vld [vmem:[%s354 + $0xc0] sm:$0xf]
      %v8573 = vld [vmem:[%s354 + $0xc4] sm:$0xf]
      %v8574 = vld [vmem:[%s354 + $0xc8] sm:$0xf]
      %v8575 = vld [vmem:[%s354 + $0xcc] sm:$0x1]
      %v8576 = vld [vmem:[%s8] sm:$0xff]
      %v8577 = vld [vmem:[%s8 + $0x8] sm:$0xff]
      %v8578 = vld [vmem:[%s8 + $0x10] sm:$0xff]
      %v8579 = vld [vmem:[%s8 + $0x18] sm:$0xff]
      %v8580 = vld [vmem:[%s8 + $0x20] sm:$0xff]
      %v8581 = vld [vmem:[%s8 + $0x28] sm:$0xff]
      %v8582 = vld [vmem:[%s8 + $0x30] sm:$0xff]
      %v8583 = vld [vmem:[%s8 + $0x38] sm:$0xff]
      %v8584 = vld [vmem:[%s8 + $0x40] sm:$0xff]
      %v8585 = vld [vmem:[%s8 + $0x48] sm:$0xff]
      %v8586 = vld [vmem:[%s8 + $0x50] sm:$0xff]
      %v8587 = vld [vmem:[%s8 + $0x58] sm:$0xff]
      %v8588 = vld [vmem:[%s8 + $0x60] sm:$0xff]
      %v8589 = vld [vmem:[%s8 + $0x68] sm:$0xff]
      %v8590 = vld [vmem:[%s8 + $0x70] sm:$0xff]
      %v8591 = vld [vmem:[%s8 + $0x78] sm:$0xff]
      %v8592 = vld [vmem:[%s9] sm:$0x3]
      %v8594 = vlaneseq
      %v8595 = vshrl.u32 %v8594, 7
      %v8596 = vsub.s32 0, %v8595
      %v8597 = vrot.slane %v8592, %v8596
      %v8598 = vlaneseq
      %v8599 = vshrl.u32 %v8598, 7
      %v8600 = vsub.s32 1, %v8599
      %v8601 = vrot.slane %v8592, %v8600
      %v8653 = vunpack.c.l.b16 %v8527
      %v8654 = vunpack.c.l.b16 %v8528
      %v8655 = vunpack.c.l.b16 %v8529
      %v8656 = vunpack.c.l.b16 %v8530
      %v8657 = vunpack.c.l.b16 %v8531
      %v8658 = vunpack.c.l.b16 %v8532
      %v8659 = vunpack.c.l.b16 %v8533
      %v8660 = vunpack.c.l.b16 %v8534
      %v8661 = vunpack.c.l.b16 %v8535
      %v8662 = vunpack.c.l.b16 %v8536
      %v8663 = vunpack.c.l.b16 %v8537
      %v8664 = vunpack.c.l.b16 %v8538
      %v8665 = vunpack.c.l.b16 %v8539
      %v8666 = vunpack.c.l.b16 %v8540
      %v8667 = vunpack.c.l.b16 %v8541
      %v8668 = vunpack.c.l.b16 %v8542
      %v8669 = vunpack.c.l.b16 %v8543
      %v8670 = vunpack.c.l.b16 %v8544
      %v8671 = vunpack.c.l.b16 %v8545
      %v8672 = vunpack.c.l.b16 %v8546
      %v8673 = vunpack.c.l.b16 %v8547
      %v8674 = vunpack.c.l.b16 %v8548
      %v8675 = vunpack.c.l.b16 %v8549
      %v8676 = vunpack.c.l.b16 %v8550
      %v8677 = vunpack.c.l.b16 %v8551
      %v8678 = vunpack.c.l.b16 %v8552
      %v8679 = vunpack.c.l.b16 %v8553
      %v8680 = vunpack.c.l.b16 %v8554
      %v8681 = vunpack.c.l.b16 %v8555
      %v8682 = vunpack.c.l.b16 %v8556
      %v8683 = vunpack.c.l.b16 %v8557
      %v8684 = vunpack.c.l.b16 %v8558
      %v8685 = vunpack.c.l.b16 %v8559
      %v8686 = vunpack.c.l.b16 %v8560
      %v8687 = vunpack.c.l.b16 %v8561
      %v8688 = vunpack.c.l.b16 %v8562
      %v8689 = vunpack.c.l.b16 %v8563
      %v8690 = vunpack.c.l.b16 %v8564
      %v8691 = vunpack.c.l.b16 %v8565
      %v8692 = vunpack.c.l.b16 %v8566
      %v8693 = vunpack.c.l.b16 %v8567
      %v8694 = vunpack.c.l.b16 %v8568
      %v8695 = vunpack.c.l.b16 %v8569
      %v8696 = vunpack.c.l.b16 %v8570
      %v8697 = vunpack.c.l.b16 %v8571
      %v8698 = vunpack.c.l.b16 %v8572
      %v8699 = vunpack.c.l.b16 %v8573
      %v8700 = vunpack.c.l.b16 %v8574
      %v8701 = vunpack.c.l.b16 %v8575
      %v8702 = vpack.c.b16 %v8654, %v8653
      %v8703 = vpack.c.b16 %v8656, %v8655
      %v8704 = vpack.c.b16 %v8658, %v8657
      %v8705 = vpack.c.b16 %v8660, %v8659
      %v8706 = vpack.c.b16 %v8662, %v8661
      %v8707 = vpack.c.b16 %v8664, %v8663
      %v8708 = vpack.c.b16 %v8666, %v8665
      %v8709 = vpack.c.b16 %v8668, %v8667
      %v8710 = vpack.c.b16 %v8670, %v8669
      %v8711 = vpack.c.b16 %v8672, %v8671
      %v8712 = vpack.c.b16 %v8674, %v8673
      %v8713 = vpack.c.b16 %v8676, %v8675
      %v8714 = vpack.c.b16 %v8678, %v8677
      %v8715 = vpack.c.b16 %v8680, %v8679
      %v8716 = vpack.c.b16 %v8682, %v8681
      %v8717 = vpack.c.b16 %v8684, %v8683
      %v8718 = vpack.c.b16 %v8686, %v8685
      %v8719 = vpack.c.b16 %v8688, %v8687
      %v8720 = vpack.c.b16 %v8690, %v8689
      %v8721 = vpack.c.b16 %v8692, %v8691
      %v8722 = vpack.c.b16 %v8694, %v8693
      %v8723 = vpack.c.b16 %v8696, %v8695
      %v8724 = vpack.c.b16 %v8698, %v8697
      %v8725 = vpack.c.b16 %v8700, %v8699
      %v8726 = vpack.c.b16 %v8701, %v8701
      %v8728 = vshrl.u32 %v8702, 16
      %v8730 = vshll.u32 %v8702, 16
      %v8732 = vrot.slane %v8730, 1
      %v8733 = vor.u32 %v8728, %v8732
      %v8735 = vshll.u32 %v8703, 16
      %v8737 = vrot.slane %v8735, 1
      %v8738 = vsel %vm2343, %v8733, %v8737
      %v8739 = vshrl.u32 %v8703, 16
      %v8741 = vor.u32 %v8739, %v8737
      %v8743 = vshll.u32 %v8704, 16
      %v8745 = vrot.slane %v8743, 1
      %v8746 = vsel %vm2343, %v8741, %v8745
      %v8747 = vshrl.u32 %v8704, 16
      %v8749 = vor.u32 %v8747, %v8745
      %v8751 = vshll.u32 %v8705, 16
      %v8753 = vrot.slane %v8751, 1
      %v8754 = vsel %vm2343, %v8749, %v8753
      %v8755 = vshrl.u32 %v8705, 16
      %v8757 = vor.u32 %v8755, %v8753
      %v8759 = vshll.u32 %v8706, 16
      %v8761 = vrot.slane %v8759, 1
      %v8762 = vsel %vm2343, %v8757, %v8761
      %v8763 = vshrl.u32 %v8706, 16
      %v8765 = vor.u32 %v8763, %v8761
      %v8767 = vshll.u32 %v8707, 16
      %v8769 = vrot.slane %v8767, 1
      %v8770 = vsel %vm2343, %v8765, %v8769
      %v8771 = vshrl.u32 %v8707, 16
      %v8773 = vor.u32 %v8771, %v8769
      %v8775 = vshll.u32 %v8708, 16
      %v8777 = vrot.slane %v8775, 1
      %v8778 = vsel %vm2343, %v8773, %v8777
      %v8779 = vshrl.u32 %v8708, 16
      %v8781 = vor.u32 %v8779, %v8777
      %v8783 = vshll.u32 %v8709, 16
      %v8785 = vrot.slane %v8783, 1
      %v8786 = vsel %vm2343, %v8781, %v8785
      %v8787 = vshrl.u32 %v8709, 16
      %v8789 = vor.u32 %v8787, %v8785
      %v8791 = vshll.u32 %v8710, 16
      %v8793 = vrot.slane %v8791, 1
      %v8794 = vsel %vm2343, %v8789, %v8793
      %v8795 = vshrl.u32 %v8710, 16
      %v8797 = vor.u32 %v8795, %v8793
      %v8799 = vshll.u32 %v8711, 16
      %v8801 = vrot.slane %v8799, 1
      %v8802 = vsel %vm2343, %v8797, %v8801
      %v8803 = vshrl.u32 %v8711, 16
      %v8805 = vor.u32 %v8803, %v8801
      %v8807 = vshll.u32 %v8712, 16
      %v8809 = vrot.slane %v8807, 1
      %v8810 = vsel %vm2343, %v8805, %v8809
      %v8811 = vshrl.u32 %v8712, 16
      %v8813 = vor.u32 %v8811, %v8809
      %v8815 = vshll.u32 %v8713, 16
      %v8817 = vrot.slane %v8815, 1
      %v8818 = vsel %vm2343, %v8813, %v8817
      %v8819 = vshrl.u32 %v8713, 16
      %v8821 = vor.u32 %v8819, %v8817
      %v8823 = vshll.u32 %v8714, 16
      %v8825 = vrot.slane %v8823, 1
      %v8826 = vsel %vm2343, %v8821, %v8825
      %v8827 = vshrl.u32 %v8714, 16
      %v8829 = vor.u32 %v8827, %v8825
      %v8831 = vshll.u32 %v8715, 16
      %v8833 = vrot.slane %v8831, 1
      %v8834 = vsel %vm2343, %v8829, %v8833
      %v8835 = vshrl.u32 %v8715, 16
      %v8837 = vor.u32 %v8835, %v8833
      %v8839 = vshll.u32 %v8716, 16
      %v8841 = vrot.slane %v8839, 1
      %v8842 = vsel %vm2343, %v8837, %v8841
      %v8843 = vshrl.u32 %v8716, 16
      %v8845 = vor.u32 %v8843, %v8841
      %v8847 = vshll.u32 %v8717, 16
      %v8849 = vrot.slane %v8847, 1
      %v8850 = vsel %vm2343, %v8845, %v8849
      %v8851 = vshrl.u32 %v8717, 16
      %v8853 = vor.u32 %v8851, %v8849
      %v8855 = vshll.u32 %v8718, 16
      %v8857 = vrot.slane %v8855, 1
      %v8858 = vsel %vm2343, %v8853, %v8857
      %v8859 = vshrl.u32 %v8718, 16
      %v8861 = vor.u32 %v8859, %v8857
      %v8863 = vshll.u32 %v8719, 16
      %v8865 = vrot.slane %v8863, 1
      %v8866 = vsel %vm2343, %v8861, %v8865
      %v8867 = vshrl.u32 %v8719, 16
      %v8869 = vor.u32 %v8867, %v8865
      %v8871 = vshll.u32 %v8720, 16
      %v8873 = vrot.slane %v8871, 1
      %v8874 = vsel %vm2343, %v8869, %v8873
      %v8875 = vshrl.u32 %v8720, 16
      %v8877 = vor.u32 %v8875, %v8873
      %v8879 = vshll.u32 %v8721, 16
      %v8881 = vrot.slane %v8879, 1
      %v8882 = vsel %vm2343, %v8877, %v8881
      %v8883 = vshrl.u32 %v8721, 16
      %v8885 = vor.u32 %v8883, %v8881
      %v8887 = vshll.u32 %v8722, 16
      %v8889 = vrot.slane %v8887, 1
      %v8890 = vsel %vm2343, %v8885, %v8889
      %v8891 = vshrl.u32 %v8722, 16
      %v8893 = vor.u32 %v8891, %v8889
      %v8895 = vshll.u32 %v8723, 16
      %v8897 = vrot.slane %v8895, 1
      %v8898 = vsel %vm2343, %v8893, %v8897
      %v8899 = vshrl.u32 %v8723, 16
      %v8901 = vor.u32 %v8899, %v8897
      %v8903 = vshll.u32 %v8724, 16
      %v8905 = vrot.slane %v8903, 1
      %v8906 = vsel %vm2343, %v8901, %v8905
      %v8907 = vshrl.u32 %v8724, 16
      %v8909 = vor.u32 %v8907, %v8905
      %v8911 = vshll.u32 %v8725, 16
      %v8913 = vrot.slane %v8911, 1
      %v8914 = vsel %vm2343, %v8909, %v8913
      %v8915 = vshrl.u32 %v8725, 16
      %v8917 = vor.u32 %v8915, %v8913
      %v8919 = vshll.u32 %v8726, 16
      %v8921 = vrot.slane %v8919, 1
      %v8922 = vsel %vm2343, %v8917, %v8921
      %v8963 = vunpack.c.l.b16 %v8576
      %v8964 = vunpack.c.h.b16 %v8576
      %v8965 = vunpack.c.l.b16 %v8577
      %v8966 = vunpack.c.h.b16 %v8577
      %v8967 = vunpack.c.l.b16 %v8578
      %v8968 = vunpack.c.h.b16 %v8578
      %v8969 = vunpack.c.l.b16 %v8579
      %v8970 = vunpack.c.h.b16 %v8579
      %v8971 = vunpack.c.l.b16 %v8580
      %v8972 = vunpack.c.h.b16 %v8580
      %v8973 = vunpack.c.l.b16 %v8581
      %v8974 = vunpack.c.h.b16 %v8581
      %v8975 = vunpack.c.l.b16 %v8582
      %v8976 = vunpack.c.h.b16 %v8582
      %v8977 = vunpack.c.l.b16 %v8583
      %v8978 = vunpack.c.h.b16 %v8583
      %v8979 = vunpack.c.l.b16 %v8584
      %v8980 = vunpack.c.h.b16 %v8584
      %v8981 = vunpack.c.l.b16 %v8585
      %v8982 = vunpack.c.h.b16 %v8585
      %v8983 = vunpack.c.l.b16 %v8586
      %v8984 = vunpack.c.h.b16 %v8586
      %v8985 = vunpack.c.l.b16 %v8587
      %v8986 = vunpack.c.h.b16 %v8587
      %v8987 = vunpack.c.l.b16 %v8588
      %v8988 = vunpack.c.h.b16 %v8588
      %v8989 = vunpack.c.l.b16 %v8589
      %v8990 = vunpack.c.h.b16 %v8589
      %v8991 = vunpack.c.l.b16 %v8590
      %v8992 = vunpack.c.h.b16 %v8590
      %v8993 = vunpack.c.l.b16 %v8591
      %v8994 = vunpack.c.h.b16 %v8591
      %v8995 = vpack.c.b16 %v8965, %v8963
      %v8996 = vpack.c.b16 %v8966, %v8964
      %v8997 = vpack.c.b16 %v8969, %v8967
      %v8998 = vpack.c.b16 %v8970, %v8968
      %v8999 = vpack.c.b16 %v8973, %v8971
      %v9000 = vpack.c.b16 %v8974, %v8972
      %v9001 = vpack.c.b16 %v8977, %v8975
      %v9002 = vpack.c.b16 %v8978, %v8976
      %v9003 = vpack.c.b16 %v8981, %v8979
      %v9004 = vpack.c.b16 %v8982, %v8980
      %v9005 = vpack.c.b16 %v8985, %v8983
      %v9006 = vpack.c.b16 %v8986, %v8984
      %v9007 = vpack.c.b16 %v8989, %v8987
      %v9008 = vpack.c.b16 %v8990, %v8988
      %v9009 = vpack.c.b16 %v8993, %v8991
      %v9010 = vpack.c.b16 %v8994, %v8992
      %9027 = vmatprep.subr.bf16.mxu0 %v8996
      %9028 = vmatpush1.bf16.msra.mxu0 %v8995
      %9029 = vmatprep.subr.bf16.mxu0 %v8998
      %9030 = vmatpush1.bf16.msra.mxu0 %v8997
      %9031 = vmatprep.subr.bf16.mxu0 %v9000
      %9032 = vmatpush1.bf16.msra.mxu0 %v8999
      %9033 = vmatprep.subr.bf16.mxu0 %v9002
      %9034 = vmatpush1.bf16.msra.mxu0 %v9001
      %9035 = vmatprep.subr.bf16.mxu0 %v9004
      %9036 = vmatpush1.bf16.msra.mxu0 %v9003
      %9037 = vmatprep.subr.bf16.mxu0 %v9006
      %9038 = vmatpush1.bf16.msra.mxu0 %v9005
      %9039 = vmatprep.subr.bf16.mxu0 %v9008
      %9040 = vmatpush1.bf16.msra.mxu0 %v9007
      %9041 = vmatprep.subr.bf16.mxu0 %v9010
      %9042 = vmatpush1.bf16.msra.mxu0 %v9009
      %9043 = vmatprep.subr.bf16.mxu0 0
      %9044 = vmatpush1.bf16.msra.mxu0 0
      %9045 = vmatprep.subr.bf16.mxu0 0
      %9046 = vmatpush1.bf16.msra.mxu0 0
      %9047 = vmatprep.subr.bf16.mxu0 0
      %9048 = vmatpush1.bf16.msra.mxu0 0
      %9049 = vmatprep.subr.bf16.mxu0 0
      %9050 = vmatpush1.bf16.msra.mxu0 0
      %9051 = vmatprep.subr.bf16.mxu0 0
      %9052 = vmatpush1.bf16.msra.mxu0 0
      %9053 = vmatprep.subr.bf16.mxu0 0
      %9054 = vmatpush1.bf16.msra.mxu0 0
      %9055 = vmatprep.subr.bf16.mxu0 0
      %9056 = vmatpush1.bf16.msra.mxu0 0
      %9057 = vmatprep.subr.bf16.mxu0 0
      %9058 = vmatpush1.bf16.msra.mxu0 0
      %9059 = vmatprep.mubr.bf16.mxu0 0
      %9060 = vmatmul.mubr.bf16.gmra.mrb[0].mxu0 %v8738
      %v9061 = vpop.f32.mrb[0].mxu0
      %v9062 = vadd.f32 %v8597, %v9061
      %v9063 = vpop.f32.mrb[0].mxu0
      %v9064 = vadd.f32 %v8601, %v9063
      %v9065 = vpop.f32.mrb[0].mxu0
      %v9066 = vadd.f32 %v8597, %v9065
      %v9067 = vpop.f32.mrb[0].mxu0
      %v9068 = vadd.f32 %v8601, %v9067
      %9069 = vmatprep.mubr.bf16.mxu0 0
      %9070 = vmatmul.mubr.bf16.gmra.mrb[0].mxu0 %v8746
      %v9071 = vpop.f32.mrb[0].mxu0
      %v9072 = vadd.f32 %v8597, %v9071
      %v9073 = vpop.f32.mrb[0].mxu0
      %v9074 = vadd.f32 %v8601, %v9073
      %v9075 = vpop.f32.mrb[0].mxu0
      %v9076 = vadd.f32 %v8597, %v9075
      %v9077 = vpop.f32.mrb[0].mxu0
      %v9078 = vadd.f32 %v8601, %v9077
      %9079 = vmatprep.mubr.bf16.mxu0 0
      %9080 = vmatmul.mubr.bf16.gmra.mrb[0].mxu0 %v8754
      %v9081 = vpop.f32.mrb[0].mxu0
      %v9082 = vadd.f32 %v8597, %v9081
      %v9083 = vpop.f32.mrb[0].mxu0
      %v9084 = vadd.f32 %v8601, %v9083
      %v9085 = vpop.f32.mrb[0].mxu0
      %v9086 = vadd.f32 %v8597, %v9085
      %v9087 = vpop.f32.mrb[0].mxu0
      %v9088 = vadd.f32 %v8601, %v9087
      %9089 = vmatprep.mubr.bf16.mxu0 0
      %9090 = vmatmul.mubr.bf16.gmra.mrb[0].mxu0 %v8762
      %v9091 = vpop.f32.mrb[0].mxu0
      %v9092 = vadd.f32 %v8597, %v9091
      %v9093 = vpop.f32.mrb[0].mxu0
      %v9094 = vadd.f32 %v8601, %v9093
      %v9095 = vpop.f32.mrb[0].mxu0
      %v9096 = vadd.f32 %v8597, %v9095
      %v9097 = vpop.f32.mrb[0].mxu0
      %v9098 = vadd.f32 %v8601, %v9097
      %9099 = vmatprep.mubr.bf16.mxu0 0
      %9100 = vmatmul.mubr.bf16.gmra.mrb[0].mxu0 %v8770
      %v9101 = vpop.f32.mrb[0].mxu0
      %v9102 = vadd.f32 %v8597, %v9101
      %v9103 = vpop.f32.mrb[0].mxu0
      %v9104 = vadd.f32 %v8601, %v9103
      %v9105 = vpop.f32.mrb[0].mxu0
      %v9106 = vadd.f32 %v8597, %v9105
      %v9107 = vpop.f32.mrb[0].mxu0
      %v9108 = vadd.f32 %v8601, %v9107
      %9109 = vmatprep.mubr.bf16.mxu0 0
      %9110 = vmatmul.mubr.bf16.gmra.mrb[0].mxu0 %v8778
      %v9111 = vpop.f32.mrb[0].mxu0
      %v9112 = vadd.f32 %v8597, %v9111
      %v9113 = vpop.f32.mrb[0].mxu0
      %v9114 = vadd.f32 %v8601, %v9113
      %v9115 = vpop.f32.mrb[0].mxu0
      %v9116 = vadd.f32 %v8597, %v9115
      %v9117 = vpop.f32.mrb[0].mxu0
      %v9118 = vadd.f32 %v8601, %v9117
      %9119 = vmatprep.mubr.bf16.mxu0 0
      %9120 = vmatmul.mubr.bf16.gmra.mrb[0].mxu0 %v8786
      %v9121 = vpop.f32.mrb[0].mxu0
      %v9122 = vadd.f32 %v8597, %v9121
      %v9123 = vpop.f32.mrb[0].mxu0
      %v9124 = vadd.f32 %v8601, %v9123
      %v9125 = vpop.f32.mrb[0].mxu0
      %v9126 = vadd.f32 %v8597, %v9125
      %v9127 = vpop.f32.mrb[0].mxu0
      %v9128 = vadd.f32 %v8601, %v9127
      %9129 = vmatprep.mubr.bf16.mxu0 0
      %9130 = vmatmul.mubr.bf16.gmra.mrb[0].mxu0 %v8794
      %v9131 = vpop.f32.mrb[0].mxu0
      %v9132 = vadd.f32 %v8597, %v9131
      %v9133 = vpop.f32.mrb[0].mxu0
      %v9134 = vadd.f32 %v8601, %v9133
      %v9135 = vpop.f32.mrb[0].mxu0
      %v9136 = vadd.f32 %v8597, %v9135
      %v9137 = vpop.f32.mrb[0].mxu0
      %v9138 = vadd.f32 %v8601, %v9137
      %9139 = vmatprep.mubr.bf16.mxu0 0
      %9140 = vmatmul.mubr.bf16.gmra.mrb[0].mxu0 %v8802
      %v9141 = vpop.f32.mrb[0].mxu0
      %v9142 = vadd.f32 %v8597, %v9141
      %v9143 = vpop.f32.mrb[0].mxu0
      %v9144 = vadd.f32 %v8601, %v9143
      %v9145 = vpop.f32.mrb[0].mxu0
      %v9146 = vadd.f32 %v8597, %v9145
      %v9147 = vpop.f32.mrb[0].mxu0
      %v9148 = vadd.f32 %v8601, %v9147
      %9149 = vmatprep.mubr.bf16.mxu0 0
      %9150 = vmatmul.mubr.bf16.gmra.mrb[0].mxu0 %v8810
      %v9151 = vpop.f32.mrb[0].mxu0
      %v9152 = vadd.f32 %v8597, %v9151
      %v9153 = vpop.f32.mrb[0].mxu0
      %v9154 = vadd.f32 %v8601, %v9153
      %v9155 = vpop.f32.mrb[0].mxu0
      %v9156 = vadd.f32 %v8597, %v9155
      %v9157 = vpop.f32.mrb[0].mxu0
      %v9158 = vadd.f32 %v8601, %v9157
      %9159 = vmatprep.mubr.bf16.mxu0 0
      %9160 = vmatmul.mubr.bf16.gmra.mrb[0].mxu0 %v8818
      %v9161 = vpop.f32.mrb[0].mxu0
      %v9162 = vadd.f32 %v8597, %v9161
      %v9163 = vpop.f32.mrb[0].mxu0
      %v9164 = vadd.f32 %v8601, %v9163
      %v9165 = vpop.f32.mrb[0].mxu0
      %v9166 = vadd.f32 %v8597, %v9165
      %v9167 = vpop.f32.mrb[0].mxu0
      %v9168 = vadd.f32 %v8601, %v9167
      %9169 = vmatprep.mubr.bf16.mxu0 0
      %9170 = vmatmul.mubr.bf16.gmra.mrb[0].mxu0 %v8826
      %v9171 = vpop.f32.mrb[0].mxu0
      %v9172 = vadd.f32 %v8597, %v9171
      %v9173 = vpop.f32.mrb[0].mxu0
      %v9174 = vadd.f32 %v8601, %v9173
      %v9175 = vpop.f32.mrb[0].mxu0
      %v9176 = vadd.f32 %v8597, %v9175
      %v9177 = vpop.f32.mrb[0].mxu0
      %v9178 = vadd.f32 %v8601, %v9177
      %9179 = vmatprep.mubr.bf16.mxu0 0
      %9180 = vmatmul.mubr.bf16.gmra.mrb[0].mxu0 %v8834
      %v9181 = vpop.f32.mrb[0].mxu0
      %v9182 = vadd.f32 %v8597, %v9181
      %v9183 = vpop.f32.mrb[0].mxu0
      %v9184 = vadd.f32 %v8601, %v9183
      %v9185 = vpop.f32.mrb[0].mxu0
      %v9186 = vadd.f32 %v8597, %v9185
      %v9187 = vpop.f32.mrb[0].mxu0
      %v9188 = vadd.f32 %v8601, %v9187
      %9189 = vmatprep.mubr.bf16.mxu0 0
      %9190 = vmatmul.mubr.bf16.gmra.mrb[0].mxu0 %v8842
      %v9191 = vpop.f32.mrb[0].mxu0
      %v9192 = vadd.f32 %v8597, %v9191
      %v9193 = vpop.f32.mrb[0].mxu0
      %v9194 = vadd.f32 %v8601, %v9193
      %v9195 = vpop.f32.mrb[0].mxu0
      %v9196 = vadd.f32 %v8597, %v9195
      %v9197 = vpop.f32.mrb[0].mxu0
      %v9198 = vadd.f32 %v8601, %v9197
      %9199 = vmatprep.mubr.bf16.mxu0 0
      %9200 = vmatmul.mubr.bf16.gmra.mrb[0].mxu0 %v8850
      %v9201 = vpop.f32.mrb[0].mxu0
      %v9202 = vadd.f32 %v8597, %v9201
      %v9203 = vpop.f32.mrb[0].mxu0
      %v9204 = vadd.f32 %v8601, %v9203
      %v9205 = vpop.f32.mrb[0].mxu0
      %v9206 = vadd.f32 %v8597, %v9205
      %v9207 = vpop.f32.mrb[0].mxu0
      %v9208 = vadd.f32 %v8601, %v9207
      %9209 = vmatprep.mubr.bf16.mxu0 0
      %9210 = vmatmul.mubr.bf16.gmra.mrb[0].mxu0 %v8858
      %v9211 = vpop.f32.mrb[0].mxu0
      %v9212 = vadd.f32 %v8597, %v9211
      %v9213 = vpop.f32.mrb[0].mxu0
      %v9214 = vadd.f32 %v8601, %v9213
      %v9215 = vpop.f32.mrb[0].mxu0
      %v9216 = vadd.f32 %v8597, %v9215
      %v9217 = vpop.f32.mrb[0].mxu0
      %v9218 = vadd.f32 %v8601, %v9217
      %9219 = vmatprep.mubr.bf16.mxu0 0
      %9220 = vmatmul.mubr.bf16.gmra.mrb[0].mxu0 %v8866
      %v9221 = vpop.f32.mrb[0].mxu0
      %v9222 = vadd.f32 %v8597, %v9221
      %v9223 = vpop.f32.mrb[0].mxu0
      %v9224 = vadd.f32 %v8601, %v9223
      %v9225 = vpop.f32.mrb[0].mxu0
      %v9226 = vadd.f32 %v8597, %v9225
      %v9227 = vpop.f32.mrb[0].mxu0
      %v9228 = vadd.f32 %v8601, %v9227
      %9229 = vmatprep.mubr.bf16.mxu0 0
      %9230 = vmatmul.mubr.bf16.gmra.mrb[0].mxu0 %v8874
      %v9231 = vpop.f32.mrb[0].mxu0
      %v9232 = vadd.f32 %v8597, %v9231
      %v9233 = vpop.f32.mrb[0].mxu0
      %v9234 = vadd.f32 %v8601, %v9233
      %v9235 = vpop.f32.mrb[0].mxu0
      %v9236 = vadd.f32 %v8597, %v9235
      %v9237 = vpop.f32.mrb[0].mxu0
      %v9238 = vadd.f32 %v8601, %v9237
      %9239 = vmatprep.mubr.bf16.mxu0 0
      %9240 = vmatmul.mubr.bf16.gmra.mrb[0].mxu0 %v8882
      %v9241 = vpop.f32.mrb[0].mxu0
      %v9242 = vadd.f32 %v8597, %v9241
      %v9243 = vpop.f32.mrb[0].mxu0
      %v9244 = vadd.f32 %v8601, %v9243
      %v9245 = vpop.f32.mrb[0].mxu0
      %v9246 = vadd.f32 %v8597, %v9245
      %v9247 = vpop.f32.mrb[0].mxu0
      %v9248 = vadd.f32 %v8601, %v9247
      %9249 = vmatprep.mubr.bf16.mxu0 0
      %9250 = vmatmul.mubr.bf16.gmra.mrb[0].mxu0 %v8890
      %v9251 = vpop.f32.mrb[0].mxu0
      %v9252 = vadd.f32 %v8597, %v9251
      %v9253 = vpop.f32.mrb[0].mxu0
      %v9254 = vadd.f32 %v8601, %v9253
      %v9255 = vpop.f32.mrb[0].mxu0
      %v9256 = vadd.f32 %v8597, %v9255
      %v9257 = vpop.f32.mrb[0].mxu0
      %v9258 = vadd.f32 %v8601, %v9257
      %9259 = vmatprep.mubr.bf16.mxu0 0
      %9260 = vmatmul.mubr.bf16.gmra.mrb[0].mxu0 %v8898
      %v9261 = vpop.f32.mrb[0].mxu0
      %v9262 = vadd.f32 %v8597, %v9261
      %v9263 = vpop.f32.mrb[0].mxu0
      %v9264 = vadd.f32 %v8601, %v9263
      %v9265 = vpop.f32.mrb[0].mxu0
      %v9266 = vadd.f32 %v8597, %v9265
      %v9267 = vpop.f32.mrb[0].mxu0
      %v9268 = vadd.f32 %v8601, %v9267
      %9269 = vmatprep.mubr.bf16.mxu0 0
      %9270 = vmatmul.mubr.bf16.gmra.mrb[0].mxu0 %v8906
      %v9271 = vpop.f32.mrb[0].mxu0
      %v9272 = vadd.f32 %v8597, %v9271
      %v9273 = vpop.f32.mrb[0].mxu0
      %v9274 = vadd.f32 %v8601, %v9273
      %v9275 = vpop.f32.mrb[0].mxu0
      %v9276 = vadd.f32 %v8597, %v9275
      %v9277 = vpop.f32.mrb[0].mxu0
      %v9278 = vadd.f32 %v8601, %v9277
      %9279 = vmatprep.mubr.bf16.mxu0 0
      %9280 = vmatmul.mubr.bf16.gmra.mrb[0].mxu0 %v8914
      %v9281 = vpop.f32.mrb[0].mxu0
      %v9282 = vadd.f32 %v8597, %v9281
      %v9283 = vpop.f32.mrb[0].mxu0
      %v9284 = vadd.f32 %v8601, %v9283
      %v9285 = vpop.f32.mrb[0].mxu0
      %v9286 = vadd.f32 %v8597, %v9285
      %v9287 = vpop.f32.mrb[0].mxu0
      %v9288 = vadd.f32 %v8601, %v9287
      %9289 = vmatprep.mubr.bf16.mxu0 0
      %9290 = vmatmul.mubr.bf16.gmra.mrb[0].mxu0 %v8922
      %v9291 = vpop.f32.mrb[0].mxu0
      %v9292 = vadd.f32 %v8597, %v9291
      %v9293 = vpop.f32.mrb[0].mxu0
      %v9294 = vadd.f32 %v8601, %v9293
      %v9295 = vpop.f32.mrb[0].mxu0
      %v9296 = vadd.f32 %v8597, %v9295
      %v9297 = vpop.f32.mrb[0].mxu0
      %v9298 = vadd.f32 %v8601, %v9297
      %9299 = vdwg.mxu0
      %v9300 = vadd.f32 %v8289, %v9062
      %v9301 = vadd.f32 %v8291, %v9064
      %v9302 = vadd.f32 %v8293, %v9066
      %v9303 = vadd.f32 %v8295, %v9068
      %v9304 = vadd.f32 %v8299, %v9072
      %v9305 = vadd.f32 %v8301, %v9074
      %v9306 = vadd.f32 %v8303, %v9076
      %v9307 = vadd.f32 %v8305, %v9078
      %v9308 = vadd.f32 %v8309, %v9082
      %v9309 = vadd.f32 %v8311, %v9084
      %v9310 = vadd.f32 %v8313, %v9086
      %v9311 = vadd.f32 %v8315, %v9088
      %v9312 = vadd.f32 %v8319, %v9092
      %v9313 = vadd.f32 %v8321, %v9094
      %v9314 = vadd.f32 %v8323, %v9096
      %v9315 = vadd.f32 %v8325, %v9098
      %v9316 = vadd.f32 %v8329, %v9102
      %v9317 = vadd.f32 %v8331, %v9104
      %v9318 = vadd.f32 %v8333, %v9106
      %v9319 = vadd.f32 %v8335, %v9108
      %v9320 = vadd.f32 %v8339, %v9112
      %v9321 = vadd.f32 %v8341, %v9114
      %v9322 = vadd.f32 %v8343, %v9116
      %v9323 = vadd.f32 %v8345, %v9118
      %v9324 = vadd.f32 %v8349, %v9122
      %v9325 = vadd.f32 %v8351, %v9124
      %v9326 = vadd.f32 %v8353, %v9126
      %v9327 = vadd.f32 %v8355, %v9128
      %v9328 = vadd.f32 %v8359, %v9132
      %v9329 = vadd.f32 %v8361, %v9134
      %v9330 = vadd.f32 %v8363, %v9136
      %v9331 = vadd.f32 %v8365, %v9138
      %v9332 = vadd.f32 %v8369, %v9142
      %v9333 = vadd.f32 %v8371, %v9144
      %v9334 = vadd.f32 %v8373, %v9146
      %v9335 = vadd.f32 %v8375, %v9148
      %v9336 = vadd.f32 %v8379, %v9152
      %v9337 = vadd.f32 %v8381, %v9154
      %v9338 = vadd.f32 %v8383, %v9156
      %v9339 = vadd.f32 %v8385, %v9158
      %v9340 = vadd.f32 %v8389, %v9162
      %v9341 = vadd.f32 %v8391, %v9164
      %v9342 = vadd.f32 %v8393, %v9166
      %v9343 = vadd.f32 %v8395, %v9168
      %v9344 = vadd.f32 %v8399, %v9172
      %v9345 = vadd.f32 %v8401, %v9174
      %v9346 = vadd.f32 %v8403, %v9176
      %v9347 = vadd.f32 %v8405, %v9178
      %v9348 = vadd.f32 %v8409, %v9182
      %v9349 = vadd.f32 %v8411, %v9184
      %v9350 = vadd.f32 %v8413, %v9186
      %v9351 = vadd.f32 %v8415, %v9188
      %v9352 = vadd.f32 %v8419, %v9192
      %v9353 = vadd.f32 %v8421, %v9194
      %v9354 = vadd.f32 %v8423, %v9196
      %v9355 = vadd.f32 %v8425, %v9198
      %v9356 = vadd.f32 %v8429, %v9202
      %v9357 = vadd.f32 %v8431, %v9204
      %v9358 = vadd.f32 %v8433, %v9206
      %v9359 = vadd.f32 %v8435, %v9208
      %v9360 = vadd.f32 %v8439, %v9212
      %v9361 = vadd.f32 %v8441, %v9214
      %v9362 = vadd.f32 %v8443, %v9216
      %v9363 = vadd.f32 %v8445, %v9218
      %v9364 = vadd.f32 %v8449, %v9222
      %v9365 = vadd.f32 %v8451, %v9224
      %v9366 = vadd.f32 %v8453, %v9226
      %v9367 = vadd.f32 %v8455, %v9228
      %v9368 = vadd.f32 %v8459, %v9232
      %v9369 = vadd.f32 %v8461, %v9234
      %v9370 = vadd.f32 %v8463, %v9236
      %v9371 = vadd.f32 %v8465, %v9238
      %v9372 = vadd.f32 %v8469, %v9242
      %v9373 = vadd.f32 %v8471, %v9244
      %v9374 = vadd.f32 %v8473, %v9246
      %v9375 = vadd.f32 %v8475, %v9248
      %v9376 = vadd.f32 %v8479, %v9252
      %v9377 = vadd.f32 %v8481, %v9254
      %v9378 = vadd.f32 %v8483, %v9256
      %v9379 = vadd.f32 %v8485, %v9258
      %v9380 = vadd.f32 %v8489, %v9262
      %v9381 = vadd.f32 %v8491, %v9264
      %v9382 = vadd.f32 %v8493, %v9266
      %v9383 = vadd.f32 %v8495, %v9268
      %v9384 = vadd.f32 %v8499, %v9272
      %v9385 = vadd.f32 %v8501, %v9274
      %v9386 = vadd.f32 %v8503, %v9276
      %v9387 = vadd.f32 %v8505, %v9278
      %v9388 = vadd.f32 %v8509, %v9282
      %v9389 = vadd.f32 %v8511, %v9284
      %v9390 = vadd.f32 %v8513, %v9286
      %v9391 = vadd.f32 %v8515, %v9288
      %v9392 = vadd.f32 %v8519, %v9292
      %v9393 = vadd.f32 %v8521, %v9294
      %v9394 = vadd.f32 %v8523, %v9296
      %v9395 = vadd.f32 %v8525, %v9298
      %v9396 = vmax.f32 %v9300, 0.0
      %v9397 = vmax.f32 %v9301, 0.0
      %v9398 = vmax.f32 %v9302, 0.0
      %v9399 = vmax.f32 %v9303, 0.0
      %v9400 = vmax.f32 %v9304, 0.0
      %v9401 = vmax.f32 %v9305, 0.0
      %v9402 = vmax.f32 %v9306, 0.0
      %v9403 = vmax.f32 %v9307, 0.0
      %v9404 = vmax.f32 %v9308, 0.0
      %v9405 = vmax.f32 %v9309, 0.0
      %v9406 = vmax.f32 %v9310, 0.0
      %v9407 = vmax.f32 %v9311, 0.0
      %v9408 = vmax.f32 %v9312, 0.0
      %v9409 = vmax.f32 %v9313, 0.0
      %v9410 = vmax.f32 %v9314, 0.0
      %v9411 = vmax.f32 %v9315, 0.0
      %v9412 = vmax.f32 %v9316, 0.0
      %v9413 = vmax.f32 %v9317, 0.0
      %v9414 = vmax.f32 %v9318, 0.0
      %v9415 = vmax.f32 %v9319, 0.0
      %v9416 = vmax.f32 %v9320, 0.0
      %v9417 = vmax.f32 %v9321, 0.0
      %v9418 = vmax.f32 %v9322, 0.0
      %v9419 = vmax.f32 %v9323, 0.0
      %v9420 = vmax.f32 %v9324, 0.0
      %v9421 = vmax.f32 %v9325, 0.0
      %v9422 = vmax.f32 %v9326, 0.0
      %v9423 = vmax.f32 %v9327, 0.0
      %v9424 = vmax.f32 %v9328, 0.0
      %v9425 = vmax.f32 %v9329, 0.0
      %v9426 = vmax.f32 %v9330, 0.0
      %v9427 = vmax.f32 %v9331, 0.0
      %v9428 = vmax.f32 %v9332, 0.0
      %v9429 = vmax.f32 %v9333, 0.0
      %v9430 = vmax.f32 %v9334, 0.0
      %v9431 = vmax.f32 %v9335, 0.0
      %v9432 = vmax.f32 %v9336, 0.0
      %v9433 = vmax.f32 %v9337, 0.0
      %v9434 = vmax.f32 %v9338, 0.0
      %v9435 = vmax.f32 %v9339, 0.0
      %v9436 = vmax.f32 %v9340, 0.0
      %v9437 = vmax.f32 %v9341, 0.0
      %v9438 = vmax.f32 %v9342, 0.0
      %v9439 = vmax.f32 %v9343, 0.0
      %v9440 = vmax.f32 %v9344, 0.0
      %v9441 = vmax.f32 %v9345, 0.0
      %v9442 = vmax.f32 %v9346, 0.0
      %v9443 = vmax.f32 %v9347, 0.0
      %v9444 = vmax.f32 %v9348, 0.0
      %v9445 = vmax.f32 %v9349, 0.0
      %v9446 = vmax.f32 %v9350, 0.0
      %v9447 = vmax.f32 %v9351, 0.0
      %v9448 = vmax.f32 %v9352, 0.0
      %v9449 = vmax.f32 %v9353, 0.0
      %v9450 = vmax.f32 %v9354, 0.0
      %v9451 = vmax.f32 %v9355, 0.0
      %v9452 = vmax.f32 %v9356, 0.0
      %v9453 = vmax.f32 %v9357, 0.0
      %v9454 = vmax.f32 %v9358, 0.0
      %v9455 = vmax.f32 %v9359, 0.0
      %v9456 = vmax.f32 %v9360, 0.0
      %v9457 = vmax.f32 %v9361, 0.0
      %v9458 = vmax.f32 %v9362, 0.0
      %v9459 = vmax.f32 %v9363, 0.0
      %v9460 = vmax.f32 %v9364, 0.0
      %v9461 = vmax.f32 %v9365, 0.0
      %v9462 = vmax.f32 %v9366, 0.0
      %v9463 = vmax.f32 %v9367, 0.0
      %v9464 = vmax.f32 %v9368, 0.0
      %v9465 = vmax.f32 %v9369, 0.0
      %v9466 = vmax.f32 %v9370, 0.0
      %v9467 = vmax.f32 %v9371, 0.0
      %v9468 = vmax.f32 %v9372, 0.0
      %v9469 = vmax.f32 %v9373, 0.0
      %v9470 = vmax.f32 %v9374, 0.0
      %v9471 = vmax.f32 %v9375, 0.0
      %v9472 = vmax.f32 %v9376, 0.0
      %v9473 = vmax.f32 %v9377, 0.0
      %v9474 = vmax.f32 %v9378, 0.0
      %v9475 = vmax.f32 %v9379, 0.0
      %v9476 = vmax.f32 %v9380, 0.0
      %v9477 = vmax.f32 %v9381, 0.0
      %v9478 = vmax.f32 %v9382, 0.0
      %v9479 = vmax.f32 %v9383, 0.0
      %v9480 = vmax.f32 %v9384, 0.0
      %v9481 = vmax.f32 %v9385, 0.0
      %v9482 = vmax.f32 %v9386, 0.0
      %v9483 = vmax.f32 %v9387, 0.0
      %v9484 = vmax.f32 %v9388, 0.0
      %v9485 = vmax.f32 %v9389, 0.0
      %v9486 = vmax.f32 %v9390, 0.0
      %v9487 = vmax.f32 %v9391, 0.0
      %v9488 = vmax.f32 %v9392, 0.0
      %v9489 = vmax.f32 %v9393, 0.0
      %v9490 = vmax.f32 %v9394, 0.0
      %v9491 = vmax.f32 %v9395, 0.0
      %v9492 = vpack.c.bf16 %v9398, %v9396
      %v9493 = vpack.c.bf16 %v9399, %v9397
      %v9494 = vpack.c.bf16 %v9402, %v9400
      %v9495 = vpack.c.bf16 %v9403, %v9401
      %v9496 = vpack.c.bf16 %v9406, %v9404
      %v9497 = vpack.c.bf16 %v9407, %v9405
      %v9498 = vpack.c.bf16 %v9410, %v9408
      %v9499 = vpack.c.bf16 %v9411, %v9409
      %v9500 = vpack.c.bf16 %v9414, %v9412
      %v9501 = vpack.c.bf16 %v9415, %v9413
      %v9502 = vpack.c.bf16 %v9418, %v9416
      %v9503 = vpack.c.bf16 %v9419, %v9417
      %v9504 = vpack.c.bf16 %v9422, %v9420
      %v9505 = vpack.c.bf16 %v9423, %v9421
      %v9506 = vpack.c.bf16 %v9426, %v9424
      %v9507 = vpack.c.bf16 %v9427, %v9425
      %v9508 = vpack.c.bf16 %v9430, %v9428
      %v9509 = vpack.c.bf16 %v9431, %v9429
      %v9510 = vpack.c.bf16 %v9434, %v9432
      %v9511 = vpack.c.bf16 %v9435, %v9433
      %v9512 = vpack.c.bf16 %v9438, %v9436
      %v9513 = vpack.c.bf16 %v9439, %v9437
      %v9514 = vpack.c.bf16 %v9442, %v9440
      %v9515 = vpack.c.bf16 %v9443, %v9441
      %v9516 = vpack.c.bf16 %v9446, %v9444
      %v9517 = vpack.c.bf16 %v9447, %v9445
      %v9518 = vpack.c.bf16 %v9450, %v9448
      %v9519 = vpack.c.bf16 %v9451, %v9449
      %v9520 = vpack.c.bf16 %v9454, %v9452
      %v9521 = vpack.c.bf16 %v9455, %v9453
      %v9522 = vpack.c.bf16 %v9458, %v9456
      %v9523 = vpack.c.bf16 %v9459, %v9457
      %v9524 = vpack.c.bf16 %v9462, %v9460
      %v9525 = vpack.c.bf16 %v9463, %v9461
      %v9526 = vpack.c.bf16 %v9466, %v9464
      %v9527 = vpack.c.bf16 %v9467, %v9465
      %v9528 = vpack.c.bf16 %v9470, %v9468
      %v9529 = vpack.c.bf16 %v9471, %v9469
      %v9530 = vpack.c.bf16 %v9474, %v9472
      %v9531 = vpack.c.bf16 %v9475, %v9473
      %v9532 = vpack.c.bf16 %v9478, %v9476
      %v9533 = vpack.c.bf16 %v9479, %v9477
      %v9534 = vpack.c.bf16 %v9482, %v9480
      %v9535 = vpack.c.bf16 %v9483, %v9481
      %v9536 = vpack.c.bf16 %v9486, %v9484
      %v9537 = vpack.c.bf16 %v9487, %v9485
      %v9538 = vpack.c.bf16 %v9490, %v9488
      %v9539 = vpack.c.bf16 %v9491, %v9489
      %v9588 = vunpack.c.l.b16 %v9492
      %v9589 = vunpack.c.l.b16 %v9493
      %v9590 = vunpack.c.h.b16 %v9492
      %v9591 = vunpack.c.h.b16 %v9493
      %v9592 = vunpack.c.l.b16 %v9494
      %v9593 = vunpack.c.l.b16 %v9495
      %v9594 = vunpack.c.h.b16 %v9494
      %v9595 = vunpack.c.h.b16 %v9495
      %v9596 = vunpack.c.l.b16 %v9496
      %v9597 = vunpack.c.l.b16 %v9497
      %v9598 = vunpack.c.h.b16 %v9496
      %v9599 = vunpack.c.h.b16 %v9497
      %v9600 = vunpack.c.l.b16 %v9498
      %v9601 = vunpack.c.l.b16 %v9499
      %v9602 = vunpack.c.h.b16 %v9498
      %v9603 = vunpack.c.h.b16 %v9499
      %v9604 = vunpack.c.l.b16 %v9500
      %v9605 = vunpack.c.l.b16 %v9501
      %v9606 = vunpack.c.h.b16 %v9500
      %v9607 = vunpack.c.h.b16 %v9501
      %v9608 = vunpack.c.l.b16 %v9502
      %v9609 = vunpack.c.l.b16 %v9503
      %v9610 = vunpack.c.h.b16 %v9502
      %v9611 = vunpack.c.h.b16 %v9503
      %v9612 = vunpack.c.l.b16 %v9504
      %v9613 = vunpack.c.l.b16 %v9505
      %v9614 = vunpack.c.h.b16 %v9504
      %v9615 = vunpack.c.h.b16 %v9505
      %v9616 = vunpack.c.l.b16 %v9506
      %v9617 = vunpack.c.l.b16 %v9507
      %v9618 = vunpack.c.h.b16 %v9506
      %v9619 = vunpack.c.h.b16 %v9507
      %v9620 = vunpack.c.l.b16 %v9508
      %v9621 = vunpack.c.l.b16 %v9509
      %v9622 = vunpack.c.h.b16 %v9508
      %v9623 = vunpack.c.h.b16 %v9509
      %v9624 = vunpack.c.l.b16 %v9510
      %v9625 = vunpack.c.l.b16 %v9511
      %v9626 = vunpack.c.h.b16 %v9510
      %v9627 = vunpack.c.h.b16 %v9511
      %v9628 = vunpack.c.l.b16 %v9512
      %v9629 = vunpack.c.l.b16 %v9513
      %v9630 = vunpack.c.h.b16 %v9512
      %v9631 = vunpack.c.h.b16 %v9513
      %v9632 = vunpack.c.l.b16 %v9514
      %v9633 = vunpack.c.l.b16 %v9515
      %v9634 = vunpack.c.h.b16 %v9514
      %v9635 = vunpack.c.h.b16 %v9515
      %v9636 = vunpack.c.l.b16 %v9516
      %v9637 = vunpack.c.l.b16 %v9517
      %v9638 = vunpack.c.h.b16 %v9516
      %v9639 = vunpack.c.h.b16 %v9517
      %v9640 = vunpack.c.l.b16 %v9518
      %v9641 = vunpack.c.l.b16 %v9519
      %v9642 = vunpack.c.h.b16 %v9518
      %v9643 = vunpack.c.h.b16 %v9519
      %v9644 = vunpack.c.l.b16 %v9520
      %v9645 = vunpack.c.l.b16 %v9521
      %v9646 = vunpack.c.h.b16 %v9520
      %v9647 = vunpack.c.h.b16 %v9521
      %v9648 = vunpack.c.l.b16 %v9522
      %v9649 = vunpack.c.l.b16 %v9523
      %v9650 = vunpack.c.h.b16 %v9522
      %v9651 = vunpack.c.h.b16 %v9523
      %v9652 = vunpack.c.l.b16 %v9524
      %v9653 = vunpack.c.l.b16 %v9525
      %v9654 = vunpack.c.h.b16 %v9524
      %v9655 = vunpack.c.h.b16 %v9525
      %v9656 = vunpack.c.l.b16 %v9526
      %v9657 = vunpack.c.l.b16 %v9527
      %v9658 = vunpack.c.h.b16 %v9526
      %v9659 = vunpack.c.h.b16 %v9527
      %v9660 = vunpack.c.l.b16 %v9528
      %v9661 = vunpack.c.l.b16 %v9529
      %v9662 = vunpack.c.h.b16 %v9528
      %v9663 = vunpack.c.h.b16 %v9529
      %v9664 = vunpack.c.l.b16 %v9530
      %v9665 = vunpack.c.l.b16 %v9531
      %v9666 = vunpack.c.h.b16 %v9530
      %v9667 = vunpack.c.h.b16 %v9531
      %v9668 = vunpack.c.l.b16 %v9532
      %v9669 = vunpack.c.l.b16 %v9533
      %v9670 = vunpack.c.h.b16 %v9532
      %v9671 = vunpack.c.h.b16 %v9533
      %v9672 = vunpack.c.l.b16 %v9534
      %v9673 = vunpack.c.l.b16 %v9535
      %v9674 = vunpack.c.h.b16 %v9534
      %v9675 = vunpack.c.h.b16 %v9535
      %v9676 = vunpack.c.l.b16 %v9536
      %v9677 = vunpack.c.l.b16 %v9537
      %v9678 = vunpack.c.h.b16 %v9536
      %v9679 = vunpack.c.h.b16 %v9537
      %v9680 = vunpack.c.l.b16 %v9538
      %v9681 = vunpack.c.l.b16 %v9539
      %v9682 = vunpack.c.h.b16 %v9538
      %v9683 = vunpack.c.h.b16 %v9539
      %v9684 = vpack.c.b16 %v9589, %v9588
      %v9685 = vpack.c.b16 %v9591, %v9590
      %v9686 = vpack.c.b16 %v9593, %v9592
      %v9687 = vpack.c.b16 %v9595, %v9594
      %v9688 = vpack.c.b16 %v9597, %v9596
      %v9689 = vpack.c.b16 %v9599, %v9598
      %v9690 = vpack.c.b16 %v9601, %v9600
      %v9691 = vpack.c.b16 %v9603, %v9602
      %v9692 = vpack.c.b16 %v9605, %v9604
      %v9693 = vpack.c.b16 %v9607, %v9606
      %v9694 = vpack.c.b16 %v9609, %v9608
      %v9695 = vpack.c.b16 %v9611, %v9610
      %v9696 = vpack.c.b16 %v9613, %v9612
      %v9697 = vpack.c.b16 %v9615, %v9614
      %v9698 = vpack.c.b16 %v9617, %v9616
      %v9699 = vpack.c.b16 %v9619, %v9618
      %v9700 = vpack.c.b16 %v9621, %v9620
      %v9701 = vpack.c.b16 %v9623, %v9622
      %v9702 = vpack.c.b16 %v9625, %v9624
      %v9703 = vpack.c.b16 %v9627, %v9626
      %v9704 = vpack.c.b16 %v9629, %v9628
      %v9705 = vpack.c.b16 %v9631, %v9630
      %v9706 = vpack.c.b16 %v9633, %v9632
      %v9707 = vpack.c.b16 %v9635, %v9634
      %v9708 = vpack.c.b16 %v9637, %v9636
      %v9709 = vpack.c.b16 %v9639, %v9638
      %v9710 = vpack.c.b16 %v9641, %v9640
      %v9711 = vpack.c.b16 %v9643, %v9642
      %v9712 = vpack.c.b16 %v9645, %v9644
      %v9713 = vpack.c.b16 %v9647, %v9646
      %v9714 = vpack.c.b16 %v9649, %v9648
      %v9715 = vpack.c.b16 %v9651, %v9650
      %v9716 = vpack.c.b16 %v9653, %v9652
      %v9717 = vpack.c.b16 %v9655, %v9654
      %v9718 = vpack.c.b16 %v9657, %v9656
      %v9719 = vpack.c.b16 %v9659, %v9658
      %v9720 = vpack.c.b16 %v9661, %v9660
      %v9721 = vpack.c.b16 %v9663, %v9662
      %v9722 = vpack.c.b16 %v9665, %v9664
      %v9723 = vpack.c.b16 %v9667, %v9666
      %v9724 = vpack.c.b16 %v9669, %v9668
      %v9725 = vpack.c.b16 %v9671, %v9670
      %v9726 = vpack.c.b16 %v9673, %v9672
      %v9727 = vpack.c.b16 %v9675, %v9674
      %v9728 = vpack.c.b16 %v9677, %v9676
      %v9729 = vpack.c.b16 %v9679, %v9678
      %v9730 = vpack.c.b16 %v9681, %v9680
      %v9731 = vpack.c.b16 %v9683, %v9682
      %9780 = vst [vmem:[%s359] sm:$0xff] %v9684
      %9781 = vst [vmem:[%s359 + $0x8] sm:$0xff] %v9685
      %9782 = vst [vmem:[%s359 + $0x10] sm:$0xff] %v9686
      %9783 = vst [vmem:[%s359 + $0x18] sm:$0xff] %v9687
      %9784 = vst [vmem:[%s359 + $0x20] sm:$0xff] %v9688
      %9785 = vst [vmem:[%s359 + $0x28] sm:$0xff] %v9689
      %9786 = vst [vmem:[%s359 + $0x30] sm:$0xff] %v9690
      %9787 = vst [vmem:[%s359 + $0x38] sm:$0xff] %v9691
      %9788 = vst [vmem:[%s359 + $0x40] sm:$0xff] %v9692
      %9789 = vst [vmem:[%s359 + $0x48] sm:$0xff] %v9693
      %9790 = vst [vmem:[%s359 + $0x50] sm:$0xff] %v9694
      %9791 = vst [vmem:[%s359 + $0x58] sm:$0xff] %v9695
      %9792 = vst [vmem:[%s359 + $0x60] sm:$0xff] %v9696
      %9793 = vst [vmem:[%s359 + $0x68] sm:$0xff] %v9697
      %9794 = vst [vmem:[%s359 + $0x70] sm:$0xff] %v9698
      %9795 = vst [vmem:[%s359 + $0x78] sm:$0xff] %v9699
      %9796 = vst [vmem:[%s359 + $0x80] sm:$0xff] %v9700
      %9797 = vst [vmem:[%s359 + $0x88] sm:$0xff] %v9701
      %9798 = vst [vmem:[%s359 + $0x90] sm:$0xff] %v9702
      %9799 = vst [vmem:[%s359 + $0x98] sm:$0xff] %v9703
      %9800 = vst [vmem:[%s359 + $0xa0] sm:$0xff] %v9704
      %9801 = vst [vmem:[%s359 + $0xa8] sm:$0xff] %v9705
      %9802 = vst [vmem:[%s359 + $0xb0] sm:$0xff] %v9706
      %9803 = vst [vmem:[%s359 + $0xb8] sm:$0xff] %v9707
      %9804 = vst [vmem:[%s359 + $0xc0] sm:$0xff] %v9708
      %9805 = vst [vmem:[%s359 + $0xc8] sm:$0xff] %v9709
      %9806 = vst [vmem:[%s359 + $0xd0] sm:$0xff] %v9710
      %9807 = vst [vmem:[%s359 + $0xd8] sm:$0xff] %v9711
      %9808 = vst [vmem:[%s359 + $0xe0] sm:$0xff] %v9712
      %9809 = vst [vmem:[%s359 + $0xe8] sm:$0xff] %v9713
      %9810 = vst [vmem:[%s359 + $0xf0] sm:$0xff] %v9714
      %9811 = vst [vmem:[%s359 + $0xf8] sm:$0xff] %v9715
      %9812 = vst [vmem:[%s359 + $0x100] sm:$0xff] %v9716
      %9813 = vst [vmem:[%s359 + $0x108] sm:$0xff] %v9717
      %9814 = vst [vmem:[%s359 + $0x110] sm:$0xff] %v9718
      %9815 = vst [vmem:[%s359 + $0x118] sm:$0xff] %v9719
      %9816 = vst [vmem:[%s359 + $0x120] sm:$0xff] %v9720
      %9817 = vst [vmem:[%s359 + $0x128] sm:$0xff] %v9721
      %9818 = vst [vmem:[%s359 + $0x130] sm:$0xff] %v9722
      %9819 = vst [vmem:[%s359 + $0x138] sm:$0xff] %v9723
      %9820 = vst [vmem:[%s359 + $0x140] sm:$0xff] %v9724
      %9821 = vst [vmem:[%s359 + $0x148] sm:$0xff] %v9725
      %9822 = vst [vmem:[%s359 + $0x150] sm:$0xff] %v9726
      %9823 = vst [vmem:[%s359 + $0x158] sm:$0xff] %v9727
      %9824 = vst [vmem:[%s359 + $0x160] sm:$0xff] %v9728
      %9825 = vst [vmem:[%s359 + $0x168] sm:$0xff] %v9729
      %9826 = vst [vmem:[%s359 + $0x170] sm:$0xff] %v9730
      %9827 = vst [vmem:[%s359 + $0x178] sm:$0xff] %v9731
      %p9828 = scmp.lt.s32.totalorder %s21, 1
      %s9829 = scalar_select %p9828, %s21, 1
      %s9830 = smul.addr %s9829, 96
      %s9831 = smul.addr %s9830, 4
      %s9832 = scalar_lea.vmem %s10, %s9831
      // Predicated region
      $region61: #{bottleneck_forward.1} parent=59 // pred_check
        %p9833 = pneg %p254
      $region62: #{bottleneck_forward.1} parent=59 // pred_check_branch
        %9835 = sbr.rel (%p9833) target = $region64
      $region63: #{bottleneck_forward.1} parent=59 // pred_region
        _
      $region64: #{bottleneck_forward.1} parent=59 // pred_fallthru
        _
    $region60: #{bottleneck_forward.1} parent=5 // pred_fallthru
      _
    %p9836 = scmp.le.s32.totalorder 2, %s16
    // Predicated region
    $region65: #{bottleneck_forward.1} parent=5 // pred_check
      %p9837 = pneg %p9836
    $region66: #{bottleneck_forward.1} parent=5 // pred_check_branch
      %9839 = sbr.rel (%p9837) target = $region68
    $region67: #{bottleneck_forward.1} parent=5 // pred_region
      %s9840 = ssub.s32 %s16, 2
      // Predicated region
      $region69: #{bottleneck_forward.1} parent=67 // pred_check
        %p9841 = pneg %p260
      $region70: #{bottleneck_forward.1} parent=67 // pred_check_branch
        %9843 = sbr.rel (%p9841) target = $region72
      $region71: #{bottleneck_forward.1} parent=67 // pred_region
        %p9844 = scmp.lt.s32.totalorder %s22, 1
        %s9845 = scalar_select %p9844, %s22, 1
        %s9846 = smul.addr %s9845, 96
        %s9847 = smul.addr %s9846, 4
        %s9848 = scalar_lea.vmem %s10, %s9847
      $region72: #{bottleneck_forward.1} parent=67 // pred_fallthru
        _
    $region68: #{bottleneck_forward.1} parent=5 // pred_fallthru
      _
  $region6: #{bottleneck_forward.1} parent=0 // loop_footer
    %s20 = sadd.s32 1, %s16
  $region7: #{bottleneck_forward.1} parent=0 // loop_footer_branch
    %15 = sbr.rel target = $region3
  $region8: #{bottleneck_forward.1} parent=0 // loop_exit
    _

</llo_original>
